<compile_context>
chip_gen: v7x
topology: tpu7x:2x2x1
jax: 0.10.0
libtpu: 0.0.40
codegen_flags: <defaults>
</compile_context>

<pallas_src>
import math
from functools import partial

import jax
import jax.numpy as jnp
from jax import lax
from jax.experimental import pallas as pl
from jax.experimental.pallas import tpu as pltpu

BN_EPS = 1e-5
LANE = 128
_VMEM = pl.BlockSpec(memory_space=pltpu.MemorySpace.VMEM)


def _round_up(x, m):
    return (x + m - 1) // m * m


# ----------------------------------------------------------------------------
# Pallas kernels
# ----------------------------------------------------------------------------
def _apply_relu(y, relu_cols, tn):
    # relu_cols: 0 = no relu; -1 = relu on all columns; n>0 = relu only on global cols < n
    if relu_cols == 0:
        return y
    if relu_cols < 0:
        return jnp.maximum(y, 0.0)
    col = lax.broadcasted_iota(jnp.int32, y.shape, 1) + pl.program_id(1) * tn
    return jnp.where(col < relu_cols, jnp.maximum(y, 0.0), y)


def _mm_affine_kernel(a_ref, w_ref, s_ref, b_ref, o_ref, *, relu_cols, tn):
    # Single-K-step: no accumulator round trip.  bf16 in -> f32 MXU acc -> bf16 out.
    y = jnp.dot(a_ref[...], w_ref[...], preferred_element_type=jnp.float32)
    y = y * s_ref[...] + b_ref[...]
    y = _apply_relu(y, relu_cols, tn)
    o_ref[...] = y.astype(o_ref.dtype)


def _mm_affine_res_kernel(a_ref, w_ref, s_ref, b_ref, r_ref, o_ref, *, relu_cols, tn):
    y = jnp.dot(a_ref[...], w_ref[...], preferred_element_type=jnp.float32)
    y = y * s_ref[...] + b_ref[...] + r_ref[...].astype(jnp.float32)
    y = _apply_relu(y, relu_cols, tn)
    o_ref[...] = y.astype(o_ref.dtype)


def _mm_affine_acc_kernel(a_ref, w_ref, s_ref, b_ref, o_ref, acc_ref, *, relu_cols, tn):
    # Fallback for K_pad > 2048 (unused in this config).
    k = pl.program_id(2)

    @pl.when(k == 0)
    def _init():
        acc_ref[...] = jnp.zeros_like(acc_ref)

    acc_ref[...] += jnp.dot(a_ref[...], w_ref[...], preferred_element_type=jnp.float32)

    @pl.when(k == pl.num_programs(2) - 1)
    def _fin():
        y = acc_ref[...] * s_ref[...] + b_ref[...]
        y = _apply_relu(y, relu_cols, tn)
        o_ref[...] = y.astype(o_ref.dtype)


def _mm_affine_acc_res_kernel(a_ref, w_ref, s_ref, b_ref, r_ref, o_ref, acc_ref,
                              *, relu_cols, tn):
    k = pl.program_id(2)

    @pl.when(k == 0)
    def _init():
        acc_ref[...] = jnp.zeros_like(acc_ref)

    acc_ref[...] += jnp.dot(a_ref[...], w_ref[...], preferred_element_type=jnp.float32)

    @pl.when(k == pl.num_programs(2) - 1)
    def _fin():
        y = acc_ref[...] * s_ref[...] + b_ref[...] + r_ref[...].astype(jnp.float32)
        y = _apply_relu(y, relu_cols, tn)
        o_ref[...] = y.astype(o_ref.dtype)


def _max_taps_kernel(t_ref, o_ref):
    # t: [taps, TR, 128] -> elementwise max over taps (VPU, lane-dense).
    o_ref[...] = jnp.max(t_ref[...], axis=0)


def _avgpool_fc_kernel(x_ref, w_ref, b_ref, o_ref):
    # x: [N, S, C_pad] (bf16) -> mean over S (f32) -> @ W -> + bias
    pooled = jnp.mean(x_ref[...].astype(jnp.float32), axis=1)
    y = jnp.dot(pooled, w_ref[...], preferred_element_type=jnp.float32)
    o_ref[...] = (y + b_ref[...]).astype(o_ref.dtype)


# ----------------------------------------------------------------------------
# Pallas wrappers
# ----------------------------------------------------------------------------
def mm_affine(a, w_p, s_p, b_p, *, m, n, residual=None, relu_cols=-1):
    """Fused (A @ W) * scale + bias [+ residual] [+ relu], bf16 output.

    a:       [M, K_pad] bf16 (K already zero-padded in im2col)
    w_p:     [K_pad, N_pad] bf16 (pre-padded at init)
    s_p,b_p: [1, N_pad] f32
    residual:[M, n] bf16 or None
    """
    M, K_pad = a.shape
    Kw, N_pad = w_p.shape
    assert K_pad == Kw

    TM = min(512, _round_up(M, 8))
    M_pad = _round_up(M, TM)
    TN = 128 if N_pad == 128 else (256 if N_pad % 256 == 0 else 128)
    if K_pad <= 2048:
        TK = K_pad
    else:
        TK = max(t for t in (2048, 1024, 512, 256, 128) if K_pad % t == 0)
    single_k = (TK == K_pad)

    if M_pad > M:
        a = jnp.pad(a, ((0, M_pad - M), (0, 0)))

    args = [a, w_p, s_p, b_p]
    have_res = residual is not None
    if have_res:
        r = residual.astype(jnp.bfloat16)
        r = jnp.pad(r, ((0, M_pad - r.shape[0]), (0, N_pad - r.shape[1])))
        args.append(r)

    # VMEM budget: double-buffered tiles + scratch + slack, capped for v7x (64 MiB phys).
    tile_bytes = TM * TK * 2 + TK * TN * 2 + 2 * TN * 4 + TM * TN * 2
    if have_res:
        tile_bytes += TM * TN * 2
    scratch_bytes = 0 if single_k else TM * TN * 4
    vmem_limit = int(min(max(2 * tile_bytes + scratch_bytes + (8 << 20), 16 << 20),
                         32 << 20))

    flops = 2 * M_pad * N_pad * K_pad
    bytes_accessed = (M_pad * K_pad * 2 + K_pad * N_pad * 2 + M_pad * N_pad * 2
                      + (M_pad * N_pad * 2 if have_res else 0) + 2 * N_pad * 4)
    out_shape = jax.ShapeDtypeStruct((M_pad, N_pad), jnp.bfloat16)

    if single_k:
        grid = (M_pad // TM, N_pad // TN)
        in_specs = [
            pl.BlockSpec((TM, TK), lambda i, j: (i, 0)),
            pl.BlockSpec((TK, TN), lambda i, j: (0, j)),
            pl.BlockSpec((1, TN), lambda i, j: (0, j)),
            pl.BlockSpec((1, TN), lambda i, j: (0, j)),
        ]
        if have_res:
            in_specs.append(pl.BlockSpec((TM, TN), lambda i, j: (i, j)))
        kernel = partial(_mm_affine_res_kernel if have_res else _mm_affine_kernel,
                         relu_cols=relu_cols, tn=TN)
        out = pl.pallas_call(
            kernel,
            out_shape=out_shape,
            grid=grid,
            in_specs=in_specs,
            out_specs=pl.BlockSpec((TM, TN), lambda i, j: (i, j)),
            compiler_params=pltpu.CompilerParams(
                dimension_semantics=("parallel", "parallel"),
                vmem_limit_bytes=vmem_limit),
            cost_estimate=pl.CostEstimate(flops=flops, transcendentals=0,
                                          bytes_accessed=bytes_accessed),
        )(*args)
    else:
        grid = (M_pad // TM, N_pad // TN, K_pad // TK)
        in_specs = [
            pl.BlockSpec((TM, TK), lambda i, j, k: (i, k)),
            pl.BlockSpec((TK, TN), lambda i, j, k: (k, j)),
            pl.BlockSpec((1, TN), lambda i, j, k: (0, j)),
            pl.BlockSpec((1, TN), lambda i, j, k: (0, j)),
        ]
        if have_res:
            in_specs.append(pl.BlockSpec((TM, TN), lambda i, j, k: (i, j)))
        kernel = partial(_mm_affine_acc_res_kernel if have_res else _mm_affine_acc_kernel,
                         relu_cols=relu_cols, tn=TN)
        out = pl.pallas_call(
            kernel,
            out_shape=out_shape,
            grid=grid,
            in_specs=in_specs,
            out_specs=pl.BlockSpec((TM, TN), lambda i, j, k: (i, j)),
            scratch_shapes=[pltpu.VMEM((TM, TN), jnp.float32)],
            compiler_params=pltpu.CompilerParams(
                dimension_semantics=("parallel", "parallel", "arbitrary"),
                vmem_limit_bytes=vmem_limit),
            cost_estimate=pl.CostEstimate(flops=flops, transcendentals=0,
                                          bytes_accessed=bytes_accessed),
        )(*args)
    return out[:m, :n]


def _im2col(x, ksize, stride, padding, k_pad):
    """x: [N, D, H, W, C] -> patches [N*Do*Ho*Wo, k_pad] (K padding folded into concat)."""
    N, D, H, W, C = x.shape
    Kd, Kh, Kw = ksize
    sd, sh, sw = stride
    pd, ph, pw = padding
    xp = jnp.pad(x, ((0, 0), (pd, pd), (ph, ph), (pw, pw), (0, 0)))
    Do = (D + 2 * pd - Kd) // sd + 1
    Ho = (H + 2 * ph - Kh) // sh + 1
    Wo = (W + 2 * pw - Kw) // sw + 1
    taps = []
    for kd in range(Kd):
        for kh in range(Kh):
            for kw in range(Kw):
                taps.append(
                    xp[:, kd:kd + Do * sd:sd, kh:kh + Ho * sh:sh, kw:kw + Wo * sw:sw, :]
                )
    K = Kd * Kh * Kw * C
    if k_pad > K:
        taps.append(jnp.zeros((N, Do, Ho, Wo, k_pad - K), x.dtype))
    a = jnp.concatenate(taps, axis=-1).reshape(N * Do * Ho * Wo, k_pad)
    return a, (N, Do, Ho, Wo)


def conv3d_bn(x, prep, *, ksize, stride, padding, cout, residual=None, relu_cols=-1):
    """Conv3d (no bias) + folded BN [+ residual] [+ relu], bf16 in/out.

    x: [N, D, H, W, Cin]; prep: {"w":[K_pad,N_pad] bf16, "s","b":[1,N_pad] f32}.
    """
    x = x.astype(jnp.bfloat16)
    k_pad = prep["w"].shape[0]
    a, (N, Do, Ho, Wo) = _im2col(x, ksize, stride, padding, k_pad)
    res2 = None
    if residual is not None:
        res2 = residual.reshape(N * Do * Ho * Wo, residual.shape[-1])
    y = mm_affine(a, prep["w"], prep["s"], prep["b"],
                  m=N * Do * Ho * Wo, n=cout, residual=res2, relu_cols=relu_cols)
    return y.reshape(N, Do, Ho, Wo, cout)


def maxpool3d(x, k=3, s=2, p=1):
    """MaxPool3d(kernel=3, stride=2, padding=1), -inf padding (PyTorch semantics), bf16."""
    N, D, H, W, C = x.shape
    xp = jnp.pad(
        x, ((0, 0), (p, p), (p, p), (p, p), (0, 0)), constant_values=-jnp.inf
    )
    Do = (D + 2 * p - k) // s + 1
    Ho = (H + 2 * p - k) // s + 1
    Wo = (W + 2 * p - k) // s + 1
    taps = []
    for kd in range(k):
        for kh in range(k):
            for kw in range(k):
                taps.append(
                    xp[:, kd:kd + Do * s:s, kh:kh + Ho * s:s, kw:kw + Wo * s:s, :]
                )
    ntaps = k * k * k
    t = jnp.stack(taps, axis=0).reshape(ntaps, -1)
    total = t.shape[1]

    # Lane-dense layout: flatten everything except taps, tile along a 128-lane axis.
    if total > 256 * LANE:
        TR = 256
        total_pad = _round_up(total, TR * LANE)
    else:
        total_pad = _round_up(total, 8 * LANE)
        TR = total_pad // LANE
    R = total_pad // LANE
    t = jnp.pad(t, ((0, 0), (0, total_pad - total)), constant_values=-jnp.inf)
    t = t.reshape(ntaps, R, LANE)

    out = pl.pallas_call(
        _max_taps_kernel,
        out_shape=jax.ShapeDtypeStruct((R, LANE), x.dtype),
        grid=(R // TR,),
        in_specs=[pl.BlockSpec((ntaps, TR, LANE), lambda i: (0, i, 0))],
        out_specs=pl.BlockSpec((TR, LANE), lambda i: (i, 0)),
        compiler_params=pltpu.CompilerParams(dimension_semantics=("parallel",)),
    )(t)
    return out.reshape(-1)[:total].reshape(N, Do, Ho, Wo, C)


def avgpool_fc(x, fc_wp, fc_bp, n_classes):
    """Fused AdaptiveAvgPool3d((1,1,1)) + Linear. x: [N,D,H,W,C] bf16 -> [N, n_classes] f32."""
    N, D, H, W, C = x.shape
    C_pad, NC_pad = fc_wp.shape
    xr = x.reshape(N, D * H * W, C)
    xr = jnp.pad(xr, ((0, 0), (0, 0), (0, C_pad - C)))
    out = pl.pallas_call(
        _avgpool_fc_kernel,
        out_shape=jax.ShapeDtypeStruct((N, NC_pad), jnp.float32),
        in_specs=[_VMEM, _VMEM, _VMEM],
        out_specs=_VMEM,
    )(xr, fc_wp, fc_bp)
    return out[:, :n_classes]


# ----------------------------------------------------------------------------
# Static model configuration (kept OUT of the jitted params pytree)
# ----------------------------------------------------------------------------
BLOCK_INPLANES = [4, 8, 16, 32]   # small block_inplanes, widen_factor = 1.0
LAYERS = [1, 1, 1, 1]             # BasicBlock x 1 per stage (ResNet-10 style)
N_INPUT_CHANNELS = 3
CONV1_T_SIZE = 7
CONV1_T_STRIDE = 1
N_CLASSES = 10
BLOCK_EXPANSION = 1               # BasicBlock


def _make_block_configs():
    cfgs = []
    in_planes = BLOCK_INPLANES[0]
    for stage, (planes, n_blocks) in enumerate(zip(BLOCK_INPLANES, LAYERS)):
        stride = 1 if stage == 0 else 2
        stage_cfg = []
        for b in range(n_blocks):
            s = stride if b == 0 else 1
            has_ds = (s != 1) or (in_planes != planes * BLOCK_EXPANSION)
            stage_cfg.append(
                {"stride": s, "in_planes": in_planes, "planes": planes,
                 "downsample": has_ds}
            )
            in_planes = planes * BLOCK_EXPANSION
        cfgs.append(stage_cfg)
    return cfgs


BLOCK_CONFIGS = _make_block_configs()


# ----------------------------------------------------------------------------
# Parameters (deterministic synthetic weights, pre-padded / pre-cast at init)
# ----------------------------------------------------------------------------
def _kaiming_conv(key, kd, kh, kw, cin, cout):
    fan_out = cout * kd * kh * kw
    std = math.sqrt(2.0 / fan_out)
    return std * jax.random.normal(key, (kd, kh, kw, cin, cout), jnp.float32)


def _bn_fold(c):
    # gamma=1, beta=0, running_mean=0, running_var=1 -> folded scale/bias
    scale = jnp.full((c,), 1.0 / math.sqrt(1.0 + BN_EPS), jnp.float32)
    bias = jnp.zeros((c,), jnp.float32)
    return scale, bias


def _prep_conv(w, bn_scale, bn_bias):
    """Matmul-ready weight: [K_pad, N_pad] bf16 + [1, N_pad] f32 scale/bias (done once)."""
    Kd, Kh, Kw, Cin, Cout = w.shape
    K = Kd * Kh * Kw * Cin
    K_pad = _round_up(K, LANE)
    N_pad = _round_up(Cout, LANE)
    wm = w.reshape(K, Cout).astype(jnp.bfloat16)
    wm = jnp.pad(wm, ((0, K_pad - K), (0, N_pad - Cout)))
    s = jnp.pad(bn_scale.astype(jnp.float32), (0, N_pad - Cout)).reshape(1, N_pad)
    b = jnp.pad(bn_bias.astype(jnp.float32), (0, N_pad - Cout)).reshape(1, N_pad)
    return {"w": wm, "s": s, "b": b}


def init_params(key):
    keys = iter(jax.random.split(key, 128))
    params = {}

    stem_planes = BLOCK_INPLANES[0]
    w1 = _kaiming_conv(next(keys), CONV1_T_SIZE, 7, 7, N_INPUT_CHANNELS, stem_planes)
    s1, b1 = _bn_fold(stem_planes)
    params["stem"] = _prep_conv(w1, s1, b1)

    layers = []
    for stage_cfg in BLOCK_CONFIGS:
        blocks = []
        for cfg in stage_cfg:
            in_planes, planes = cfg["in_planes"], cfg["planes"]
            out_planes = planes * BLOCK_EXPANSION
            blk = {}
            conv1_w = _kaiming_conv(next(keys), 3, 3, 3, in_planes, planes)
            bn1_s, bn1_b = _bn_fold(planes)
            conv2_w = _kaiming_conv(next(keys), 3, 3, 3, planes, planes)
            bn2_s, bn2_b = _bn_fold(planes)
            if cfg["downsample"]:
                # shortcut_type='B': conv1x1x1 + BN.  Pack it into the centre tap of a
                # zero 3x3x3 kernel and concat with conv1 along Cout: one matmul / one
                # read of x serves both branches (exact for stride-s, pad-1 3x3x3).
                ds_w = _kaiming_conv(next(keys), 1, 1, 1, in_planes, out_planes)
                ds_s, ds_b = _bn_fold(out_planes)
                ds_emb = jnp.zeros((3, 3, 3, in_planes, out_planes), jnp.float32)
                ds_emb = ds_emb.at[1, 1, 1].set(ds_w[0, 0, 0])
                w_packed = jnp.concatenate([conv1_w, ds_emb], axis=-1)
                s_packed = jnp.concatenate([bn1_s, ds_s])
                b_packed = jnp.concatenate([bn1_b, ds_b])
                blk["conv1ds"] = _prep_conv(w_packed, s_packed, b_packed)
            else:
                blk["conv1"] = _prep_conv(conv1_w, bn1_s, bn1_b)
            blk["conv2"] = _prep_conv(conv2_w, bn2_s, bn2_b)
            blocks.append(blk)
        layers.append(blocks)
    params["layers"] = layers

    feat = BLOCK_INPLANES[3] * BLOCK_EXPANSION
    bound = 1.0 / math.sqrt(feat)
    fc_w = jax.random.uniform(next(keys), (feat, N_CLASSES), jnp.float32, -bound, bound)
    fc_b = jax.random.uniform(next(keys), (N_CLASSES,), jnp.float32, -bound, bound)
    C_pad = _round_up(feat, LANE)
    NC_pad = _round_up(N_CLASSES, LANE)
    params["fc_w"] = jnp.pad(fc_w, ((0, C_pad - feat), (0, NC_pad - N_CLASSES)))
    params["fc_b"] = jnp.pad(fc_b, (0, NC_pad - N_CLASSES)).reshape(1, NC_pad)
    return params


# ----------------------------------------------------------------------------
# Forward pass
# ----------------------------------------------------------------------------
def basic_block(x, p, cfg):
    s = cfg["stride"]                       # static Python int
    planes = cfg["planes"] * BLOCK_EXPANSION
    if cfg["downsample"]:
        # Packed conv1 + downsample: ReLU only on the conv1 columns (< planes).
        y = conv3d_bn(x, p["conv1ds"], ksize=(3, 3, 3), stride=(s, s, s),
                      padding=(1, 1, 1), cout=2 * planes, relu_cols=planes)
        out1 = y[..., :planes]
        shortcut = y[..., planes:]
    else:
        out1 = conv3d_bn(x, p["conv1"], ksize=(3, 3, 3), stride=(s, s, s),
                         padding=(1, 1, 1), cout=planes, relu_cols=-1)
        shortcut = x
    out = conv3d_bn(out1, p["conv2"], ksize=(3, 3, 3), stride=(1, 1, 1),
                    padding=(1, 1, 1), cout=planes, residual=shortcut, relu_cols=-1)
    return out


def resnet_forward(params, x_ncdhw):
    # NCDHW -> NDHWC
    x = jnp.transpose(x_ncdhw, (0, 2, 3, 4, 1))

    # stem: conv1 + bn1 + relu
    x = conv3d_bn(x, params["stem"],
                  ksize=(CONV1_T_SIZE, 7, 7),
                  stride=(CONV1_T_STRIDE, 2, 2),
                  padding=(CONV1_T_SIZE // 2, 3, 3),
                  cout=BLOCK_INPLANES[0], relu_cols=-1)
    # maxpool
    x = maxpool3d(x, k=3, s=2, p=1)

    # residual stages
    for blocks_p, blocks_c in zip(params["layers"], BLOCK_CONFIGS):
        for p, c in zip(blocks_p, blocks_c):
            x = basic_block(x, p, c)

    # fused global average pool + fc (f32 logits)
    return avgpool_fc(x, params["fc_w"], params["fc_b"], N_CLASSES)


if __name__ == "__main__":
    key = jax.random.PRNGKey(0)
    pkey, xkey = jax.random.split(key)
    params = init_params(pkey)

    # Small input consistent with the Conv3d stem: [N, C, D, H, W]
    x = jax.random.normal(xkey, (2, N_INPUT_CHANNELS, 8, 16, 16), jnp.float32)

    fwd = jax.jit(resnet_forward)
    out = fwd(params, x)
    jax.block_until_ready(out)
    assert out.shape == (2, N_CLASSES), out.shape
    print("KERNEL_OK")
</pallas_src>

<mosaic_0001>
module attributes {stable_mosaic.version = 11 : i64} {
  func.func @_mm_affine_kernel(%arg0: i32, %arg1: i32, %arg2: memref<512x1152xbf16, #tpu.memory_space<vmem>>, %arg3: memref<1152x128xbf16, #tpu.memory_space<vmem>>, %arg4: memref<1x128xf32, #tpu.memory_space<vmem>>, %arg5: memref<1x128xf32, #tpu.memory_space<vmem>>, %arg6: memref<512x128xbf16, #tpu.memory_space<vmem>>) attributes {dimension_semantics = [#tpu.dimension_semantics<parallel>, #tpu.dimension_semantics<parallel>], iteration_bounds = array<i64: 2, 1>, scalar_prefetch = 0 : i64, scratch_operands = 0 : i64, tpu.core_type = #tpu.core_type<tc>, window_params = [{transform_indices = @transform_0, window_bounds = array<i64: 512, 1152>}, {transform_indices = @transform_1, window_bounds = array<i64: 1152, 128>}, {transform_indices = @transform_2, window_bounds = array<i64: 1, 128>}, {transform_indices = @transform_3, window_bounds = array<i64: 1, 128>}, {transform_indices = @transform_4, window_bounds = array<i64: 512, 128>}]} {
    %c0 = arith.constant 0 : index
    %c0_0 = arith.constant 0 : index
    %0 = vector.load %arg2[%c0, %c0_0] : memref<512x1152xbf16, #tpu.memory_space<vmem>>, vector<512x1152xbf16>
    %c0_1 = arith.constant 0 : index
    %c0_2 = arith.constant 0 : index
    %1 = vector.load %arg3[%c0_1, %c0_2] : memref<1152x128xbf16, #tpu.memory_space<vmem>>, vector<1152x128xbf16>
    %cst = arith.constant dense<0.000000e+00> : vector<512x128xf32>
    %2 = tpu.matmul %0, %1, %cst {dimension_numbers = #tpu.dot_dimension_numbers<[1], [0], [0], [1], [0, 0, 1, 1], [], []>} : vector<512x1152xbf16>, vector<1152x128xbf16>, vector<512x128xf32> -> vector<512x128xf32>
    %c0_3 = arith.constant 0 : index
    %c0_4 = arith.constant 0 : index
    %3 = vector.load %arg4[%c0_3, %c0_4] : memref<1x128xf32, #tpu.memory_space<vmem>>, vector<1x128xf32>
    %4 = vector.broadcast %3 : vector<1x128xf32> to vector<512x128xf32>
    %5 = arith.mulf %2, %4 : vector<512x128xf32>
    %c0_5 = arith.constant 0 : index
    %c0_6 = arith.constant 0 : index
    %6 = vector.load %arg5[%c0_5, %c0_6] : memref<1x128xf32, #tpu.memory_space<vmem>>, vector<1x128xf32>
    %7 = vector.broadcast %6 : vector<1x128xf32> to vector<512x128xf32>
    %8 = arith.addf %5, %7 : vector<512x128xf32>
    %cst_7 = arith.constant 0.000000e+00 : f32
    %9 = vector.broadcast %cst_7 : f32 to vector<512x128xf32>
    %10 = arith.maximumf %8, %9 : vector<512x128xf32>
    %11 = arith.truncf %10 : vector<512x128xf32> to vector<512x128xbf16>
    %c0_8 = arith.constant 0 : index
    %c0_9 = arith.constant 0 : index
    %12 = vector.load %arg6[%c0_8, %c0_9] : memref<512x128xbf16, #tpu.memory_space<vmem>>, vector<512x128xbf16>
    tpu.vector_store %arg6[%c0_8, %c0_9], %11 {strides = array<i32>} : memref<512x128xbf16, #tpu.memory_space<vmem>>, vector<512x128xbf16>,
    return
  }
  func.func @transform_0(%arg0: i32, %arg1: i32) -> (i32, i32) {
    %c0_i32 = arith.constant 0 : i32
    %c0_i32_0 = arith.constant 0 : i32
    return %arg0, %c0_i32 : i32, i32
  }
  func.func @transform_1(%arg0: i32, %arg1: i32) -> (i32, i32) {
    %c0_i32 = arith.constant 0 : i32
    %c0_i32_0 = arith.constant 0 : i32
    return %c0_i32, %arg1 : i32, i32
  }
  func.func @transform_2(%arg0: i32, %arg1: i32) -> (i32, i32) {
    %c0_i32 = arith.constant 0 : i32
    %c0_i32_0 = arith.constant 0 : i32
    return %c0_i32, %arg1 : i32, i32
  }
  func.func @transform_3(%arg0: i32, %arg1: i32) -> (i32, i32) {
    %c0_i32 = arith.constant 0 : i32
    %c0_i32_0 = arith.constant 0 : i32
    return %c0_i32, %arg1 : i32, i32
  }
  func.func @transform_4(%arg0: i32, %arg1: i32) -> (i32, i32) {
    %c0_i32 = arith.constant 0 : i32
    return %arg0, %arg1 : i32, i32
  }
}

module attributes {stable_mosaic.version = 11 : i64} {
  func.func @_max_taps_kernel(%arg0: i32, %arg1: memref<27x8x128xbf16, #tpu.memory_space<vmem>>, %arg2: memref<8x128xbf16, #tpu.memory_space<vmem>>) attributes {dimension_semantics = [#tpu.dimension_semantics<parallel>], iteration_bounds = array<i64: 1>, scalar_prefetch = 0 : i64, scratch_operands = 0 : i64, tpu.core_type = #tpu.core_type<tc>, window_params = [{transform_indices = @transform_0, window_bounds = array<i64: 27, 8, 128>}, {transform_indices = @transform_1, window_bounds = array<i64: 8, 128>}]} {
    %c0 = arith.constant 0 : index
    %c0_0 = arith.constant 0 : index
    %c0_1 = arith.constant 0 : index
    %0 = vector.load %arg1[%c0, %c0_0, %c0_1] : memref<27x8x128xbf16, #tpu.memory_space<vmem>>, vector<27x8x128xbf16>
    %cst = arith.constant dense<0xFF80> : vector<8x128xbf16>
    %1 = vector.multi_reduction <maximumf>, %0, %cst [0] : vector<27x8x128xbf16> to vector<8x128xbf16>
    %c0_2 = arith.constant 0 : index
    %c0_3 = arith.constant 0 : index
    %2 = vector.load %arg2[%c0_2, %c0_3] : memref<8x128xbf16, #tpu.memory_space<vmem>>, vector<8x128xbf16>
    tpu.vector_store %arg2[%c0_2, %c0_3], %1 {strides = array<i32>} : memref<8x128xbf16, #tpu.memory_space<vmem>>, vector<8x128xbf16>,
    return
  }
  func.func @transform_0(%arg0: i32) -> (i32, i32, i32) {
    %c0_i32 = arith.constant 0 : i32
    %c0_i32_0 = arith.constant 0 : i32
    %c0_i32_1 = arith.constant 0 : i32
    return %c0_i32, %arg0, %c0_i32_0 : i32, i32, i32
  }
  func.func @transform_1(%arg0: i32) -> (i32, i32) {
    %c0_i32 = arith.constant 0 : i32
    %c0_i32_0 = arith.constant 0 : i32
    return %arg0, %c0_i32 : i32, i32
  }
}

module attributes {stable_mosaic.version = 11 : i64} {
  func.func @_mm_affine_kernel(%arg0: i32, %arg1: i32, %arg2: memref<128x128xbf16, #tpu.memory_space<vmem>>, %arg3: memref<128x128xbf16, #tpu.memory_space<vmem>>, %arg4: memref<1x128xf32, #tpu.memory_space<vmem>>, %arg5: memref<1x128xf32, #tpu.memory_space<vmem>>, %arg6: memref<128x128xbf16, #tpu.memory_space<vmem>>) attributes {dimension_semantics = [#tpu.dimension_semantics<parallel>, #tpu.dimension_semantics<parallel>], iteration_bounds = array<i64: 1, 1>, scalar_prefetch = 0 : i64, scratch_operands = 0 : i64, tpu.core_type = #tpu.core_type<tc>, window_params = [{transform_indices = @transform_0, window_bounds = array<i64: 128, 128>}, {transform_indices = @transform_1, window_bounds = array<i64: 128, 128>}, {transform_indices = @transform_2, window_bounds = array<i64: 1, 128>}, {transform_indices = @transform_3, window_bounds = array<i64: 1, 128>}, {transform_indices = @transform_4, window_bounds = array<i64: 128, 128>}]} {
    %c0 = arith.constant 0 : index
    %c0_0 = arith.constant 0 : index
    %0 = vector.load %arg2[%c0, %c0_0] : memref<128x128xbf16, #tpu.memory_space<vmem>>, vector<128x128xbf16>
    %c0_1 = arith.constant 0 : index
    %c0_2 = arith.constant 0 : index
    %1 = vector.load %arg3[%c0_1, %c0_2] : memref<128x128xbf16, #tpu.memory_space<vmem>>, vector<128x128xbf16>
    %cst = arith.constant dense<0.000000e+00> : vector<128x128xf32>
    %2 = tpu.matmul %0, %1, %cst {dimension_numbers = #tpu.dot_dimension_numbers<[1], [0], [0], [1], [0, 0, 1, 1], [], []>} : vector<128x128xbf16>, vector<128x128xbf16>, vector<128x128xf32> -> vector<128x128xf32>
    %c0_3 = arith.constant 0 : index
    %c0_4 = arith.constant 0 : index
    %3 = vector.load %arg4[%c0_3, %c0_4] : memref<1x128xf32, #tpu.memory_space<vmem>>, vector<1x128xf32>
    %4 = vector.broadcast %3 : vector<1x128xf32> to vector<128x128xf32>
    %5 = arith.mulf %2, %4 : vector<128x128xf32>
    %c0_5 = arith.constant 0 : index
    %c0_6 = arith.constant 0 : index
    %6 = vector.load %arg5[%c0_5, %c0_6] : memref<1x128xf32, #tpu.memory_space<vmem>>, vector<1x128xf32>
    %7 = vector.broadcast %6 : vector<1x128xf32> to vector<128x128xf32>
    %8 = arith.addf %5, %7 : vector<128x128xf32>
    %cst_7 = arith.constant 0.000000e+00 : f32
    %9 = vector.broadcast %cst_7 : f32 to vector<128x128xf32>
    %10 = arith.maximumf %8, %9 : vector<128x128xf32>
    %11 = arith.truncf %10 : vector<128x128xf32> to vector<128x128xbf16>
    %c0_8 = arith.constant 0 : index
    %c0_9 = arith.constant 0 : index
    %12 = vector.load %arg6[%c0_8, %c0_9] : memref<128x128xbf16, #tpu.memory_space<vmem>>, vector<128x128xbf16>
    tpu.vector_store %arg6[%c0_8, %c0_9], %11 {strides = array<i32>} : memref<128x128xbf16, #tpu.memory_space<vmem>>, vector<128x128xbf16>,
    return
  }
  func.func @transform_0(%arg0: i32, %arg1: i32) -> (i32, i32) {
    %c0_i32 = arith.constant 0 : i32
    %c0_i32_0 = arith.constant 0 : i32
    return %arg0, %c0_i32 : i32, i32
  }
  func.func @transform_1(%arg0: i32, %arg1: i32) -> (i32, i32) {
    %c0_i32 = arith.constant 0 : i32
    %c0_i32_0 = arith.constant 0 : i32
    return %c0_i32, %arg1 : i32, i32
  }
  func.func @transform_2(%arg0: i32, %arg1: i32) -> (i32, i32) {
    %c0_i32 = arith.constant 0 : i32
    %c0_i32_0 = arith.constant 0 : i32
    return %c0_i32, %arg1 : i32, i32
  }
  func.func @transform_3(%arg0: i32, %arg1: i32) -> (i32, i32) {
    %c0_i32 = arith.constant 0 : i32
    %c0_i32_0 = arith.constant 0 : i32
    return %c0_i32, %arg1 : i32, i32
  }
  func.func @transform_4(%arg0: i32, %arg1: i32) -> (i32, i32) {
    %c0_i32 = arith.constant 0 : i32
    return %arg0, %arg1 : i32, i32
  }
}

module attributes {stable_mosaic.version = 11 : i64} {
  func.func @_mm_affine_res_kernel(%arg0: i32, %arg1: i32, %arg2: memref<128x128xbf16, #tpu.memory_space<vmem>>, %arg3: memref<128x128xbf16, #tpu.memory_space<vmem>>, %arg4: memref<1x128xf32, #tpu.memory_space<vmem>>, %arg5: memref<1x128xf32, #tpu.memory_space<vmem>>, %arg6: memref<128x128xbf16, #tpu.memory_space<vmem>>, %arg7: memref<128x128xbf16, #tpu.memory_space<vmem>>) attributes {dimension_semantics = [#tpu.dimension_semantics<parallel>, #tpu.dimension_semantics<parallel>], iteration_bounds = array<i64: 1, 1>, scalar_prefetch = 0 : i64, scratch_operands = 0 : i64, tpu.core_type = #tpu.core_type<tc>, window_params = [{transform_indices = @transform_0, window_bounds = array<i64: 128, 128>}, {transform_indices = @transform_1, window_bounds = array<i64: 128, 128>}, {transform_indices = @transform_2, window_bounds = array<i64: 1, 128>}, {transform_indices = @transform_3, window_bounds = array<i64: 1, 128>}, {transform_indices = @transform_4, window_bounds = array<i64: 128, 128>}, {transform_indices = @transform_5, window_bounds = array<i64: 128, 128>}]} {
    %c0 = arith.constant 0 : index
    %c0_0 = arith.constant 0 : index
    %0 = vector.load %arg2[%c0, %c0_0] : memref<128x128xbf16, #tpu.memory_space<vmem>>, vector<128x128xbf16>
    %c0_1 = arith.constant 0 : index
    %c0_2 = arith.constant 0 : index
    %1 = vector.load %arg3[%c0_1, %c0_2] : memref<128x128xbf16, #tpu.memory_space<vmem>>, vector<128x128xbf16>
    %cst = arith.constant dense<0.000000e+00> : vector<128x128xf32>
    %2 = tpu.matmul %0, %1, %cst {dimension_numbers = #tpu.dot_dimension_numbers<[1], [0], [0], [1], [0, 0, 1, 1], [], []>} : vector<128x128xbf16>, vector<128x128xbf16>, vector<128x128xf32> -> vector<128x128xf32>
    %c0_3 = arith.constant 0 : index
    %c0_4 = arith.constant 0 : index
    %3 = vector.load %arg4[%c0_3, %c0_4] : memref<1x128xf32, #tpu.memory_space<vmem>>, vector<1x128xf32>
    %4 = vector.broadcast %3 : vector<1x128xf32> to vector<128x128xf32>
    %5 = arith.mulf %2, %4 : vector<128x128xf32>
    %c0_5 = arith.constant 0 : index
    %c0_6 = arith.constant 0 : index
    %6 = vector.load %arg5[%c0_5, %c0_6] : memref<1x128xf32, #tpu.memory_space<vmem>>, vector<1x128xf32>
    %7 = vector.broadcast %6 : vector<1x128xf32> to vector<128x128xf32>
    %8 = arith.addf %5, %7 : vector<128x128xf32>
    %c0_7 = arith.constant 0 : index
    %c0_8 = arith.constant 0 : index
    %9 = vector.load %arg6[%c0_7, %c0_8] : memref<128x128xbf16, #tpu.memory_space<vmem>>, vector<128x128xbf16>
    %10 = arith.extf %9 : vector<128x128xbf16> to vector<128x128xf32>
    %11 = arith.addf %8, %10 : vector<128x128xf32>
    %cst_9 = arith.constant 0.000000e+00 : f32
    %12 = vector.broadcast %cst_9 : f32 to vector<128x128xf32>
    %13 = arith.maximumf %11, %12 : vector<128x128xf32>
    %14 = arith.truncf %13 : vector<128x128xf32> to vector<128x128xbf16>
    %c0_10 = arith.constant 0 : index
    %c0_11 = arith.constant 0 : index
    %15 = vector.load %arg7[%c0_10, %c0_11] : memref<128x128xbf16, #tpu.memory_space<vmem>>, vector<128x128xbf16>
    tpu.vector_store %arg7[%c0_10, %c0_11], %14 {strides = array<i32>} : memref<128x128xbf16, #tpu.memory_space<vmem>>, vector<128x128xbf16>,
    return
  }
  func.func @transform_0(%arg0: i32, %arg1: i32) -> (i32, i32) {
    %c0_i32 = arith.constant 0 : i32
    %c0_i32_0 = arith.constant 0 : i32
    return %arg0, %c0_i32 : i32, i32
  }
  func.func @transform_1(%arg0: i32, %arg1: i32) -> (i32, i32) {
    %c0_i32 = arith.constant 0 : i32
    %c0_i32_0 = arith.constant 0 : i32
    return %c0_i32, %arg1 : i32, i32
  }
  func.func @transform_2(%arg0: i32, %arg1: i32) -> (i32, i32) {
    %c0_i32 = arith.constant 0 : i32
    %c0_i32_0 = arith.constant 0 : i32
    return %c0_i32, %arg1 : i32, i32
  }
  func.func @transform_3(%arg0: i32, %arg1: i32) -> (i32, i32) {
    %c0_i32 = arith.constant 0 : i32
    %c0_i32_0 = arith.constant 0 : i32
    return %c0_i32, %arg1 : i32, i32
  }
  func.func @transform_4(%arg0: i32, %arg1: i32) -> (i32, i32) {
    %c0_i32 = arith.constant 0 : i32
    return %arg0, %arg1 : i32, i32
  }
  func.func @transform_5(%arg0: i32, %arg1: i32) -> (i32, i32) {
    %c0_i32 = arith.constant 0 : i32
    return %arg0, %arg1 : i32, i32
  }
}

module attributes {stable_mosaic.version = 11 : i64} {
  func.func @_mm_affine_kernel(%arg0: i32, %arg1: i32, %arg2: memref<16x128xbf16, #tpu.memory_space<vmem>>, %arg3: memref<128x128xbf16, #tpu.memory_space<vmem>>, %arg4: memref<1x128xf32, #tpu.memory_space<vmem>>, %arg5: memref<1x128xf32, #tpu.memory_space<vmem>>, %arg6: memref<16x128xbf16, #tpu.memory_space<vmem>>) attributes {dimension_semantics = [#tpu.dimension_semantics<parallel>, #tpu.dimension_semantics<parallel>], iteration_bounds = array<i64: 1, 1>, scalar_prefetch = 0 : i64, scratch_operands = 0 : i64, tpu.core_type = #tpu.core_type<tc>, window_params = [{transform_indices = @transform_0, window_bounds = array<i64: 16, 128>}, {transform_indices = @transform_1, window_bounds = array<i64: 128, 128>}, {transform_indices = @transform_2, window_bounds = array<i64: 1, 128>}, {transform_indices = @transform_3, window_bounds = array<i64: 1, 128>}, {transform_indices = @transform_4, window_bounds = array<i64: 16, 128>}]} {
    %c0 = arith.constant 0 : index
    %c0_0 = arith.constant 0 : index
    %0 = vector.load %arg2[%c0, %c0_0] : memref<16x128xbf16, #tpu.memory_space<vmem>>, vector<16x128xbf16>
    %c0_1 = arith.constant 0 : index
    %c0_2 = arith.constant 0 : index
    %1 = vector.load %arg3[%c0_1, %c0_2] : memref<128x128xbf16, #tpu.memory_space<vmem>>, vector<128x128xbf16>
    %cst = arith.constant dense<0.000000e+00> : vector<16x128xf32>
    %2 = tpu.matmul %0, %1, %cst {dimension_numbers = #tpu.dot_dimension_numbers<[1], [0], [0], [1], [0, 0, 1, 1], [], []>} : vector<16x128xbf16>, vector<128x128xbf16>, vector<16x128xf32> -> vector<16x128xf32>
    %c0_3 = arith.constant 0 : index
    %c0_4 = arith.constant 0 : index
    %3 = vector.load %arg4[%c0_3, %c0_4] : memref<1x128xf32, #tpu.memory_space<vmem>>, vector<1x128xf32>
    %4 = vector.broadcast %3 : vector<1x128xf32> to vector<16x128xf32>
    %5 = arith.mulf %2, %4 : vector<16x128xf32>
    %c0_5 = arith.constant 0 : index
    %c0_6 = arith.constant 0 : index
    %6 = vector.load %arg5[%c0_5, %c0_6] : memref<1x128xf32, #tpu.memory_space<vmem>>, vector<1x128xf32>
    %7 = vector.broadcast %6 : vector<1x128xf32> to vector<16x128xf32>
    %8 = arith.addf %5, %7 : vector<16x128xf32>
    %9 = tpu.iota {dimensions = array<i32: 1>} : vector<16x128xi32>
    %c128_i32 = arith.constant 128 : i32
    %10 = arith.muli %arg1, %c128_i32 : i32
    %11 = vector.broadcast %10 : i32 to vector<16x128xi32>
    %12 = arith.addi %9, %11 : vector<16x128xi32>
    %c8_i32 = arith.constant 8 : i32
    %13 = vector.broadcast %c8_i32 : i32 to vector<16x128xi32>
    %14 = arith.cmpi slt, %12, %13 : vector<16x128xi32>
    %cst_7 = arith.constant 0.000000e+00 : f32
    %15 = vector.broadcast %cst_7 : f32 to vector<16x128xf32>
    %16 = arith.maximumf %8, %15 : vector<16x128xf32>
    %17 = arith.select %14, %16, %8 : vector<16x128xi1>, vector<16x128xf32>
    %18 = arith.truncf %17 : vector<16x128xf32> to vector<16x128xbf16>
    %c0_8 = arith.constant 0 : index
    %c0_9 = arith.constant 0 : index
    %19 = vector.load %arg6[%c0_8, %c0_9] : memref<16x128xbf16, #tpu.memory_space<vmem>>, vector<16x128xbf16>
    tpu.vector_store %arg6[%c0_8, %c0_9], %18 {strides = array<i32>} : memref<16x128xbf16, #tpu.memory_space<vmem>>, vector<16x128xbf16>,
    return
  }
  func.func @transform_0(%arg0: i32, %arg1: i32) -> (i32, i32) {
    %c0_i32 = arith.constant 0 : i32
    %c0_i32_0 = arith.constant 0 : i32
    return %arg0, %c0_i32 : i32, i32
  }
  func.func @transform_1(%arg0: i32, %arg1: i32) -> (i32, i32) {
    %c0_i32 = arith.constant 0 : i32
    %c0_i32_0 = arith.constant 0 : i32
    return %c0_i32, %arg1 : i32, i32
  }
  func.func @transform_2(%arg0: i32, %arg1: i32) -> (i32, i32) {
    %c0_i32 = arith.constant 0 : i32
    %c0_i32_0 = arith.constant 0 : i32
    return %c0_i32, %arg1 : i32, i32
  }
  func.func @transform_3(%arg0: i32, %arg1: i32) -> (i32, i32) {
    %c0_i32 = arith.constant 0 : i32
    %c0_i32_0 = arith.constant 0 : i32
    return %c0_i32, %arg1 : i32, i32
  }
  func.func @transform_4(%arg0: i32, %arg1: i32) -> (i32, i32) {
    %c0_i32 = arith.constant 0 : i32
    return %arg0, %arg1 : i32, i32
  }
}

module attributes {stable_mosaic.version = 11 : i64} {
  func.func @_mm_affine_res_kernel(%arg0: i32, %arg1: i32, %arg2: memref<16x256xbf16, #tpu.memory_space<vmem>>, %arg3: memref<256x128xbf16, #tpu.memory_space<vmem>>, %arg4: memref<1x128xf32, #tpu.memory_space<vmem>>, %arg5: memref<1x128xf32, #tpu.memory_space<vmem>>, %arg6: memref<16x128xbf16, #tpu.memory_space<vmem>>, %arg7: memref<16x128xbf16, #tpu.memory_space<vmem>>) attributes {dimension_semantics = [#tpu.dimension_semantics<parallel>, #tpu.dimension_semantics<parallel>], iteration_bounds = array<i64: 1, 1>, scalar_prefetch = 0 : i64, scratch_operands = 0 : i64, tpu.core_type = #tpu.core_type<tc>, window_params = [{transform_indices = @transform_0, window_bounds = array<i64: 16, 256>}, {transform_indices = @transform_1, window_bounds = array<i64: 256, 128>}, {transform_indices = @transform_2, window_bounds = array<i64: 1, 128>}, {transform_indices = @transform_3, window_bounds = array<i64: 1, 128>}, {transform_indices = @transform_4, window_bounds = array<i64: 16, 128>}, {transform_indices = @transform_5, window_bounds = array<i64: 16, 128>}]} {
    %c0 = arith.constant 0 : index
    %c0_0 = arith.constant 0 : index
    %0 = vector.load %arg2[%c0, %c0_0] : memref<16x256xbf16, #tpu.memory_space<vmem>>, vector<16x256xbf16>
    %c0_1 = arith.constant 0 : index
    %c0_2 = arith.constant 0 : index
    %1 = vector.load %arg3[%c0_1, %c0_2] : memref<256x128xbf16, #tpu.memory_space<vmem>>, vector<256x128xbf16>
    %cst = arith.constant dense<0.000000e+00> : vector<16x128xf32>
    %2 = tpu.matmul %0, %1, %cst {dimension_numbers = #tpu.dot_dimension_numbers<[1], [0], [0], [1], [0, 0, 1, 1], [], []>} : vector<16x256xbf16>, vector<256x128xbf16>, vector<16x128xf32> -> vector<16x128xf32>
    %c0_3 = arith.constant 0 : index
    %c0_4 = arith.constant 0 : index
    %3 = vector.load %arg4[%c0_3, %c0_4] : memref<1x128xf32, #tpu.memory_space<vmem>>, vector<1x128xf32>
    %4 = vector.broadcast %3 : vector<1x128xf32> to vector<16x128xf32>
    %5 = arith.mulf %2, %4 : vector<16x128xf32>
    %c0_5 = arith.constant 0 : index
    %c0_6 = arith.constant 0 : index
    %6 = vector.load %arg5[%c0_5, %c0_6] : memref<1x128xf32, #tpu.memory_space<vmem>>, vector<1x128xf32>
    %7 = vector.broadcast %6 : vector<1x128xf32> to vector<16x128xf32>
    %8 = arith.addf %5, %7 : vector<16x128xf32>
    %c0_7 = arith.constant 0 : index
    %c0_8 = arith.constant 0 : index
    %9 = vector.load %arg6[%c0_7, %c0_8] : memref<16x128xbf16, #tpu.memory_space<vmem>>, vector<16x128xbf16>
    %10 = arith.extf %9 : vector<16x128xbf16> to vector<16x128xf32>
    %11 = arith.addf %8, %10 : vector<16x128xf32>
    %cst_9 = arith.constant 0.000000e+00 : f32
    %12 = vector.broadcast %cst_9 : f32 to vector<16x128xf32>
    %13 = arith.maximumf %11, %12 : vector<16x128xf32>
    %14 = arith.truncf %13 : vector<16x128xf32> to vector<16x128xbf16>
    %c0_10 = arith.constant 0 : index
    %c0_11 = arith.constant 0 : index
    %15 = vector.load %arg7[%c0_10, %c0_11] : memref<16x128xbf16, #tpu.memory_space<vmem>>, vector<16x128xbf16>
    tpu.vector_store %arg7[%c0_10, %c0_11], %14 {strides = array<i32>} : memref<16x128xbf16, #tpu.memory_space<vmem>>, vector<16x128xbf16>,
    return
  }
  func.func @transform_0(%arg0: i32, %arg1: i32) -> (i32, i32) {
    %c0_i32 = arith.constant 0 : i32
    %c0_i32_0 = arith.constant 0 : i32
    return %arg0, %c0_i32 : i32, i32
  }
  func.func @transform_1(%arg0: i32, %arg1: i32) -> (i32, i32) {
    %c0_i32 = arith.constant 0 : i32
    %c0_i32_0 = arith.constant 0 : i32
    return %c0_i32, %arg1 : i32, i32
  }
  func.func @transform_2(%arg0: i32, %arg1: i32) -> (i32, i32) {
    %c0_i32 = arith.constant 0 : i32
    %c0_i32_0 = arith.constant 0 : i32
    return %c0_i32, %arg1 : i32, i32
  }
  func.func @transform_3(%arg0: i32, %arg1: i32) -> (i32, i32) {
    %c0_i32 = arith.constant 0 : i32
    %c0_i32_0 = arith.constant 0 : i32
    return %c0_i32, %arg1 : i32, i32
  }
  func.func @transform_4(%arg0: i32, %arg1: i32) -> (i32, i32) {
    %c0_i32 = arith.constant 0 : i32
    return %arg0, %arg1 : i32, i32
  }
  func.func @transform_5(%arg0: i32, %arg1: i32) -> (i32, i32) {
    %c0_i32 = arith.constant 0 : i32
    return %arg0, %arg1 : i32, i32
  }
}

module attributes {stable_mosaic.version = 11 : i64} {
  func.func @_mm_affine_kernel(%arg0: i32, %arg1: i32, %arg2: memref<8x256xbf16, #tpu.memory_space<vmem>>, %arg3: memref<256x128xbf16, #tpu.memory_space<vmem>>, %arg4: memref<1x128xf32, #tpu.memory_space<vmem>>, %arg5: memref<1x128xf32, #tpu.memory_space<vmem>>, %arg6: memref<8x128xbf16, #tpu.memory_space<vmem>>) attributes {dimension_semantics = [#tpu.dimension_semantics<parallel>, #tpu.dimension_semantics<parallel>], iteration_bounds = array<i64: 1, 1>, scalar_prefetch = 0 : i64, scratch_operands = 0 : i64, tpu.core_type = #tpu.core_type<tc>, window_params = [{transform_indices = @transform_0, window_bounds = array<i64: 8, 256>}, {transform_indices = @transform_1, window_bounds = array<i64: 256, 128>}, {transform_indices = @transform_2, window_bounds = array<i64: 1, 128>}, {transform_indices = @transform_3, window_bounds = array<i64: 1, 128>}, {transform_indices = @transform_4, window_bounds = array<i64: 8, 128>}]} {
    %c0 = arith.constant 0 : index
    %c0_0 = arith.constant 0 : index
    %0 = vector.load %arg2[%c0, %c0_0] : memref<8x256xbf16, #tpu.memory_space<vmem>>, vector<8x256xbf16>
    %c0_1 = arith.constant 0 : index
    %c0_2 = arith.constant 0 : index
    %1 = vector.load %arg3[%c0_1, %c0_2] : memref<256x128xbf16, #tpu.memory_space<vmem>>, vector<256x128xbf16>
    %cst = arith.constant dense<0.000000e+00> : vector<8x128xf32>
    %2 = tpu.matmul %0, %1, %cst {dimension_numbers = #tpu.dot_dimension_numbers<[1], [0], [0], [1], [0, 0, 1, 1], [], []>} : vector<8x256xbf16>, vector<256x128xbf16>, vector<8x128xf32> -> vector<8x128xf32>
    %c0_3 = arith.constant 0 : index
    %c0_4 = arith.constant 0 : index
    %3 = vector.load %arg4[%c0_3, %c0_4] : memref<1x128xf32, #tpu.memory_space<vmem>>, vector<1x128xf32>
    %4 = vector.broadcast %3 : vector<1x128xf32> to vector<8x128xf32>
    %5 = arith.mulf %2, %4 : vector<8x128xf32>
    %c0_5 = arith.constant 0 : index
    %c0_6 = arith.constant 0 : index
    %6 = vector.load %arg5[%c0_5, %c0_6] : memref<1x128xf32, #tpu.memory_space<vmem>>, vector<1x128xf32>
    %7 = vector.broadcast %6 : vector<1x128xf32> to vector<8x128xf32>
    %8 = arith.addf %5, %7 : vector<8x128xf32>
    %9 = tpu.iota {dimensions = array<i32: 1>} : vector<8x128xi32>
    %c128_i32 = arith.constant 128 : i32
    %10 = arith.muli %arg1, %c128_i32 : i32
    %11 = vector.broadcast %10 : i32 to vector<8x128xi32>
    %12 = arith.addi %9, %11 : vector<8x128xi32>
    %c16_i32 = arith.constant 16 : i32
    %13 = vector.broadcast %c16_i32 : i32 to vector<8x128xi32>
    %14 = arith.cmpi slt, %12, %13 : vector<8x128xi32>
    %cst_7 = arith.constant 0.000000e+00 : f32
    %15 = vector.broadcast %cst_7 : f32 to vector<8x128xf32>
    %16 = arith.maximumf %8, %15 : vector<8x128xf32>
    %17 = arith.select %14, %16, %8 : vector<8x128xi1>, vector<8x128xf32>
    %18 = arith.truncf %17 : vector<8x128xf32> to vector<8x128xbf16>
    %c0_8 = arith.constant 0 : index
    %c0_9 = arith.constant 0 : index
    %19 = vector.load %arg6[%c0_8, %c0_9] : memref<8x128xbf16, #tpu.memory_space<vmem>>, vector<8x128xbf16>
    tpu.vector_store %arg6[%c0_8, %c0_9], %18 {strides = array<i32>} : memref<8x128xbf16, #tpu.memory_space<vmem>>, vector<8x128xbf16>,
    return
  }
  func.func @transform_0(%arg0: i32, %arg1: i32) -> (i32, i32) {
    %c0_i32 = arith.constant 0 : i32
    %c0_i32_0 = arith.constant 0 : i32
    return %arg0, %c0_i32 : i32, i32
  }
  func.func @transform_1(%arg0: i32, %arg1: i32) -> (i32, i32) {
    %c0_i32 = arith.constant 0 : i32
    %c0_i32_0 = arith.constant 0 : i32
    return %c0_i32, %arg1 : i32, i32
  }
  func.func @transform_2(%arg0: i32, %arg1: i32) -> (i32, i32) {
    %c0_i32 = arith.constant 0 : i32
    %c0_i32_0 = arith.constant 0 : i32
    return %c0_i32, %arg1 : i32, i32
  }
  func.func @transform_3(%arg0: i32, %arg1: i32) -> (i32, i32) {
    %c0_i32 = arith.constant 0 : i32
    %c0_i32_0 = arith.constant 0 : i32
    return %c0_i32, %arg1 : i32, i32
  }
  func.func @transform_4(%arg0: i32, %arg1: i32) -> (i32, i32) {
    %c0_i32 = arith.constant 0 : i32
    return %arg0, %arg1 : i32, i32
  }
}

module attributes {stable_mosaic.version = 11 : i64} {
  func.func @_mm_affine_res_kernel(%arg0: i32, %arg1: i32, %arg2: memref<8x512xbf16, #tpu.memory_space<vmem>>, %arg3: memref<512x128xbf16, #tpu.memory_space<vmem>>, %arg4: memref<1x128xf32, #tpu.memory_space<vmem>>, %arg5: memref<1x128xf32, #tpu.memory_space<vmem>>, %arg6: memref<8x128xbf16, #tpu.memory_space<vmem>>, %arg7: memref<8x128xbf16, #tpu.memory_space<vmem>>) attributes {dimension_semantics = [#tpu.dimension_semantics<parallel>, #tpu.dimension_semantics<parallel>], iteration_bounds = array<i64: 1, 1>, scalar_prefetch = 0 : i64, scratch_operands = 0 : i64, tpu.core_type = #tpu.core_type<tc>, window_params = [{transform_indices = @transform_0, window_bounds = array<i64: 8, 512>}, {transform_indices = @transform_1, window_bounds = array<i64: 512, 128>}, {transform_indices = @transform_2, window_bounds = array<i64: 1, 128>}, {transform_indices = @transform_3, window_bounds = array<i64: 1, 128>}, {transform_indices = @transform_4, window_bounds = array<i64: 8, 128>}, {transform_indices = @transform_5, window_bounds = array<i64: 8, 128>}]} {
    %c0 = arith.constant 0 : index
    %c0_0 = arith.constant 0 : index
    %0 = vector.load %arg2[%c0, %c0_0] : memref<8x512xbf16, #tpu.memory_space<vmem>>, vector<8x512xbf16>
    %c0_1 = arith.constant 0 : index
    %c0_2 = arith.constant 0 : index
    %1 = vector.load %arg3[%c0_1, %c0_2] : memref<512x128xbf16, #tpu.memory_space<vmem>>, vector<512x128xbf16>
    %cst = arith.constant dense<0.000000e+00> : vector<8x128xf32>
    %2 = tpu.matmul %0, %1, %cst {dimension_numbers = #tpu.dot_dimension_numbers<[1], [0], [0], [1], [0, 0, 1, 1], [], []>} : vector<8x512xbf16>, vector<512x128xbf16>, vector<8x128xf32> -> vector<8x128xf32>
    %c0_3 = arith.constant 0 : index
    %c0_4 = arith.constant 0 : index
    %3 = vector.load %arg4[%c0_3, %c0_4] : memref<1x128xf32, #tpu.memory_space<vmem>>, vector<1x128xf32>
    %4 = vector.broadcast %3 : vector<1x128xf32> to vector<8x128xf32>
    %5 = arith.mulf %2, %4 : vector<8x128xf32>
    %c0_5 = arith.constant 0 : index
    %c0_6 = arith.constant 0 : index
    %6 = vector.load %arg5[%c0_5, %c0_6] : memref<1x128xf32, #tpu.memory_space<vmem>>, vector<1x128xf32>
    %7 = vector.broadcast %6 : vector<1x128xf32> to vector<8x128xf32>
    %8 = arith.addf %5, %7 : vector<8x128xf32>
    %c0_7 = arith.constant 0 : index
    %c0_8 = arith.constant 0 : index
    %9 = vector.load %arg6[%c0_7, %c0_8] : memref<8x128xbf16, #tpu.memory_space<vmem>>, vector<8x128xbf16>
    %10 = arith.extf %9 : vector<8x128xbf16> to vector<8x128xf32>
    %11 = arith.addf %8, %10 : vector<8x128xf32>
    %cst_9 = arith.constant 0.000000e+00 : f32
    %12 = vector.broadcast %cst_9 : f32 to vector<8x128xf32>
    %13 = arith.maximumf %11, %12 : vector<8x128xf32>
    %14 = arith.truncf %13 : vector<8x128xf32> to vector<8x128xbf16>
    %c0_10 = arith.constant 0 : index
    %c0_11 = arith.constant 0 : index
    %15 = vector.load %arg7[%c0_10, %c0_11] : memref<8x128xbf16, #tpu.memory_space<vmem>>, vector<8x128xbf16>
    tpu.vector_store %arg7[%c0_10, %c0_11], %14 {strides = array<i32>} : memref<8x128xbf16, #tpu.memory_space<vmem>>, vector<8x128xbf16>,
    return
  }
  func.func @transform_0(%arg0: i32, %arg1: i32) -> (i32, i32) {
    %c0_i32 = arith.constant 0 : i32
    %c0_i32_0 = arith.constant 0 : i32
    return %arg0, %c0_i32 : i32, i32
  }
  func.func @transform_1(%arg0: i32, %arg1: i32) -> (i32, i32) {
    %c0_i32 = arith.constant 0 : i32
    %c0_i32_0 = arith.constant 0 : i32
    return %c0_i32, %arg1 : i32, i32
  }
  func.func @transform_2(%arg0: i32, %arg1: i32) -> (i32, i32) {
    %c0_i32 = arith.constant 0 : i32
    %c0_i32_0 = arith.constant 0 : i32
    return %c0_i32, %arg1 : i32, i32
  }
  func.func @transform_3(%arg0: i32, %arg1: i32) -> (i32, i32) {
    %c0_i32 = arith.constant 0 : i32
    %c0_i32_0 = arith.constant 0 : i32
    return %c0_i32, %arg1 : i32, i32
  }
  func.func @transform_4(%arg0: i32, %arg1: i32) -> (i32, i32) {
    %c0_i32 = arith.constant 0 : i32
    return %arg0, %arg1 : i32, i32
  }
  func.func @transform_5(%arg0: i32, %arg1: i32) -> (i32, i32) {
    %c0_i32 = arith.constant 0 : i32
    return %arg0, %arg1 : i32, i32
  }
}

module attributes {stable_mosaic.version = 11 : i64} {
  func.func @_mm_affine_kernel(%arg0: i32, %arg1: i32, %arg2: memref<8x512xbf16, #tpu.memory_space<vmem>>, %arg3: memref<512x128xbf16, #tpu.memory_space<vmem>>, %arg4: memref<1x128xf32, #tpu.memory_space<vmem>>, %arg5: memref<1x128xf32, #tpu.memory_space<vmem>>, %arg6: memref<8x128xbf16, #tpu.memory_space<vmem>>) attributes {dimension_semantics = [#tpu.dimension_semantics<parallel>, #tpu.dimension_semantics<parallel>], iteration_bounds = array<i64: 1, 1>, scalar_prefetch = 0 : i64, scratch_operands = 0 : i64, tpu.core_type = #tpu.core_type<tc>, window_params = [{transform_indices = @transform_0, window_bounds = array<i64: 8, 512>}, {transform_indices = @transform_1, window_bounds = array<i64: 512, 128>}, {transform_indices = @transform_2, window_bounds = array<i64: 1, 128>}, {transform_indices = @transform_3, window_bounds = array<i64: 1, 128>}, {transform_indices = @transform_4, window_bounds = array<i64: 8, 128>}]} {
    %c0 = arith.constant 0 : index
    %c0_0 = arith.constant 0 : index
    %0 = vector.load %arg2[%c0, %c0_0] : memref<8x512xbf16, #tpu.memory_space<vmem>>, vector<8x512xbf16>
    %c0_1 = arith.constant 0 : index
    %c0_2 = arith.constant 0 : index
    %1 = vector.load %arg3[%c0_1, %c0_2] : memref<512x128xbf16, #tpu.memory_space<vmem>>, vector<512x128xbf16>
    %cst = arith.constant dense<0.000000e+00> : vector<8x128xf32>
    %2 = tpu.matmul %0, %1, %cst {dimension_numbers = #tpu.dot_dimension_numbers<[1], [0], [0], [1], [0, 0, 1, 1], [], []>} : vector<8x512xbf16>, vector<512x128xbf16>, vector<8x128xf32> -> vector<8x128xf32>
    %c0_3 = arith.constant 0 : index
    %c0_4 = arith.constant 0 : index
    %3 = vector.load %arg4[%c0_3, %c0_4] : memref<1x128xf32, #tpu.memory_space<vmem>>, vector<1x128xf32>
    %4 = vector.broadcast %3 : vector<1x128xf32> to vector<8x128xf32>
    %5 = arith.mulf %2, %4 : vector<8x128xf32>
    %c0_5 = arith.constant 0 : index
    %c0_6 = arith.constant 0 : index
    %6 = vector.load %arg5[%c0_5, %c0_6] : memref<1x128xf32, #tpu.memory_space<vmem>>, vector<1x128xf32>
    %7 = vector.broadcast %6 : vector<1x128xf32> to vector<8x128xf32>
    %8 = arith.addf %5, %7 : vector<8x128xf32>
    %9 = tpu.iota {dimensions = array<i32: 1>} : vector<8x128xi32>
    %c128_i32 = arith.constant 128 : i32
    %10 = arith.muli %arg1, %c128_i32 : i32
    %11 = vector.broadcast %10 : i32 to vector<8x128xi32>
    %12 = arith.addi %9, %11 : vector<8x128xi32>
    %c32_i32 = arith.constant 32 : i32
    %13 = vector.broadcast %c32_i32 : i32 to vector<8x128xi32>
    %14 = arith.cmpi slt, %12, %13 : vector<8x128xi32>
    %cst_7 = arith.constant 0.000000e+00 : f32
    %15 = vector.broadcast %cst_7 : f32 to vector<8x128xf32>
    %16 = arith.maximumf %8, %15 : vector<8x128xf32>
    %17 = arith.select %14, %16, %8 : vector<8x128xi1>, vector<8x128xf32>
    %18 = arith.truncf %17 : vector<8x128xf32> to vector<8x128xbf16>
    %c0_8 = arith.constant 0 : index
    %c0_9 = arith.constant 0 : index
    %19 = vector.load %arg6[%c0_8, %c0_9] : memref<8x128xbf16, #tpu.memory_space<vmem>>, vector<8x128xbf16>
    tpu.vector_store %arg6[%c0_8, %c0_9], %18 {strides = array<i32>} : memref<8x128xbf16, #tpu.memory_space<vmem>>, vector<8x128xbf16>,
    return
  }
  func.func @transform_0(%arg0: i32, %arg1: i32) -> (i32, i32) {
    %c0_i32 = arith.constant 0 : i32
    %c0_i32_0 = arith.constant 0 : i32
    return %arg0, %c0_i32 : i32, i32
  }
  func.func @transform_1(%arg0: i32, %arg1: i32) -> (i32, i32) {
    %c0_i32 = arith.constant 0 : i32
    %c0_i32_0 = arith.constant 0 : i32
    return %c0_i32, %arg1 : i32, i32
  }
  func.func @transform_2(%arg0: i32, %arg1: i32) -> (i32, i32) {
    %c0_i32 = arith.constant 0 : i32
    %c0_i32_0 = arith.constant 0 : i32
    return %c0_i32, %arg1 : i32, i32
  }
  func.func @transform_3(%arg0: i32, %arg1: i32) -> (i32, i32) {
    %c0_i32 = arith.constant 0 : i32
    %c0_i32_0 = arith.constant 0 : i32
    return %c0_i32, %arg1 : i32, i32
  }
  func.func @transform_4(%arg0: i32, %arg1: i32) -> (i32, i32) {
    %c0_i32 = arith.constant 0 : i32
    return %arg0, %arg1 : i32, i32
  }
}

module attributes {stable_mosaic.version = 11 : i64} {
  func.func @_mm_affine_res_kernel(%arg0: i32, %arg1: i32, %arg2: memref<8x896xbf16, #tpu.memory_space<vmem>>, %arg3: memref<896x128xbf16, #tpu.memory_space<vmem>>, %arg4: memref<1x128xf32, #tpu.memory_space<vmem>>, %arg5: memref<1x128xf32, #tpu.memory_space<vmem>>, %arg6: memref<8x128xbf16, #tpu.memory_space<vmem>>, %arg7: memref<8x128xbf16, #tpu.memory_space<vmem>>) attributes {dimension_semantics = [#tpu.dimension_semantics<parallel>, #tpu.dimension_semantics<parallel>], iteration_bounds = array<i64: 1, 1>, scalar_prefetch = 0 : i64, scratch_operands = 0 : i64, tpu.core_type = #tpu.core_type<tc>, window_params = [{transform_indices = @transform_0, window_bounds = array<i64: 8, 896>}, {transform_indices = @transform_1, window_bounds = array<i64: 896, 128>}, {transform_indices = @transform_2, window_bounds = array<i64: 1, 128>}, {transform_indices = @transform_3, window_bounds = array<i64: 1, 128>}, {transform_indices = @transform_4, window_bounds = array<i64: 8, 128>}, {transform_indices = @transform_5, window_bounds = array<i64: 8, 128>}]} {
    %c0 = arith.constant 0 : index
    %c0_0 = arith.constant 0 : index
    %0 = vector.load %arg2[%c0, %c0_0] : memref<8x896xbf16, #tpu.memory_space<vmem>>, vector<8x896xbf16>
    %c0_1 = arith.constant 0 : index
    %c0_2 = arith.constant 0 : index
    %1 = vector.load %arg3[%c0_1, %c0_2] : memref<896x128xbf16, #tpu.memory_space<vmem>>, vector<896x128xbf16>
    %cst = arith.constant dense<0.000000e+00> : vector<8x128xf32>
    %2 = tpu.matmul %0, %1, %cst {dimension_numbers = #tpu.dot_dimension_numbers<[1], [0], [0], [1], [0, 0, 1, 1], [], []>} : vector<8x896xbf16>, vector<896x128xbf16>, vector<8x128xf32> -> vector<8x128xf32>
    %c0_3 = arith.constant 0 : index
    %c0_4 = arith.constant 0 : index
    %3 = vector.load %arg4[%c0_3, %c0_4] : memref<1x128xf32, #tpu.memory_space<vmem>>, vector<1x128xf32>
    %4 = vector.broadcast %3 : vector<1x128xf32> to vector<8x128xf32>
    %5 = arith.mulf %2, %4 : vector<8x128xf32>
    %c0_5 = arith.constant 0 : index
    %c0_6 = arith.constant 0 : index
    %6 = vector.load %arg5[%c0_5, %c0_6] : memref<1x128xf32, #tpu.memory_space<vmem>>, vector<1x128xf32>
    %7 = vector.broadcast %6 : vector<1x128xf32> to vector<8x128xf32>
    %8 = arith.addf %5, %7 : vector<8x128xf32>
    %c0_7 = arith.constant 0 : index
    %c0_8 = arith.constant 0 : index
    %9 = vector.load %arg6[%c0_7, %c0_8] : memref<8x128xbf16, #tpu.memory_space<vmem>>, vector<8x128xbf16>
    %10 = arith.extf %9 : vector<8x128xbf16> to vector<8x128xf32>
    %11 = arith.addf %8, %10 : vector<8x128xf32>
    %cst_9 = arith.constant 0.000000e+00 : f32
    %12 = vector.broadcast %cst_9 : f32 to vector<8x128xf32>
    %13 = arith.maximumf %11, %12 : vector<8x128xf32>
    %14 = arith.truncf %13 : vector<8x128xf32> to vector<8x128xbf16>
    %c0_10 = arith.constant 0 : index
    %c0_11 = arith.constant 0 : index
    %15 = vector.load %arg7[%c0_10, %c0_11] : memref<8x128xbf16, #tpu.memory_space<vmem>>, vector<8x128xbf16>
    tpu.vector_store %arg7[%c0_10, %c0_11], %14 {strides = array<i32>} : memref<8x128xbf16, #tpu.memory_space<vmem>>, vector<8x128xbf16>,
    return
  }
  func.func @transform_0(%arg0: i32, %arg1: i32) -> (i32, i32) {
    %c0_i32 = arith.constant 0 : i32
    %c0_i32_0 = arith.constant 0 : i32
    return %arg0, %c0_i32 : i32, i32
  }
  func.func @transform_1(%arg0: i32, %arg1: i32) -> (i32, i32) {
    %c0_i32 = arith.constant 0 : i32
    %c0_i32_0 = arith.constant 0 : i32
    return %c0_i32, %arg1 : i32, i32
  }
  func.func @transform_2(%arg0: i32, %arg1: i32) -> (i32, i32) {
    %c0_i32 = arith.constant 0 : i32
    %c0_i32_0 = arith.constant 0 : i32
    return %c0_i32, %arg1 : i32, i32
  }
  func.func @transform_3(%arg0: i32, %arg1: i32) -> (i32, i32) {
    %c0_i32 = arith.constant 0 : i32
    %c0_i32_0 = arith.constant 0 : i32
    return %c0_i32, %arg1 : i32, i32
  }
  func.func @transform_4(%arg0: i32, %arg1: i32) -> (i32, i32) {
    %c0_i32 = arith.constant 0 : i32
    return %arg0, %arg1 : i32, i32
  }
  func.func @transform_5(%arg0: i32, %arg1: i32) -> (i32, i32) {
    %c0_i32 = arith.constant 0 : i32
    return %arg0, %arg1 : i32, i32
  }
}

module attributes {stable_mosaic.version = 11 : i64} {
  func.func @_avgpool_fc_kernel(%arg0: memref<2x1x128xbf16, #tpu.memory_space<vmem>>, %arg1: memref<128x128xf32, #tpu.memory_space<vmem>>, %arg2: memref<1x128xf32, #tpu.memory_space<vmem>>, %arg3: memref<2x128xf32, #tpu.memory_space<vmem>>) attributes {dimension_semantics = [], scalar_prefetch = 0 : i64, scratch_operands = 0 : i64, tpu.core_type = #tpu.core_type<tc>} {
    %c0 = arith.constant 0 : index
    %c0_0 = arith.constant 0 : index
    %c0_1 = arith.constant 0 : index
    %0 = vector.load %arg0[%c0, %c0_0, %c0_1] : memref<2x1x128xbf16, #tpu.memory_space<vmem>>, vector<2x1x128xbf16>
    %1 = arith.extf %0 : vector<2x1x128xbf16> to vector<2x1x128xf32>
    %cst = arith.constant dense<0.000000e+00> : vector<2x128xf32>
    %2 = vector.multi_reduction <add>, %1, %cst [1] : vector<2x1x128xf32> to vector<2x128xf32>
    %cst_2 = arith.constant 1.000000e+00 : f32
    %3 = vector.broadcast %cst_2 : f32 to vector<2x128xf32>
    %4 = arith.divf %2, %3 : vector<2x128xf32>
    %c0_3 = arith.constant 0 : index
    %c0_4 = arith.constant 0 : index
    %5 = vector.load %arg1[%c0_3, %c0_4] : memref<128x128xf32, #tpu.memory_space<vmem>>, vector<128x128xf32>
    %cst_5 = arith.constant dense<0.000000e+00> : vector<2x128xf32>
    %6 = tpu.matmul %4, %5, %cst_5 {dimension_numbers = #tpu.dot_dimension_numbers<[1], [0], [0], [1], [0, 0, 1, 1], [], []>} : vector<2x128xf32>, vector<128x128xf32>, vector<2x128xf32> -> vector<2x128xf32>
    %c0_6 = arith.constant 0 : index
    %c0_7 = arith.constant 0 : index
    %7 = vector.load %arg2[%c0_6, %c0_7] : memref<1x128xf32, #tpu.memory_space<vmem>>, vector<1x128xf32>
    %8 = vector.broadcast %7 : vector<1x128xf32> to vector<2x128xf32>
    %9 = arith.addf %6, %8 : vector<2x128xf32>
    %c0_8 = arith.constant 0 : index
    %c0_9 = arith.constant 0 : index
    %10 = vector.load %arg3[%c0_8, %c0_9] : memref<2x128xf32, #tpu.memory_space<vmem>>, vector<2x128xf32>
    tpu.vector_store %arg3[%c0_8, %c0_9], %9 {strides = array<i32>} : memref<2x128xf32, #tpu.memory_space<vmem>>, vector<2x128xf32>,
    return
  }
}

</mosaic_0001>

<llo_original>
// kernel: resnet_forward.12
$region0: #{resnet_forward.12}
  #allocation0 [shape = 'u32[]', space=smem, size = 0x4, offset = 0x4, fixed_abs, tag = 'smem constant byte address 0x4 - core index']
  #allocation1 [shape = 'u32[144,128]{1,0:T(1,128)}', space=vmem, size = 0x12000, scoped, tag = 'internal scratch']
  %s0 = inlined_call_operand.vmem [shape: bf16[27,8,128], index: 0, kind: input, shape index: {}]
  %s1 = inlined_call_operand.vmem [shape: bf16[8,128], index: 1, kind: output, shape index: {}]
  %s2 = sld [smem:[#allocation0]]
  $region14: #{resnet_forward.12} parent=0
    _
  %s4 = ssub.s32 1, %s2
  %s5 = scalar_select 0, %s4, %s2
  // Predicated region
  $region2: #{resnet_forward.12} parent=0 // pred_check
    _
  $region3: #{resnet_forward.12} parent=0 // pred_check_branch
    %7 = sbr.rel (0) target = $region5
  $region4: #{resnet_forward.12} parent=0 // pred_region
    _
  $region5: #{resnet_forward.12} parent=0 // pred_fallthru
    _
  %v9 = vld [vmem:[%s0] sm:$0xf]
  %v10 = vld [vmem:[%s0 + $0x4] sm:$0xf]
  %v11 = vld [vmem:[%s0 + $0x8] sm:$0xf]
  %v12 = vld [vmem:[%s0 + $0xc] sm:$0xf]
  %v13 = vld [vmem:[%s0 + $0x10] sm:$0xf]
  %v14 = vld [vmem:[%s0 + $0x14] sm:$0xf]
  %v15 = vld [vmem:[%s0 + $0x18] sm:$0xf]
  %v16 = vld [vmem:[%s0 + $0x1c] sm:$0xf]
  %v17 = vld [vmem:[%s0 + $0x20] sm:$0xf]
  %v18 = vld [vmem:[%s0 + $0x24] sm:$0xf]
  %v19 = vld [vmem:[%s0 + $0x28] sm:$0xf]
  %v20 = vld [vmem:[%s0 + $0x2c] sm:$0xf]
  %v21 = vld [vmem:[%s0 + $0x30] sm:$0xf]
  %v22 = vld [vmem:[%s0 + $0x34] sm:$0xf]
  %v23 = vld [vmem:[%s0 + $0x38] sm:$0xf]
  %v24 = vld [vmem:[%s0 + $0x3c] sm:$0xf]
  %v25 = vld [vmem:[%s0 + $0x40] sm:$0xf]
  %v26 = vld [vmem:[%s0 + $0x44] sm:$0xf]
  %v27 = vld [vmem:[%s0 + $0x48] sm:$0xf]
  %v28 = vld [vmem:[%s0 + $0x4c] sm:$0xf]
  %v29 = vld [vmem:[%s0 + $0x50] sm:$0xf]
  %v30 = vld [vmem:[%s0 + $0x54] sm:$0xf]
  %v31 = vld [vmem:[%s0 + $0x58] sm:$0xf]
  %v32 = vld [vmem:[%s0 + $0x5c] sm:$0xf]
  %v33 = vld [vmem:[%s0 + $0x60] sm:$0xf]
  %v34 = vld [vmem:[%s0 + $0x64] sm:$0xf]
  %v35 = vld [vmem:[%s0 + $0x68] sm:$0xf]
  %vm36 = vcmask 1043456
  %v39 = vsel %vm36, %v9, 4286644096
  %v42 = vsel %vm36, %v10, 4286644096
  %v45 = vsel %vm36, %v11, 4286644096
  %v48 = vsel %vm36, %v12, 4286644096
  %v51 = vsel %vm36, %v13, 4286644096
  %v53 = vmax.bf16 %v39, %v51
  %v55 = vsel %vm36, %v14, 4286644096
  %v57 = vmax.bf16 %v42, %v55
  %v59 = vsel %vm36, %v15, 4286644096
  %v61 = vmax.bf16 %v45, %v59
  %v63 = vsel %vm36, %v16, 4286644096
  %v65 = vmax.bf16 %v48, %v63
  %v67 = vsel %vm36, %v17, 4286644096
  %v69 = vmax.bf16 %v53, %v67
  %v71 = vsel %vm36, %v18, 4286644096
  %v73 = vmax.bf16 %v57, %v71
  %v75 = vsel %vm36, %v19, 4286644096
  %v77 = vmax.bf16 %v61, %v75
  %v79 = vsel %vm36, %v20, 4286644096
  %v81 = vmax.bf16 %v65, %v79
  %v83 = vsel %vm36, %v21, 4286644096
  %v85 = vmax.bf16 %v69, %v83
  %v87 = vsel %vm36, %v22, 4286644096
  %v89 = vmax.bf16 %v73, %v87
  %v91 = vsel %vm36, %v23, 4286644096
  %v93 = vmax.bf16 %v77, %v91
  %v95 = vsel %vm36, %v24, 4286644096
  %v97 = vmax.bf16 %v81, %v95
  %v99 = vsel %vm36, %v25, 4286644096
  %v101 = vmax.bf16 %v85, %v99
  %v103 = vsel %vm36, %v26, 4286644096
  %v105 = vmax.bf16 %v89, %v103
  %v107 = vsel %vm36, %v27, 4286644096
  %v109 = vmax.bf16 %v93, %v107
  %v111 = vsel %vm36, %v28, 4286644096
  %v113 = vmax.bf16 %v97, %v111
  %v115 = vsel %vm36, %v29, 4286644096
  %v117 = vmax.bf16 %v101, %v115
  %v119 = vsel %vm36, %v30, 4286644096
  %v121 = vmax.bf16 %v105, %v119
  %v123 = vsel %vm36, %v31, 4286644096
  %v125 = vmax.bf16 %v109, %v123
  %v127 = vsel %vm36, %v32, 4286644096
  %v129 = vmax.bf16 %v113, %v127
  %v131 = vsel %vm36, %v33, 4286644096
  %v133 = vmax.bf16 %v117, %v131
  %v135 = vsel %vm36, %v34, 4286644096
  %v137 = vmax.bf16 %v121, %v135
  %v139 = vsel %vm36, %v35, 4286644096
  %v141 = vmax.bf16 %v125, %v139
  %v142 = vmax.bf16 %v133, %v137
  %v143 = vmax.bf16 %v141, %v129
  %v144 = vmax.bf16 %v142, %v143
  %145 = vst [vmem:[%s1] sm:$0xf] %v144
  // Predicated region
  $region6: #{resnet_forward.12} parent=0 // pred_check
    _
  $region7: #{resnet_forward.12} parent=0 // pred_check_branch
    %147 = sbr.rel (0) target = $region9
  $region8: #{resnet_forward.12} parent=0 // pred_region
    _
  $region9: #{resnet_forward.12} parent=0 // pred_fallthru
    _
  // Predicated region
  $region10: #{resnet_forward.12} parent=0 // pred_check
    _
  $region11: #{resnet_forward.12} parent=0 // pred_check_branch
    %149 = sbr.rel (0) target = $region13
  $region12: #{resnet_forward.12} parent=0 // pred_region
    _
  $region13: #{resnet_forward.12} parent=0 // pred_fallthru
    _

// kernel: resnet_forward.11
$region0: #{resnet_forward.11}
  #allocation0 [shape = 'u32[]', space=smem, size = 0x4, offset = 0x4, fixed_abs, tag = 'smem constant byte address 0x4 - core index']
  #allocation1 [shape = 'u32[144,128]{1,0:T(1,128)}', space=vmem, size = 0x12000, scoped, tag = 'internal scratch']
  %s0 = inlined_call_operand.vmem [shape: bf16[1024,1152], index: 0, kind: input, shape index: {}]
  %s1 = inlined_call_operand.vmem [shape: bf16[1152,128], index: 1, kind: input, shape index: {}]
  %s2 = inlined_call_operand.vmem [shape: f32[1,128], index: 2, kind: input, shape index: {}]
  %s3 = inlined_call_operand.vmem [shape: f32[1,128], index: 3, kind: input, shape index: {}]
  %s4 = inlined_call_operand.vmem [shape: bf16[1024,128], index: 4, kind: output, shape index: {}]
  %s5 = sld [smem:[#allocation0]]
  $region49: #{resnet_forward.11} parent=0
    _
  %s7 = ssub.s32 1, %s5
  %s8 = scalar_select 0, %s7, %s5
  loop: start=0, step=1, limit=4
  $region2: #{resnet_forward.11} parent=0 // loop_pre_header
    _
  $region3: #{resnet_forward.11} parent=0 // loop_header
    %s10 = sphi 0, %s14
    %p11 = scmp.ge.s32.totalorder %s10, 4
    %s17 = sphi 0, %s29
    %s18 = sphi 0, %s25
    %s19 = sphi 0, %s17
    %s20 = sphi 0, %s18
    %s21 = sphi 0, %s19
    %s22 = sphi 0, %s20
    %s32 = sphi 0, %s34
    %s35 = sphi 0, %s32
    %s36 = sphi 0, %s35
    %s52 = sphi 0, %s36
    %s58 = sphi 0, %s60
    %s61 = sphi 0, %s58
    %s62 = sphi 0, %s61
    %s78 = sphi 0, %s62
    %s84 = sphi 0, %s86
    %s87 = sphi 0, %s84
    %s88 = sphi 0, %s87
    %s104 = sphi 0, %s88
    %s110 = sphi 0, %s112
    %s113 = sphi 0, %s110
    %s114 = sphi 0, %s113
    %s130 = sphi 0, %s114
    %s138 = sphi 0, %s140
    %s141 = sphi 0, %s138
    %s142 = sphi 0, %s141
    %s158 = sphi 0, %s142
  $region4: #{resnet_forward.11} parent=0 // loop_header_branch
    %13 = sbr.rel (%p11) target = $region8
  $region5: #{resnet_forward.11} parent=0 // loop_body
    %s15 = ssub.s32 %s10, 1
    %s16 = ssub.s32 %s10, 2
    %s23 = sadd.s32 1, %s18
    %p24 = scmp.ge.s32.totalorder %s23, 1
    %s25 = scalar_select %p24, 0, %s23
    %s26 = sadd.s32 1, %s17
    %s27 = scalar_select %p24, %s26, %s17
    %p28 = scmp.ge.s32.totalorder %s27, 2
    %s29 = scalar_select %p28, 0, %s27
    %s30 = ssub.s32 %s17, %s29
    %p31 = scmp.eq.s32.totalorder %s30, 0
    %s33 = sadd.s32 %s32, 1
    %s34 = scalar_select %p31, %s32, %s33
    %p37 = pneg %p31
    %p38 = scmp.eq.s32.totalorder %s10, 1
    %p39 = por %p37, %p38
    %p40 = scmp.ne.s32.totalorder %s32, %s35
    %p41 = scmp.eq.s32.totalorder %s10, 0
    %p42 = por %p40, %p41
    %p43 = scmp.ne.s32.totalorder %s32, %s35
    %p44 = scmp.eq.s32.totalorder %s15, 1
    %p45 = por %p43, %p44
    %p46 = scmp.ne.s32.totalorder %s35, %s36
    %p47 = scmp.eq.s32.totalorder %s15, 0
    %p48 = por %p46, %p47
    %p49 = scmp.ne.s32.totalorder %s35, %s36
    %p50 = scmp.eq.s32.totalorder %s16, 1
    %p51 = por %p49, %p50
    %p53 = scmp.ne.s32.totalorder %s36, %s52
    %p54 = scmp.eq.s32.totalorder %s16, 0
    %p55 = por %p53, %p54
    %s56 = ssub.s32 %s18, %s25
    %p57 = scmp.eq.s32.totalorder %s56, 0
    %s59 = sadd.s32 %s58, 1
    %s60 = scalar_select %p57, %s58, %s59
    %p63 = pneg %p57
    %p64 = scmp.eq.s32.totalorder %s10, 1
    %p65 = por %p63, %p64
    %p66 = scmp.ne.s32.totalorder %s58, %s61
    %p67 = scmp.eq.s32.totalorder %s10, 0
    %p68 = por %p66, %p67
    %p69 = scmp.ne.s32.totalorder %s58, %s61
    %p70 = scmp.eq.s32.totalorder %s15, 1
    %p71 = por %p69, %p70
    %p72 = scmp.ne.s32.totalorder %s61, %s62
    %p73 = scmp.eq.s32.totalorder %s15, 0
    %p74 = por %p72, %p73
    %p75 = scmp.ne.s32.totalorder %s61, %s62
    %p76 = scmp.eq.s32.totalorder %s16, 1
    %p77 = por %p75, %p76
    %p79 = scmp.ne.s32.totalorder %s62, %s78
    %p80 = scmp.eq.s32.totalorder %s16, 0
    %p81 = por %p79, %p80
    %s82 = ssub.s32 %s18, %s25
    %p83 = scmp.eq.s32.totalorder %s82, 0
    %s85 = sadd.s32 %s84, 1
    %s86 = scalar_select %p83, %s84, %s85
    %p89 = pneg %p83
    %p90 = scmp.eq.s32.totalorder %s10, 1
    %p91 = por %p89, %p90
    %p92 = scmp.ne.s32.totalorder %s84, %s87
    %p93 = scmp.eq.s32.totalorder %s10, 0
    %p94 = por %p92, %p93
    %p95 = scmp.ne.s32.totalorder %s84, %s87
    %p96 = scmp.eq.s32.totalorder %s15, 1
    %p97 = por %p95, %p96
    %p98 = scmp.ne.s32.totalorder %s87, %s88
    %p99 = scmp.eq.s32.totalorder %s15, 0
    %p100 = por %p98, %p99
    %p101 = scmp.ne.s32.totalorder %s87, %s88
    %p102 = scmp.eq.s32.totalorder %s16, 1
    %p103 = por %p101, %p102
    %p105 = scmp.ne.s32.totalorder %s88, %s104
    %p106 = scmp.eq.s32.totalorder %s16, 0
    %p107 = por %p105, %p106
    %s108 = ssub.s32 %s18, %s25
    %p109 = scmp.eq.s32.totalorder %s108, 0
    %s111 = sadd.s32 %s110, 1
    %s112 = scalar_select %p109, %s110, %s111
    %p115 = pneg %p109
    %p116 = scmp.eq.s32.totalorder %s10, 1
    %p117 = por %p115, %p116
    %p118 = scmp.ne.s32.totalorder %s110, %s113
    %p119 = scmp.eq.s32.totalorder %s10, 0
    %p120 = por %p118, %p119
    %p121 = scmp.ne.s32.totalorder %s110, %s113
    %p122 = scmp.eq.s32.totalorder %s15, 1
    %p123 = por %p121, %p122
    %p124 = scmp.ne.s32.totalorder %s113, %s114
    %p125 = scmp.eq.s32.totalorder %s15, 0
    %p126 = por %p124, %p125
    %p127 = scmp.ne.s32.totalorder %s113, %s114
    %p128 = scmp.eq.s32.totalorder %s16, 1
    %p129 = por %p127, %p128
    %p131 = scmp.ne.s32.totalorder %s114, %s130
    %p132 = scmp.eq.s32.totalorder %s16, 0
    %p133 = por %p131, %p132
    %s134 = ssub.s32 %s17, %s29
    %s135 = ssub.s32 %s18, %s25
    %s136 = sor.u32 %s134, %s135
    %p137 = scmp.eq.s32.totalorder %s136, 0
    %s139 = sadd.s32 %s138, 1
    %s140 = scalar_select %p137, %s138, %s139
    %p143 = pneg %p137
    %p144 = scmp.eq.s32.totalorder %s10, 1
    %p145 = por %p143, %p144
    %p146 = scmp.ne.s32.totalorder %s138, %s141
    %p147 = scmp.eq.s32.totalorder %s10, 0
    %p148 = por %p146, %p147
    %p149 = scmp.ne.s32.totalorder %s138, %s141
    %p150 = scmp.eq.s32.totalorder %s15, 1
    %p151 = por %p149, %p150
    %p152 = scmp.ne.s32.totalorder %s141, %s142
    %p153 = scmp.eq.s32.totalorder %s15, 0
    %p154 = por %p152, %p153
    %p155 = scmp.ne.s32.totalorder %s141, %s142
    %p156 = scmp.eq.s32.totalorder %s16, 1
    %p157 = por %p155, %p156
    %p159 = scmp.ne.s32.totalorder %s142, %s158
    %p160 = scmp.eq.s32.totalorder %s16, 0
    %p161 = por %p159, %p160
    %p162 = scmp.le.s32.totalorder 1, %s10
    %p163 = scmp.lt.s32.totalorder %s10, 3
    %p164 = pnand %p162, %p163
    %p165 = pneg %p164
    // Predicated region
    $region9: #{resnet_forward.11} parent=5 // pred_check
      _
    $region10: #{resnet_forward.11} parent=5 // pred_check_branch
      %167 = sbr.rel (%p164) target = $region12
    $region11: #{resnet_forward.11} parent=5 // pred_region
      %s168 = ssub.s32 %s10, 1
      // Predicated region
      $region13: #{resnet_forward.11} parent=11 // pred_check
        %p169 = pneg %p74
      $region14: #{resnet_forward.11} parent=11 // pred_check_branch
        %171 = sbr.rel (%p169) target = $region16
      $region15: #{resnet_forward.11} parent=11 // pred_region
        %p172 = scmp.lt.s32.totalorder %s20, 0
        %s173 = scalar_select %p172, %s20, 0
        %s174 = smul.addr %s173, 4
        %s175 = scalar_lea.vmem %s1, %s174
      $region16: #{resnet_forward.11} parent=11 // pred_fallthru
        _
      // Predicated region
      $region17: #{resnet_forward.11} parent=11 // pred_check
        %p176 = pneg %p100
      $region18: #{resnet_forward.11} parent=11 // pred_check_branch
        %178 = sbr.rel (%p176) target = $region20
      $region19: #{resnet_forward.11} parent=11 // pred_region
        %p179 = scmp.lt.s32.totalorder %s20, 0
        %s180 = scalar_select %p179, %s20, 0
        %s181 = scalar_lea.vmem %s2, %s180
      $region20: #{resnet_forward.11} parent=11 // pred_fallthru
        _
      // Predicated region
      $region21: #{resnet_forward.11} parent=11 // pred_check
        %p182 = pneg %p126
      $region22: #{resnet_forward.11} parent=11 // pred_check_branch
        %184 = sbr.rel (%p182) target = $region24
      $region23: #{resnet_forward.11} parent=11 // pred_region
        %p185 = scmp.lt.s32.totalorder %s20, 0
        %s186 = scalar_select %p185, %s20, 0
        %s187 = scalar_lea.vmem %s3, %s186
      $region24: #{resnet_forward.11} parent=11 // pred_fallthru
        _
    $region12: #{resnet_forward.11} parent=5 // pred_fallthru
      _
    %p188 = scmp.lt.s32.totalorder %s10, 2
    // Predicated region
    $region25: #{resnet_forward.11} parent=5 // pred_check
      %p189 = pneg %p188
    $region26: #{resnet_forward.11} parent=5 // pred_check_branch
      %191 = sbr.rel (%p189) target = $region28
    $region27: #{resnet_forward.11} parent=5 // pred_region
      // Predicated region
      $region29: #{resnet_forward.11} parent=27 // pred_check
        %p192 = pneg %p42
      $region30: #{resnet_forward.11} parent=27 // pred_check_branch
        %194 = sbr.rel (%p192) target = $region32
      $region31: #{resnet_forward.11} parent=27 // pred_region
        %s195 = smul.u32 64, %s17
        %p196 = scmp.lt.s32.totalorder %s195, 127
        %s197 = scalar_select %p196, %s195, 127
        %s198 = smul.addr %s197, 9
        %s199 = smul.addr %s198, 4
        %s200 = scalar_lea.vmem %s0, %s199
        %s201 = smul.u32 64, %s17
      $region32: #{resnet_forward.11} parent=27 // pred_fallthru
        _
    $region28: #{resnet_forward.11} parent=5 // pred_fallthru
      _
    %p202 = scmp.le.s32.totalorder 1, %s10
    %p203 = scmp.lt.s32.totalorder %s10, 3
    %p204 = pnand %p202, %p203
    %p205 = pneg %p204
    // Predicated region
    $region33: #{resnet_forward.11} parent=5 // pred_check
      _
    $region34: #{resnet_forward.11} parent=5 // pred_check_branch
      %207 = sbr.rel (%p204) target = $region36
    $region35: #{resnet_forward.11} parent=5 // pred_region
      %s208 = ssub.s32 %s10, 1
      %s209 = smul.u32 64, %s19
      %p210 = scmp.lt.s32.totalorder %s209, 127
      %s211 = scalar_select %p210, %s209, 127
      %s212 = smul.addr %s211, 9
      %s213 = smul.addr %s212, 4
      %s214 = scalar_lea.vmem %s0, %s213
      %p215 = pneg %p48
      %p216 = pneg %p45
      %p217 = scmp.lt.s32.totalorder %s20, 0
      %s218 = scalar_select %p217, %s20, 0
      %s219 = smul.addr %s218, 4
      %s220 = scalar_lea.vmem %s1, %s219
      %p221 = pneg %p74
      %p222 = pneg %p71
      %p223 = scmp.lt.s32.totalorder %s20, 0
      %s224 = scalar_select %p223, %s20, 0
      %s225 = scalar_lea.vmem %s2, %s224
      %p226 = pneg %p100
      %p227 = pneg %p97
      %p228 = scmp.lt.s32.totalorder %s20, 0
      %s229 = scalar_select %p228, %s20, 0
      %s230 = scalar_lea.vmem %s3, %s229
      %p231 = pneg %p126
      %p232 = pneg %p123
      %p233 = pneg %p154
      %p234 = pneg %p151
      %s235 = smul.u32 64, %s19
      %p236 = scmp.lt.s32.totalorder %s235, 127
      %s237 = scalar_select %p236, %s235, 127
      %p238 = scmp.lt.s32.totalorder %s20, 0
      %s239 = scalar_select %p238, %s20, 0
      %s240 = sadd.s32 %s239, %s237
      %s241 = smul.addr %s240, 4
      %s242 = scalar_lea.vmem %s4, %s241
      %s243 = smul.u32 64, %s19
      %p244 = scmp.lt.s32.totalorder %s243, 127
      %s245 = scalar_select %p244, %s243, 127
      %s246 = smul.addr %s245, 9
      %s247 = smul.addr %s246, 4
      %s248 = scalar_lea.vmem %s0, %s247
      %s249 = smul.u32 64, %s19
      %p250 = scmp.lt.s32.totalorder %s20, 0
      %s251 = scalar_select %p250, %s20, 0
      %s252 = smul.addr %s251, 4
      %s253 = scalar_lea.vmem %s1, %s252
      %p254 = scmp.lt.s32.totalorder %s20, 0
      %s255 = scalar_select %p254, %s20, 0
      %s256 = scalar_lea.vmem %s2, %s255
      %p257 = scmp.lt.s32.totalorder %s20, 0
      %s258 = scalar_select %p257, %s20, 0
      %s259 = scalar_lea.vmem %s3, %s258
      %s260 = smul.u32 64, %s19
      %p261 = scmp.lt.s32.totalorder %s260, 127
      %s262 = scalar_select %p261, %s260, 127
      %p263 = scmp.lt.s32.totalorder %s20, 0
      %s264 = scalar_select %p263, %s20, 0
      %s265 = sadd.s32 %s264, %s262
      %s266 = smul.addr %s265, 4
      %s267 = scalar_lea.vmem %s4, %s266
      %s268 = smul.u32 64, %s19
      %v270 = vld [vmem:[%s248] sm:$0xff]
      %v271 = vld [vmem:[%s248 + $0x8] sm:$0xff]
      %v272 = vld [vmem:[%s248 + $0x10] sm:$0xff]
      %v273 = vld [vmem:[%s248 + $0x18] sm:$0xff]
      %v274 = vld [vmem:[%s248 + $0x20] sm:$0xf]
      %v275 = vld [vmem:[%s248 + $0x24] sm:$0xff]
      %v276 = vld [vmem:[%s248 + $0x2c] sm:$0xff]
      %v277 = vld [vmem:[%s248 + $0x34] sm:$0xff]
      %v278 = vld [vmem:[%s248 + $0x3c] sm:$0xff]
      %v279 = vld [vmem:[%s248 + $0x44] sm:$0xf]
      %v280 = vld [vmem:[%s248 + $0x48] sm:$0xff]
      %v281 = vld [vmem:[%s248 + $0x50] sm:$0xff]
      %v282 = vld [vmem:[%s248 + $0x58] sm:$0xff]
      %v283 = vld [vmem:[%s248 + $0x60] sm:$0xff]
      %v284 = vld [vmem:[%s248 + $0x68] sm:$0xf]
      %v285 = vld [vmem:[%s248 + $0x6c] sm:$0xff]
      %v286 = vld [vmem:[%s248 + $0x74] sm:$0xff]
      %v287 = vld [vmem:[%s248 + $0x7c] sm:$0xff]
      %v288 = vld [vmem:[%s248 + $0x84] sm:$0xff]
      %v289 = vld [vmem:[%s248 + $0x8c] sm:$0xf]
      %v290 = vld [vmem:[%s248 + $0x90] sm:$0xff]
      %v291 = vld [vmem:[%s248 + $0x98] sm:$0xff]
      %v292 = vld [vmem:[%s248 + $0xa0] sm:$0xff]
      %v293 = vld [vmem:[%s248 + $0xa8] sm:$0xff]
      %v294 = vld [vmem:[%s248 + $0xb0] sm:$0xf]
      %v295 = vld [vmem:[%s248 + $0xb4] sm:$0xff]
      %v296 = vld [vmem:[%s248 + $0xbc] sm:$0xff]
      %v297 = vld [vmem:[%s248 + $0xc4] sm:$0xff]
      %v298 = vld [vmem:[%s248 + $0xcc] sm:$0xff]
      %v299 = vld [vmem:[%s248 + $0xd4] sm:$0xf]
      %v300 = vld [vmem:[%s248 + $0xd8] sm:$0xff]
      %v301 = vld [vmem:[%s248 + $0xe0] sm:$0xff]
      %v302 = vld [vmem:[%s248 + $0xe8] sm:$0xff]
      %v303 = vld [vmem:[%s248 + $0xf0] sm:$0xff]
      %v304 = vld [vmem:[%s248 + $0xf8] sm:$0xf]
      %v305 = vld [vmem:[%s248 + $0xfc] sm:$0xff]
      %v306 = vld [vmem:[%s248 + $0x104] sm:$0xff]
      %v307 = vld [vmem:[%s248 + $0x10c] sm:$0xff]
      %v308 = vld [vmem:[%s248 + $0x114] sm:$0xff]
      %v309 = vld [vmem:[%s248 + $0x11c] sm:$0xf]
      %v310 = vld [vmem:[%s248 + $0x120] sm:$0xff]
      %v311 = vld [vmem:[%s248 + $0x128] sm:$0xff]
      %v312 = vld [vmem:[%s248 + $0x130] sm:$0xff]
      %v313 = vld [vmem:[%s248 + $0x138] sm:$0xff]
      %v314 = vld [vmem:[%s248 + $0x140] sm:$0xf]
      %v315 = vld [vmem:[%s248 + $0x144] sm:$0xff]
      %v316 = vld [vmem:[%s248 + $0x14c] sm:$0xff]
      %v317 = vld [vmem:[%s248 + $0x154] sm:$0xff]
      %v318 = vld [vmem:[%s248 + $0x15c] sm:$0xff]
      %v319 = vld [vmem:[%s248 + $0x164] sm:$0xf]
      %v320 = vld [vmem:[%s248 + $0x168] sm:$0xff]
      %v321 = vld [vmem:[%s248 + $0x170] sm:$0xff]
      %v322 = vld [vmem:[%s248 + $0x178] sm:$0xff]
      %v323 = vld [vmem:[%s248 + $0x180] sm:$0xff]
      %v324 = vld [vmem:[%s248 + $0x188] sm:$0xf]
      %v325 = vld [vmem:[%s248 + $0x18c] sm:$0xff]
      %v326 = vld [vmem:[%s248 + $0x194] sm:$0xff]
      %v327 = vld [vmem:[%s248 + $0x19c] sm:$0xff]
      %v328 = vld [vmem:[%s248 + $0x1a4] sm:$0xff]
      %v329 = vld [vmem:[%s248 + $0x1ac] sm:$0xf]
      %v330 = vld [vmem:[%s248 + $0x1b0] sm:$0xff]
      %v331 = vld [vmem:[%s248 + $0x1b8] sm:$0xff]
      %v332 = vld [vmem:[%s248 + $0x1c0] sm:$0xff]
      %v333 = vld [vmem:[%s248 + $0x1c8] sm:$0xff]
      %v334 = vld [vmem:[%s248 + $0x1d0] sm:$0xf]
      %v335 = vld [vmem:[%s248 + $0x1d4] sm:$0xff]
      %v336 = vld [vmem:[%s248 + $0x1dc] sm:$0xff]
      %v337 = vld [vmem:[%s248 + $0x1e4] sm:$0xff]
      %v338 = vld [vmem:[%s248 + $0x1ec] sm:$0xff]
      %v339 = vld [vmem:[%s248 + $0x1f4] sm:$0xf]
      %v340 = vld [vmem:[%s248 + $0x1f8] sm:$0xff]
      %v341 = vld [vmem:[%s248 + $0x200] sm:$0xff]
      %v342 = vld [vmem:[%s248 + $0x208] sm:$0xff]
      %v343 = vld [vmem:[%s248 + $0x210] sm:$0xff]
      %v344 = vld [vmem:[%s248 + $0x218] sm:$0xf]
      %v345 = vld [vmem:[%s248 + $0x21c] sm:$0xff]
      %v346 = vld [vmem:[%s248 + $0x224] sm:$0xff]
      %v347 = vld [vmem:[%s248 + $0x22c] sm:$0xff]
      %v348 = vld [vmem:[%s248 + $0x234] sm:$0xff]
      %v349 = vld [vmem:[%s248 + $0x23c] sm:$0xf]
      %v350 = vld [vmem:[%s248 + $0x240] sm:$0xff]
      %v351 = vld [vmem:[%s248 + $0x248] sm:$0xff]
      %v352 = vld [vmem:[%s248 + $0x250] sm:$0xff]
      %v353 = vld [vmem:[%s248 + $0x258] sm:$0xff]
      %v354 = vld [vmem:[%s248 + $0x260] sm:$0xf]
      %v355 = vld [vmem:[%s248 + $0x264] sm:$0xff]
      %v356 = vld [vmem:[%s248 + $0x26c] sm:$0xff]
      %v357 = vld [vmem:[%s248 + $0x274] sm:$0xff]
      %v358 = vld [vmem:[%s248 + $0x27c] sm:$0xff]
      %v359 = vld [vmem:[%s248 + $0x284] sm:$0xf]
      %v360 = vld [vmem:[%s248 + $0x288] sm:$0xff]
      %v361 = vld [vmem:[%s248 + $0x290] sm:$0xff]
      %v362 = vld [vmem:[%s248 + $0x298] sm:$0xff]
      %v363 = vld [vmem:[%s248 + $0x2a0] sm:$0xff]
      %v364 = vld [vmem:[%s248 + $0x2a8] sm:$0xf]
      %v365 = vld [vmem:[%s248 + $0x2ac] sm:$0xff]
      %v366 = vld [vmem:[%s248 + $0x2b4] sm:$0xff]
      %v367 = vld [vmem:[%s248 + $0x2bc] sm:$0xff]
      %v368 = vld [vmem:[%s248 + $0x2c4] sm:$0xff]
      %v369 = vld [vmem:[%s248 + $0x2cc] sm:$0xf]
      %v370 = vld [vmem:[%s248 + $0x2d0] sm:$0xff]
      %v371 = vld [vmem:[%s248 + $0x2d8] sm:$0xff]
      %v372 = vld [vmem:[%s248 + $0x2e0] sm:$0xff]
      %v373 = vld [vmem:[%s248 + $0x2e8] sm:$0xff]
      %v374 = vld [vmem:[%s248 + $0x2f0] sm:$0xf]
      %v375 = vld [vmem:[%s248 + $0x2f4] sm:$0xff]
      %v376 = vld [vmem:[%s248 + $0x2fc] sm:$0xff]
      %v377 = vld [vmem:[%s248 + $0x304] sm:$0xff]
      %v378 = vld [vmem:[%s248 + $0x30c] sm:$0xff]
      %v379 = vld [vmem:[%s248 + $0x314] sm:$0xf]
      %v380 = vld [vmem:[%s248 + $0x318] sm:$0xff]
      %v381 = vld [vmem:[%s248 + $0x320] sm:$0xff]
      %v382 = vld [vmem:[%s248 + $0x328] sm:$0xff]
      %v383 = vld [vmem:[%s248 + $0x330] sm:$0xff]
      %v384 = vld [vmem:[%s248 + $0x338] sm:$0xf]
      %v385 = vld [vmem:[%s248 + $0x33c] sm:$0xff]
      %v386 = vld [vmem:[%s248 + $0x344] sm:$0xff]
      %v387 = vld [vmem:[%s248 + $0x34c] sm:$0xff]
      %v388 = vld [vmem:[%s248 + $0x354] sm:$0xff]
      %v389 = vld [vmem:[%s248 + $0x35c] sm:$0xf]
      %v390 = vld [vmem:[%s248 + $0x360] sm:$0xff]
      %v391 = vld [vmem:[%s248 + $0x368] sm:$0xff]
      %v392 = vld [vmem:[%s248 + $0x370] sm:$0xff]
      %v393 = vld [vmem:[%s248 + $0x378] sm:$0xff]
      %v394 = vld [vmem:[%s248 + $0x380] sm:$0xf]
      %v395 = vld [vmem:[%s248 + $0x384] sm:$0xff]
      %v396 = vld [vmem:[%s248 + $0x38c] sm:$0xff]
      %v397 = vld [vmem:[%s248 + $0x394] sm:$0xff]
      %v398 = vld [vmem:[%s248 + $0x39c] sm:$0xff]
      %v399 = vld [vmem:[%s248 + $0x3a4] sm:$0xf]
      %v400 = vld [vmem:[%s248 + $0x3a8] sm:$0xff]
      %v401 = vld [vmem:[%s248 + $0x3b0] sm:$0xff]
      %v402 = vld [vmem:[%s248 + $0x3b8] sm:$0xff]
      %v403 = vld [vmem:[%s248 + $0x3c0] sm:$0xff]
      %v404 = vld [vmem:[%s248 + $0x3c8] sm:$0xf]
      %v405 = vld [vmem:[%s248 + $0x3cc] sm:$0xff]
      %v406 = vld [vmem:[%s248 + $0x3d4] sm:$0xff]
      %v407 = vld [vmem:[%s248 + $0x3dc] sm:$0xff]
      %v408 = vld [vmem:[%s248 + $0x3e4] sm:$0xff]
      %v409 = vld [vmem:[%s248 + $0x3ec] sm:$0xf]
      %v410 = vld [vmem:[%s248 + $0x3f0] sm:$0xff]
      %v411 = vld [vmem:[%s248 + $0x3f8] sm:$0xff]
      %v412 = vld [vmem:[%s248 + $0x400] sm:$0xff]
      %v413 = vld [vmem:[%s248 + $0x408] sm:$0xff]
      %v414 = vld [vmem:[%s248 + $0x410] sm:$0xf]
      %v415 = vld [vmem:[%s248 + $0x414] sm:$0xff]
      %v416 = vld [vmem:[%s248 + $0x41c] sm:$0xff]
      %v417 = vld [vmem:[%s248 + $0x424] sm:$0xff]
      %v418 = vld [vmem:[%s248 + $0x42c] sm:$0xff]
      %v419 = vld [vmem:[%s248 + $0x434] sm:$0xf]
      %v420 = vld [vmem:[%s248 + $0x438] sm:$0xff]
      %v421 = vld [vmem:[%s248 + $0x440] sm:$0xff]
      %v422 = vld [vmem:[%s248 + $0x448] sm:$0xff]
      %v423 = vld [vmem:[%s248 + $0x450] sm:$0xff]
      %v424 = vld [vmem:[%s248 + $0x458] sm:$0xf]
      %v425 = vld [vmem:[%s248 + $0x45c] sm:$0xff]
      %v426 = vld [vmem:[%s248 + $0x464] sm:$0xff]
      %v427 = vld [vmem:[%s248 + $0x46c] sm:$0xff]
      %v428 = vld [vmem:[%s248 + $0x474] sm:$0xff]
      %v429 = vld [vmem:[%s248 + $0x47c] sm:$0xf]
      %v430 = vld [vmem:[%s248 + $0x480] sm:$0xff]
      %v431 = vld [vmem:[%s248 + $0x488] sm:$0xff]
      %v432 = vld [vmem:[%s248 + $0x490] sm:$0xff]
      %v433 = vld [vmem:[%s248 + $0x498] sm:$0xff]
      %v434 = vld [vmem:[%s248 + $0x4a0] sm:$0xf]
      %v435 = vld [vmem:[%s248 + $0x4a4] sm:$0xff]
      %v436 = vld [vmem:[%s248 + $0x4ac] sm:$0xff]
      %v437 = vld [vmem:[%s248 + $0x4b4] sm:$0xff]
      %v438 = vld [vmem:[%s248 + $0x4bc] sm:$0xff]
      %v439 = vld [vmem:[%s248 + $0x4c4] sm:$0xf]
      %v440 = vld [vmem:[%s248 + $0x4c8] sm:$0xff]
      %v441 = vld [vmem:[%s248 + $0x4d0] sm:$0xff]
      %v442 = vld [vmem:[%s248 + $0x4d8] sm:$0xff]
      %v443 = vld [vmem:[%s248 + $0x4e0] sm:$0xff]
      %v444 = vld [vmem:[%s248 + $0x4e8] sm:$0xf]
      %v445 = vld [vmem:[%s248 + $0x4ec] sm:$0xff]
      %v446 = vld [vmem:[%s248 + $0x4f4] sm:$0xff]
      %v447 = vld [vmem:[%s248 + $0x4fc] sm:$0xff]
      %v448 = vld [vmem:[%s248 + $0x504] sm:$0xff]
      %v449 = vld [vmem:[%s248 + $0x50c] sm:$0xf]
      %v450 = vld [vmem:[%s248 + $0x510] sm:$0xff]
      %v451 = vld [vmem:[%s248 + $0x518] sm:$0xff]
      %v452 = vld [vmem:[%s248 + $0x520] sm:$0xff]
      %v453 = vld [vmem:[%s248 + $0x528] sm:$0xff]
      %v454 = vld [vmem:[%s248 + $0x530] sm:$0xf]
      %v455 = vld [vmem:[%s248 + $0x534] sm:$0xff]
      %v456 = vld [vmem:[%s248 + $0x53c] sm:$0xff]
      %v457 = vld [vmem:[%s248 + $0x544] sm:$0xff]
      %v458 = vld [vmem:[%s248 + $0x54c] sm:$0xff]
      %v459 = vld [vmem:[%s248 + $0x554] sm:$0xf]
      %v460 = vld [vmem:[%s248 + $0x558] sm:$0xff]
      %v461 = vld [vmem:[%s248 + $0x560] sm:$0xff]
      %v462 = vld [vmem:[%s248 + $0x568] sm:$0xff]
      %v463 = vld [vmem:[%s248 + $0x570] sm:$0xff]
      %v464 = vld [vmem:[%s248 + $0x578] sm:$0xf]
      %v465 = vld [vmem:[%s248 + $0x57c] sm:$0xff]
      %v466 = vld [vmem:[%s248 + $0x584] sm:$0xff]
      %v467 = vld [vmem:[%s248 + $0x58c] sm:$0xff]
      %v468 = vld [vmem:[%s248 + $0x594] sm:$0xff]
      %v469 = vld [vmem:[%s248 + $0x59c] sm:$0xf]
      %v470 = vld [vmem:[%s248 + $0x5a0] sm:$0xff]
      %v471 = vld [vmem:[%s248 + $0x5a8] sm:$0xff]
      %v472 = vld [vmem:[%s248 + $0x5b0] sm:$0xff]
      %v473 = vld [vmem:[%s248 + $0x5b8] sm:$0xff]
      %v474 = vld [vmem:[%s248 + $0x5c0] sm:$0xf]
      %v475 = vld [vmem:[%s248 + $0x5c4] sm:$0xff]
      %v476 = vld [vmem:[%s248 + $0x5cc] sm:$0xff]
      %v477 = vld [vmem:[%s248 + $0x5d4] sm:$0xff]
      %v478 = vld [vmem:[%s248 + $0x5dc] sm:$0xff]
      %v479 = vld [vmem:[%s248 + $0x5e4] sm:$0xf]
      %v480 = vld [vmem:[%s248 + $0x5e8] sm:$0xff]
      %v481 = vld [vmem:[%s248 + $0x5f0] sm:$0xff]
      %v482 = vld [vmem:[%s248 + $0x5f8] sm:$0xff]
      %v483 = vld [vmem:[%s248 + $0x600] sm:$0xff]
      %v484 = vld [vmem:[%s248 + $0x608] sm:$0xf]
      %v485 = vld [vmem:[%s248 + $0x60c] sm:$0xff]
      %v486 = vld [vmem:[%s248 + $0x614] sm:$0xff]
      %v487 = vld [vmem:[%s248 + $0x61c] sm:$0xff]
      %v488 = vld [vmem:[%s248 + $0x624] sm:$0xff]
      %v489 = vld [vmem:[%s248 + $0x62c] sm:$0xf]
      %v490 = vld [vmem:[%s248 + $0x630] sm:$0xff]
      %v491 = vld [vmem:[%s248 + $0x638] sm:$0xff]
      %v492 = vld [vmem:[%s248 + $0x640] sm:$0xff]
      %v493 = vld [vmem:[%s248 + $0x648] sm:$0xff]
      %v494 = vld [vmem:[%s248 + $0x650] sm:$0xf]
      %v495 = vld [vmem:[%s248 + $0x654] sm:$0xff]
      %v496 = vld [vmem:[%s248 + $0x65c] sm:$0xff]
      %v497 = vld [vmem:[%s248 + $0x664] sm:$0xff]
      %v498 = vld [vmem:[%s248 + $0x66c] sm:$0xff]
      %v499 = vld [vmem:[%s248 + $0x674] sm:$0xf]
      %v500 = vld [vmem:[%s248 + $0x678] sm:$0xff]
      %v501 = vld [vmem:[%s248 + $0x680] sm:$0xff]
      %v502 = vld [vmem:[%s248 + $0x688] sm:$0xff]
      %v503 = vld [vmem:[%s248 + $0x690] sm:$0xff]
      %v504 = vld [vmem:[%s248 + $0x698] sm:$0xf]
      %v505 = vld [vmem:[%s248 + $0x69c] sm:$0xff]
      %v506 = vld [vmem:[%s248 + $0x6a4] sm:$0xff]
      %v507 = vld [vmem:[%s248 + $0x6ac] sm:$0xff]
      %v508 = vld [vmem:[%s248 + $0x6b4] sm:$0xff]
      %v509 = vld [vmem:[%s248 + $0x6bc] sm:$0xf]
      %v510 = vld [vmem:[%s248 + $0x6c0] sm:$0xff]
      %v511 = vld [vmem:[%s248 + $0x6c8] sm:$0xff]
      %v512 = vld [vmem:[%s248 + $0x6d0] sm:$0xff]
      %v513 = vld [vmem:[%s248 + $0x6d8] sm:$0xff]
      %v514 = vld [vmem:[%s248 + $0x6e0] sm:$0xf]
      %v515 = vld [vmem:[%s248 + $0x6e4] sm:$0xff]
      %v516 = vld [vmem:[%s248 + $0x6ec] sm:$0xff]
      %v517 = vld [vmem:[%s248 + $0x6f4] sm:$0xff]
      %v518 = vld [vmem:[%s248 + $0x6fc] sm:$0xff]
      %v519 = vld [vmem:[%s248 + $0x704] sm:$0xf]
      %v520 = vld [vmem:[%s248 + $0x708] sm:$0xff]
      %v521 = vld [vmem:[%s248 + $0x710] sm:$0xff]
      %v522 = vld [vmem:[%s248 + $0x718] sm:$0xff]
      %v523 = vld [vmem:[%s248 + $0x720] sm:$0xff]
      %v524 = vld [vmem:[%s248 + $0x728] sm:$0xf]
      %v525 = vld [vmem:[%s248 + $0x72c] sm:$0xff]
      %v526 = vld [vmem:[%s248 + $0x734] sm:$0xff]
      %v527 = vld [vmem:[%s248 + $0x73c] sm:$0xff]
      %v528 = vld [vmem:[%s248 + $0x744] sm:$0xff]
      %v529 = vld [vmem:[%s248 + $0x74c] sm:$0xf]
      %v530 = vld [vmem:[%s248 + $0x750] sm:$0xff]
      %v531 = vld [vmem:[%s248 + $0x758] sm:$0xff]
      %v532 = vld [vmem:[%s248 + $0x760] sm:$0xff]
      %v533 = vld [vmem:[%s248 + $0x768] sm:$0xff]
      %v534 = vld [vmem:[%s248 + $0x770] sm:$0xf]
      %v535 = vld [vmem:[%s248 + $0x774] sm:$0xff]
      %v536 = vld [vmem:[%s248 + $0x77c] sm:$0xff]
      %v537 = vld [vmem:[%s248 + $0x784] sm:$0xff]
      %v538 = vld [vmem:[%s248 + $0x78c] sm:$0xff]
      %v539 = vld [vmem:[%s248 + $0x794] sm:$0xf]
      %v540 = vld [vmem:[%s248 + $0x798] sm:$0xff]
      %v541 = vld [vmem:[%s248 + $0x7a0] sm:$0xff]
      %v542 = vld [vmem:[%s248 + $0x7a8] sm:$0xff]
      %v543 = vld [vmem:[%s248 + $0x7b0] sm:$0xff]
      %v544 = vld [vmem:[%s248 + $0x7b8] sm:$0xf]
      %v545 = vld [vmem:[%s248 + $0x7bc] sm:$0xff]
      %v546 = vld [vmem:[%s248 + $0x7c4] sm:$0xff]
      %v547 = vld [vmem:[%s248 + $0x7cc] sm:$0xff]
      %v548 = vld [vmem:[%s248 + $0x7d4] sm:$0xff]
      %v549 = vld [vmem:[%s248 + $0x7dc] sm:$0xf]
      %v550 = vld [vmem:[%s248 + $0x7e0] sm:$0xff]
      %v551 = vld [vmem:[%s248 + $0x7e8] sm:$0xff]
      %v552 = vld [vmem:[%s248 + $0x7f0] sm:$0xff]
      %v553 = vld [vmem:[%s248 + $0x7f8] sm:$0xff]
      %v554 = vld [vmem:[%s248 + $0x800] sm:$0xf]
      %v555 = vld [vmem:[%s248 + $0x804] sm:$0xff]
      %v556 = vld [vmem:[%s248 + $0x80c] sm:$0xff]
      %v557 = vld [vmem:[%s248 + $0x814] sm:$0xff]
      %v558 = vld [vmem:[%s248 + $0x81c] sm:$0xff]
      %v559 = vld [vmem:[%s248 + $0x824] sm:$0xf]
      %v560 = vld [vmem:[%s248 + $0x828] sm:$0xff]
      %v561 = vld [vmem:[%s248 + $0x830] sm:$0xff]
      %v562 = vld [vmem:[%s248 + $0x838] sm:$0xff]
      %v563 = vld [vmem:[%s248 + $0x840] sm:$0xff]
      %v564 = vld [vmem:[%s248 + $0x848] sm:$0xf]
      %v565 = vld [vmem:[%s248 + $0x84c] sm:$0xff]
      %v566 = vld [vmem:[%s248 + $0x854] sm:$0xff]
      %v567 = vld [vmem:[%s248 + $0x85c] sm:$0xff]
      %v568 = vld [vmem:[%s248 + $0x864] sm:$0xff]
      %v569 = vld [vmem:[%s248 + $0x86c] sm:$0xf]
      %v570 = vld [vmem:[%s248 + $0x870] sm:$0xff]
      %v571 = vld [vmem:[%s248 + $0x878] sm:$0xff]
      %v572 = vld [vmem:[%s248 + $0x880] sm:$0xff]
      %v573 = vld [vmem:[%s248 + $0x888] sm:$0xff]
      %v574 = vld [vmem:[%s248 + $0x890] sm:$0xf]
      %v575 = vld [vmem:[%s248 + $0x894] sm:$0xff]
      %v576 = vld [vmem:[%s248 + $0x89c] sm:$0xff]
      %v577 = vld [vmem:[%s248 + $0x8a4] sm:$0xff]
      %v578 = vld [vmem:[%s248 + $0x8ac] sm:$0xff]
      %v579 = vld [vmem:[%s248 + $0x8b4] sm:$0xf]
      %v580 = vld [vmem:[%s248 + $0x8b8] sm:$0xff]
      %v581 = vld [vmem:[%s248 + $0x8c0] sm:$0xff]
      %v582 = vld [vmem:[%s248 + $0x8c8] sm:$0xff]
      %v583 = vld [vmem:[%s248 + $0x8d0] sm:$0xff]
      %v584 = vld [vmem:[%s248 + $0x8d8] sm:$0xf]
      %v585 = vld [vmem:[%s248 + $0x8dc] sm:$0xff]
      %v586 = vld [vmem:[%s248 + $0x8e4] sm:$0xff]
      %v587 = vld [vmem:[%s248 + $0x8ec] sm:$0xff]
      %v588 = vld [vmem:[%s248 + $0x8f4] sm:$0xff]
      %v589 = vld [vmem:[%s248 + $0x8fc] sm:$0xf]
      %v590 = vld [vmem:[%s253] sm:$0xf]
      %v591 = vld [vmem:[%s253 + $0x4] sm:$0xf]
      %v592 = vld [vmem:[%s253 + $0x8] sm:$0xf]
      %v593 = vld [vmem:[%s253 + $0xc] sm:$0xf]
      %v594 = vld [vmem:[%s253 + $0x10] sm:$0xf]
      %v595 = vld [vmem:[%s253 + $0x14] sm:$0xf]
      %v596 = vld [vmem:[%s253 + $0x18] sm:$0xf]
      %v597 = vld [vmem:[%s253 + $0x1c] sm:$0xf]
      %v598 = vld [vmem:[%s253 + $0x20] sm:$0xf]
      %v599 = vld [vmem:[%s253 + $0x24] sm:$0xf]
      %v600 = vld [vmem:[%s253 + $0x28] sm:$0xf]
      %v601 = vld [vmem:[%s253 + $0x2c] sm:$0xf]
      %v602 = vld [vmem:[%s253 + $0x30] sm:$0xf]
      %v603 = vld [vmem:[%s253 + $0x34] sm:$0xf]
      %v604 = vld [vmem:[%s253 + $0x38] sm:$0xf]
      %v605 = vld [vmem:[%s253 + $0x3c] sm:$0xf]
      %v606 = vld [vmem:[%s253 + $0x40] sm:$0xf]
      %v607 = vld [vmem:[%s253 + $0x44] sm:$0xf]
      %v608 = vld [vmem:[%s253 + $0x48] sm:$0xf]
      %v609 = vld [vmem:[%s253 + $0x4c] sm:$0xf]
      %v610 = vld [vmem:[%s253 + $0x50] sm:$0xf]
      %v611 = vld [vmem:[%s253 + $0x54] sm:$0xf]
      %v612 = vld [vmem:[%s253 + $0x58] sm:$0xf]
      %v613 = vld [vmem:[%s253 + $0x5c] sm:$0xf]
      %v614 = vld [vmem:[%s253 + $0x60] sm:$0xf]
      %v615 = vld [vmem:[%s253 + $0x64] sm:$0xf]
      %v616 = vld [vmem:[%s253 + $0x68] sm:$0xf]
      %v617 = vld [vmem:[%s253 + $0x6c] sm:$0xf]
      %v618 = vld [vmem:[%s253 + $0x70] sm:$0xf]
      %v619 = vld [vmem:[%s253 + $0x74] sm:$0xf]
      %v620 = vld [vmem:[%s253 + $0x78] sm:$0xf]
      %v621 = vld [vmem:[%s253 + $0x7c] sm:$0xf]
      %v622 = vld [vmem:[%s253 + $0x80] sm:$0xf]
      %v623 = vld [vmem:[%s253 + $0x84] sm:$0xf]
      %v624 = vld [vmem:[%s253 + $0x88] sm:$0xf]
      %v625 = vld [vmem:[%s253 + $0x8c] sm:$0xf]
      %v626 = vld [vmem:[%s253 + $0x90] sm:$0xf]
      %v627 = vld [vmem:[%s253 + $0x94] sm:$0xf]
      %v628 = vld [vmem:[%s253 + $0x98] sm:$0xf]
      %v629 = vld [vmem:[%s253 + $0x9c] sm:$0xf]
      %v630 = vld [vmem:[%s253 + $0xa0] sm:$0xf]
      %v631 = vld [vmem:[%s253 + $0xa4] sm:$0xf]
      %v632 = vld [vmem:[%s253 + $0xa8] sm:$0xf]
      %v633 = vld [vmem:[%s253 + $0xac] sm:$0xf]
      %v634 = vld [vmem:[%s253 + $0xb0] sm:$0xf]
      %v635 = vld [vmem:[%s253 + $0xb4] sm:$0xf]
      %v636 = vld [vmem:[%s253 + $0xb8] sm:$0xf]
      %v637 = vld [vmem:[%s253 + $0xbc] sm:$0xf]
      %v638 = vld [vmem:[%s253 + $0xc0] sm:$0xf]
      %v639 = vld [vmem:[%s253 + $0xc4] sm:$0xf]
      %v640 = vld [vmem:[%s253 + $0xc8] sm:$0xf]
      %v641 = vld [vmem:[%s253 + $0xcc] sm:$0xf]
      %v642 = vld [vmem:[%s253 + $0xd0] sm:$0xf]
      %v643 = vld [vmem:[%s253 + $0xd4] sm:$0xf]
      %v644 = vld [vmem:[%s253 + $0xd8] sm:$0xf]
      %v645 = vld [vmem:[%s253 + $0xdc] sm:$0xf]
      %v646 = vld [vmem:[%s253 + $0xe0] sm:$0xf]
      %v647 = vld [vmem:[%s253 + $0xe4] sm:$0xf]
      %v648 = vld [vmem:[%s253 + $0xe8] sm:$0xf]
      %v649 = vld [vmem:[%s253 + $0xec] sm:$0xf]
      %v650 = vld [vmem:[%s253 + $0xf0] sm:$0xf]
      %v651 = vld [vmem:[%s253 + $0xf4] sm:$0xf]
      %v652 = vld [vmem:[%s253 + $0xf8] sm:$0xf]
      %v653 = vld [vmem:[%s253 + $0xfc] sm:$0xf]
      %v654 = vld [vmem:[%s253 + $0x100] sm:$0xf]
      %v655 = vld [vmem:[%s253 + $0x104] sm:$0xf]
      %v656 = vld [vmem:[%s253 + $0x108] sm:$0xf]
      %v657 = vld [vmem:[%s253 + $0x10c] sm:$0xf]
      %v658 = vld [vmem:[%s253 + $0x110] sm:$0xf]
      %v659 = vld [vmem:[%s253 + $0x114] sm:$0xf]
      %v660 = vld [vmem:[%s253 + $0x118] sm:$0xf]
      %v661 = vld [vmem:[%s253 + $0x11c] sm:$0xf]
      %v662 = vld [vmem:[%s253 + $0x120] sm:$0xf]
      %v663 = vld [vmem:[%s253 + $0x124] sm:$0xf]
      %v664 = vld [vmem:[%s253 + $0x128] sm:$0xf]
      %v665 = vld [vmem:[%s253 + $0x12c] sm:$0xf]
      %v666 = vld [vmem:[%s253 + $0x130] sm:$0xf]
      %v667 = vld [vmem:[%s253 + $0x134] sm:$0xf]
      %v668 = vld [vmem:[%s253 + $0x138] sm:$0xf]
      %v669 = vld [vmem:[%s253 + $0x13c] sm:$0xf]
      %v670 = vld [vmem:[%s253 + $0x140] sm:$0xf]
      %v671 = vld [vmem:[%s253 + $0x144] sm:$0xf]
      %v672 = vld [vmem:[%s253 + $0x148] sm:$0xf]
      %v673 = vld [vmem:[%s253 + $0x14c] sm:$0xf]
      %v674 = vld [vmem:[%s253 + $0x150] sm:$0xf]
      %v675 = vld [vmem:[%s253 + $0x154] sm:$0xf]
      %v676 = vld [vmem:[%s253 + $0x158] sm:$0xf]
      %v677 = vld [vmem:[%s253 + $0x15c] sm:$0xf]
      %v678 = vld [vmem:[%s253 + $0x160] sm:$0xf]
      %v679 = vld [vmem:[%s253 + $0x164] sm:$0xf]
      %v680 = vld [vmem:[%s253 + $0x168] sm:$0xf]
      %v681 = vld [vmem:[%s253 + $0x16c] sm:$0xf]
      %v682 = vld [vmem:[%s253 + $0x170] sm:$0xf]
      %v683 = vld [vmem:[%s253 + $0x174] sm:$0xf]
      %v684 = vld [vmem:[%s253 + $0x178] sm:$0xf]
      %v685 = vld [vmem:[%s253 + $0x17c] sm:$0xf]
      %v686 = vld [vmem:[%s253 + $0x180] sm:$0xf]
      %v687 = vld [vmem:[%s253 + $0x184] sm:$0xf]
      %v688 = vld [vmem:[%s253 + $0x188] sm:$0xf]
      %v689 = vld [vmem:[%s253 + $0x18c] sm:$0xf]
      %v690 = vld [vmem:[%s253 + $0x190] sm:$0xf]
      %v691 = vld [vmem:[%s253 + $0x194] sm:$0xf]
      %v692 = vld [vmem:[%s253 + $0x198] sm:$0xf]
      %v693 = vld [vmem:[%s253 + $0x19c] sm:$0xf]
      %v694 = vld [vmem:[%s253 + $0x1a0] sm:$0xf]
      %v695 = vld [vmem:[%s253 + $0x1a4] sm:$0xf]
      %v696 = vld [vmem:[%s253 + $0x1a8] sm:$0xf]
      %v697 = vld [vmem:[%s253 + $0x1ac] sm:$0xf]
      %v698 = vld [vmem:[%s253 + $0x1b0] sm:$0xf]
      %v699 = vld [vmem:[%s253 + $0x1b4] sm:$0xf]
      %v700 = vld [vmem:[%s253 + $0x1b8] sm:$0xf]
      %v701 = vld [vmem:[%s253 + $0x1bc] sm:$0xf]
      %v702 = vld [vmem:[%s253 + $0x1c0] sm:$0xf]
      %v703 = vld [vmem:[%s253 + $0x1c4] sm:$0xf]
      %v704 = vld [vmem:[%s253 + $0x1c8] sm:$0xf]
      %v705 = vld [vmem:[%s253 + $0x1cc] sm:$0xf]
      %v706 = vld [vmem:[%s253 + $0x1d0] sm:$0xf]
      %v707 = vld [vmem:[%s253 + $0x1d4] sm:$0xf]
      %v708 = vld [vmem:[%s253 + $0x1d8] sm:$0xf]
      %v709 = vld [vmem:[%s253 + $0x1dc] sm:$0xf]
      %v710 = vld [vmem:[%s253 + $0x1e0] sm:$0xf]
      %v711 = vld [vmem:[%s253 + $0x1e4] sm:$0xf]
      %v712 = vld [vmem:[%s253 + $0x1e8] sm:$0xf]
      %v713 = vld [vmem:[%s253 + $0x1ec] sm:$0xf]
      %v714 = vld [vmem:[%s253 + $0x1f0] sm:$0xf]
      %v715 = vld [vmem:[%s253 + $0x1f4] sm:$0xf]
      %v716 = vld [vmem:[%s253 + $0x1f8] sm:$0xf]
      %v717 = vld [vmem:[%s253 + $0x1fc] sm:$0xf]
      %v718 = vld [vmem:[%s253 + $0x200] sm:$0xf]
      %v719 = vld [vmem:[%s253 + $0x204] sm:$0xf]
      %v720 = vld [vmem:[%s253 + $0x208] sm:$0xf]
      %v721 = vld [vmem:[%s253 + $0x20c] sm:$0xf]
      %v722 = vld [vmem:[%s253 + $0x210] sm:$0xf]
      %v723 = vld [vmem:[%s253 + $0x214] sm:$0xf]
      %v724 = vld [vmem:[%s253 + $0x218] sm:$0xf]
      %v725 = vld [vmem:[%s253 + $0x21c] sm:$0xf]
      %v726 = vld [vmem:[%s253 + $0x220] sm:$0xf]
      %v727 = vld [vmem:[%s253 + $0x224] sm:$0xf]
      %v728 = vld [vmem:[%s253 + $0x228] sm:$0xf]
      %v729 = vld [vmem:[%s253 + $0x22c] sm:$0xf]
      %v730 = vld [vmem:[%s253 + $0x230] sm:$0xf]
      %v731 = vld [vmem:[%s253 + $0x234] sm:$0xf]
      %v732 = vld [vmem:[%s253 + $0x238] sm:$0xf]
      %v733 = vld [vmem:[%s253 + $0x23c] sm:$0xf]
      %v1054 = vunpack.c.l.b16 %v270
      %v1055 = vunpack.c.h.b16 %v270
      %v1056 = vunpack.c.l.b16 %v271
      %v1057 = vunpack.c.h.b16 %v271
      %v1058 = vunpack.c.l.b16 %v272
      %v1059 = vunpack.c.h.b16 %v272
      %v1060 = vunpack.c.l.b16 %v273
      %v1061 = vunpack.c.h.b16 %v273
      %v1062 = vunpack.c.l.b16 %v274
      %v1063 = vunpack.c.l.b16 %v275
      %v1064 = vunpack.c.h.b16 %v275
      %v1065 = vunpack.c.l.b16 %v276
      %v1066 = vunpack.c.h.b16 %v276
      %v1067 = vunpack.c.l.b16 %v277
      %v1068 = vunpack.c.h.b16 %v277
      %v1069 = vunpack.c.l.b16 %v278
      %v1070 = vunpack.c.h.b16 %v278
      %v1071 = vunpack.c.l.b16 %v279
      %v1072 = vunpack.c.l.b16 %v280
      %v1073 = vunpack.c.h.b16 %v280
      %v1074 = vunpack.c.l.b16 %v281
      %v1075 = vunpack.c.h.b16 %v281
      %v1076 = vunpack.c.l.b16 %v282
      %v1077 = vunpack.c.h.b16 %v282
      %v1078 = vunpack.c.l.b16 %v283
      %v1079 = vunpack.c.h.b16 %v283
      %v1080 = vunpack.c.l.b16 %v284
      %v1081 = vunpack.c.l.b16 %v285
      %v1082 = vunpack.c.h.b16 %v285
      %v1083 = vunpack.c.l.b16 %v286
      %v1084 = vunpack.c.h.b16 %v286
      %v1085 = vunpack.c.l.b16 %v287
      %v1086 = vunpack.c.h.b16 %v287
      %v1087 = vunpack.c.l.b16 %v288
      %v1088 = vunpack.c.h.b16 %v288
      %v1089 = vunpack.c.l.b16 %v289
      %v1090 = vunpack.c.l.b16 %v290
      %v1091 = vunpack.c.h.b16 %v290
      %v1092 = vunpack.c.l.b16 %v291
      %v1093 = vunpack.c.h.b16 %v291
      %v1094 = vunpack.c.l.b16 %v292
      %v1095 = vunpack.c.h.b16 %v292
      %v1096 = vunpack.c.l.b16 %v293
      %v1097 = vunpack.c.h.b16 %v293
      %v1098 = vunpack.c.l.b16 %v294
      %v1099 = vunpack.c.l.b16 %v295
      %v1100 = vunpack.c.h.b16 %v295
      %v1101 = vunpack.c.l.b16 %v296
      %v1102 = vunpack.c.h.b16 %v296
      %v1103 = vunpack.c.l.b16 %v297
      %v1104 = vunpack.c.h.b16 %v297
      %v1105 = vunpack.c.l.b16 %v298
      %v1106 = vunpack.c.h.b16 %v298
      %v1107 = vunpack.c.l.b16 %v299
      %v1108 = vunpack.c.l.b16 %v300
      %v1109 = vunpack.c.h.b16 %v300
      %v1110 = vunpack.c.l.b16 %v301
      %v1111 = vunpack.c.h.b16 %v301
      %v1112 = vunpack.c.l.b16 %v302
      %v1113 = vunpack.c.h.b16 %v302
      %v1114 = vunpack.c.l.b16 %v303
      %v1115 = vunpack.c.h.b16 %v303
      %v1116 = vunpack.c.l.b16 %v304
      %v1117 = vunpack.c.l.b16 %v305
      %v1118 = vunpack.c.h.b16 %v305
      %v1119 = vunpack.c.l.b16 %v306
      %v1120 = vunpack.c.h.b16 %v306
      %v1121 = vunpack.c.l.b16 %v307
      %v1122 = vunpack.c.h.b16 %v307
      %v1123 = vunpack.c.l.b16 %v308
      %v1124 = vunpack.c.h.b16 %v308
      %v1125 = vunpack.c.l.b16 %v309
      %v1126 = vunpack.c.l.b16 %v310
      %v1127 = vunpack.c.h.b16 %v310
      %v1128 = vunpack.c.l.b16 %v311
      %v1129 = vunpack.c.h.b16 %v311
      %v1130 = vunpack.c.l.b16 %v312
      %v1131 = vunpack.c.h.b16 %v312
      %v1132 = vunpack.c.l.b16 %v313
      %v1133 = vunpack.c.h.b16 %v313
      %v1134 = vunpack.c.l.b16 %v314
      %v1135 = vunpack.c.l.b16 %v315
      %v1136 = vunpack.c.h.b16 %v315
      %v1137 = vunpack.c.l.b16 %v316
      %v1138 = vunpack.c.h.b16 %v316
      %v1139 = vunpack.c.l.b16 %v317
      %v1140 = vunpack.c.h.b16 %v317
      %v1141 = vunpack.c.l.b16 %v318
      %v1142 = vunpack.c.h.b16 %v318
      %v1143 = vunpack.c.l.b16 %v319
      %v1144 = vunpack.c.l.b16 %v320
      %v1145 = vunpack.c.h.b16 %v320
      %v1146 = vunpack.c.l.b16 %v321
      %v1147 = vunpack.c.h.b16 %v321
      %v1148 = vunpack.c.l.b16 %v322
      %v1149 = vunpack.c.h.b16 %v322
      %v1150 = vunpack.c.l.b16 %v323
      %v1151 = vunpack.c.h.b16 %v323
      %v1152 = vunpack.c.l.b16 %v324
      %v1153 = vunpack.c.l.b16 %v325
      %v1154 = vunpack.c.h.b16 %v325
      %v1155 = vunpack.c.l.b16 %v326
      %v1156 = vunpack.c.h.b16 %v326
      %v1157 = vunpack.c.l.b16 %v327
      %v1158 = vunpack.c.h.b16 %v327
      %v1159 = vunpack.c.l.b16 %v328
      %v1160 = vunpack.c.h.b16 %v328
      %v1161 = vunpack.c.l.b16 %v329
      %v1162 = vunpack.c.l.b16 %v330
      %v1163 = vunpack.c.h.b16 %v330
      %v1164 = vunpack.c.l.b16 %v331
      %v1165 = vunpack.c.h.b16 %v331
      %v1166 = vunpack.c.l.b16 %v332
      %v1167 = vunpack.c.h.b16 %v332
      %v1168 = vunpack.c.l.b16 %v333
      %v1169 = vunpack.c.h.b16 %v333
      %v1170 = vunpack.c.l.b16 %v334
      %v1171 = vunpack.c.l.b16 %v335
      %v1172 = vunpack.c.h.b16 %v335
      %v1173 = vunpack.c.l.b16 %v336
      %v1174 = vunpack.c.h.b16 %v336
      %v1175 = vunpack.c.l.b16 %v337
      %v1176 = vunpack.c.h.b16 %v337
      %v1177 = vunpack.c.l.b16 %v338
      %v1178 = vunpack.c.h.b16 %v338
      %v1179 = vunpack.c.l.b16 %v339
      %v1180 = vunpack.c.l.b16 %v340
      %v1181 = vunpack.c.h.b16 %v340
      %v1182 = vunpack.c.l.b16 %v341
      %v1183 = vunpack.c.h.b16 %v341
      %v1184 = vunpack.c.l.b16 %v342
      %v1185 = vunpack.c.h.b16 %v342
      %v1186 = vunpack.c.l.b16 %v343
      %v1187 = vunpack.c.h.b16 %v343
      %v1188 = vunpack.c.l.b16 %v344
      %v1189 = vunpack.c.l.b16 %v345
      %v1190 = vunpack.c.h.b16 %v345
      %v1191 = vunpack.c.l.b16 %v346
      %v1192 = vunpack.c.h.b16 %v346
      %v1193 = vunpack.c.l.b16 %v347
      %v1194 = vunpack.c.h.b16 %v347
      %v1195 = vunpack.c.l.b16 %v348
      %v1196 = vunpack.c.h.b16 %v348
      %v1197 = vunpack.c.l.b16 %v349
      %v1198 = vunpack.c.l.b16 %v350
      %v1199 = vunpack.c.h.b16 %v350
      %v1200 = vunpack.c.l.b16 %v351
      %v1201 = vunpack.c.h.b16 %v351
      %v1202 = vunpack.c.l.b16 %v352
      %v1203 = vunpack.c.h.b16 %v352
      %v1204 = vunpack.c.l.b16 %v353
      %v1205 = vunpack.c.h.b16 %v353
      %v1206 = vunpack.c.l.b16 %v354
      %v1207 = vunpack.c.l.b16 %v355
      %v1208 = vunpack.c.h.b16 %v355
      %v1209 = vunpack.c.l.b16 %v356
      %v1210 = vunpack.c.h.b16 %v356
      %v1211 = vunpack.c.l.b16 %v357
      %v1212 = vunpack.c.h.b16 %v357
      %v1213 = vunpack.c.l.b16 %v358
      %v1214 = vunpack.c.h.b16 %v358
      %v1215 = vunpack.c.l.b16 %v359
      %v1216 = vunpack.c.l.b16 %v360
      %v1217 = vunpack.c.h.b16 %v360
      %v1218 = vunpack.c.l.b16 %v361
      %v1219 = vunpack.c.h.b16 %v361
      %v1220 = vunpack.c.l.b16 %v362
      %v1221 = vunpack.c.h.b16 %v362
      %v1222 = vunpack.c.l.b16 %v363
      %v1223 = vunpack.c.h.b16 %v363
      %v1224 = vunpack.c.l.b16 %v364
      %v1225 = vunpack.c.l.b16 %v365
      %v1226 = vunpack.c.h.b16 %v365
      %v1227 = vunpack.c.l.b16 %v366
      %v1228 = vunpack.c.h.b16 %v366
      %v1229 = vunpack.c.l.b16 %v367
      %v1230 = vunpack.c.h.b16 %v367
      %v1231 = vunpack.c.l.b16 %v368
      %v1232 = vunpack.c.h.b16 %v368
      %v1233 = vunpack.c.l.b16 %v369
      %v1234 = vunpack.c.l.b16 %v370
      %v1235 = vunpack.c.h.b16 %v370
      %v1236 = vunpack.c.l.b16 %v371
      %v1237 = vunpack.c.h.b16 %v371
      %v1238 = vunpack.c.l.b16 %v372
      %v1239 = vunpack.c.h.b16 %v372
      %v1240 = vunpack.c.l.b16 %v373
      %v1241 = vunpack.c.h.b16 %v373
      %v1242 = vunpack.c.l.b16 %v374
      %v1243 = vunpack.c.l.b16 %v375
      %v1244 = vunpack.c.h.b16 %v375
      %v1245 = vunpack.c.l.b16 %v376
      %v1246 = vunpack.c.h.b16 %v376
      %v1247 = vunpack.c.l.b16 %v377
      %v1248 = vunpack.c.h.b16 %v377
      %v1249 = vunpack.c.l.b16 %v378
      %v1250 = vunpack.c.h.b16 %v378
      %v1251 = vunpack.c.l.b16 %v379
      %v1252 = vunpack.c.l.b16 %v380
      %v1253 = vunpack.c.h.b16 %v380
      %v1254 = vunpack.c.l.b16 %v381
      %v1255 = vunpack.c.h.b16 %v381
      %v1256 = vunpack.c.l.b16 %v382
      %v1257 = vunpack.c.h.b16 %v382
      %v1258 = vunpack.c.l.b16 %v383
      %v1259 = vunpack.c.h.b16 %v383
      %v1260 = vunpack.c.l.b16 %v384
      %v1261 = vunpack.c.l.b16 %v385
      %v1262 = vunpack.c.h.b16 %v385
      %v1263 = vunpack.c.l.b16 %v386
      %v1264 = vunpack.c.h.b16 %v386
      %v1265 = vunpack.c.l.b16 %v387
      %v1266 = vunpack.c.h.b16 %v387
      %v1267 = vunpack.c.l.b16 %v388
      %v1268 = vunpack.c.h.b16 %v388
      %v1269 = vunpack.c.l.b16 %v389
      %v1270 = vunpack.c.l.b16 %v390
      %v1271 = vunpack.c.h.b16 %v390
      %v1272 = vunpack.c.l.b16 %v391
      %v1273 = vunpack.c.h.b16 %v391
      %v1274 = vunpack.c.l.b16 %v392
      %v1275 = vunpack.c.h.b16 %v392
      %v1276 = vunpack.c.l.b16 %v393
      %v1277 = vunpack.c.h.b16 %v393
      %v1278 = vunpack.c.l.b16 %v394
      %v1279 = vunpack.c.l.b16 %v395
      %v1280 = vunpack.c.h.b16 %v395
      %v1281 = vunpack.c.l.b16 %v396
      %v1282 = vunpack.c.h.b16 %v396
      %v1283 = vunpack.c.l.b16 %v397
      %v1284 = vunpack.c.h.b16 %v397
      %v1285 = vunpack.c.l.b16 %v398
      %v1286 = vunpack.c.h.b16 %v398
      %v1287 = vunpack.c.l.b16 %v399
      %v1288 = vunpack.c.l.b16 %v400
      %v1289 = vunpack.c.h.b16 %v400
      %v1290 = vunpack.c.l.b16 %v401
      %v1291 = vunpack.c.h.b16 %v401
      %v1292 = vunpack.c.l.b16 %v402
      %v1293 = vunpack.c.h.b16 %v402
      %v1294 = vunpack.c.l.b16 %v403
      %v1295 = vunpack.c.h.b16 %v403
      %v1296 = vunpack.c.l.b16 %v404
      %v1297 = vunpack.c.l.b16 %v405
      %v1298 = vunpack.c.h.b16 %v405
      %v1299 = vunpack.c.l.b16 %v406
      %v1300 = vunpack.c.h.b16 %v406
      %v1301 = vunpack.c.l.b16 %v407
      %v1302 = vunpack.c.h.b16 %v407
      %v1303 = vunpack.c.l.b16 %v408
      %v1304 = vunpack.c.h.b16 %v408
      %v1305 = vunpack.c.l.b16 %v409
      %v1306 = vunpack.c.l.b16 %v410
      %v1307 = vunpack.c.h.b16 %v410
      %v1308 = vunpack.c.l.b16 %v411
      %v1309 = vunpack.c.h.b16 %v411
      %v1310 = vunpack.c.l.b16 %v412
      %v1311 = vunpack.c.h.b16 %v412
      %v1312 = vunpack.c.l.b16 %v413
      %v1313 = vunpack.c.h.b16 %v413
      %v1314 = vunpack.c.l.b16 %v414
      %v1315 = vunpack.c.l.b16 %v415
      %v1316 = vunpack.c.h.b16 %v415
      %v1317 = vunpack.c.l.b16 %v416
      %v1318 = vunpack.c.h.b16 %v416
      %v1319 = vunpack.c.l.b16 %v417
      %v1320 = vunpack.c.h.b16 %v417
      %v1321 = vunpack.c.l.b16 %v418
      %v1322 = vunpack.c.h.b16 %v418
      %v1323 = vunpack.c.l.b16 %v419
      %v1324 = vunpack.c.l.b16 %v420
      %v1325 = vunpack.c.h.b16 %v420
      %v1326 = vunpack.c.l.b16 %v421
      %v1327 = vunpack.c.h.b16 %v421
      %v1328 = vunpack.c.l.b16 %v422
      %v1329 = vunpack.c.h.b16 %v422
      %v1330 = vunpack.c.l.b16 %v423
      %v1331 = vunpack.c.h.b16 %v423
      %v1332 = vunpack.c.l.b16 %v424
      %v1333 = vunpack.c.l.b16 %v425
      %v1334 = vunpack.c.h.b16 %v425
      %v1335 = vunpack.c.l.b16 %v426
      %v1336 = vunpack.c.h.b16 %v426
      %v1337 = vunpack.c.l.b16 %v427
      %v1338 = vunpack.c.h.b16 %v427
      %v1339 = vunpack.c.l.b16 %v428
      %v1340 = vunpack.c.h.b16 %v428
      %v1341 = vunpack.c.l.b16 %v429
      %v1342 = vunpack.c.l.b16 %v430
      %v1343 = vunpack.c.h.b16 %v430
      %v1344 = vunpack.c.l.b16 %v431
      %v1345 = vunpack.c.h.b16 %v431
      %v1346 = vunpack.c.l.b16 %v432
      %v1347 = vunpack.c.h.b16 %v432
      %v1348 = vunpack.c.l.b16 %v433
      %v1349 = vunpack.c.h.b16 %v433
      %v1350 = vunpack.c.l.b16 %v434
      %v1351 = vunpack.c.l.b16 %v435
      %v1352 = vunpack.c.h.b16 %v435
      %v1353 = vunpack.c.l.b16 %v436
      %v1354 = vunpack.c.h.b16 %v436
      %v1355 = vunpack.c.l.b16 %v437
      %v1356 = vunpack.c.h.b16 %v437
      %v1357 = vunpack.c.l.b16 %v438
      %v1358 = vunpack.c.h.b16 %v438
      %v1359 = vunpack.c.l.b16 %v439
      %v1360 = vunpack.c.l.b16 %v440
      %v1361 = vunpack.c.h.b16 %v440
      %v1362 = vunpack.c.l.b16 %v441
      %v1363 = vunpack.c.h.b16 %v441
      %v1364 = vunpack.c.l.b16 %v442
      %v1365 = vunpack.c.h.b16 %v442
      %v1366 = vunpack.c.l.b16 %v443
      %v1367 = vunpack.c.h.b16 %v443
      %v1368 = vunpack.c.l.b16 %v444
      %v1369 = vunpack.c.l.b16 %v445
      %v1370 = vunpack.c.h.b16 %v445
      %v1371 = vunpack.c.l.b16 %v446
      %v1372 = vunpack.c.h.b16 %v446
      %v1373 = vunpack.c.l.b16 %v447
      %v1374 = vunpack.c.h.b16 %v447
      %v1375 = vunpack.c.l.b16 %v448
      %v1376 = vunpack.c.h.b16 %v448
      %v1377 = vunpack.c.l.b16 %v449
      %v1378 = vunpack.c.l.b16 %v450
      %v1379 = vunpack.c.h.b16 %v450
      %v1380 = vunpack.c.l.b16 %v451
      %v1381 = vunpack.c.h.b16 %v451
      %v1382 = vunpack.c.l.b16 %v452
      %v1383 = vunpack.c.h.b16 %v452
      %v1384 = vunpack.c.l.b16 %v453
      %v1385 = vunpack.c.h.b16 %v453
      %v1386 = vunpack.c.l.b16 %v454
      %v1387 = vunpack.c.l.b16 %v455
      %v1388 = vunpack.c.h.b16 %v455
      %v1389 = vunpack.c.l.b16 %v456
      %v1390 = vunpack.c.h.b16 %v456
      %v1391 = vunpack.c.l.b16 %v457
      %v1392 = vunpack.c.h.b16 %v457
      %v1393 = vunpack.c.l.b16 %v458
      %v1394 = vunpack.c.h.b16 %v458
      %v1395 = vunpack.c.l.b16 %v459
      %v1396 = vunpack.c.l.b16 %v460
      %v1397 = vunpack.c.h.b16 %v460
      %v1398 = vunpack.c.l.b16 %v461
      %v1399 = vunpack.c.h.b16 %v461
      %v1400 = vunpack.c.l.b16 %v462
      %v1401 = vunpack.c.h.b16 %v462
      %v1402 = vunpack.c.l.b16 %v463
      %v1403 = vunpack.c.h.b16 %v463
      %v1404 = vunpack.c.l.b16 %v464
      %v1405 = vunpack.c.l.b16 %v465
      %v1406 = vunpack.c.h.b16 %v465
      %v1407 = vunpack.c.l.b16 %v466
      %v1408 = vunpack.c.h.b16 %v466
      %v1409 = vunpack.c.l.b16 %v467
      %v1410 = vunpack.c.h.b16 %v467
      %v1411 = vunpack.c.l.b16 %v468
      %v1412 = vunpack.c.h.b16 %v468
      %v1413 = vunpack.c.l.b16 %v469
      %v1414 = vunpack.c.l.b16 %v470
      %v1415 = vunpack.c.h.b16 %v470
      %v1416 = vunpack.c.l.b16 %v471
      %v1417 = vunpack.c.h.b16 %v471
      %v1418 = vunpack.c.l.b16 %v472
      %v1419 = vunpack.c.h.b16 %v472
      %v1420 = vunpack.c.l.b16 %v473
      %v1421 = vunpack.c.h.b16 %v473
      %v1422 = vunpack.c.l.b16 %v474
      %v1423 = vunpack.c.l.b16 %v475
      %v1424 = vunpack.c.h.b16 %v475
      %v1425 = vunpack.c.l.b16 %v476
      %v1426 = vunpack.c.h.b16 %v476
      %v1427 = vunpack.c.l.b16 %v477
      %v1428 = vunpack.c.h.b16 %v477
      %v1429 = vunpack.c.l.b16 %v478
      %v1430 = vunpack.c.h.b16 %v478
      %v1431 = vunpack.c.l.b16 %v479
      %v1432 = vunpack.c.l.b16 %v480
      %v1433 = vunpack.c.h.b16 %v480
      %v1434 = vunpack.c.l.b16 %v481
      %v1435 = vunpack.c.h.b16 %v481
      %v1436 = vunpack.c.l.b16 %v482
      %v1437 = vunpack.c.h.b16 %v482
      %v1438 = vunpack.c.l.b16 %v483
      %v1439 = vunpack.c.h.b16 %v483
      %v1440 = vunpack.c.l.b16 %v484
      %v1441 = vunpack.c.l.b16 %v485
      %v1442 = vunpack.c.h.b16 %v485
      %v1443 = vunpack.c.l.b16 %v486
      %v1444 = vunpack.c.h.b16 %v486
      %v1445 = vunpack.c.l.b16 %v487
      %v1446 = vunpack.c.h.b16 %v487
      %v1447 = vunpack.c.l.b16 %v488
      %v1448 = vunpack.c.h.b16 %v488
      %v1449 = vunpack.c.l.b16 %v489
      %v1450 = vunpack.c.l.b16 %v490
      %v1451 = vunpack.c.h.b16 %v490
      %v1452 = vunpack.c.l.b16 %v491
      %v1453 = vunpack.c.h.b16 %v491
      %v1454 = vunpack.c.l.b16 %v492
      %v1455 = vunpack.c.h.b16 %v492
      %v1456 = vunpack.c.l.b16 %v493
      %v1457 = vunpack.c.h.b16 %v493
      %v1458 = vunpack.c.l.b16 %v494
      %v1459 = vunpack.c.l.b16 %v495
      %v1460 = vunpack.c.h.b16 %v495
      %v1461 = vunpack.c.l.b16 %v496
      %v1462 = vunpack.c.h.b16 %v496
      %v1463 = vunpack.c.l.b16 %v497
      %v1464 = vunpack.c.h.b16 %v497
      %v1465 = vunpack.c.l.b16 %v498
      %v1466 = vunpack.c.h.b16 %v498
      %v1467 = vunpack.c.l.b16 %v499
      %v1468 = vunpack.c.l.b16 %v500
      %v1469 = vunpack.c.h.b16 %v500
      %v1470 = vunpack.c.l.b16 %v501
      %v1471 = vunpack.c.h.b16 %v501
      %v1472 = vunpack.c.l.b16 %v502
      %v1473 = vunpack.c.h.b16 %v502
      %v1474 = vunpack.c.l.b16 %v503
      %v1475 = vunpack.c.h.b16 %v503
      %v1476 = vunpack.c.l.b16 %v504
      %v1477 = vunpack.c.l.b16 %v505
      %v1478 = vunpack.c.h.b16 %v505
      %v1479 = vunpack.c.l.b16 %v506
      %v1480 = vunpack.c.h.b16 %v506
      %v1481 = vunpack.c.l.b16 %v507
      %v1482 = vunpack.c.h.b16 %v507
      %v1483 = vunpack.c.l.b16 %v508
      %v1484 = vunpack.c.h.b16 %v508
      %v1485 = vunpack.c.l.b16 %v509
      %v1486 = vunpack.c.l.b16 %v510
      %v1487 = vunpack.c.h.b16 %v510
      %v1488 = vunpack.c.l.b16 %v511
      %v1489 = vunpack.c.h.b16 %v511
      %v1490 = vunpack.c.l.b16 %v512
      %v1491 = vunpack.c.h.b16 %v512
      %v1492 = vunpack.c.l.b16 %v513
      %v1493 = vunpack.c.h.b16 %v513
      %v1494 = vunpack.c.l.b16 %v514
      %v1495 = vunpack.c.l.b16 %v515
      %v1496 = vunpack.c.h.b16 %v515
      %v1497 = vunpack.c.l.b16 %v516
      %v1498 = vunpack.c.h.b16 %v516
      %v1499 = vunpack.c.l.b16 %v517
      %v1500 = vunpack.c.h.b16 %v517
      %v1501 = vunpack.c.l.b16 %v518
      %v1502 = vunpack.c.h.b16 %v518
      %v1503 = vunpack.c.l.b16 %v519
      %v1504 = vunpack.c.l.b16 %v520
      %v1505 = vunpack.c.h.b16 %v520
      %v1506 = vunpack.c.l.b16 %v521
      %v1507 = vunpack.c.h.b16 %v521
      %v1508 = vunpack.c.l.b16 %v522
      %v1509 = vunpack.c.h.b16 %v522
      %v1510 = vunpack.c.l.b16 %v523
      %v1511 = vunpack.c.h.b16 %v523
      %v1512 = vunpack.c.l.b16 %v524
      %v1513 = vunpack.c.l.b16 %v525
      %v1514 = vunpack.c.h.b16 %v525
      %v1515 = vunpack.c.l.b16 %v526
      %v1516 = vunpack.c.h.b16 %v526
      %v1517 = vunpack.c.l.b16 %v527
      %v1518 = vunpack.c.h.b16 %v527
      %v1519 = vunpack.c.l.b16 %v528
      %v1520 = vunpack.c.h.b16 %v528
      %v1521 = vunpack.c.l.b16 %v529
      %v1522 = vunpack.c.l.b16 %v530
      %v1523 = vunpack.c.h.b16 %v530
      %v1524 = vunpack.c.l.b16 %v531
      %v1525 = vunpack.c.h.b16 %v531
      %v1526 = vunpack.c.l.b16 %v532
      %v1527 = vunpack.c.h.b16 %v532
      %v1528 = vunpack.c.l.b16 %v533
      %v1529 = vunpack.c.h.b16 %v533
      %v1530 = vunpack.c.l.b16 %v534
      %v1531 = vunpack.c.l.b16 %v535
      %v1532 = vunpack.c.h.b16 %v535
      %v1533 = vunpack.c.l.b16 %v536
      %v1534 = vunpack.c.h.b16 %v536
      %v1535 = vunpack.c.l.b16 %v537
      %v1536 = vunpack.c.h.b16 %v537
      %v1537 = vunpack.c.l.b16 %v538
      %v1538 = vunpack.c.h.b16 %v538
      %v1539 = vunpack.c.l.b16 %v539
      %v1540 = vunpack.c.l.b16 %v540
      %v1541 = vunpack.c.h.b16 %v540
      %v1542 = vunpack.c.l.b16 %v541
      %v1543 = vunpack.c.h.b16 %v541
      %v1544 = vunpack.c.l.b16 %v542
      %v1545 = vunpack.c.h.b16 %v542
      %v1546 = vunpack.c.l.b16 %v543
      %v1547 = vunpack.c.h.b16 %v543
      %v1548 = vunpack.c.l.b16 %v544
      %v1549 = vunpack.c.l.b16 %v545
      %v1550 = vunpack.c.h.b16 %v545
      %v1551 = vunpack.c.l.b16 %v546
      %v1552 = vunpack.c.h.b16 %v546
      %v1553 = vunpack.c.l.b16 %v547
      %v1554 = vunpack.c.h.b16 %v547
      %v1555 = vunpack.c.l.b16 %v548
      %v1556 = vunpack.c.h.b16 %v548
      %v1557 = vunpack.c.l.b16 %v549
      %v1558 = vunpack.c.l.b16 %v550
      %v1559 = vunpack.c.h.b16 %v550
      %v1560 = vunpack.c.l.b16 %v551
      %v1561 = vunpack.c.h.b16 %v551
      %v1562 = vunpack.c.l.b16 %v552
      %v1563 = vunpack.c.h.b16 %v552
      %v1564 = vunpack.c.l.b16 %v553
      %v1565 = vunpack.c.h.b16 %v553
      %v1566 = vunpack.c.l.b16 %v554
      %v1567 = vunpack.c.l.b16 %v555
      %v1568 = vunpack.c.h.b16 %v555
      %v1569 = vunpack.c.l.b16 %v556
      %v1570 = vunpack.c.h.b16 %v556
      %v1571 = vunpack.c.l.b16 %v557
      %v1572 = vunpack.c.h.b16 %v557
      %v1573 = vunpack.c.l.b16 %v558
      %v1574 = vunpack.c.h.b16 %v558
      %v1575 = vunpack.c.l.b16 %v559
      %v1576 = vunpack.c.l.b16 %v560
      %v1577 = vunpack.c.h.b16 %v560
      %v1578 = vunpack.c.l.b16 %v561
      %v1579 = vunpack.c.h.b16 %v561
      %v1580 = vunpack.c.l.b16 %v562
      %v1581 = vunpack.c.h.b16 %v562
      %v1582 = vunpack.c.l.b16 %v563
      %v1583 = vunpack.c.h.b16 %v563
      %v1584 = vunpack.c.l.b16 %v564
      %v1585 = vunpack.c.l.b16 %v565
      %v1586 = vunpack.c.h.b16 %v565
      %v1587 = vunpack.c.l.b16 %v566
      %v1588 = vunpack.c.h.b16 %v566
      %v1589 = vunpack.c.l.b16 %v567
      %v1590 = vunpack.c.h.b16 %v567
      %v1591 = vunpack.c.l.b16 %v568
      %v1592 = vunpack.c.h.b16 %v568
      %v1593 = vunpack.c.l.b16 %v569
      %v1594 = vunpack.c.l.b16 %v570
      %v1595 = vunpack.c.h.b16 %v570
      %v1596 = vunpack.c.l.b16 %v571
      %v1597 = vunpack.c.h.b16 %v571
      %v1598 = vunpack.c.l.b16 %v572
      %v1599 = vunpack.c.h.b16 %v572
      %v1600 = vunpack.c.l.b16 %v573
      %v1601 = vunpack.c.h.b16 %v573
      %v1602 = vunpack.c.l.b16 %v574
      %v1603 = vunpack.c.l.b16 %v575
      %v1604 = vunpack.c.h.b16 %v575
      %v1605 = vunpack.c.l.b16 %v576
      %v1606 = vunpack.c.h.b16 %v576
      %v1607 = vunpack.c.l.b16 %v577
      %v1608 = vunpack.c.h.b16 %v577
      %v1609 = vunpack.c.l.b16 %v578
      %v1610 = vunpack.c.h.b16 %v578
      %v1611 = vunpack.c.l.b16 %v579
      %v1612 = vunpack.c.l.b16 %v580
      %v1613 = vunpack.c.h.b16 %v580
      %v1614 = vunpack.c.l.b16 %v581
      %v1615 = vunpack.c.h.b16 %v581
      %v1616 = vunpack.c.l.b16 %v582
      %v1617 = vunpack.c.h.b16 %v582
      %v1618 = vunpack.c.l.b16 %v583
      %v1619 = vunpack.c.h.b16 %v583
      %v1620 = vunpack.c.l.b16 %v584
      %v1621 = vunpack.c.l.b16 %v585
      %v1622 = vunpack.c.h.b16 %v585
      %v1623 = vunpack.c.l.b16 %v586
      %v1624 = vunpack.c.h.b16 %v586
      %v1625 = vunpack.c.l.b16 %v587
      %v1626 = vunpack.c.h.b16 %v587
      %v1627 = vunpack.c.l.b16 %v588
      %v1628 = vunpack.c.h.b16 %v588
      %v1629 = vunpack.c.l.b16 %v589
      %v1630 = vpack.c.b16 %v1063, %v1054
      %v1631 = vpack.c.b16 %v1064, %v1055
      %v1632 = vpack.c.b16 %v1065, %v1056
      %v1633 = vpack.c.b16 %v1066, %v1057
      %v1634 = vpack.c.b16 %v1067, %v1058
      %v1635 = vpack.c.b16 %v1068, %v1059
      %v1636 = vpack.c.b16 %v1069, %v1060
      %v1637 = vpack.c.b16 %v1070, %v1061
      %v1638 = vpack.c.b16 %v1071, %v1062
      %v1639 = vpack.c.b16 %v1081, %v1072
      %v1640 = vpack.c.b16 %v1082, %v1073
      %v1641 = vpack.c.b16 %v1083, %v1074
      %v1642 = vpack.c.b16 %v1084, %v1075
      %v1643 = vpack.c.b16 %v1085, %v1076
      %v1644 = vpack.c.b16 %v1086, %v1077
      %v1645 = vpack.c.b16 %v1087, %v1078
      %v1646 = vpack.c.b16 %v1088, %v1079
      %v1647 = vpack.c.b16 %v1089, %v1080
      %v1648 = vpack.c.b16 %v1099, %v1090
      %v1649 = vpack.c.b16 %v1100, %v1091
      %v1650 = vpack.c.b16 %v1101, %v1092
      %v1651 = vpack.c.b16 %v1102, %v1093
      %v1652 = vpack.c.b16 %v1103, %v1094
      %v1653 = vpack.c.b16 %v1104, %v1095
      %v1654 = vpack.c.b16 %v1105, %v1096
      %v1655 = vpack.c.b16 %v1106, %v1097
      %v1656 = vpack.c.b16 %v1107, %v1098
      %v1657 = vpack.c.b16 %v1117, %v1108
      %v1658 = vpack.c.b16 %v1118, %v1109
      %v1659 = vpack.c.b16 %v1119, %v1110
      %v1660 = vpack.c.b16 %v1120, %v1111
      %v1661 = vpack.c.b16 %v1121, %v1112
      %v1662 = vpack.c.b16 %v1122, %v1113
      %v1663 = vpack.c.b16 %v1123, %v1114
      %v1664 = vpack.c.b16 %v1124, %v1115
      %v1665 = vpack.c.b16 %v1125, %v1116
      %v1666 = vpack.c.b16 %v1135, %v1126
      %v1667 = vpack.c.b16 %v1136, %v1127
      %v1668 = vpack.c.b16 %v1137, %v1128
      %v1669 = vpack.c.b16 %v1138, %v1129
      %v1670 = vpack.c.b16 %v1139, %v1130
      %v1671 = vpack.c.b16 %v1140, %v1131
      %v1672 = vpack.c.b16 %v1141, %v1132
      %v1673 = vpack.c.b16 %v1142, %v1133
      %v1674 = vpack.c.b16 %v1143, %v1134
      %v1675 = vpack.c.b16 %v1153, %v1144
      %v1676 = vpack.c.b16 %v1154, %v1145
      %v1677 = vpack.c.b16 %v1155, %v1146
      %v1678 = vpack.c.b16 %v1156, %v1147
      %v1679 = vpack.c.b16 %v1157, %v1148
      %v1680 = vpack.c.b16 %v1158, %v1149
      %v1681 = vpack.c.b16 %v1159, %v1150
      %v1682 = vpack.c.b16 %v1160, %v1151
      %v1683 = vpack.c.b16 %v1161, %v1152
      %v1684 = vpack.c.b16 %v1171, %v1162
      %v1685 = vpack.c.b16 %v1172, %v1163
      %v1686 = vpack.c.b16 %v1173, %v1164
      %v1687 = vpack.c.b16 %v1174, %v1165
      %v1688 = vpack.c.b16 %v1175, %v1166
      %v1689 = vpack.c.b16 %v1176, %v1167
      %v1690 = vpack.c.b16 %v1177, %v1168
      %v1691 = vpack.c.b16 %v1178, %v1169
      %v1692 = vpack.c.b16 %v1179, %v1170
      %v1693 = vpack.c.b16 %v1189, %v1180
      %v1694 = vpack.c.b16 %v1190, %v1181
      %v1695 = vpack.c.b16 %v1191, %v1182
      %v1696 = vpack.c.b16 %v1192, %v1183
      %v1697 = vpack.c.b16 %v1193, %v1184
      %v1698 = vpack.c.b16 %v1194, %v1185
      %v1699 = vpack.c.b16 %v1195, %v1186
      %v1700 = vpack.c.b16 %v1196, %v1187
      %v1701 = vpack.c.b16 %v1197, %v1188
      %v1702 = vpack.c.b16 %v1207, %v1198
      %v1703 = vpack.c.b16 %v1208, %v1199
      %v1704 = vpack.c.b16 %v1209, %v1200
      %v1705 = vpack.c.b16 %v1210, %v1201
      %v1706 = vpack.c.b16 %v1211, %v1202
      %v1707 = vpack.c.b16 %v1212, %v1203
      %v1708 = vpack.c.b16 %v1213, %v1204
      %v1709 = vpack.c.b16 %v1214, %v1205
      %v1710 = vpack.c.b16 %v1215, %v1206
      %v1711 = vpack.c.b16 %v1225, %v1216
      %v1712 = vpack.c.b16 %v1226, %v1217
      %v1713 = vpack.c.b16 %v1227, %v1218
      %v1714 = vpack.c.b16 %v1228, %v1219
      %v1715 = vpack.c.b16 %v1229, %v1220
      %v1716 = vpack.c.b16 %v1230, %v1221
      %v1717 = vpack.c.b16 %v1231, %v1222
      %v1718 = vpack.c.b16 %v1232, %v1223
      %v1719 = vpack.c.b16 %v1233, %v1224
      %v1720 = vpack.c.b16 %v1243, %v1234
      %v1721 = vpack.c.b16 %v1244, %v1235
      %v1722 = vpack.c.b16 %v1245, %v1236
      %v1723 = vpack.c.b16 %v1246, %v1237
      %v1724 = vpack.c.b16 %v1247, %v1238
      %v1725 = vpack.c.b16 %v1248, %v1239
      %v1726 = vpack.c.b16 %v1249, %v1240
      %v1727 = vpack.c.b16 %v1250, %v1241
      %v1728 = vpack.c.b16 %v1251, %v1242
      %v1729 = vpack.c.b16 %v1261, %v1252
      %v1730 = vpack.c.b16 %v1262, %v1253
      %v1731 = vpack.c.b16 %v1263, %v1254
      %v1732 = vpack.c.b16 %v1264, %v1255
      %v1733 = vpack.c.b16 %v1265, %v1256
      %v1734 = vpack.c.b16 %v1266, %v1257
      %v1735 = vpack.c.b16 %v1267, %v1258
      %v1736 = vpack.c.b16 %v1268, %v1259
      %v1737 = vpack.c.b16 %v1269, %v1260
      %v1738 = vpack.c.b16 %v1279, %v1270
      %v1739 = vpack.c.b16 %v1280, %v1271
      %v1740 = vpack.c.b16 %v1281, %v1272
      %v1741 = vpack.c.b16 %v1282, %v1273
      %v1742 = vpack.c.b16 %v1283, %v1274
      %v1743 = vpack.c.b16 %v1284, %v1275
      %v1744 = vpack.c.b16 %v1285, %v1276
      %v1745 = vpack.c.b16 %v1286, %v1277
      %v1746 = vpack.c.b16 %v1287, %v1278
      %v1747 = vpack.c.b16 %v1297, %v1288
      %v1748 = vpack.c.b16 %v1298, %v1289
      %v1749 = vpack.c.b16 %v1299, %v1290
      %v1750 = vpack.c.b16 %v1300, %v1291
      %v1751 = vpack.c.b16 %v1301, %v1292
      %v1752 = vpack.c.b16 %v1302, %v1293
      %v1753 = vpack.c.b16 %v1303, %v1294
      %v1754 = vpack.c.b16 %v1304, %v1295
      %v1755 = vpack.c.b16 %v1305, %v1296
      %v1756 = vpack.c.b16 %v1315, %v1306
      %v1757 = vpack.c.b16 %v1316, %v1307
      %v1758 = vpack.c.b16 %v1317, %v1308
      %v1759 = vpack.c.b16 %v1318, %v1309
      %v1760 = vpack.c.b16 %v1319, %v1310
      %v1761 = vpack.c.b16 %v1320, %v1311
      %v1762 = vpack.c.b16 %v1321, %v1312
      %v1763 = vpack.c.b16 %v1322, %v1313
      %v1764 = vpack.c.b16 %v1323, %v1314
      %v1765 = vpack.c.b16 %v1333, %v1324
      %v1766 = vpack.c.b16 %v1334, %v1325
      %v1767 = vpack.c.b16 %v1335, %v1326
      %v1768 = vpack.c.b16 %v1336, %v1327
      %v1769 = vpack.c.b16 %v1337, %v1328
      %v1770 = vpack.c.b16 %v1338, %v1329
      %v1771 = vpack.c.b16 %v1339, %v1330
      %v1772 = vpack.c.b16 %v1340, %v1331
      %v1773 = vpack.c.b16 %v1341, %v1332
      %v1774 = vpack.c.b16 %v1351, %v1342
      %v1775 = vpack.c.b16 %v1352, %v1343
      %v1776 = vpack.c.b16 %v1353, %v1344
      %v1777 = vpack.c.b16 %v1354, %v1345
      %v1778 = vpack.c.b16 %v1355, %v1346
      %v1779 = vpack.c.b16 %v1356, %v1347
      %v1780 = vpack.c.b16 %v1357, %v1348
      %v1781 = vpack.c.b16 %v1358, %v1349
      %v1782 = vpack.c.b16 %v1359, %v1350
      %v1783 = vpack.c.b16 %v1369, %v1360
      %v1784 = vpack.c.b16 %v1370, %v1361
      %v1785 = vpack.c.b16 %v1371, %v1362
      %v1786 = vpack.c.b16 %v1372, %v1363
      %v1787 = vpack.c.b16 %v1373, %v1364
      %v1788 = vpack.c.b16 %v1374, %v1365
      %v1789 = vpack.c.b16 %v1375, %v1366
      %v1790 = vpack.c.b16 %v1376, %v1367
      %v1791 = vpack.c.b16 %v1377, %v1368
      %v1792 = vpack.c.b16 %v1387, %v1378
      %v1793 = vpack.c.b16 %v1388, %v1379
      %v1794 = vpack.c.b16 %v1389, %v1380
      %v1795 = vpack.c.b16 %v1390, %v1381
      %v1796 = vpack.c.b16 %v1391, %v1382
      %v1797 = vpack.c.b16 %v1392, %v1383
      %v1798 = vpack.c.b16 %v1393, %v1384
      %v1799 = vpack.c.b16 %v1394, %v1385
      %v1800 = vpack.c.b16 %v1395, %v1386
      %v1801 = vpack.c.b16 %v1405, %v1396
      %v1802 = vpack.c.b16 %v1406, %v1397
      %v1803 = vpack.c.b16 %v1407, %v1398
      %v1804 = vpack.c.b16 %v1408, %v1399
      %v1805 = vpack.c.b16 %v1409, %v1400
      %v1806 = vpack.c.b16 %v1410, %v1401
      %v1807 = vpack.c.b16 %v1411, %v1402
      %v1808 = vpack.c.b16 %v1412, %v1403
      %v1809 = vpack.c.b16 %v1413, %v1404
      %v1810 = vpack.c.b16 %v1423, %v1414
      %v1811 = vpack.c.b16 %v1424, %v1415
      %v1812 = vpack.c.b16 %v1425, %v1416
      %v1813 = vpack.c.b16 %v1426, %v1417
      %v1814 = vpack.c.b16 %v1427, %v1418
      %v1815 = vpack.c.b16 %v1428, %v1419
      %v1816 = vpack.c.b16 %v1429, %v1420
      %v1817 = vpack.c.b16 %v1430, %v1421
      %v1818 = vpack.c.b16 %v1431, %v1422
      %v1819 = vpack.c.b16 %v1441, %v1432
      %v1820 = vpack.c.b16 %v1442, %v1433
      %v1821 = vpack.c.b16 %v1443, %v1434
      %v1822 = vpack.c.b16 %v1444, %v1435
      %v1823 = vpack.c.b16 %v1445, %v1436
      %v1824 = vpack.c.b16 %v1446, %v1437
      %v1825 = vpack.c.b16 %v1447, %v1438
      %v1826 = vpack.c.b16 %v1448, %v1439
      %v1827 = vpack.c.b16 %v1449, %v1440
      %v1828 = vpack.c.b16 %v1459, %v1450
      %v1829 = vpack.c.b16 %v1460, %v1451
      %v1830 = vpack.c.b16 %v1461, %v1452
      %v1831 = vpack.c.b16 %v1462, %v1453
      %v1832 = vpack.c.b16 %v1463, %v1454
      %v1833 = vpack.c.b16 %v1464, %v1455
      %v1834 = vpack.c.b16 %v1465, %v1456
      %v1835 = vpack.c.b16 %v1466, %v1457
      %v1836 = vpack.c.b16 %v1467, %v1458
      %v1837 = vpack.c.b16 %v1477, %v1468
      %v1838 = vpack.c.b16 %v1478, %v1469
      %v1839 = vpack.c.b16 %v1479, %v1470
      %v1840 = vpack.c.b16 %v1480, %v1471
      %v1841 = vpack.c.b16 %v1481, %v1472
      %v1842 = vpack.c.b16 %v1482, %v1473
      %v1843 = vpack.c.b16 %v1483, %v1474
      %v1844 = vpack.c.b16 %v1484, %v1475
      %v1845 = vpack.c.b16 %v1485, %v1476
      %v1846 = vpack.c.b16 %v1495, %v1486
      %v1847 = vpack.c.b16 %v1496, %v1487
      %v1848 = vpack.c.b16 %v1497, %v1488
      %v1849 = vpack.c.b16 %v1498, %v1489
      %v1850 = vpack.c.b16 %v1499, %v1490
      %v1851 = vpack.c.b16 %v1500, %v1491
      %v1852 = vpack.c.b16 %v1501, %v1492
      %v1853 = vpack.c.b16 %v1502, %v1493
      %v1854 = vpack.c.b16 %v1503, %v1494
      %v1855 = vpack.c.b16 %v1513, %v1504
      %v1856 = vpack.c.b16 %v1514, %v1505
      %v1857 = vpack.c.b16 %v1515, %v1506
      %v1858 = vpack.c.b16 %v1516, %v1507
      %v1859 = vpack.c.b16 %v1517, %v1508
      %v1860 = vpack.c.b16 %v1518, %v1509
      %v1861 = vpack.c.b16 %v1519, %v1510
      %v1862 = vpack.c.b16 %v1520, %v1511
      %v1863 = vpack.c.b16 %v1521, %v1512
      %v1864 = vpack.c.b16 %v1531, %v1522
      %v1865 = vpack.c.b16 %v1532, %v1523
      %v1866 = vpack.c.b16 %v1533, %v1524
      %v1867 = vpack.c.b16 %v1534, %v1525
      %v1868 = vpack.c.b16 %v1535, %v1526
      %v1869 = vpack.c.b16 %v1536, %v1527
      %v1870 = vpack.c.b16 %v1537, %v1528
      %v1871 = vpack.c.b16 %v1538, %v1529
      %v1872 = vpack.c.b16 %v1539, %v1530
      %v1873 = vpack.c.b16 %v1549, %v1540
      %v1874 = vpack.c.b16 %v1550, %v1541
      %v1875 = vpack.c.b16 %v1551, %v1542
      %v1876 = vpack.c.b16 %v1552, %v1543
      %v1877 = vpack.c.b16 %v1553, %v1544
      %v1878 = vpack.c.b16 %v1554, %v1545
      %v1879 = vpack.c.b16 %v1555, %v1546
      %v1880 = vpack.c.b16 %v1556, %v1547
      %v1881 = vpack.c.b16 %v1557, %v1548
      %v1882 = vpack.c.b16 %v1567, %v1558
      %v1883 = vpack.c.b16 %v1568, %v1559
      %v1884 = vpack.c.b16 %v1569, %v1560
      %v1885 = vpack.c.b16 %v1570, %v1561
      %v1886 = vpack.c.b16 %v1571, %v1562
      %v1887 = vpack.c.b16 %v1572, %v1563
      %v1888 = vpack.c.b16 %v1573, %v1564
      %v1889 = vpack.c.b16 %v1574, %v1565
      %v1890 = vpack.c.b16 %v1575, %v1566
      %v1891 = vpack.c.b16 %v1585, %v1576
      %v1892 = vpack.c.b16 %v1586, %v1577
      %v1893 = vpack.c.b16 %v1587, %v1578
      %v1894 = vpack.c.b16 %v1588, %v1579
      %v1895 = vpack.c.b16 %v1589, %v1580
      %v1896 = vpack.c.b16 %v1590, %v1581
      %v1897 = vpack.c.b16 %v1591, %v1582
      %v1898 = vpack.c.b16 %v1592, %v1583
      %v1899 = vpack.c.b16 %v1593, %v1584
      %v1900 = vpack.c.b16 %v1603, %v1594
      %v1901 = vpack.c.b16 %v1604, %v1595
      %v1902 = vpack.c.b16 %v1605, %v1596
      %v1903 = vpack.c.b16 %v1606, %v1597
      %v1904 = vpack.c.b16 %v1607, %v1598
      %v1905 = vpack.c.b16 %v1608, %v1599
      %v1906 = vpack.c.b16 %v1609, %v1600
      %v1907 = vpack.c.b16 %v1610, %v1601
      %v1908 = vpack.c.b16 %v1611, %v1602
      %v1909 = vpack.c.b16 %v1621, %v1612
      %v1910 = vpack.c.b16 %v1622, %v1613
      %v1911 = vpack.c.b16 %v1623, %v1614
      %v1912 = vpack.c.b16 %v1624, %v1615
      %v1913 = vpack.c.b16 %v1625, %v1616
      %v1914 = vpack.c.b16 %v1626, %v1617
      %v1915 = vpack.c.b16 %v1627, %v1618
      %v1916 = vpack.c.b16 %v1628, %v1619
      %v1917 = vpack.c.b16 %v1629, %v1620
      %v2350 = vunpack.c.l.b16 %v590
      %v2351 = vunpack.c.l.b16 %v591
      %v2352 = vunpack.c.l.b16 %v592
      %v2353 = vunpack.c.l.b16 %v593
      %v2354 = vunpack.c.l.b16 %v594
      %v2355 = vunpack.c.l.b16 %v595
      %v2356 = vunpack.c.l.b16 %v596
      %v2357 = vunpack.c.l.b16 %v597
      %v2358 = vunpack.c.l.b16 %v598
      %v2359 = vunpack.c.l.b16 %v599
      %v2360 = vunpack.c.l.b16 %v600
      %v2361 = vunpack.c.l.b16 %v601
      %v2362 = vunpack.c.l.b16 %v602
      %v2363 = vunpack.c.l.b16 %v603
      %v2364 = vunpack.c.l.b16 %v604
      %v2365 = vunpack.c.l.b16 %v605
      %v2366 = vunpack.c.l.b16 %v606
      %v2367 = vunpack.c.l.b16 %v607
      %v2368 = vunpack.c.l.b16 %v608
      %v2369 = vunpack.c.l.b16 %v609
      %v2370 = vunpack.c.l.b16 %v610
      %v2371 = vunpack.c.l.b16 %v611
      %v2372 = vunpack.c.l.b16 %v612
      %v2373 = vunpack.c.l.b16 %v613
      %v2374 = vunpack.c.l.b16 %v614
      %v2375 = vunpack.c.l.b16 %v615
      %v2376 = vunpack.c.l.b16 %v616
      %v2377 = vunpack.c.l.b16 %v617
      %v2378 = vunpack.c.l.b16 %v618
      %v2379 = vunpack.c.l.b16 %v619
      %v2380 = vunpack.c.l.b16 %v620
      %v2381 = vunpack.c.l.b16 %v621
      %v2382 = vunpack.c.l.b16 %v622
      %v2383 = vunpack.c.l.b16 %v623
      %v2384 = vunpack.c.l.b16 %v624
      %v2385 = vunpack.c.l.b16 %v625
      %v2386 = vunpack.c.l.b16 %v626
      %v2387 = vunpack.c.l.b16 %v627
      %v2388 = vunpack.c.l.b16 %v628
      %v2389 = vunpack.c.l.b16 %v629
      %v2390 = vunpack.c.l.b16 %v630
      %v2391 = vunpack.c.l.b16 %v631
      %v2392 = vunpack.c.l.b16 %v632
      %v2393 = vunpack.c.l.b16 %v633
      %v2394 = vunpack.c.l.b16 %v634
      %v2395 = vunpack.c.l.b16 %v635
      %v2396 = vunpack.c.l.b16 %v636
      %v2397 = vunpack.c.l.b16 %v637
      %v2398 = vunpack.c.l.b16 %v638
      %v2399 = vunpack.c.l.b16 %v639
      %v2400 = vunpack.c.l.b16 %v640
      %v2401 = vunpack.c.l.b16 %v641
      %v2402 = vunpack.c.l.b16 %v642
      %v2403 = vunpack.c.l.b16 %v643
      %v2404 = vunpack.c.l.b16 %v644
      %v2405 = vunpack.c.l.b16 %v645
      %v2406 = vunpack.c.l.b16 %v646
      %v2407 = vunpack.c.l.b16 %v647
      %v2408 = vunpack.c.l.b16 %v648
      %v2409 = vunpack.c.l.b16 %v649
      %v2410 = vunpack.c.l.b16 %v650
      %v2411 = vunpack.c.l.b16 %v651
      %v2412 = vunpack.c.l.b16 %v652
      %v2413 = vunpack.c.l.b16 %v653
      %v2414 = vunpack.c.l.b16 %v654
      %v2415 = vunpack.c.l.b16 %v655
      %v2416 = vunpack.c.l.b16 %v656
      %v2417 = vunpack.c.l.b16 %v657
      %v2418 = vunpack.c.l.b16 %v658
      %v2419 = vunpack.c.l.b16 %v659
      %v2420 = vunpack.c.l.b16 %v660
      %v2421 = vunpack.c.l.b16 %v661
      %v2422 = vunpack.c.l.b16 %v662
      %v2423 = vunpack.c.l.b16 %v663
      %v2424 = vunpack.c.l.b16 %v664
      %v2425 = vunpack.c.l.b16 %v665
      %v2426 = vunpack.c.l.b16 %v666
      %v2427 = vunpack.c.l.b16 %v667
      %v2428 = vunpack.c.l.b16 %v668
      %v2429 = vunpack.c.l.b16 %v669
      %v2430 = vunpack.c.l.b16 %v670
      %v2431 = vunpack.c.l.b16 %v671
      %v2432 = vunpack.c.l.b16 %v672
      %v2433 = vunpack.c.l.b16 %v673
      %v2434 = vunpack.c.l.b16 %v674
      %v2435 = vunpack.c.l.b16 %v675
      %v2436 = vunpack.c.l.b16 %v676
      %v2437 = vunpack.c.l.b16 %v677
      %v2438 = vunpack.c.l.b16 %v678
      %v2439 = vunpack.c.l.b16 %v679
      %v2440 = vunpack.c.l.b16 %v680
      %v2441 = vunpack.c.l.b16 %v681
      %v2442 = vunpack.c.l.b16 %v682
      %v2443 = vunpack.c.l.b16 %v683
      %v2444 = vunpack.c.l.b16 %v684
      %v2445 = vunpack.c.l.b16 %v685
      %v2446 = vunpack.c.l.b16 %v686
      %v2447 = vunpack.c.l.b16 %v687
      %v2448 = vunpack.c.l.b16 %v688
      %v2449 = vunpack.c.l.b16 %v689
      %v2450 = vunpack.c.l.b16 %v690
      %v2451 = vunpack.c.l.b16 %v691
      %v2452 = vunpack.c.l.b16 %v692
      %v2453 = vunpack.c.l.b16 %v693
      %v2454 = vunpack.c.l.b16 %v694
      %v2455 = vunpack.c.l.b16 %v695
      %v2456 = vunpack.c.l.b16 %v696
      %v2457 = vunpack.c.l.b16 %v697
      %v2458 = vunpack.c.l.b16 %v698
      %v2459 = vunpack.c.l.b16 %v699
      %v2460 = vunpack.c.l.b16 %v700
      %v2461 = vunpack.c.l.b16 %v701
      %v2462 = vunpack.c.l.b16 %v702
      %v2463 = vunpack.c.l.b16 %v703
      %v2464 = vunpack.c.l.b16 %v704
      %v2465 = vunpack.c.l.b16 %v705
      %v2466 = vunpack.c.l.b16 %v706
      %v2467 = vunpack.c.l.b16 %v707
      %v2468 = vunpack.c.l.b16 %v708
      %v2469 = vunpack.c.l.b16 %v709
      %v2470 = vunpack.c.l.b16 %v710
      %v2471 = vunpack.c.l.b16 %v711
      %v2472 = vunpack.c.l.b16 %v712
      %v2473 = vunpack.c.l.b16 %v713
      %v2474 = vunpack.c.l.b16 %v714
      %v2475 = vunpack.c.l.b16 %v715
      %v2476 = vunpack.c.l.b16 %v716
      %v2477 = vunpack.c.l.b16 %v717
      %v2478 = vunpack.c.l.b16 %v718
      %v2479 = vunpack.c.l.b16 %v719
      %v2480 = vunpack.c.l.b16 %v720
      %v2481 = vunpack.c.l.b16 %v721
      %v2482 = vunpack.c.l.b16 %v722
      %v2483 = vunpack.c.l.b16 %v723
      %v2484 = vunpack.c.l.b16 %v724
      %v2485 = vunpack.c.l.b16 %v725
      %v2486 = vunpack.c.l.b16 %v726
      %v2487 = vunpack.c.l.b16 %v727
      %v2488 = vunpack.c.l.b16 %v728
      %v2489 = vunpack.c.l.b16 %v729
      %v2490 = vunpack.c.l.b16 %v730
      %v2491 = vunpack.c.l.b16 %v731
      %v2492 = vunpack.c.l.b16 %v732
      %v2493 = vunpack.c.l.b16 %v733
      %v2494 = vpack.c.b16 %v2351, %v2350
      %v2495 = vpack.c.b16 %v2353, %v2352
      %v2496 = vpack.c.b16 %v2355, %v2354
      %v2497 = vpack.c.b16 %v2357, %v2356
      %v2498 = vpack.c.b16 %v2359, %v2358
      %v2499 = vpack.c.b16 %v2361, %v2360
      %v2500 = vpack.c.b16 %v2363, %v2362
      %v2501 = vpack.c.b16 %v2365, %v2364
      %v2502 = vpack.c.b16 %v2367, %v2366
      %v2503 = vpack.c.b16 %v2369, %v2368
      %v2504 = vpack.c.b16 %v2371, %v2370
      %v2505 = vpack.c.b16 %v2373, %v2372
      %v2506 = vpack.c.b16 %v2375, %v2374
      %v2507 = vpack.c.b16 %v2377, %v2376
      %v2508 = vpack.c.b16 %v2379, %v2378
      %v2509 = vpack.c.b16 %v2381, %v2380
      %v2510 = vpack.c.b16 %v2383, %v2382
      %v2511 = vpack.c.b16 %v2385, %v2384
      %v2512 = vpack.c.b16 %v2387, %v2386
      %v2513 = vpack.c.b16 %v2389, %v2388
      %v2514 = vpack.c.b16 %v2391, %v2390
      %v2515 = vpack.c.b16 %v2393, %v2392
      %v2516 = vpack.c.b16 %v2395, %v2394
      %v2517 = vpack.c.b16 %v2397, %v2396
      %v2518 = vpack.c.b16 %v2399, %v2398
      %v2519 = vpack.c.b16 %v2401, %v2400
      %v2520 = vpack.c.b16 %v2403, %v2402
      %v2521 = vpack.c.b16 %v2405, %v2404
      %v2522 = vpack.c.b16 %v2407, %v2406
      %v2523 = vpack.c.b16 %v2409, %v2408
      %v2524 = vpack.c.b16 %v2411, %v2410
      %v2525 = vpack.c.b16 %v2413, %v2412
      %v2526 = vpack.c.b16 %v2415, %v2414
      %v2527 = vpack.c.b16 %v2417, %v2416
      %v2528 = vpack.c.b16 %v2419, %v2418
      %v2529 = vpack.c.b16 %v2421, %v2420
      %v2530 = vpack.c.b16 %v2423, %v2422
      %v2531 = vpack.c.b16 %v2425, %v2424
      %v2532 = vpack.c.b16 %v2427, %v2426
      %v2533 = vpack.c.b16 %v2429, %v2428
      %v2534 = vpack.c.b16 %v2431, %v2430
      %v2535 = vpack.c.b16 %v2433, %v2432
      %v2536 = vpack.c.b16 %v2435, %v2434
      %v2537 = vpack.c.b16 %v2437, %v2436
      %v2538 = vpack.c.b16 %v2439, %v2438
      %v2539 = vpack.c.b16 %v2441, %v2440
      %v2540 = vpack.c.b16 %v2443, %v2442
      %v2541 = vpack.c.b16 %v2445, %v2444
      %v2542 = vpack.c.b16 %v2447, %v2446
      %v2543 = vpack.c.b16 %v2449, %v2448
      %v2544 = vpack.c.b16 %v2451, %v2450
      %v2545 = vpack.c.b16 %v2453, %v2452
      %v2546 = vpack.c.b16 %v2455, %v2454
      %v2547 = vpack.c.b16 %v2457, %v2456
      %v2548 = vpack.c.b16 %v2459, %v2458
      %v2549 = vpack.c.b16 %v2461, %v2460
      %v2550 = vpack.c.b16 %v2463, %v2462
      %v2551 = vpack.c.b16 %v2465, %v2464
      %v2552 = vpack.c.b16 %v2467, %v2466
      %v2553 = vpack.c.b16 %v2469, %v2468
      %v2554 = vpack.c.b16 %v2471, %v2470
      %v2555 = vpack.c.b16 %v2473, %v2472
      %v2556 = vpack.c.b16 %v2475, %v2474
      %v2557 = vpack.c.b16 %v2477, %v2476
      %v2558 = vpack.c.b16 %v2479, %v2478
      %v2559 = vpack.c.b16 %v2481, %v2480
      %v2560 = vpack.c.b16 %v2483, %v2482
      %v2561 = vpack.c.b16 %v2485, %v2484
      %v2562 = vpack.c.b16 %v2487, %v2486
      %v2563 = vpack.c.b16 %v2489, %v2488
      %v2564 = vpack.c.b16 %v2491, %v2490
      %v2565 = vpack.c.b16 %v2493, %v2492
      %2638 = vmatprep.subr.bf16.mxu0 0
      %2639 = vmatpush1.bf16.msra.mxu0 %v2494
      %2640 = vmatprep.subr.bf16.mxu0 0
      %2641 = vmatpush1.bf16.msra.mxu0 %v2495
      %2642 = vmatprep.subr.bf16.mxu0 0
      %2643 = vmatpush1.bf16.msra.mxu0 %v2496
      %2644 = vmatprep.subr.bf16.mxu0 0
      %2645 = vmatpush1.bf16.msra.mxu0 %v2497
      %2646 = vmatprep.subr.bf16.mxu0 0
      %2647 = vmatpush1.bf16.msra.mxu0 %v2498
      %2648 = vmatprep.subr.bf16.mxu0 0
      %2649 = vmatpush1.bf16.msra.mxu0 %v2499
      %2650 = vmatprep.subr.bf16.mxu0 0
      %2651 = vmatpush1.bf16.msra.mxu0 %v2500
      %2652 = vmatprep.subr.bf16.mxu0 0
      %2653 = vmatpush1.bf16.msra.mxu0 %v2501
      %2654 = vmatprep.subr.bf16.mxu0 0
      %2655 = vmatpush1.bf16.msra.mxu0 %v2502
      %2656 = vmatprep.subr.bf16.mxu0 0
      %2657 = vmatpush1.bf16.msra.mxu0 %v2503
      %2658 = vmatprep.subr.bf16.mxu0 0
      %2659 = vmatpush1.bf16.msra.mxu0 %v2504
      %2660 = vmatprep.subr.bf16.mxu0 0
      %2661 = vmatpush1.bf16.msra.mxu0 %v2505
      %2662 = vmatprep.subr.bf16.mxu0 0
      %2663 = vmatpush1.bf16.msra.mxu0 %v2506
      %2664 = vmatprep.subr.bf16.mxu0 0
      %2665 = vmatpush1.bf16.msra.mxu0 %v2507
      %2666 = vmatprep.subr.bf16.mxu0 0
      %2667 = vmatpush1.bf16.msra.mxu0 %v2508
      %2668 = vmatprep.subr.bf16.mxu0 0
      %2669 = vmatpush1.bf16.msra.mxu0 %v2509
      %2670 = vmatprep.mubr.bf16.mxu0 %v1631
      %2671 = vmatmul.mubr.bf16.gmra.mrb[0].mxu0 %v1630
      %v2672 = vpop.f32.mrb[0].mxu0
      %v2673 = vadd.f32 0.0, %v2672
      %v2674 = vpop.f32.mrb[0].mxu0
      %v2675 = vpop.f32.mrb[0].mxu0
      %v2676 = vadd.f32 0.0, %v2675
      %v2677 = vpop.f32.mrb[0].mxu0
      %2678 = vmatprep.mubr.bf16.mxu0 %v1640
      %2679 = vmatmul.mubr.bf16.gmra.mrb[0].mxu0 %v1639
      %v2680 = vpop.f32.mrb[0].mxu0
      %v2681 = vadd.f32 0.0, %v2680
      %v2682 = vpop.f32.mrb[0].mxu0
      %v2683 = vpop.f32.mrb[0].mxu0
      %v2684 = vadd.f32 0.0, %v2683
      %v2685 = vpop.f32.mrb[0].mxu0
      %2686 = vmatprep.mubr.bf16.mxu0 %v1649
      %2687 = vmatmul.mubr.bf16.gmra.mrb[0].mxu0 %v1648
      %v2688 = vpop.f32.mrb[0].mxu0
      %v2689 = vadd.f32 0.0, %v2688
      %v2690 = vpop.f32.mrb[0].mxu0
      %v2691 = vpop.f32.mrb[0].mxu0
      %v2692 = vadd.f32 0.0, %v2691
      %v2693 = vpop.f32.mrb[0].mxu0
      %2694 = vmatprep.mubr.bf16.mxu0 %v1658
      %2695 = vmatmul.mubr.bf16.gmra.mrb[0].mxu0 %v1657
      %v2696 = vpop.f32.mrb[0].mxu0
      %v2697 = vadd.f32 0.0, %v2696
      %v2698 = vpop.f32.mrb[0].mxu0
      %v2699 = vpop.f32.mrb[0].mxu0
      %v2700 = vadd.f32 0.0, %v2699
      %v2701 = vpop.f32.mrb[0].mxu0
      %2702 = vmatprep.mubr.bf16.mxu0 %v1667
      %2703 = vmatmul.mubr.bf16.gmra.mrb[0].mxu0 %v1666
      %v2704 = vpop.f32.mrb[0].mxu0
      %v2705 = vadd.f32 0.0, %v2704
      %v2706 = vpop.f32.mrb[0].mxu0
      %v2707 = vpop.f32.mrb[0].mxu0
      %v2708 = vadd.f32 0.0, %v2707
      %v2709 = vpop.f32.mrb[0].mxu0
      %2710 = vmatprep.mubr.bf16.mxu0 %v1676
      %2711 = vmatmul.mubr.bf16.gmra.mrb[0].mxu0 %v1675
      %v2712 = vpop.f32.mrb[0].mxu0
      %v2713 = vadd.f32 0.0, %v2712
      %v2714 = vpop.f32.mrb[0].mxu0
      %v2715 = vpop.f32.mrb[0].mxu0
      %v2716 = vadd.f32 0.0, %v2715
      %v2717 = vpop.f32.mrb[0].mxu0
      %2718 = vmatprep.mubr.bf16.mxu0 %v1685
      %2719 = vmatmul.mubr.bf16.gmra.mrb[0].mxu0 %v1684
      %v2720 = vpop.f32.mrb[0].mxu0
      %v2721 = vadd.f32 0.0, %v2720
      %v2722 = vpop.f32.mrb[0].mxu0
      %v2723 = vpop.f32.mrb[0].mxu0
      %v2724 = vadd.f32 0.0, %v2723
      %v2725 = vpop.f32.mrb[0].mxu0
      %2726 = vmatprep.mubr.bf16.mxu0 %v1694
      %2727 = vmatmul.mubr.bf16.gmra.mrb[0].mxu0 %v1693
      %v2728 = vpop.f32.mrb[0].mxu0
      %v2729 = vadd.f32 0.0, %v2728
      %v2730 = vpop.f32.mrb[0].mxu0
      %v2731 = vpop.f32.mrb[0].mxu0
      %v2732 = vadd.f32 0.0, %v2731
      %v2733 = vpop.f32.mrb[0].mxu0
      %2734 = vmatprep.mubr.bf16.mxu0 %v1703
      %2735 = vmatmul.mubr.bf16.gmra.mrb[0].mxu0 %v1702
      %v2736 = vpop.f32.mrb[0].mxu0
      %v2737 = vadd.f32 0.0, %v2736
      %v2738 = vpop.f32.mrb[0].mxu0
      %v2739 = vpop.f32.mrb[0].mxu0
      %v2740 = vadd.f32 0.0, %v2739
      %v2741 = vpop.f32.mrb[0].mxu0
      %2742 = vmatprep.mubr.bf16.mxu0 %v1712
      %2743 = vmatmul.mubr.bf16.gmra.mrb[0].mxu0 %v1711
      %v2744 = vpop.f32.mrb[0].mxu0
      %v2745 = vadd.f32 0.0, %v2744
      %v2746 = vpop.f32.mrb[0].mxu0
      %v2747 = vpop.f32.mrb[0].mxu0
      %v2748 = vadd.f32 0.0, %v2747
      %v2749 = vpop.f32.mrb[0].mxu0
      %2750 = vmatprep.mubr.bf16.mxu0 %v1721
      %2751 = vmatmul.mubr.bf16.gmra.mrb[0].mxu0 %v1720
      %v2752 = vpop.f32.mrb[0].mxu0
      %v2753 = vadd.f32 0.0, %v2752
      %v2754 = vpop.f32.mrb[0].mxu0
      %v2755 = vpop.f32.mrb[0].mxu0
      %v2756 = vadd.f32 0.0, %v2755
      %v2757 = vpop.f32.mrb[0].mxu0
      %2758 = vmatprep.mubr.bf16.mxu0 %v1730
      %2759 = vmatmul.mubr.bf16.gmra.mrb[0].mxu0 %v1729
      %v2760 = vpop.f32.mrb[0].mxu0
      %v2761 = vadd.f32 0.0, %v2760
      %v2762 = vpop.f32.mrb[0].mxu0
      %v2763 = vpop.f32.mrb[0].mxu0
      %v2764 = vadd.f32 0.0, %v2763
      %v2765 = vpop.f32.mrb[0].mxu0
      %2766 = vmatprep.mubr.bf16.mxu0 %v1739
      %2767 = vmatmul.mubr.bf16.gmra.mrb[0].mxu0 %v1738
      %v2768 = vpop.f32.mrb[0].mxu0
      %v2769 = vadd.f32 0.0, %v2768
      %v2770 = vpop.f32.mrb[0].mxu0
      %v2771 = vpop.f32.mrb[0].mxu0
      %v2772 = vadd.f32 0.0, %v2771
      %v2773 = vpop.f32.mrb[0].mxu0
      %2774 = vmatprep.mubr.bf16.mxu0 %v1748
      %2775 = vmatmul.mubr.bf16.gmra.mrb[0].mxu0 %v1747
      %v2776 = vpop.f32.mrb[0].mxu0
      %v2777 = vadd.f32 0.0, %v2776
      %v2778 = vpop.f32.mrb[0].mxu0
      %v2779 = vpop.f32.mrb[0].mxu0
      %v2780 = vadd.f32 0.0, %v2779
      %v2781 = vpop.f32.mrb[0].mxu0
      %2782 = vmatprep.mubr.bf16.mxu0 %v1757
      %2783 = vmatmul.mubr.bf16.gmra.mrb[0].mxu0 %v1756
      %v2784 = vpop.f32.mrb[0].mxu0
      %v2785 = vadd.f32 0.0, %v2784
      %v2786 = vpop.f32.mrb[0].mxu0
      %v2787 = vpop.f32.mrb[0].mxu0
      %v2788 = vadd.f32 0.0, %v2787
      %v2789 = vpop.f32.mrb[0].mxu0
      %2790 = vmatprep.mubr.bf16.mxu0 %v1766
      %2791 = vmatmul.mubr.bf16.gmra.mrb[0].mxu0 %v1765
      %v2792 = vpop.f32.mrb[0].mxu0
      %v2793 = vadd.f32 0.0, %v2792
      %v2794 = vpop.f32.mrb[0].mxu0
      %v2795 = vpop.f32.mrb[0].mxu0
      %v2796 = vadd.f32 0.0, %v2795
      %v2797 = vpop.f32.mrb[0].mxu0
      %2798 = vmatprep.mubr.bf16.mxu0 %v1775
      %2799 = vmatmul.mubr.bf16.gmra.mrb[0].mxu0 %v1774
      %v2800 = vpop.f32.mrb[0].mxu0
      %v2801 = vadd.f32 0.0, %v2800
      %v2802 = vpop.f32.mrb[0].mxu0
      %v2803 = vpop.f32.mrb[0].mxu0
      %v2804 = vadd.f32 0.0, %v2803
      %v2805 = vpop.f32.mrb[0].mxu0
      %2806 = vmatprep.mubr.bf16.mxu0 %v1784
      %2807 = vmatmul.mubr.bf16.gmra.mrb[0].mxu0 %v1783
      %v2808 = vpop.f32.mrb[0].mxu0
      %v2809 = vadd.f32 0.0, %v2808
      %v2810 = vpop.f32.mrb[0].mxu0
      %v2811 = vpop.f32.mrb[0].mxu0
      %v2812 = vadd.f32 0.0, %v2811
      %v2813 = vpop.f32.mrb[0].mxu0
      %2814 = vmatprep.mubr.bf16.mxu0 %v1793
      %2815 = vmatmul.mubr.bf16.gmra.mrb[0].mxu0 %v1792
      %v2816 = vpop.f32.mrb[0].mxu0
      %v2817 = vadd.f32 0.0, %v2816
      %v2818 = vpop.f32.mrb[0].mxu0
      %v2819 = vpop.f32.mrb[0].mxu0
      %v2820 = vadd.f32 0.0, %v2819
      %v2821 = vpop.f32.mrb[0].mxu0
      %2822 = vmatprep.mubr.bf16.mxu0 %v1802
      %2823 = vmatmul.mubr.bf16.gmra.mrb[0].mxu0 %v1801
      %v2824 = vpop.f32.mrb[0].mxu0
      %v2825 = vadd.f32 0.0, %v2824
      %v2826 = vpop.f32.mrb[0].mxu0
      %v2827 = vpop.f32.mrb[0].mxu0
      %v2828 = vadd.f32 0.0, %v2827
      %v2829 = vpop.f32.mrb[0].mxu0
      %2830 = vmatprep.mubr.bf16.mxu0 %v1811
      %2831 = vmatmul.mubr.bf16.gmra.mrb[0].mxu0 %v1810
      %v2832 = vpop.f32.mrb[0].mxu0
      %v2833 = vadd.f32 0.0, %v2832
      %v2834 = vpop.f32.mrb[0].mxu0
      %v2835 = vpop.f32.mrb[0].mxu0
      %v2836 = vadd.f32 0.0, %v2835
      %v2837 = vpop.f32.mrb[0].mxu0
      %2838 = vmatprep.mubr.bf16.mxu0 %v1820
      %2839 = vmatmul.mubr.bf16.gmra.mrb[0].mxu0 %v1819
      %v2840 = vpop.f32.mrb[0].mxu0
      %v2841 = vadd.f32 0.0, %v2840
      %v2842 = vpop.f32.mrb[0].mxu0
      %v2843 = vpop.f32.mrb[0].mxu0
      %v2844 = vadd.f32 0.0, %v2843
      %v2845 = vpop.f32.mrb[0].mxu0
      %2846 = vmatprep.mubr.bf16.mxu0 %v1829
      %2847 = vmatmul.mubr.bf16.gmra.mrb[0].mxu0 %v1828
      %v2848 = vpop.f32.mrb[0].mxu0
      %v2849 = vadd.f32 0.0, %v2848
      %v2850 = vpop.f32.mrb[0].mxu0
      %v2851 = vpop.f32.mrb[0].mxu0
      %v2852 = vadd.f32 0.0, %v2851
      %v2853 = vpop.f32.mrb[0].mxu0
      %2854 = vmatprep.mubr.bf16.mxu0 %v1838
      %2855 = vmatmul.mubr.bf16.gmra.mrb[0].mxu0 %v1837
      %v2856 = vpop.f32.mrb[0].mxu0
      %v2857 = vadd.f32 0.0, %v2856
      %v2858 = vpop.f32.mrb[0].mxu0
      %v2859 = vpop.f32.mrb[0].mxu0
      %v2860 = vadd.f32 0.0, %v2859
      %v2861 = vpop.f32.mrb[0].mxu0
      %2862 = vmatprep.mubr.bf16.mxu0 %v1847
      %2863 = vmatmul.mubr.bf16.gmra.mrb[0].mxu0 %v1846
      %v2864 = vpop.f32.mrb[0].mxu0
      %v2865 = vadd.f32 0.0, %v2864
      %v2866 = vpop.f32.mrb[0].mxu0
      %v2867 = vpop.f32.mrb[0].mxu0
      %v2868 = vadd.f32 0.0, %v2867
      %v2869 = vpop.f32.mrb[0].mxu0
      %2870 = vmatprep.mubr.bf16.mxu0 %v1856
      %2871 = vmatmul.mubr.bf16.gmra.mrb[0].mxu0 %v1855
      %v2872 = vpop.f32.mrb[0].mxu0
      %v2873 = vadd.f32 0.0, %v2872
      %v2874 = vpop.f32.mrb[0].mxu0
      %v2875 = vpop.f32.mrb[0].mxu0
      %v2876 = vadd.f32 0.0, %v2875
      %v2877 = vpop.f32.mrb[0].mxu0
      %2878 = vmatprep.mubr.bf16.mxu0 %v1865
      %2879 = vmatmul.mubr.bf16.gmra.mrb[0].mxu0 %v1864
      %v2880 = vpop.f32.mrb[0].mxu0
      %v2881 = vadd.f32 0.0, %v2880
      %v2882 = vpop.f32.mrb[0].mxu0
      %v2883 = vpop.f32.mrb[0].mxu0
      %v2884 = vadd.f32 0.0, %v2883
      %v2885 = vpop.f32.mrb[0].mxu0
      %2886 = vmatprep.mubr.bf16.mxu0 %v1874
      %2887 = vmatmul.mubr.bf16.gmra.mrb[0].mxu0 %v1873
      %v2888 = vpop.f32.mrb[0].mxu0
      %v2889 = vadd.f32 0.0, %v2888
      %v2890 = vpop.f32.mrb[0].mxu0
      %v2891 = vpop.f32.mrb[0].mxu0
      %v2892 = vadd.f32 0.0, %v2891
      %v2893 = vpop.f32.mrb[0].mxu0
      %2894 = vmatprep.mubr.bf16.mxu0 %v1883
      %2895 = vmatmul.mubr.bf16.gmra.mrb[0].mxu0 %v1882
      %v2896 = vpop.f32.mrb[0].mxu0
      %v2897 = vadd.f32 0.0, %v2896
      %v2898 = vpop.f32.mrb[0].mxu0
      %v2899 = vpop.f32.mrb[0].mxu0
      %v2900 = vadd.f32 0.0, %v2899
      %v2901 = vpop.f32.mrb[0].mxu0
      %2902 = vmatprep.mubr.bf16.mxu0 %v1892
      %2903 = vmatmul.mubr.bf16.gmra.mrb[0].mxu0 %v1891
      %v2904 = vpop.f32.mrb[0].mxu0
      %v2905 = vadd.f32 0.0, %v2904
      %v2906 = vpop.f32.mrb[0].mxu0
      %v2907 = vpop.f32.mrb[0].mxu0
      %v2908 = vadd.f32 0.0, %v2907
      %v2909 = vpop.f32.mrb[0].mxu0
      %2910 = vmatprep.mubr.bf16.mxu0 %v1901
      %2911 = vmatmul.mubr.bf16.gmra.mrb[0].mxu0 %v1900
      %v2912 = vpop.f32.mrb[0].mxu0
      %v2913 = vadd.f32 0.0, %v2912
      %v2914 = vpop.f32.mrb[0].mxu0
      %v2915 = vpop.f32.mrb[0].mxu0
      %v2916 = vadd.f32 0.0, %v2915
      %v2917 = vpop.f32.mrb[0].mxu0
      %2918 = vmatprep.mubr.bf16.mxu0 %v1910
      %2919 = vmatmul.mubr.bf16.gmra.mrb[0].mxu0 %v1909
      %v2920 = vpop.f32.mrb[0].mxu0
      %v2921 = vadd.f32 0.0, %v2920
      %v2922 = vpop.f32.mrb[0].mxu0
      %v2923 = vpop.f32.mrb[0].mxu0
      %v2924 = vadd.f32 0.0, %v2923
      %v2925 = vpop.f32.mrb[0].mxu0
      %2926 = vdwg.mxu0
      %2927 = vmatprep.subr.bf16.mxu0 0
      %2928 = vmatpush1.bf16.msra.mxu0 %v2510
      %2929 = vmatprep.subr.bf16.mxu0 0
      %2930 = vmatpush1.bf16.msra.mxu0 %v2511
      %2931 = vmatprep.subr.bf16.mxu0 0
      %2932 = vmatpush1.bf16.msra.mxu0 %v2512
      %2933 = vmatprep.subr.bf16.mxu0 0
      %2934 = vmatpush1.bf16.msra.mxu0 %v2513
      %2935 = vmatprep.subr.bf16.mxu0 0
      %2936 = vmatpush1.bf16.msra.mxu0 %v2514
      %2937 = vmatprep.subr.bf16.mxu0 0
      %2938 = vmatpush1.bf16.msra.mxu0 %v2515
      %2939 = vmatprep.subr.bf16.mxu0 0
      %2940 = vmatpush1.bf16.msra.mxu0 %v2516
      %2941 = vmatprep.subr.bf16.mxu0 0
      %2942 = vmatpush1.bf16.msra.mxu0 %v2517
      %2943 = vmatprep.subr.bf16.mxu0 0
      %2944 = vmatpush1.bf16.msra.mxu0 %v2518
      %2945 = vmatprep.subr.bf16.mxu0 0
      %2946 = vmatpush1.bf16.msra.mxu0 %v2519
      %2947 = vmatprep.subr.bf16.mxu0 0
      %2948 = vmatpush1.bf16.msra.mxu0 %v2520
      %2949 = vmatprep.subr.bf16.mxu0 0
      %2950 = vmatpush1.bf16.msra.mxu0 %v2521
      %2951 = vmatprep.subr.bf16.mxu0 0
      %2952 = vmatpush1.bf16.msra.mxu0 %v2522
      %2953 = vmatprep.subr.bf16.mxu0 0
      %2954 = vmatpush1.bf16.msra.mxu0 %v2523
      %2955 = vmatprep.subr.bf16.mxu0 0
      %2956 = vmatpush1.bf16.msra.mxu0 %v2524
      %2957 = vmatprep.subr.bf16.mxu0 0
      %2958 = vmatpush1.bf16.msra.mxu0 %v2525
      %2959 = vmatprep.mubr.bf16.mxu0 %v1633
      %2960 = vmatmul.mubr.bf16.gmra.mrb[0].mxu0 %v1632
      %v2961 = vpop.f32.mrb[0].mxu0
      %v2962 = vadd.f32 %v2673, %v2961
      %v2963 = vpop.f32.mrb[0].mxu0
      %v2964 = vpop.f32.mrb[0].mxu0
      %v2965 = vadd.f32 %v2676, %v2964
      %v2966 = vpop.f32.mrb[0].mxu0
      %2967 = vmatprep.mubr.bf16.mxu0 %v1642
      %2968 = vmatmul.mubr.bf16.gmra.mrb[0].mxu0 %v1641
      %v2969 = vpop.f32.mrb[0].mxu0
      %v2970 = vadd.f32 %v2681, %v2969
      %v2971 = vpop.f32.mrb[0].mxu0
      %v2972 = vpop.f32.mrb[0].mxu0
      %v2973 = vadd.f32 %v2684, %v2972
      %v2974 = vpop.f32.mrb[0].mxu0
      %2975 = vmatprep.mubr.bf16.mxu0 %v1651
      %2976 = vmatmul.mubr.bf16.gmra.mrb[0].mxu0 %v1650
      %v2977 = vpop.f32.mrb[0].mxu0
      %v2978 = vadd.f32 %v2689, %v2977
      %v2979 = vpop.f32.mrb[0].mxu0
      %v2980 = vpop.f32.mrb[0].mxu0
      %v2981 = vadd.f32 %v2692, %v2980
      %v2982 = vpop.f32.mrb[0].mxu0
      %2983 = vmatprep.mubr.bf16.mxu0 %v1660
      %2984 = vmatmul.mubr.bf16.gmra.mrb[0].mxu0 %v1659
      %v2985 = vpop.f32.mrb[0].mxu0
      %v2986 = vadd.f32 %v2697, %v2985
      %v2987 = vpop.f32.mrb[0].mxu0
      %v2988 = vpop.f32.mrb[0].mxu0
      %v2989 = vadd.f32 %v2700, %v2988
      %v2990 = vpop.f32.mrb[0].mxu0
      %2991 = vmatprep.mubr.bf16.mxu0 %v1669
      %2992 = vmatmul.mubr.bf16.gmra.mrb[0].mxu0 %v1668
      %v2993 = vpop.f32.mrb[0].mxu0
      %v2994 = vadd.f32 %v2705, %v2993
      %v2995 = vpop.f32.mrb[0].mxu0
      %v2996 = vpop.f32.mrb[0].mxu0
      %v2997 = vadd.f32 %v2708, %v2996
      %v2998 = vpop.f32.mrb[0].mxu0
      %2999 = vmatprep.mubr.bf16.mxu0 %v1678
      %3000 = vmatmul.mubr.bf16.gmra.mrb[0].mxu0 %v1677
      %v3001 = vpop.f32.mrb[0].mxu0
      %v3002 = vadd.f32 %v2713, %v3001
      %v3003 = vpop.f32.mrb[0].mxu0
      %v3004 = vpop.f32.mrb[0].mxu0
      %v3005 = vadd.f32 %v2716, %v3004
      %v3006 = vpop.f32.mrb[0].mxu0
      %3007 = vmatprep.mubr.bf16.mxu0 %v1687
      %3008 = vmatmul.mubr.bf16.gmra.mrb[0].mxu0 %v1686
      %v3009 = vpop.f32.mrb[0].mxu0
      %v3010 = vadd.f32 %v2721, %v3009
      %v3011 = vpop.f32.mrb[0].mxu0
      %v3012 = vpop.f32.mrb[0].mxu0
      %v3013 = vadd.f32 %v2724, %v3012
      %v3014 = vpop.f32.mrb[0].mxu0
      %3015 = vmatprep.mubr.bf16.mxu0 %v1696
      %3016 = vmatmul.mubr.bf16.gmra.mrb[0].mxu0 %v1695
      %v3017 = vpop.f32.mrb[0].mxu0
      %v3018 = vadd.f32 %v2729, %v3017
      %v3019 = vpop.f32.mrb[0].mxu0
      %v3020 = vpop.f32.mrb[0].mxu0
      %v3021 = vadd.f32 %v2732, %v3020
      %v3022 = vpop.f32.mrb[0].mxu0
      %3023 = vmatprep.mubr.bf16.mxu0 %v1705
      %3024 = vmatmul.mubr.bf16.gmra.mrb[0].mxu0 %v1704
      %v3025 = vpop.f32.mrb[0].mxu0
      %v3026 = vadd.f32 %v2737, %v3025
      %v3027 = vpop.f32.mrb[0].mxu0
      %v3028 = vpop.f32.mrb[0].mxu0
      %v3029 = vadd.f32 %v2740, %v3028
      %v3030 = vpop.f32.mrb[0].mxu0
      %3031 = vmatprep.mubr.bf16.mxu0 %v1714
      %3032 = vmatmul.mubr.bf16.gmra.mrb[0].mxu0 %v1713
      %v3033 = vpop.f32.mrb[0].mxu0
      %v3034 = vadd.f32 %v2745, %v3033
      %v3035 = vpop.f32.mrb[0].mxu0
      %v3036 = vpop.f32.mrb[0].mxu0
      %v3037 = vadd.f32 %v2748, %v3036
      %v3038 = vpop.f32.mrb[0].mxu0
      %3039 = vmatprep.mubr.bf16.mxu0 %v1723
      %3040 = vmatmul.mubr.bf16.gmra.mrb[0].mxu0 %v1722
      %v3041 = vpop.f32.mrb[0].mxu0
      %v3042 = vadd.f32 %v2753, %v3041
      %v3043 = vpop.f32.mrb[0].mxu0
      %v3044 = vpop.f32.mrb[0].mxu0
      %v3045 = vadd.f32 %v2756, %v3044
      %v3046 = vpop.f32.mrb[0].mxu0
      %3047 = vmatprep.mubr.bf16.mxu0 %v1732
      %3048 = vmatmul.mubr.bf16.gmra.mrb[0].mxu0 %v1731
      %v3049 = vpop.f32.mrb[0].mxu0
      %v3050 = vadd.f32 %v2761, %v3049
      %v3051 = vpop.f32.mrb[0].mxu0
      %v3052 = vpop.f32.mrb[0].mxu0
      %v3053 = vadd.f32 %v2764, %v3052
      %v3054 = vpop.f32.mrb[0].mxu0
      %3055 = vmatprep.mubr.bf16.mxu0 %v1741
      %3056 = vmatmul.mubr.bf16.gmra.mrb[0].mxu0 %v1740
      %v3057 = vpop.f32.mrb[0].mxu0
      %v3058 = vadd.f32 %v2769, %v3057
      %v3059 = vpop.f32.mrb[0].mxu0
      %v3060 = vpop.f32.mrb[0].mxu0
      %v3061 = vadd.f32 %v2772, %v3060
      %v3062 = vpop.f32.mrb[0].mxu0
      %3063 = vmatprep.mubr.bf16.mxu0 %v1750
      %3064 = vmatmul.mubr.bf16.gmra.mrb[0].mxu0 %v1749
      %v3065 = vpop.f32.mrb[0].mxu0
      %v3066 = vadd.f32 %v2777, %v3065
      %v3067 = vpop.f32.mrb[0].mxu0
      %v3068 = vpop.f32.mrb[0].mxu0
      %v3069 = vadd.f32 %v2780, %v3068
      %v3070 = vpop.f32.mrb[0].mxu0
      %3071 = vmatprep.mubr.bf16.mxu0 %v1759
      %3072 = vmatmul.mubr.bf16.gmra.mrb[0].mxu0 %v1758
      %v3073 = vpop.f32.mrb[0].mxu0
      %v3074 = vadd.f32 %v2785, %v3073
      %v3075 = vpop.f32.mrb[0].mxu0
      %v3076 = vpop.f32.mrb[0].mxu0
      %v3077 = vadd.f32 %v2788, %v3076
      %v3078 = vpop.f32.mrb[0].mxu0
      %3079 = vmatprep.mubr.bf16.mxu0 %v1768
      %3080 = vmatmul.mubr.bf16.gmra.mrb[0].mxu0 %v1767
      %v3081 = vpop.f32.mrb[0].mxu0
      %v3082 = vadd.f32 %v2793, %v3081
      %v3083 = vpop.f32.mrb[0].mxu0
      %v3084 = vpop.f32.mrb[0].mxu0
      %v3085 = vadd.f32 %v2796, %v3084
      %v3086 = vpop.f32.mrb[0].mxu0
      %3087 = vmatprep.mubr.bf16.mxu0 %v1777
      %3088 = vmatmul.mubr.bf16.gmra.mrb[0].mxu0 %v1776
      %v3089 = vpop.f32.mrb[0].mxu0
      %v3090 = vadd.f32 %v2801, %v3089
      %v3091 = vpop.f32.mrb[0].mxu0
      %v3092 = vpop.f32.mrb[0].mxu0
      %v3093 = vadd.f32 %v2804, %v3092
      %v3094 = vpop.f32.mrb[0].mxu0
      %3095 = vmatprep.mubr.bf16.mxu0 %v1786
      %3096 = vmatmul.mubr.bf16.gmra.mrb[0].mxu0 %v1785
      %v3097 = vpop.f32.mrb[0].mxu0
      %v3098 = vadd.f32 %v2809, %v3097
      %v3099 = vpop.f32.mrb[0].mxu0
      %v3100 = vpop.f32.mrb[0].mxu0
      %v3101 = vadd.f32 %v2812, %v3100
      %v3102 = vpop.f32.mrb[0].mxu0
      %3103 = vmatprep.mubr.bf16.mxu0 %v1795
      %3104 = vmatmul.mubr.bf16.gmra.mrb[0].mxu0 %v1794
      %v3105 = vpop.f32.mrb[0].mxu0
      %v3106 = vadd.f32 %v2817, %v3105
      %v3107 = vpop.f32.mrb[0].mxu0
      %v3108 = vpop.f32.mrb[0].mxu0
      %v3109 = vadd.f32 %v2820, %v3108
      %v3110 = vpop.f32.mrb[0].mxu0
      %3111 = vmatprep.mubr.bf16.mxu0 %v1804
      %3112 = vmatmul.mubr.bf16.gmra.mrb[0].mxu0 %v1803
      %v3113 = vpop.f32.mrb[0].mxu0
      %v3114 = vadd.f32 %v2825, %v3113
      %v3115 = vpop.f32.mrb[0].mxu0
      %v3116 = vpop.f32.mrb[0].mxu0
      %v3117 = vadd.f32 %v2828, %v3116
      %v3118 = vpop.f32.mrb[0].mxu0
      %3119 = vmatprep.mubr.bf16.mxu0 %v1813
      %3120 = vmatmul.mubr.bf16.gmra.mrb[0].mxu0 %v1812
      %v3121 = vpop.f32.mrb[0].mxu0
      %v3122 = vadd.f32 %v2833, %v3121
      %v3123 = vpop.f32.mrb[0].mxu0
      %v3124 = vpop.f32.mrb[0].mxu0
      %v3125 = vadd.f32 %v2836, %v3124
      %v3126 = vpop.f32.mrb[0].mxu0
      %3127 = vmatprep.mubr.bf16.mxu0 %v1822
      %3128 = vmatmul.mubr.bf16.gmra.mrb[0].mxu0 %v1821
      %v3129 = vpop.f32.mrb[0].mxu0
      %v3130 = vadd.f32 %v2841, %v3129
      %v3131 = vpop.f32.mrb[0].mxu0
      %v3132 = vpop.f32.mrb[0].mxu0
      %v3133 = vadd.f32 %v2844, %v3132
      %v3134 = vpop.f32.mrb[0].mxu0
      %3135 = vmatprep.mubr.bf16.mxu0 %v1831
      %3136 = vmatmul.mubr.bf16.gmra.mrb[0].mxu0 %v1830
      %v3137 = vpop.f32.mrb[0].mxu0
      %v3138 = vadd.f32 %v2849, %v3137
      %v3139 = vpop.f32.mrb[0].mxu0
      %v3140 = vpop.f32.mrb[0].mxu0
      %v3141 = vadd.f32 %v2852, %v3140
      %v3142 = vpop.f32.mrb[0].mxu0
      %3143 = vmatprep.mubr.bf16.mxu0 %v1840
      %3144 = vmatmul.mubr.bf16.gmra.mrb[0].mxu0 %v1839
      %v3145 = vpop.f32.mrb[0].mxu0
      %v3146 = vadd.f32 %v2857, %v3145
      %v3147 = vpop.f32.mrb[0].mxu0
      %v3148 = vpop.f32.mrb[0].mxu0
      %v3149 = vadd.f32 %v2860, %v3148
      %v3150 = vpop.f32.mrb[0].mxu0
      %3151 = vmatprep.mubr.bf16.mxu0 %v1849
      %3152 = vmatmul.mubr.bf16.gmra.mrb[0].mxu0 %v1848
      %v3153 = vpop.f32.mrb[0].mxu0
      %v3154 = vadd.f32 %v2865, %v3153
      %v3155 = vpop.f32.mrb[0].mxu0
      %v3156 = vpop.f32.mrb[0].mxu0
      %v3157 = vadd.f32 %v2868, %v3156
      %v3158 = vpop.f32.mrb[0].mxu0
      %3159 = vmatprep.mubr.bf16.mxu0 %v1858
      %3160 = vmatmul.mubr.bf16.gmra.mrb[0].mxu0 %v1857
      %v3161 = vpop.f32.mrb[0].mxu0
      %v3162 = vadd.f32 %v2873, %v3161
      %v3163 = vpop.f32.mrb[0].mxu0
      %v3164 = vpop.f32.mrb[0].mxu0
      %v3165 = vadd.f32 %v2876, %v3164
      %v3166 = vpop.f32.mrb[0].mxu0
      %3167 = vmatprep.mubr.bf16.mxu0 %v1867
      %3168 = vmatmul.mubr.bf16.gmra.mrb[0].mxu0 %v1866
      %v3169 = vpop.f32.mrb[0].mxu0
      %v3170 = vadd.f32 %v2881, %v3169
      %v3171 = vpop.f32.mrb[0].mxu0
      %v3172 = vpop.f32.mrb[0].mxu0
      %v3173 = vadd.f32 %v2884, %v3172
      %v3174 = vpop.f32.mrb[0].mxu0
      %3175 = vmatprep.mubr.bf16.mxu0 %v1876
      %3176 = vmatmul.mubr.bf16.gmra.mrb[0].mxu0 %v1875
      %v3177 = vpop.f32.mrb[0].mxu0
      %v3178 = vadd.f32 %v2889, %v3177
      %v3179 = vpop.f32.mrb[0].mxu0
      %v3180 = vpop.f32.mrb[0].mxu0
      %v3181 = vadd.f32 %v2892, %v3180
      %v3182 = vpop.f32.mrb[0].mxu0
      %3183 = vmatprep.mubr.bf16.mxu0 %v1885
      %3184 = vmatmul.mubr.bf16.gmra.mrb[0].mxu0 %v1884
      %v3185 = vpop.f32.mrb[0].mxu0
      %v3186 = vadd.f32 %v2897, %v3185
      %v3187 = vpop.f32.mrb[0].mxu0
      %v3188 = vpop.f32.mrb[0].mxu0
      %v3189 = vadd.f32 %v2900, %v3188
      %v3190 = vpop.f32.mrb[0].mxu0
      %3191 = vmatprep.mubr.bf16.mxu0 %v1894
      %3192 = vmatmul.mubr.bf16.gmra.mrb[0].mxu0 %v1893
      %v3193 = vpop.f32.mrb[0].mxu0
      %v3194 = vadd.f32 %v2905, %v3193
      %v3195 = vpop.f32.mrb[0].mxu0
      %v3196 = vpop.f32.mrb[0].mxu0
      %v3197 = vadd.f32 %v2908, %v3196
      %v3198 = vpop.f32.mrb[0].mxu0
      %3199 = vmatprep.mubr.bf16.mxu0 %v1903
      %3200 = vmatmul.mubr.bf16.gmra.mrb[0].mxu0 %v1902
      %v3201 = vpop.f32.mrb[0].mxu0
      %v3202 = vadd.f32 %v2913, %v3201
      %v3203 = vpop.f32.mrb[0].mxu0
      %v3204 = vpop.f32.mrb[0].mxu0
      %v3205 = vadd.f32 %v2916, %v3204
      %v3206 = vpop.f32.mrb[0].mxu0
      %3207 = vmatprep.mubr.bf16.mxu0 %v1912
      %3208 = vmatmul.mubr.bf16.gmra.mrb[0].mxu0 %v1911
      %v3209 = vpop.f32.mrb[0].mxu0
      %v3210 = vadd.f32 %v2921, %v3209
      %v3211 = vpop.f32.mrb[0].mxu0
      %v3212 = vpop.f32.mrb[0].mxu0
      %v3213 = vadd.f32 %v2924, %v3212
      %v3214 = vpop.f32.mrb[0].mxu0
      %3215 = vdwg.mxu0
      %3216 = vmatprep.subr.bf16.mxu0 0
      %3217 = vmatpush1.bf16.msra.mxu0 %v2526
      %3218 = vmatprep.subr.bf16.mxu0 0
      %3219 = vmatpush1.bf16.msra.mxu0 %v2527
      %3220 = vmatprep.subr.bf16.mxu0 0
      %3221 = vmatpush1.bf16.msra.mxu0 %v2528
      %3222 = vmatprep.subr.bf16.mxu0 0
      %3223 = vmatpush1.bf16.msra.mxu0 %v2529
      %3224 = vmatprep.subr.bf16.mxu0 0
      %3225 = vmatpush1.bf16.msra.mxu0 %v2530
      %3226 = vmatprep.subr.bf16.mxu0 0
      %3227 = vmatpush1.bf16.msra.mxu0 %v2531
      %3228 = vmatprep.subr.bf16.mxu0 0
      %3229 = vmatpush1.bf16.msra.mxu0 %v2532
      %3230 = vmatprep.subr.bf16.mxu0 0
      %3231 = vmatpush1.bf16.msra.mxu0 %v2533
      %3232 = vmatprep.subr.bf16.mxu0 0
      %3233 = vmatpush1.bf16.msra.mxu0 %v2534
      %3234 = vmatprep.subr.bf16.mxu0 0
      %3235 = vmatpush1.bf16.msra.mxu0 %v2535
      %3236 = vmatprep.subr.bf16.mxu0 0
      %3237 = vmatpush1.bf16.msra.mxu0 %v2536
      %3238 = vmatprep.subr.bf16.mxu0 0
      %3239 = vmatpush1.bf16.msra.mxu0 %v2537
      %3240 = vmatprep.subr.bf16.mxu0 0
      %3241 = vmatpush1.bf16.msra.mxu0 %v2538
      %3242 = vmatprep.subr.bf16.mxu0 0
      %3243 = vmatpush1.bf16.msra.mxu0 %v2539
      %3244 = vmatprep.subr.bf16.mxu0 0
      %3245 = vmatpush1.bf16.msra.mxu0 %v2540
      %3246 = vmatprep.subr.bf16.mxu0 0
      %3247 = vmatpush1.bf16.msra.mxu0 %v2541
      %3248 = vmatprep.mubr.bf16.mxu0 %v1635
      %3249 = vmatmul.mubr.bf16.gmra.mrb[0].mxu0 %v1634
      %v3250 = vpop.f32.mrb[0].mxu0
      %v3251 = vadd.f32 %v2962, %v3250
      %v3252 = vpop.f32.mrb[0].mxu0
      %v3253 = vpop.f32.mrb[0].mxu0
      %v3254 = vadd.f32 %v2965, %v3253
      %v3255 = vpop.f32.mrb[0].mxu0
      %3256 = vmatprep.mubr.bf16.mxu0 %v1644
      %3257 = vmatmul.mubr.bf16.gmra.mrb[0].mxu0 %v1643
      %v3258 = vpop.f32.mrb[0].mxu0
      %v3259 = vadd.f32 %v2970, %v3258
      %v3260 = vpop.f32.mrb[0].mxu0
      %v3261 = vpop.f32.mrb[0].mxu0
      %v3262 = vadd.f32 %v2973, %v3261
      %v3263 = vpop.f32.mrb[0].mxu0
      %3264 = vmatprep.mubr.bf16.mxu0 %v1653
      %3265 = vmatmul.mubr.bf16.gmra.mrb[0].mxu0 %v1652
      %v3266 = vpop.f32.mrb[0].mxu0
      %v3267 = vadd.f32 %v2978, %v3266
      %v3268 = vpop.f32.mrb[0].mxu0
      %v3269 = vpop.f32.mrb[0].mxu0
      %v3270 = vadd.f32 %v2981, %v3269
      %v3271 = vpop.f32.mrb[0].mxu0
      %3272 = vmatprep.mubr.bf16.mxu0 %v1662
      %3273 = vmatmul.mubr.bf16.gmra.mrb[0].mxu0 %v1661
      %v3274 = vpop.f32.mrb[0].mxu0
      %v3275 = vadd.f32 %v2986, %v3274
      %v3276 = vpop.f32.mrb[0].mxu0
      %v3277 = vpop.f32.mrb[0].mxu0
      %v3278 = vadd.f32 %v2989, %v3277
      %v3279 = vpop.f32.mrb[0].mxu0
      %3280 = vmatprep.mubr.bf16.mxu0 %v1671
      %3281 = vmatmul.mubr.bf16.gmra.mrb[0].mxu0 %v1670
      %v3282 = vpop.f32.mrb[0].mxu0
      %v3283 = vadd.f32 %v2994, %v3282
      %v3284 = vpop.f32.mrb[0].mxu0
      %v3285 = vpop.f32.mrb[0].mxu0
      %v3286 = vadd.f32 %v2997, %v3285
      %v3287 = vpop.f32.mrb[0].mxu0
      %3288 = vmatprep.mubr.bf16.mxu0 %v1680
      %3289 = vmatmul.mubr.bf16.gmra.mrb[0].mxu0 %v1679
      %v3290 = vpop.f32.mrb[0].mxu0
      %v3291 = vadd.f32 %v3002, %v3290
      %v3292 = vpop.f32.mrb[0].mxu0
      %v3293 = vpop.f32.mrb[0].mxu0
      %v3294 = vadd.f32 %v3005, %v3293
      %v3295 = vpop.f32.mrb[0].mxu0
      %3296 = vmatprep.mubr.bf16.mxu0 %v1689
      %3297 = vmatmul.mubr.bf16.gmra.mrb[0].mxu0 %v1688
      %v3298 = vpop.f32.mrb[0].mxu0
      %v3299 = vadd.f32 %v3010, %v3298
      %v3300 = vpop.f32.mrb[0].mxu0
      %v3301 = vpop.f32.mrb[0].mxu0
      %v3302 = vadd.f32 %v3013, %v3301
      %v3303 = vpop.f32.mrb[0].mxu0
      %3304 = vmatprep.mubr.bf16.mxu0 %v1698
      %3305 = vmatmul.mubr.bf16.gmra.mrb[0].mxu0 %v1697
      %v3306 = vpop.f32.mrb[0].mxu0
      %v3307 = vadd.f32 %v3018, %v3306
      %v3308 = vpop.f32.mrb[0].mxu0
      %v3309 = vpop.f32.mrb[0].mxu0
      %v3310 = vadd.f32 %v3021, %v3309
      %v3311 = vpop.f32.mrb[0].mxu0
      %3312 = vmatprep.mubr.bf16.mxu0 %v1707
      %3313 = vmatmul.mubr.bf16.gmra.mrb[0].mxu0 %v1706
      %v3314 = vpop.f32.mrb[0].mxu0
      %v3315 = vadd.f32 %v3026, %v3314
      %v3316 = vpop.f32.mrb[0].mxu0
      %v3317 = vpop.f32.mrb[0].mxu0
      %v3318 = vadd.f32 %v3029, %v3317
      %v3319 = vpop.f32.mrb[0].mxu0
      %3320 = vmatprep.mubr.bf16.mxu0 %v1716
      %3321 = vmatmul.mubr.bf16.gmra.mrb[0].mxu0 %v1715
      %v3322 = vpop.f32.mrb[0].mxu0
      %v3323 = vadd.f32 %v3034, %v3322
      %v3324 = vpop.f32.mrb[0].mxu0
      %v3325 = vpop.f32.mrb[0].mxu0
      %v3326 = vadd.f32 %v3037, %v3325
      %v3327 = vpop.f32.mrb[0].mxu0
      %3328 = vmatprep.mubr.bf16.mxu0 %v1725
      %3329 = vmatmul.mubr.bf16.gmra.mrb[0].mxu0 %v1724
      %v3330 = vpop.f32.mrb[0].mxu0
      %v3331 = vadd.f32 %v3042, %v3330
      %v3332 = vpop.f32.mrb[0].mxu0
      %v3333 = vpop.f32.mrb[0].mxu0
      %v3334 = vadd.f32 %v3045, %v3333
      %v3335 = vpop.f32.mrb[0].mxu0
      %3336 = vmatprep.mubr.bf16.mxu0 %v1734
      %3337 = vmatmul.mubr.bf16.gmra.mrb[0].mxu0 %v1733
      %v3338 = vpop.f32.mrb[0].mxu0
      %v3339 = vadd.f32 %v3050, %v3338
      %v3340 = vpop.f32.mrb[0].mxu0
      %v3341 = vpop.f32.mrb[0].mxu0
      %v3342 = vadd.f32 %v3053, %v3341
      %v3343 = vpop.f32.mrb[0].mxu0
      %3344 = vmatprep.mubr.bf16.mxu0 %v1743
      %3345 = vmatmul.mubr.bf16.gmra.mrb[0].mxu0 %v1742
      %v3346 = vpop.f32.mrb[0].mxu0
      %v3347 = vadd.f32 %v3058, %v3346
      %v3348 = vpop.f32.mrb[0].mxu0
      %v3349 = vpop.f32.mrb[0].mxu0
      %v3350 = vadd.f32 %v3061, %v3349
      %v3351 = vpop.f32.mrb[0].mxu0
      %3352 = vmatprep.mubr.bf16.mxu0 %v1752
      %3353 = vmatmul.mubr.bf16.gmra.mrb[0].mxu0 %v1751
      %v3354 = vpop.f32.mrb[0].mxu0
      %v3355 = vadd.f32 %v3066, %v3354
      %v3356 = vpop.f32.mrb[0].mxu0
      %v3357 = vpop.f32.mrb[0].mxu0
      %v3358 = vadd.f32 %v3069, %v3357
      %v3359 = vpop.f32.mrb[0].mxu0
      %3360 = vmatprep.mubr.bf16.mxu0 %v1761
      %3361 = vmatmul.mubr.bf16.gmra.mrb[0].mxu0 %v1760
      %v3362 = vpop.f32.mrb[0].mxu0
      %v3363 = vadd.f32 %v3074, %v3362
      %v3364 = vpop.f32.mrb[0].mxu0
      %v3365 = vpop.f32.mrb[0].mxu0
      %v3366 = vadd.f32 %v3077, %v3365
      %v3367 = vpop.f32.mrb[0].mxu0
      %3368 = vmatprep.mubr.bf16.mxu0 %v1770
      %3369 = vmatmul.mubr.bf16.gmra.mrb[0].mxu0 %v1769
      %v3370 = vpop.f32.mrb[0].mxu0
      %v3371 = vadd.f32 %v3082, %v3370
      %v3372 = vpop.f32.mrb[0].mxu0
      %v3373 = vpop.f32.mrb[0].mxu0
      %v3374 = vadd.f32 %v3085, %v3373
      %v3375 = vpop.f32.mrb[0].mxu0
      %3376 = vmatprep.mubr.bf16.mxu0 %v1779
      %3377 = vmatmul.mubr.bf16.gmra.mrb[0].mxu0 %v1778
      %v3378 = vpop.f32.mrb[0].mxu0
      %v3379 = vadd.f32 %v3090, %v3378
      %v3380 = vpop.f32.mrb[0].mxu0
      %v3381 = vpop.f32.mrb[0].mxu0
      %v3382 = vadd.f32 %v3093, %v3381
      %v3383 = vpop.f32.mrb[0].mxu0
      %3384 = vmatprep.mubr.bf16.mxu0 %v1788
      %3385 = vmatmul.mubr.bf16.gmra.mrb[0].mxu0 %v1787
      %v3386 = vpop.f32.mrb[0].mxu0
      %v3387 = vadd.f32 %v3098, %v3386
      %v3388 = vpop.f32.mrb[0].mxu0
      %v3389 = vpop.f32.mrb[0].mxu0
      %v3390 = vadd.f32 %v3101, %v3389
      %v3391 = vpop.f32.mrb[0].mxu0
      %3392 = vmatprep.mubr.bf16.mxu0 %v1797
      %3393 = vmatmul.mubr.bf16.gmra.mrb[0].mxu0 %v1796
      %v3394 = vpop.f32.mrb[0].mxu0
      %v3395 = vadd.f32 %v3106, %v3394
      %v3396 = vpop.f32.mrb[0].mxu0
      %v3397 = vpop.f32.mrb[0].mxu0
      %v3398 = vadd.f32 %v3109, %v3397
      %v3399 = vpop.f32.mrb[0].mxu0
      %3400 = vmatprep.mubr.bf16.mxu0 %v1806
      %3401 = vmatmul.mubr.bf16.gmra.mrb[0].mxu0 %v1805
      %v3402 = vpop.f32.mrb[0].mxu0
      %v3403 = vadd.f32 %v3114, %v3402
      %v3404 = vpop.f32.mrb[0].mxu0
      %v3405 = vpop.f32.mrb[0].mxu0
      %v3406 = vadd.f32 %v3117, %v3405
      %v3407 = vpop.f32.mrb[0].mxu0
      %3408 = vmatprep.mubr.bf16.mxu0 %v1815
      %3409 = vmatmul.mubr.bf16.gmra.mrb[0].mxu0 %v1814
      %v3410 = vpop.f32.mrb[0].mxu0
      %v3411 = vadd.f32 %v3122, %v3410
      %v3412 = vpop.f32.mrb[0].mxu0
      %v3413 = vpop.f32.mrb[0].mxu0
      %v3414 = vadd.f32 %v3125, %v3413
      %v3415 = vpop.f32.mrb[0].mxu0
      %3416 = vmatprep.mubr.bf16.mxu0 %v1824
      %3417 = vmatmul.mubr.bf16.gmra.mrb[0].mxu0 %v1823
      %v3418 = vpop.f32.mrb[0].mxu0
      %v3419 = vadd.f32 %v3130, %v3418
      %v3420 = vpop.f32.mrb[0].mxu0
      %v3421 = vpop.f32.mrb[0].mxu0
      %v3422 = vadd.f32 %v3133, %v3421
      %v3423 = vpop.f32.mrb[0].mxu0
      %3424 = vmatprep.mubr.bf16.mxu0 %v1833
      %3425 = vmatmul.mubr.bf16.gmra.mrb[0].mxu0 %v1832
      %v3426 = vpop.f32.mrb[0].mxu0
      %v3427 = vadd.f32 %v3138, %v3426
      %v3428 = vpop.f32.mrb[0].mxu0
      %v3429 = vpop.f32.mrb[0].mxu0
      %v3430 = vadd.f32 %v3141, %v3429
      %v3431 = vpop.f32.mrb[0].mxu0
      %3432 = vmatprep.mubr.bf16.mxu0 %v1842
      %3433 = vmatmul.mubr.bf16.gmra.mrb[0].mxu0 %v1841
      %v3434 = vpop.f32.mrb[0].mxu0
      %v3435 = vadd.f32 %v3146, %v3434
      %v3436 = vpop.f32.mrb[0].mxu0
      %v3437 = vpop.f32.mrb[0].mxu0
      %v3438 = vadd.f32 %v3149, %v3437
      %v3439 = vpop.f32.mrb[0].mxu0
      %3440 = vmatprep.mubr.bf16.mxu0 %v1851
      %3441 = vmatmul.mubr.bf16.gmra.mrb[0].mxu0 %v1850
      %v3442 = vpop.f32.mrb[0].mxu0
      %v3443 = vadd.f32 %v3154, %v3442
      %v3444 = vpop.f32.mrb[0].mxu0
      %v3445 = vpop.f32.mrb[0].mxu0
      %v3446 = vadd.f32 %v3157, %v3445
      %v3447 = vpop.f32.mrb[0].mxu0
      %3448 = vmatprep.mubr.bf16.mxu0 %v1860
      %3449 = vmatmul.mubr.bf16.gmra.mrb[0].mxu0 %v1859
      %v3450 = vpop.f32.mrb[0].mxu0
      %v3451 = vadd.f32 %v3162, %v3450
      %v3452 = vpop.f32.mrb[0].mxu0
      %v3453 = vpop.f32.mrb[0].mxu0
      %v3454 = vadd.f32 %v3165, %v3453
      %v3455 = vpop.f32.mrb[0].mxu0
      %3456 = vmatprep.mubr.bf16.mxu0 %v1869
      %3457 = vmatmul.mubr.bf16.gmra.mrb[0].mxu0 %v1868
      %v3458 = vpop.f32.mrb[0].mxu0
      %v3459 = vadd.f32 %v3170, %v3458
      %v3460 = vpop.f32.mrb[0].mxu0
      %v3461 = vpop.f32.mrb[0].mxu0
      %v3462 = vadd.f32 %v3173, %v3461
      %v3463 = vpop.f32.mrb[0].mxu0
      %3464 = vmatprep.mubr.bf16.mxu0 %v1878
      %3465 = vmatmul.mubr.bf16.gmra.mrb[0].mxu0 %v1877
      %v3466 = vpop.f32.mrb[0].mxu0
      %v3467 = vadd.f32 %v3178, %v3466
      %v3468 = vpop.f32.mrb[0].mxu0
      %v3469 = vpop.f32.mrb[0].mxu0
      %v3470 = vadd.f32 %v3181, %v3469
      %v3471 = vpop.f32.mrb[0].mxu0
      %3472 = vmatprep.mubr.bf16.mxu0 %v1887
      %3473 = vmatmul.mubr.bf16.gmra.mrb[0].mxu0 %v1886
      %v3474 = vpop.f32.mrb[0].mxu0
      %v3475 = vadd.f32 %v3186, %v3474
      %v3476 = vpop.f32.mrb[0].mxu0
      %v3477 = vpop.f32.mrb[0].mxu0
      %v3478 = vadd.f32 %v3189, %v3477
      %v3479 = vpop.f32.mrb[0].mxu0
      %3480 = vmatprep.mubr.bf16.mxu0 %v1896
      %3481 = vmatmul.mubr.bf16.gmra.mrb[0].mxu0 %v1895
      %v3482 = vpop.f32.mrb[0].mxu0
      %v3483 = vadd.f32 %v3194, %v3482
      %v3484 = vpop.f32.mrb[0].mxu0
      %v3485 = vpop.f32.mrb[0].mxu0
      %v3486 = vadd.f32 %v3197, %v3485
      %v3487 = vpop.f32.mrb[0].mxu0
      %3488 = vmatprep.mubr.bf16.mxu0 %v1905
      %3489 = vmatmul.mubr.bf16.gmra.mrb[0].mxu0 %v1904
      %v3490 = vpop.f32.mrb[0].mxu0
      %v3491 = vadd.f32 %v3202, %v3490
      %v3492 = vpop.f32.mrb[0].mxu0
      %v3493 = vpop.f32.mrb[0].mxu0
      %v3494 = vadd.f32 %v3205, %v3493
      %v3495 = vpop.f32.mrb[0].mxu0
      %3496 = vmatprep.mubr.bf16.mxu0 %v1914
      %3497 = vmatmul.mubr.bf16.gmra.mrb[0].mxu0 %v1913
      %v3498 = vpop.f32.mrb[0].mxu0
      %v3499 = vadd.f32 %v3210, %v3498
      %v3500 = vpop.f32.mrb[0].mxu0
      %v3501 = vpop.f32.mrb[0].mxu0
      %v3502 = vadd.f32 %v3213, %v3501
      %v3503 = vpop.f32.mrb[0].mxu0
      %3504 = vdwg.mxu0
      %3505 = vmatprep.subr.bf16.mxu0 0
      %3506 = vmatpush1.bf16.msra.mxu0 %v2542
      %3507 = vmatprep.subr.bf16.mxu0 0
      %3508 = vmatpush1.bf16.msra.mxu0 %v2543
      %3509 = vmatprep.subr.bf16.mxu0 0
      %3510 = vmatpush1.bf16.msra.mxu0 %v2544
      %3511 = vmatprep.subr.bf16.mxu0 0
      %3512 = vmatpush1.bf16.msra.mxu0 %v2545
      %3513 = vmatprep.subr.bf16.mxu0 0
      %3514 = vmatpush1.bf16.msra.mxu0 %v2546
      %3515 = vmatprep.subr.bf16.mxu0 0
      %3516 = vmatpush1.bf16.msra.mxu0 %v2547
      %3517 = vmatprep.subr.bf16.mxu0 0
      %3518 = vmatpush1.bf16.msra.mxu0 %v2548
      %3519 = vmatprep.subr.bf16.mxu0 0
      %3520 = vmatpush1.bf16.msra.mxu0 %v2549
      %3521 = vmatprep.subr.bf16.mxu0 0
      %3522 = vmatpush1.bf16.msra.mxu0 %v2550
      %3523 = vmatprep.subr.bf16.mxu0 0
      %3524 = vmatpush1.bf16.msra.mxu0 %v2551
      %3525 = vmatprep.subr.bf16.mxu0 0
      %3526 = vmatpush1.bf16.msra.mxu0 %v2552
      %3527 = vmatprep.subr.bf16.mxu0 0
      %3528 = vmatpush1.bf16.msra.mxu0 %v2553
      %3529 = vmatprep.subr.bf16.mxu0 0
      %3530 = vmatpush1.bf16.msra.mxu0 %v2554
      %3531 = vmatprep.subr.bf16.mxu0 0
      %3532 = vmatpush1.bf16.msra.mxu0 %v2555
      %3533 = vmatprep.subr.bf16.mxu0 0
      %3534 = vmatpush1.bf16.msra.mxu0 %v2556
      %3535 = vmatprep.subr.bf16.mxu0 0
      %3536 = vmatpush1.bf16.msra.mxu0 %v2557
      %3537 = vmatprep.mubr.bf16.mxu0 %v1637
      %3538 = vmatmul.mubr.bf16.gmra.mrb[0].mxu0 %v1636
      %v3539 = vpop.f32.mrb[0].mxu0
      %v3540 = vadd.f32 %v3251, %v3539
      %v3541 = vpop.f32.mrb[0].mxu0
      %v3542 = vpop.f32.mrb[0].mxu0
      %v3543 = vadd.f32 %v3254, %v3542
      %v3544 = vpop.f32.mrb[0].mxu0
      %3545 = vmatprep.mubr.bf16.mxu0 %v1646
      %3546 = vmatmul.mubr.bf16.gmra.mrb[0].mxu0 %v1645
      %v3547 = vpop.f32.mrb[0].mxu0
      %v3548 = vadd.f32 %v3259, %v3547
      %v3549 = vpop.f32.mrb[0].mxu0
      %v3550 = vpop.f32.mrb[0].mxu0
      %v3551 = vadd.f32 %v3262, %v3550
      %v3552 = vpop.f32.mrb[0].mxu0
      %3553 = vmatprep.mubr.bf16.mxu0 %v1655
      %3554 = vmatmul.mubr.bf16.gmra.mrb[0].mxu0 %v1654
      %v3555 = vpop.f32.mrb[0].mxu0
      %v3556 = vadd.f32 %v3267, %v3555
      %v3557 = vpop.f32.mrb[0].mxu0
      %v3558 = vpop.f32.mrb[0].mxu0
      %v3559 = vadd.f32 %v3270, %v3558
      %v3560 = vpop.f32.mrb[0].mxu0
      %3561 = vmatprep.mubr.bf16.mxu0 %v1664
      %3562 = vmatmul.mubr.bf16.gmra.mrb[0].mxu0 %v1663
      %v3563 = vpop.f32.mrb[0].mxu0
      %v3564 = vadd.f32 %v3275, %v3563
      %v3565 = vpop.f32.mrb[0].mxu0
      %v3566 = vpop.f32.mrb[0].mxu0
      %v3567 = vadd.f32 %v3278, %v3566
      %v3568 = vpop.f32.mrb[0].mxu0
      %3569 = vmatprep.mubr.bf16.mxu0 %v1673
      %3570 = vmatmul.mubr.bf16.gmra.mrb[0].mxu0 %v1672
      %v3571 = vpop.f32.mrb[0].mxu0
      %v3572 = vadd.f32 %v3283, %v3571
      %v3573 = vpop.f32.mrb[0].mxu0
      %v3574 = vpop.f32.mrb[0].mxu0
      %v3575 = vadd.f32 %v3286, %v3574
      %v3576 = vpop.f32.mrb[0].mxu0
      %3577 = vmatprep.mubr.bf16.mxu0 %v1682
      %3578 = vmatmul.mubr.bf16.gmra.mrb[0].mxu0 %v1681
      %v3579 = vpop.f32.mrb[0].mxu0
      %v3580 = vadd.f32 %v3291, %v3579
      %v3581 = vpop.f32.mrb[0].mxu0
      %v3582 = vpop.f32.mrb[0].mxu0
      %v3583 = vadd.f32 %v3294, %v3582
      %v3584 = vpop.f32.mrb[0].mxu0
      %3585 = vmatprep.mubr.bf16.mxu0 %v1691
      %3586 = vmatmul.mubr.bf16.gmra.mrb[0].mxu0 %v1690
      %v3587 = vpop.f32.mrb[0].mxu0
      %v3588 = vadd.f32 %v3299, %v3587
      %v3589 = vpop.f32.mrb[0].mxu0
      %v3590 = vpop.f32.mrb[0].mxu0
      %v3591 = vadd.f32 %v3302, %v3590
      %v3592 = vpop.f32.mrb[0].mxu0
      %3593 = vmatprep.mubr.bf16.mxu0 %v1700
      %3594 = vmatmul.mubr.bf16.gmra.mrb[0].mxu0 %v1699
      %v3595 = vpop.f32.mrb[0].mxu0
      %v3596 = vadd.f32 %v3307, %v3595
      %v3597 = vpop.f32.mrb[0].mxu0
      %v3598 = vpop.f32.mrb[0].mxu0
      %v3599 = vadd.f32 %v3310, %v3598
      %v3600 = vpop.f32.mrb[0].mxu0
      %3601 = vmatprep.mubr.bf16.mxu0 %v1709
      %3602 = vmatmul.mubr.bf16.gmra.mrb[0].mxu0 %v1708
      %v3603 = vpop.f32.mrb[0].mxu0
      %v3604 = vadd.f32 %v3315, %v3603
      %v3605 = vpop.f32.mrb[0].mxu0
      %v3606 = vpop.f32.mrb[0].mxu0
      %v3607 = vadd.f32 %v3318, %v3606
      %v3608 = vpop.f32.mrb[0].mxu0
      %3609 = vmatprep.mubr.bf16.mxu0 %v1718
      %3610 = vmatmul.mubr.bf16.gmra.mrb[0].mxu0 %v1717
      %v3611 = vpop.f32.mrb[0].mxu0
      %v3612 = vadd.f32 %v3323, %v3611
      %v3613 = vpop.f32.mrb[0].mxu0
      %v3614 = vpop.f32.mrb[0].mxu0
      %v3615 = vadd.f32 %v3326, %v3614
      %v3616 = vpop.f32.mrb[0].mxu0
      %3617 = vmatprep.mubr.bf16.mxu0 %v1727
      %3618 = vmatmul.mubr.bf16.gmra.mrb[0].mxu0 %v1726
      %v3619 = vpop.f32.mrb[0].mxu0
      %v3620 = vadd.f32 %v3331, %v3619
      %v3621 = vpop.f32.mrb[0].mxu0
      %v3622 = vpop.f32.mrb[0].mxu0
      %v3623 = vadd.f32 %v3334, %v3622
      %v3624 = vpop.f32.mrb[0].mxu0
      %3625 = vmatprep.mubr.bf16.mxu0 %v1736
      %3626 = vmatmul.mubr.bf16.gmra.mrb[0].mxu0 %v1735
      %v3627 = vpop.f32.mrb[0].mxu0
      %v3628 = vadd.f32 %v3339, %v3627
      %v3629 = vpop.f32.mrb[0].mxu0
      %v3630 = vpop.f32.mrb[0].mxu0
      %v3631 = vadd.f32 %v3342, %v3630
      %v3632 = vpop.f32.mrb[0].mxu0
      %3633 = vmatprep.mubr.bf16.mxu0 %v1745
      %3634 = vmatmul.mubr.bf16.gmra.mrb[0].mxu0 %v1744
      %v3635 = vpop.f32.mrb[0].mxu0
      %v3636 = vadd.f32 %v3347, %v3635
      %v3637 = vpop.f32.mrb[0].mxu0
      %v3638 = vpop.f32.mrb[0].mxu0
      %v3639 = vadd.f32 %v3350, %v3638
      %v3640 = vpop.f32.mrb[0].mxu0
      %3641 = vmatprep.mubr.bf16.mxu0 %v1754
      %3642 = vmatmul.mubr.bf16.gmra.mrb[0].mxu0 %v1753
      %v3643 = vpop.f32.mrb[0].mxu0
      %v3644 = vadd.f32 %v3355, %v3643
      %v3645 = vpop.f32.mrb[0].mxu0
      %v3646 = vpop.f32.mrb[0].mxu0
      %v3647 = vadd.f32 %v3358, %v3646
      %v3648 = vpop.f32.mrb[0].mxu0
      %3649 = vmatprep.mubr.bf16.mxu0 %v1763
      %3650 = vmatmul.mubr.bf16.gmra.mrb[0].mxu0 %v1762
      %v3651 = vpop.f32.mrb[0].mxu0
      %v3652 = vadd.f32 %v3363, %v3651
      %v3653 = vpop.f32.mrb[0].mxu0
      %v3654 = vpop.f32.mrb[0].mxu0
      %v3655 = vadd.f32 %v3366, %v3654
      %v3656 = vpop.f32.mrb[0].mxu0
      %3657 = vmatprep.mubr.bf16.mxu0 %v1772
      %3658 = vmatmul.mubr.bf16.gmra.mrb[0].mxu0 %v1771
      %v3659 = vpop.f32.mrb[0].mxu0
      %v3660 = vadd.f32 %v3371, %v3659
      %v3661 = vpop.f32.mrb[0].mxu0
      %v3662 = vpop.f32.mrb[0].mxu0
      %v3663 = vadd.f32 %v3374, %v3662
      %v3664 = vpop.f32.mrb[0].mxu0
      %3665 = vmatprep.mubr.bf16.mxu0 %v1781
      %3666 = vmatmul.mubr.bf16.gmra.mrb[0].mxu0 %v1780
      %v3667 = vpop.f32.mrb[0].mxu0
      %v3668 = vadd.f32 %v3379, %v3667
      %v3669 = vpop.f32.mrb[0].mxu0
      %v3670 = vpop.f32.mrb[0].mxu0
      %v3671 = vadd.f32 %v3382, %v3670
      %v3672 = vpop.f32.mrb[0].mxu0
      %3673 = vmatprep.mubr.bf16.mxu0 %v1790
      %3674 = vmatmul.mubr.bf16.gmra.mrb[0].mxu0 %v1789
      %v3675 = vpop.f32.mrb[0].mxu0
      %v3676 = vadd.f32 %v3387, %v3675
      %v3677 = vpop.f32.mrb[0].mxu0
      %v3678 = vpop.f32.mrb[0].mxu0
      %v3679 = vadd.f32 %v3390, %v3678
      %v3680 = vpop.f32.mrb[0].mxu0
      %3681 = vmatprep.mubr.bf16.mxu0 %v1799
      %3682 = vmatmul.mubr.bf16.gmra.mrb[0].mxu0 %v1798
      %v3683 = vpop.f32.mrb[0].mxu0
      %v3684 = vadd.f32 %v3395, %v3683
      %v3685 = vpop.f32.mrb[0].mxu0
      %v3686 = vpop.f32.mrb[0].mxu0
      %v3687 = vadd.f32 %v3398, %v3686
      %v3688 = vpop.f32.mrb[0].mxu0
      %3689 = vmatprep.mubr.bf16.mxu0 %v1808
      %3690 = vmatmul.mubr.bf16.gmra.mrb[0].mxu0 %v1807
      %v3691 = vpop.f32.mrb[0].mxu0
      %v3692 = vadd.f32 %v3403, %v3691
      %v3693 = vpop.f32.mrb[0].mxu0
      %v3694 = vpop.f32.mrb[0].mxu0
      %v3695 = vadd.f32 %v3406, %v3694
      %v3696 = vpop.f32.mrb[0].mxu0
      %3697 = vmatprep.mubr.bf16.mxu0 %v1817
      %3698 = vmatmul.mubr.bf16.gmra.mrb[0].mxu0 %v1816
      %v3699 = vpop.f32.mrb[0].mxu0
      %v3700 = vadd.f32 %v3411, %v3699
      %v3701 = vpop.f32.mrb[0].mxu0
      %v3702 = vpop.f32.mrb[0].mxu0
      %v3703 = vadd.f32 %v3414, %v3702
      %v3704 = vpop.f32.mrb[0].mxu0
      %3705 = vmatprep.mubr.bf16.mxu0 %v1826
      %3706 = vmatmul.mubr.bf16.gmra.mrb[0].mxu0 %v1825
      %v3707 = vpop.f32.mrb[0].mxu0
      %v3708 = vadd.f32 %v3419, %v3707
      %v3709 = vpop.f32.mrb[0].mxu0
      %v3710 = vpop.f32.mrb[0].mxu0
      %v3711 = vadd.f32 %v3422, %v3710
      %v3712 = vpop.f32.mrb[0].mxu0
      %3713 = vmatprep.mubr.bf16.mxu0 %v1835
      %3714 = vmatmul.mubr.bf16.gmra.mrb[0].mxu0 %v1834
      %v3715 = vpop.f32.mrb[0].mxu0
      %v3716 = vadd.f32 %v3427, %v3715
      %v3717 = vpop.f32.mrb[0].mxu0
      %v3718 = vpop.f32.mrb[0].mxu0
      %v3719 = vadd.f32 %v3430, %v3718
      %v3720 = vpop.f32.mrb[0].mxu0
      %3721 = vmatprep.mubr.bf16.mxu0 %v1844
      %3722 = vmatmul.mubr.bf16.gmra.mrb[0].mxu0 %v1843
      %v3723 = vpop.f32.mrb[0].mxu0
      %v3724 = vadd.f32 %v3435, %v3723
      %v3725 = vpop.f32.mrb[0].mxu0
      %v3726 = vpop.f32.mrb[0].mxu0
      %v3727 = vadd.f32 %v3438, %v3726
      %v3728 = vpop.f32.mrb[0].mxu0
      %3729 = vmatprep.mubr.bf16.mxu0 %v1853
      %3730 = vmatmul.mubr.bf16.gmra.mrb[0].mxu0 %v1852
      %v3731 = vpop.f32.mrb[0].mxu0
      %v3732 = vadd.f32 %v3443, %v3731
      %v3733 = vpop.f32.mrb[0].mxu0
      %v3734 = vpop.f32.mrb[0].mxu0
      %v3735 = vadd.f32 %v3446, %v3734
      %v3736 = vpop.f32.mrb[0].mxu0
      %3737 = vmatprep.mubr.bf16.mxu0 %v1862
      %3738 = vmatmul.mubr.bf16.gmra.mrb[0].mxu0 %v1861
      %v3739 = vpop.f32.mrb[0].mxu0
      %v3740 = vadd.f32 %v3451, %v3739
      %v3741 = vpop.f32.mrb[0].mxu0
      %v3742 = vpop.f32.mrb[0].mxu0
      %v3743 = vadd.f32 %v3454, %v3742
      %v3744 = vpop.f32.mrb[0].mxu0
      %3745 = vmatprep.mubr.bf16.mxu0 %v1871
      %3746 = vmatmul.mubr.bf16.gmra.mrb[0].mxu0 %v1870
      %v3747 = vpop.f32.mrb[0].mxu0
      %v3748 = vadd.f32 %v3459, %v3747
      %v3749 = vpop.f32.mrb[0].mxu0
      %v3750 = vpop.f32.mrb[0].mxu0
      %v3751 = vadd.f32 %v3462, %v3750
      %v3752 = vpop.f32.mrb[0].mxu0
      %3753 = vmatprep.mubr.bf16.mxu0 %v1880
      %3754 = vmatmul.mubr.bf16.gmra.mrb[0].mxu0 %v1879
      %v3755 = vpop.f32.mrb[0].mxu0
      %v3756 = vadd.f32 %v3467, %v3755
      %v3757 = vpop.f32.mrb[0].mxu0
      %v3758 = vpop.f32.mrb[0].mxu0
      %v3759 = vadd.f32 %v3470, %v3758
      %v3760 = vpop.f32.mrb[0].mxu0
      %3761 = vmatprep.mubr.bf16.mxu0 %v1889
      %3762 = vmatmul.mubr.bf16.gmra.mrb[0].mxu0 %v1888
      %v3763 = vpop.f32.mrb[0].mxu0
      %v3764 = vadd.f32 %v3475, %v3763
      %v3765 = vpop.f32.mrb[0].mxu0
      %v3766 = vpop.f32.mrb[0].mxu0
      %v3767 = vadd.f32 %v3478, %v3766
      %v3768 = vpop.f32.mrb[0].mxu0
      %3769 = vmatprep.mubr.bf16.mxu0 %v1898
      %3770 = vmatmul.mubr.bf16.gmra.mrb[0].mxu0 %v1897
      %v3771 = vpop.f32.mrb[0].mxu0
      %v3772 = vadd.f32 %v3483, %v3771
      %v3773 = vpop.f32.mrb[0].mxu0
      %v3774 = vpop.f32.mrb[0].mxu0
      %v3775 = vadd.f32 %v3486, %v3774
      %v3776 = vpop.f32.mrb[0].mxu0
      %3777 = vmatprep.mubr.bf16.mxu0 %v1907
      %3778 = vmatmul.mubr.bf16.gmra.mrb[0].mxu0 %v1906
      %v3779 = vpop.f32.mrb[0].mxu0
      %v3780 = vadd.f32 %v3491, %v3779
      %v3781 = vpop.f32.mrb[0].mxu0
      %v3782 = vpop.f32.mrb[0].mxu0
      %v3783 = vadd.f32 %v3494, %v3782
      %v3784 = vpop.f32.mrb[0].mxu0
      %3785 = vmatprep.mubr.bf16.mxu0 %v1916
      %3786 = vmatmul.mubr.bf16.gmra.mrb[0].mxu0 %v1915
      %v3787 = vpop.f32.mrb[0].mxu0
      %v3788 = vadd.f32 %v3499, %v3787
      %v3789 = vpop.f32.mrb[0].mxu0
      %v3790 = vpop.f32.mrb[0].mxu0
      %v3791 = vadd.f32 %v3502, %v3790
      %v3792 = vpop.f32.mrb[0].mxu0
      %3793 = vdwg.mxu0
      %3794 = vmatprep.subr.bf16.mxu0 0
      %3795 = vmatpush1.bf16.msra.mxu0 %v2558
      %3796 = vmatprep.subr.bf16.mxu0 0
      %3797 = vmatpush1.bf16.msra.mxu0 %v2559
      %3798 = vmatprep.subr.bf16.mxu0 0
      %3799 = vmatpush1.bf16.msra.mxu0 %v2560
      %3800 = vmatprep.subr.bf16.mxu0 0
      %3801 = vmatpush1.bf16.msra.mxu0 %v2561
      %3802 = vmatprep.subr.bf16.mxu0 0
      %3803 = vmatpush1.bf16.msra.mxu0 %v2562
      %3804 = vmatprep.subr.bf16.mxu0 0
      %3805 = vmatpush1.bf16.msra.mxu0 %v2563
      %3806 = vmatprep.subr.bf16.mxu0 0
      %3807 = vmatpush1.bf16.msra.mxu0 %v2564
      %3808 = vmatprep.subr.bf16.mxu0 0
      %3809 = vmatpush1.bf16.msra.mxu0 %v2565
      %3810 = vmatprep.subr.bf16.mxu0 0
      %3811 = vmatpush1.bf16.msra.mxu0 0
      %3812 = vmatprep.subr.bf16.mxu0 0
      %3813 = vmatpush1.bf16.msra.mxu0 0
      %3814 = vmatprep.subr.bf16.mxu0 0
      %3815 = vmatpush1.bf16.msra.mxu0 0
      %3816 = vmatprep.subr.bf16.mxu0 0
      %3817 = vmatpush1.bf16.msra.mxu0 0
      %3818 = vmatprep.subr.bf16.mxu0 0
      %3819 = vmatpush1.bf16.msra.mxu0 0
      %3820 = vmatprep.subr.bf16.mxu0 0
      %3821 = vmatpush1.bf16.msra.mxu0 0
      %3822 = vmatprep.subr.bf16.mxu0 0
      %3823 = vmatpush1.bf16.msra.mxu0 0
      %3824 = vmatprep.subr.bf16.mxu0 0
      %3825 = vmatpush1.bf16.msra.mxu0 0
      %3826 = vmatprep.mubr.bf16.mxu0 0
      %3827 = vmatmul.mubr.bf16.gmra.mrb[0].mxu0 %v1638
      %v3828 = vpop.f32.mrb[0].mxu0
      %v3829 = vadd.f32 %v3540, %v3828
      %v3830 = vpop.f32.mrb[0].mxu0
      %v3831 = vpop.f32.mrb[0].mxu0
      %v3832 = vadd.f32 %v3543, %v3831
      %v3833 = vpop.f32.mrb[0].mxu0
      %3834 = vmatprep.mubr.bf16.mxu0 0
      %3835 = vmatmul.mubr.bf16.gmra.mrb[0].mxu0 %v1647
      %v3836 = vpop.f32.mrb[0].mxu0
      %v3837 = vadd.f32 %v3548, %v3836
      %v3838 = vpop.f32.mrb[0].mxu0
      %v3839 = vpop.f32.mrb[0].mxu0
      %v3840 = vadd.f32 %v3551, %v3839
      %v3841 = vpop.f32.mrb[0].mxu0
      %3842 = vmatprep.mubr.bf16.mxu0 0
      %3843 = vmatmul.mubr.bf16.gmra.mrb[0].mxu0 %v1656
      %v3844 = vpop.f32.mrb[0].mxu0
      %v3845 = vadd.f32 %v3556, %v3844
      %v3846 = vpop.f32.mrb[0].mxu0
      %v3847 = vpop.f32.mrb[0].mxu0
      %v3848 = vadd.f32 %v3559, %v3847
      %v3849 = vpop.f32.mrb[0].mxu0
      %3850 = vmatprep.mubr.bf16.mxu0 0
      %3851 = vmatmul.mubr.bf16.gmra.mrb[0].mxu0 %v1665
      %v3852 = vpop.f32.mrb[0].mxu0
      %v3853 = vadd.f32 %v3564, %v3852
      %v3854 = vpop.f32.mrb[0].mxu0
      %v3855 = vpop.f32.mrb[0].mxu0
      %v3856 = vadd.f32 %v3567, %v3855
      %v3857 = vpop.f32.mrb[0].mxu0
      %3858 = vmatprep.mubr.bf16.mxu0 0
      %3859 = vmatmul.mubr.bf16.gmra.mrb[0].mxu0 %v1674
      %v3860 = vpop.f32.mrb[0].mxu0
      %v3861 = vadd.f32 %v3572, %v3860
      %v3862 = vpop.f32.mrb[0].mxu0
      %v3863 = vpop.f32.mrb[0].mxu0
      %v3864 = vadd.f32 %v3575, %v3863
      %v3865 = vpop.f32.mrb[0].mxu0
      %3866 = vmatprep.mubr.bf16.mxu0 0
      %3867 = vmatmul.mubr.bf16.gmra.mrb[0].mxu0 %v1683
      %v3868 = vpop.f32.mrb[0].mxu0
      %v3869 = vadd.f32 %v3580, %v3868
      %v3870 = vpop.f32.mrb[0].mxu0
      %v3871 = vpop.f32.mrb[0].mxu0
      %v3872 = vadd.f32 %v3583, %v3871
      %v3873 = vpop.f32.mrb[0].mxu0
      %3874 = vmatprep.mubr.bf16.mxu0 0
      %3875 = vmatmul.mubr.bf16.gmra.mrb[0].mxu0 %v1692
      %v3876 = vpop.f32.mrb[0].mxu0
      %v3877 = vadd.f32 %v3588, %v3876
      %v3878 = vpop.f32.mrb[0].mxu0
      %v3879 = vpop.f32.mrb[0].mxu0
      %v3880 = vadd.f32 %v3591, %v3879
      %v3881 = vpop.f32.mrb[0].mxu0
      %3882 = vmatprep.mubr.bf16.mxu0 0
      %3883 = vmatmul.mubr.bf16.gmra.mrb[0].mxu0 %v1701
      %v3884 = vpop.f32.mrb[0].mxu0
      %v3885 = vadd.f32 %v3596, %v3884
      %v3886 = vpop.f32.mrb[0].mxu0
      %v3887 = vpop.f32.mrb[0].mxu0
      %v3888 = vadd.f32 %v3599, %v3887
      %v3889 = vpop.f32.mrb[0].mxu0
      %3890 = vmatprep.mubr.bf16.mxu0 0
      %3891 = vmatmul.mubr.bf16.gmra.mrb[0].mxu0 %v1710
      %v3892 = vpop.f32.mrb[0].mxu0
      %v3893 = vadd.f32 %v3604, %v3892
      %v3894 = vpop.f32.mrb[0].mxu0
      %v3895 = vpop.f32.mrb[0].mxu0
      %v3896 = vadd.f32 %v3607, %v3895
      %v3897 = vpop.f32.mrb[0].mxu0
      %3898 = vmatprep.mubr.bf16.mxu0 0
      %3899 = vmatmul.mubr.bf16.gmra.mrb[0].mxu0 %v1719
      %v3900 = vpop.f32.mrb[0].mxu0
      %v3901 = vadd.f32 %v3612, %v3900
      %v3902 = vpop.f32.mrb[0].mxu0
      %v3903 = vpop.f32.mrb[0].mxu0
      %v3904 = vadd.f32 %v3615, %v3903
      %v3905 = vpop.f32.mrb[0].mxu0
      %3906 = vmatprep.mubr.bf16.mxu0 0
      %3907 = vmatmul.mubr.bf16.gmra.mrb[0].mxu0 %v1728
      %v3908 = vpop.f32.mrb[0].mxu0
      %v3909 = vadd.f32 %v3620, %v3908
      %v3910 = vpop.f32.mrb[0].mxu0
      %v3911 = vpop.f32.mrb[0].mxu0
      %v3912 = vadd.f32 %v3623, %v3911
      %v3913 = vpop.f32.mrb[0].mxu0
      %3914 = vmatprep.mubr.bf16.mxu0 0
      %3915 = vmatmul.mubr.bf16.gmra.mrb[0].mxu0 %v1737
      %v3916 = vpop.f32.mrb[0].mxu0
      %v3917 = vadd.f32 %v3628, %v3916
      %v3918 = vpop.f32.mrb[0].mxu0
      %v3919 = vpop.f32.mrb[0].mxu0
      %v3920 = vadd.f32 %v3631, %v3919
      %v3921 = vpop.f32.mrb[0].mxu0
      %3922 = vmatprep.mubr.bf16.mxu0 0
      %3923 = vmatmul.mubr.bf16.gmra.mrb[0].mxu0 %v1746
      %v3924 = vpop.f32.mrb[0].mxu0
      %v3925 = vadd.f32 %v3636, %v3924
      %v3926 = vpop.f32.mrb[0].mxu0
      %v3927 = vpop.f32.mrb[0].mxu0
      %v3928 = vadd.f32 %v3639, %v3927
      %v3929 = vpop.f32.mrb[0].mxu0
      %3930 = vmatprep.mubr.bf16.mxu0 0
      %3931 = vmatmul.mubr.bf16.gmra.mrb[0].mxu0 %v1755
      %v3932 = vpop.f32.mrb[0].mxu0
      %v3933 = vadd.f32 %v3644, %v3932
      %v3934 = vpop.f32.mrb[0].mxu0
      %v3935 = vpop.f32.mrb[0].mxu0
      %v3936 = vadd.f32 %v3647, %v3935
      %v3937 = vpop.f32.mrb[0].mxu0
      %3938 = vmatprep.mubr.bf16.mxu0 0
      %3939 = vmatmul.mubr.bf16.gmra.mrb[0].mxu0 %v1764
      %v3940 = vpop.f32.mrb[0].mxu0
      %v3941 = vadd.f32 %v3652, %v3940
      %v3942 = vpop.f32.mrb[0].mxu0
      %v3943 = vpop.f32.mrb[0].mxu0
      %v3944 = vadd.f32 %v3655, %v3943
      %v3945 = vpop.f32.mrb[0].mxu0
      %3946 = vmatprep.mubr.bf16.mxu0 0
      %3947 = vmatmul.mubr.bf16.gmra.mrb[0].mxu0 %v1773
      %v3948 = vpop.f32.mrb[0].mxu0
      %v3949 = vadd.f32 %v3660, %v3948
      %v3950 = vpop.f32.mrb[0].mxu0
      %v3951 = vpop.f32.mrb[0].mxu0
      %v3952 = vadd.f32 %v3663, %v3951
      %v3953 = vpop.f32.mrb[0].mxu0
      %3954 = vmatprep.mubr.bf16.mxu0 0
      %3955 = vmatmul.mubr.bf16.gmra.mrb[0].mxu0 %v1782
      %v3956 = vpop.f32.mrb[0].mxu0
      %v3957 = vadd.f32 %v3668, %v3956
      %v3958 = vpop.f32.mrb[0].mxu0
      %v3959 = vpop.f32.mrb[0].mxu0
      %v3960 = vadd.f32 %v3671, %v3959
      %v3961 = vpop.f32.mrb[0].mxu0
      %3962 = vmatprep.mubr.bf16.mxu0 0
      %3963 = vmatmul.mubr.bf16.gmra.mrb[0].mxu0 %v1791
      %v3964 = vpop.f32.mrb[0].mxu0
      %v3965 = vadd.f32 %v3676, %v3964
      %v3966 = vpop.f32.mrb[0].mxu0
      %v3967 = vpop.f32.mrb[0].mxu0
      %v3968 = vadd.f32 %v3679, %v3967
      %v3969 = vpop.f32.mrb[0].mxu0
      %3970 = vmatprep.mubr.bf16.mxu0 0
      %3971 = vmatmul.mubr.bf16.gmra.mrb[0].mxu0 %v1800
      %v3972 = vpop.f32.mrb[0].mxu0
      %v3973 = vadd.f32 %v3684, %v3972
      %v3974 = vpop.f32.mrb[0].mxu0
      %v3975 = vpop.f32.mrb[0].mxu0
      %v3976 = vadd.f32 %v3687, %v3975
      %v3977 = vpop.f32.mrb[0].mxu0
      %3978 = vmatprep.mubr.bf16.mxu0 0
      %3979 = vmatmul.mubr.bf16.gmra.mrb[0].mxu0 %v1809
      %v3980 = vpop.f32.mrb[0].mxu0
      %v3981 = vadd.f32 %v3692, %v3980
      %v3982 = vpop.f32.mrb[0].mxu0
      %v3983 = vpop.f32.mrb[0].mxu0
      %v3984 = vadd.f32 %v3695, %v3983
      %v3985 = vpop.f32.mrb[0].mxu0
      %3986 = vmatprep.mubr.bf16.mxu0 0
      %3987 = vmatmul.mubr.bf16.gmra.mrb[0].mxu0 %v1818
      %v3988 = vpop.f32.mrb[0].mxu0
      %v3989 = vadd.f32 %v3700, %v3988
      %v3990 = vpop.f32.mrb[0].mxu0
      %v3991 = vpop.f32.mrb[0].mxu0
      %v3992 = vadd.f32 %v3703, %v3991
      %v3993 = vpop.f32.mrb[0].mxu0
      %3994 = vmatprep.mubr.bf16.mxu0 0
      %3995 = vmatmul.mubr.bf16.gmra.mrb[0].mxu0 %v1827
      %v3996 = vpop.f32.mrb[0].mxu0
      %v3997 = vadd.f32 %v3708, %v3996
      %v3998 = vpop.f32.mrb[0].mxu0
      %v3999 = vpop.f32.mrb[0].mxu0
      %v4000 = vadd.f32 %v3711, %v3999
      %v4001 = vpop.f32.mrb[0].mxu0
      %4002 = vmatprep.mubr.bf16.mxu0 0
      %4003 = vmatmul.mubr.bf16.gmra.mrb[0].mxu0 %v1836
      %v4004 = vpop.f32.mrb[0].mxu0
      %v4005 = vadd.f32 %v3716, %v4004
      %v4006 = vpop.f32.mrb[0].mxu0
      %v4007 = vpop.f32.mrb[0].mxu0
      %v4008 = vadd.f32 %v3719, %v4007
      %v4009 = vpop.f32.mrb[0].mxu0
      %4010 = vmatprep.mubr.bf16.mxu0 0
      %4011 = vmatmul.mubr.bf16.gmra.mrb[0].mxu0 %v1845
      %v4012 = vpop.f32.mrb[0].mxu0
      %v4013 = vadd.f32 %v3724, %v4012
      %v4014 = vpop.f32.mrb[0].mxu0
      %v4015 = vpop.f32.mrb[0].mxu0
      %v4016 = vadd.f32 %v3727, %v4015
      %v4017 = vpop.f32.mrb[0].mxu0
      %4018 = vmatprep.mubr.bf16.mxu0 0
      %4019 = vmatmul.mubr.bf16.gmra.mrb[0].mxu0 %v1854
      %v4020 = vpop.f32.mrb[0].mxu0
      %v4021 = vadd.f32 %v3732, %v4020
      %v4022 = vpop.f32.mrb[0].mxu0
      %v4023 = vpop.f32.mrb[0].mxu0
      %v4024 = vadd.f32 %v3735, %v4023
      %v4025 = vpop.f32.mrb[0].mxu0
      %4026 = vmatprep.mubr.bf16.mxu0 0
      %4027 = vmatmul.mubr.bf16.gmra.mrb[0].mxu0 %v1863
      %v4028 = vpop.f32.mrb[0].mxu0
      %v4029 = vadd.f32 %v3740, %v4028
      %v4030 = vpop.f32.mrb[0].mxu0
      %v4031 = vpop.f32.mrb[0].mxu0
      %v4032 = vadd.f32 %v3743, %v4031
      %v4033 = vpop.f32.mrb[0].mxu0
      %4034 = vmatprep.mubr.bf16.mxu0 0
      %4035 = vmatmul.mubr.bf16.gmra.mrb[0].mxu0 %v1872
      %v4036 = vpop.f32.mrb[0].mxu0
      %v4037 = vadd.f32 %v3748, %v4036
      %v4038 = vpop.f32.mrb[0].mxu0
      %v4039 = vpop.f32.mrb[0].mxu0
      %v4040 = vadd.f32 %v3751, %v4039
      %v4041 = vpop.f32.mrb[0].mxu0
      %4042 = vmatprep.mubr.bf16.mxu0 0
      %4043 = vmatmul.mubr.bf16.gmra.mrb[0].mxu0 %v1881
      %v4044 = vpop.f32.mrb[0].mxu0
      %v4045 = vadd.f32 %v3756, %v4044
      %v4046 = vpop.f32.mrb[0].mxu0
      %v4047 = vpop.f32.mrb[0].mxu0
      %v4048 = vadd.f32 %v3759, %v4047
      %v4049 = vpop.f32.mrb[0].mxu0
      %4050 = vmatprep.mubr.bf16.mxu0 0
      %4051 = vmatmul.mubr.bf16.gmra.mrb[0].mxu0 %v1890
      %v4052 = vpop.f32.mrb[0].mxu0
      %v4053 = vadd.f32 %v3764, %v4052
      %v4054 = vpop.f32.mrb[0].mxu0
      %v4055 = vpop.f32.mrb[0].mxu0
      %v4056 = vadd.f32 %v3767, %v4055
      %v4057 = vpop.f32.mrb[0].mxu0
      %4058 = vmatprep.mubr.bf16.mxu0 0
      %4059 = vmatmul.mubr.bf16.gmra.mrb[0].mxu0 %v1899
      %v4060 = vpop.f32.mrb[0].mxu0
      %v4061 = vadd.f32 %v3772, %v4060
      %v4062 = vpop.f32.mrb[0].mxu0
      %v4063 = vpop.f32.mrb[0].mxu0
      %v4064 = vadd.f32 %v3775, %v4063
      %v4065 = vpop.f32.mrb[0].mxu0
      %4066 = vmatprep.mubr.bf16.mxu0 0
      %4067 = vmatmul.mubr.bf16.gmra.mrb[0].mxu0 %v1908
      %v4068 = vpop.f32.mrb[0].mxu0
      %v4069 = vadd.f32 %v3780, %v4068
      %v4070 = vpop.f32.mrb[0].mxu0
      %v4071 = vpop.f32.mrb[0].mxu0
      %v4072 = vadd.f32 %v3783, %v4071
      %v4073 = vpop.f32.mrb[0].mxu0
      %4074 = vmatprep.mubr.bf16.mxu0 0
      %4075 = vmatmul.mubr.bf16.gmra.mrb[0].mxu0 %v1917
      %v4076 = vpop.f32.mrb[0].mxu0
      %v4077 = vadd.f32 %v3788, %v4076
      %v4078 = vpop.f32.mrb[0].mxu0
      %v4079 = vpop.f32.mrb[0].mxu0
      %v4080 = vadd.f32 %v3791, %v4079
      %v4081 = vpop.f32.mrb[0].mxu0
      %4082 = vdwg.mxu0
      %v4083 = vld [vmem:[%s256] sm:$0x1]
      %v4085 = vlaneseq
      %v4086 = vshrl.u32 %v4085, 7
      %v4087 = vsub.s32 0, %v4086
      %v4088 = vrot.slane %v4083, %v4087
      %v4090 = vmul.f32 %v3829, %v4088
      %v4091 = vmul.f32 %v3832, %v4088
      %v4092 = vmul.f32 %v3837, %v4088
      %v4093 = vmul.f32 %v3840, %v4088
      %v4094 = vmul.f32 %v3845, %v4088
      %v4095 = vmul.f32 %v3848, %v4088
      %v4096 = vmul.f32 %v3853, %v4088
      %v4097 = vmul.f32 %v3856, %v4088
      %v4098 = vmul.f32 %v3861, %v4088
      %v4099 = vmul.f32 %v3864, %v4088
      %v4100 = vmul.f32 %v3869, %v4088
      %v4101 = vmul.f32 %v3872, %v4088
      %v4102 = vmul.f32 %v3877, %v4088
      %v4103 = vmul.f32 %v3880, %v4088
      %v4104 = vmul.f32 %v3885, %v4088
      %v4105 = vmul.f32 %v3888, %v4088
      %v4106 = vmul.f32 %v3893, %v4088
      %v4107 = vmul.f32 %v3896, %v4088
      %v4108 = vmul.f32 %v3901, %v4088
      %v4109 = vmul.f32 %v3904, %v4088
      %v4110 = vmul.f32 %v3909, %v4088
      %v4111 = vmul.f32 %v3912, %v4088
      %v4112 = vmul.f32 %v3917, %v4088
      %v4113 = vmul.f32 %v3920, %v4088
      %v4114 = vmul.f32 %v3925, %v4088
      %v4115 = vmul.f32 %v3928, %v4088
      %v4116 = vmul.f32 %v3933, %v4088
      %v4117 = vmul.f32 %v3936, %v4088
      %v4118 = vmul.f32 %v3941, %v4088
      %v4119 = vmul.f32 %v3944, %v4088
      %v4120 = vmul.f32 %v3949, %v4088
      %v4121 = vmul.f32 %v3952, %v4088
      %v4122 = vmul.f32 %v3957, %v4088
      %v4123 = vmul.f32 %v3960, %v4088
      %v4124 = vmul.f32 %v3965, %v4088
      %v4125 = vmul.f32 %v3968, %v4088
      %v4126 = vmul.f32 %v3973, %v4088
      %v4127 = vmul.f32 %v3976, %v4088
      %v4128 = vmul.f32 %v3981, %v4088
      %v4129 = vmul.f32 %v3984, %v4088
      %v4130 = vmul.f32 %v3989, %v4088
      %v4131 = vmul.f32 %v3992, %v4088
      %v4132 = vmul.f32 %v3997, %v4088
      %v4133 = vmul.f32 %v4000, %v4088
      %v4134 = vmul.f32 %v4005, %v4088
      %v4135 = vmul.f32 %v4008, %v4088
      %v4136 = vmul.f32 %v4013, %v4088
      %v4137 = vmul.f32 %v4016, %v4088
      %v4138 = vmul.f32 %v4021, %v4088
      %v4139 = vmul.f32 %v4024, %v4088
      %v4140 = vmul.f32 %v4029, %v4088
      %v4141 = vmul.f32 %v4032, %v4088
      %v4142 = vmul.f32 %v4037, %v4088
      %v4143 = vmul.f32 %v4040, %v4088
      %v4144 = vmul.f32 %v4045, %v4088
      %v4145 = vmul.f32 %v4048, %v4088
      %v4146 = vmul.f32 %v4053, %v4088
      %v4147 = vmul.f32 %v4056, %v4088
      %v4148 = vmul.f32 %v4061, %v4088
      %v4149 = vmul.f32 %v4064, %v4088
      %v4150 = vmul.f32 %v4069, %v4088
      %v4151 = vmul.f32 %v4072, %v4088
      %v4152 = vmul.f32 %v4077, %v4088
      %v4153 = vmul.f32 %v4080, %v4088
      %v4154 = vld [vmem:[%s259] sm:$0x1]
      %v4156 = vlaneseq
      %v4157 = vshrl.u32 %v4156, 7
      %v4158 = vsub.s32 0, %v4157
      %v4159 = vrot.slane %v4154, %v4158
      %v4161 = vadd.f32 %v4090, %v4159
      %v4162 = vadd.f32 %v4091, %v4159
      %v4163 = vadd.f32 %v4092, %v4159
      %v4164 = vadd.f32 %v4093, %v4159
      %v4165 = vadd.f32 %v4094, %v4159
      %v4166 = vadd.f32 %v4095, %v4159
      %v4167 = vadd.f32 %v4096, %v4159
      %v4168 = vadd.f32 %v4097, %v4159
      %v4169 = vadd.f32 %v4098, %v4159
      %v4170 = vadd.f32 %v4099, %v4159
      %v4171 = vadd.f32 %v4100, %v4159
      %v4172 = vadd.f32 %v4101, %v4159
      %v4173 = vadd.f32 %v4102, %v4159
      %v4174 = vadd.f32 %v4103, %v4159
      %v4175 = vadd.f32 %v4104, %v4159
      %v4176 = vadd.f32 %v4105, %v4159
      %v4177 = vadd.f32 %v4106, %v4159
      %v4178 = vadd.f32 %v4107, %v4159
      %v4179 = vadd.f32 %v4108, %v4159
      %v4180 = vadd.f32 %v4109, %v4159
      %v4181 = vadd.f32 %v4110, %v4159
      %v4182 = vadd.f32 %v4111, %v4159
      %v4183 = vadd.f32 %v4112, %v4159
      %v4184 = vadd.f32 %v4113, %v4159
      %v4185 = vadd.f32 %v4114, %v4159
      %v4186 = vadd.f32 %v4115, %v4159
      %v4187 = vadd.f32 %v4116, %v4159
      %v4188 = vadd.f32 %v4117, %v4159
      %v4189 = vadd.f32 %v4118, %v4159
      %v4190 = vadd.f32 %v4119, %v4159
      %v4191 = vadd.f32 %v4120, %v4159
      %v4192 = vadd.f32 %v4121, %v4159
      %v4193 = vadd.f32 %v4122, %v4159
      %v4194 = vadd.f32 %v4123, %v4159
      %v4195 = vadd.f32 %v4124, %v4159
      %v4196 = vadd.f32 %v4125, %v4159
      %v4197 = vadd.f32 %v4126, %v4159
      %v4198 = vadd.f32 %v4127, %v4159
      %v4199 = vadd.f32 %v4128, %v4159
      %v4200 = vadd.f32 %v4129, %v4159
      %v4201 = vadd.f32 %v4130, %v4159
      %v4202 = vadd.f32 %v4131, %v4159
      %v4203 = vadd.f32 %v4132, %v4159
      %v4204 = vadd.f32 %v4133, %v4159
      %v4205 = vadd.f32 %v4134, %v4159
      %v4206 = vadd.f32 %v4135, %v4159
      %v4207 = vadd.f32 %v4136, %v4159
      %v4208 = vadd.f32 %v4137, %v4159
      %v4209 = vadd.f32 %v4138, %v4159
      %v4210 = vadd.f32 %v4139, %v4159
      %v4211 = vadd.f32 %v4140, %v4159
      %v4212 = vadd.f32 %v4141, %v4159
      %v4213 = vadd.f32 %v4142, %v4159
      %v4214 = vadd.f32 %v4143, %v4159
      %v4215 = vadd.f32 %v4144, %v4159
      %v4216 = vadd.f32 %v4145, %v4159
      %v4217 = vadd.f32 %v4146, %v4159
      %v4218 = vadd.f32 %v4147, %v4159
      %v4219 = vadd.f32 %v4148, %v4159
      %v4220 = vadd.f32 %v4149, %v4159
      %v4221 = vadd.f32 %v4150, %v4159
      %v4222 = vadd.f32 %v4151, %v4159
      %v4223 = vadd.f32 %v4152, %v4159
      %v4224 = vadd.f32 %v4153, %v4159
      %v4225 = vmax.f32 %v4161, 0.0
      %v4226 = vmax.f32 %v4162, 0.0
      %v4227 = vmax.f32 %v4163, 0.0
      %v4228 = vmax.f32 %v4164, 0.0
      %v4229 = vmax.f32 %v4165, 0.0
      %v4230 = vmax.f32 %v4166, 0.0
      %v4231 = vmax.f32 %v4167, 0.0
      %v4232 = vmax.f32 %v4168, 0.0
      %v4233 = vmax.f32 %v4169, 0.0
      %v4234 = vmax.f32 %v4170, 0.0
      %v4235 = vmax.f32 %v4171, 0.0
      %v4236 = vmax.f32 %v4172, 0.0
      %v4237 = vmax.f32 %v4173, 0.0
      %v4238 = vmax.f32 %v4174, 0.0
      %v4239 = vmax.f32 %v4175, 0.0
      %v4240 = vmax.f32 %v4176, 0.0
      %v4241 = vmax.f32 %v4177, 0.0
      %v4242 = vmax.f32 %v4178, 0.0
      %v4243 = vmax.f32 %v4179, 0.0
      %v4244 = vmax.f32 %v4180, 0.0
      %v4245 = vmax.f32 %v4181, 0.0
      %v4246 = vmax.f32 %v4182, 0.0
      %v4247 = vmax.f32 %v4183, 0.0
      %v4248 = vmax.f32 %v4184, 0.0
      %v4249 = vmax.f32 %v4185, 0.0
      %v4250 = vmax.f32 %v4186, 0.0
      %v4251 = vmax.f32 %v4187, 0.0
      %v4252 = vmax.f32 %v4188, 0.0
      %v4253 = vmax.f32 %v4189, 0.0
      %v4254 = vmax.f32 %v4190, 0.0
      %v4255 = vmax.f32 %v4191, 0.0
      %v4256 = vmax.f32 %v4192, 0.0
      %v4257 = vmax.f32 %v4193, 0.0
      %v4258 = vmax.f32 %v4194, 0.0
      %v4259 = vmax.f32 %v4195, 0.0
      %v4260 = vmax.f32 %v4196, 0.0
      %v4261 = vmax.f32 %v4197, 0.0
      %v4262 = vmax.f32 %v4198, 0.0
      %v4263 = vmax.f32 %v4199, 0.0
      %v4264 = vmax.f32 %v4200, 0.0
      %v4265 = vmax.f32 %v4201, 0.0
      %v4266 = vmax.f32 %v4202, 0.0
      %v4267 = vmax.f32 %v4203, 0.0
      %v4268 = vmax.f32 %v4204, 0.0
      %v4269 = vmax.f32 %v4205, 0.0
      %v4270 = vmax.f32 %v4206, 0.0
      %v4271 = vmax.f32 %v4207, 0.0
      %v4272 = vmax.f32 %v4208, 0.0
      %v4273 = vmax.f32 %v4209, 0.0
      %v4274 = vmax.f32 %v4210, 0.0
      %v4275 = vmax.f32 %v4211, 0.0
      %v4276 = vmax.f32 %v4212, 0.0
      %v4277 = vmax.f32 %v4213, 0.0
      %v4278 = vmax.f32 %v4214, 0.0
      %v4279 = vmax.f32 %v4215, 0.0
      %v4280 = vmax.f32 %v4216, 0.0
      %v4281 = vmax.f32 %v4217, 0.0
      %v4282 = vmax.f32 %v4218, 0.0
      %v4283 = vmax.f32 %v4219, 0.0
      %v4284 = vmax.f32 %v4220, 0.0
      %v4285 = vmax.f32 %v4221, 0.0
      %v4286 = vmax.f32 %v4222, 0.0
      %v4287 = vmax.f32 %v4223, 0.0
      %v4288 = vmax.f32 %v4224, 0.0
      %v4289 = vpack.c.bf16 %v4226, %v4225
      %v4290 = vpack.c.bf16 %v4228, %v4227
      %v4291 = vpack.c.bf16 %v4230, %v4229
      %v4292 = vpack.c.bf16 %v4232, %v4231
      %v4293 = vpack.c.bf16 %v4234, %v4233
      %v4294 = vpack.c.bf16 %v4236, %v4235
      %v4295 = vpack.c.bf16 %v4238, %v4237
      %v4296 = vpack.c.bf16 %v4240, %v4239
      %v4297 = vpack.c.bf16 %v4242, %v4241
      %v4298 = vpack.c.bf16 %v4244, %v4243
      %v4299 = vpack.c.bf16 %v4246, %v4245
      %v4300 = vpack.c.bf16 %v4248, %v4247
      %v4301 = vpack.c.bf16 %v4250, %v4249
      %v4302 = vpack.c.bf16 %v4252, %v4251
      %v4303 = vpack.c.bf16 %v4254, %v4253
      %v4304 = vpack.c.bf16 %v4256, %v4255
      %v4305 = vpack.c.bf16 %v4258, %v4257
      %v4306 = vpack.c.bf16 %v4260, %v4259
      %v4307 = vpack.c.bf16 %v4262, %v4261
      %v4308 = vpack.c.bf16 %v4264, %v4263
      %v4309 = vpack.c.bf16 %v4266, %v4265
      %v4310 = vpack.c.bf16 %v4268, %v4267
      %v4311 = vpack.c.bf16 %v4270, %v4269
      %v4312 = vpack.c.bf16 %v4272, %v4271
      %v4313 = vpack.c.bf16 %v4274, %v4273
      %v4314 = vpack.c.bf16 %v4276, %v4275
      %v4315 = vpack.c.bf16 %v4278, %v4277
      %v4316 = vpack.c.bf16 %v4280, %v4279
      %v4317 = vpack.c.bf16 %v4282, %v4281
      %v4318 = vpack.c.bf16 %v4284, %v4283
      %v4319 = vpack.c.bf16 %v4286, %v4285
      %v4320 = vpack.c.bf16 %v4288, %v4287
      %v4353 = vunpack.c.l.b16 %v4289
      %v4354 = vunpack.c.h.b16 %v4289
      %v4355 = vunpack.c.l.b16 %v4290
      %v4356 = vunpack.c.h.b16 %v4290
      %v4357 = vunpack.c.l.b16 %v4291
      %v4358 = vunpack.c.h.b16 %v4291
      %v4359 = vunpack.c.l.b16 %v4292
      %v4360 = vunpack.c.h.b16 %v4292
      %v4361 = vunpack.c.l.b16 %v4293
      %v4362 = vunpack.c.h.b16 %v4293
      %v4363 = vunpack.c.l.b16 %v4294
      %v4364 = vunpack.c.h.b16 %v4294
      %v4365 = vunpack.c.l.b16 %v4295
      %v4366 = vunpack.c.h.b16 %v4295
      %v4367 = vunpack.c.l.b16 %v4296
      %v4368 = vunpack.c.h.b16 %v4296
      %v4369 = vunpack.c.l.b16 %v4297
      %v4370 = vunpack.c.h.b16 %v4297
      %v4371 = vunpack.c.l.b16 %v4298
      %v4372 = vunpack.c.h.b16 %v4298
      %v4373 = vunpack.c.l.b16 %v4299
      %v4374 = vunpack.c.h.b16 %v4299
      %v4375 = vunpack.c.l.b16 %v4300
      %v4376 = vunpack.c.h.b16 %v4300
      %v4377 = vunpack.c.l.b16 %v4301
      %v4378 = vunpack.c.h.b16 %v4301
      %v4379 = vunpack.c.l.b16 %v4302
      %v4380 = vunpack.c.h.b16 %v4302
      %v4381 = vunpack.c.l.b16 %v4303
      %v4382 = vunpack.c.h.b16 %v4303
      %v4383 = vunpack.c.l.b16 %v4304
      %v4384 = vunpack.c.h.b16 %v4304
      %v4385 = vunpack.c.l.b16 %v4305
      %v4386 = vunpack.c.h.b16 %v4305
      %v4387 = vunpack.c.l.b16 %v4306
      %v4388 = vunpack.c.h.b16 %v4306
      %v4389 = vunpack.c.l.b16 %v4307
      %v4390 = vunpack.c.h.b16 %v4307
      %v4391 = vunpack.c.l.b16 %v4308
      %v4392 = vunpack.c.h.b16 %v4308
      %v4393 = vunpack.c.l.b16 %v4309
      %v4394 = vunpack.c.h.b16 %v4309
      %v4395 = vunpack.c.l.b16 %v4310
      %v4396 = vunpack.c.h.b16 %v4310
      %v4397 = vunpack.c.l.b16 %v4311
      %v4398 = vunpack.c.h.b16 %v4311
      %v4399 = vunpack.c.l.b16 %v4312
      %v4400 = vunpack.c.h.b16 %v4312
      %v4401 = vunpack.c.l.b16 %v4313
      %v4402 = vunpack.c.h.b16 %v4313
      %v4403 = vunpack.c.l.b16 %v4314
      %v4404 = vunpack.c.h.b16 %v4314
      %v4405 = vunpack.c.l.b16 %v4315
      %v4406 = vunpack.c.h.b16 %v4315
      %v4407 = vunpack.c.l.b16 %v4316
      %v4408 = vunpack.c.h.b16 %v4316
      %v4409 = vunpack.c.l.b16 %v4317
      %v4410 = vunpack.c.h.b16 %v4317
      %v4411 = vunpack.c.l.b16 %v4318
      %v4412 = vunpack.c.h.b16 %v4318
      %v4413 = vunpack.c.l.b16 %v4319
      %v4414 = vunpack.c.h.b16 %v4319
      %v4415 = vunpack.c.l.b16 %v4320
      %v4416 = vunpack.c.h.b16 %v4320
      %v4417 = vpack.c.b16 %v4353, %v4353
      %v4418 = vpack.c.b16 %v4354, %v4354
      %v4419 = vpack.c.b16 %v4355, %v4355
      %v4420 = vpack.c.b16 %v4356, %v4356
      %v4421 = vpack.c.b16 %v4357, %v4357
      %v4422 = vpack.c.b16 %v4358, %v4358
      %v4423 = vpack.c.b16 %v4359, %v4359
      %v4424 = vpack.c.b16 %v4360, %v4360
      %v4425 = vpack.c.b16 %v4361, %v4361
      %v4426 = vpack.c.b16 %v4362, %v4362
      %v4427 = vpack.c.b16 %v4363, %v4363
      %v4428 = vpack.c.b16 %v4364, %v4364
      %v4429 = vpack.c.b16 %v4365, %v4365
      %v4430 = vpack.c.b16 %v4366, %v4366
      %v4431 = vpack.c.b16 %v4367, %v4367
      %v4432 = vpack.c.b16 %v4368, %v4368
      %v4433 = vpack.c.b16 %v4369, %v4369
      %v4434 = vpack.c.b16 %v4370, %v4370
      %v4435 = vpack.c.b16 %v4371, %v4371
      %v4436 = vpack.c.b16 %v4372, %v4372
      %v4437 = vpack.c.b16 %v4373, %v4373
      %v4438 = vpack.c.b16 %v4374, %v4374
      %v4439 = vpack.c.b16 %v4375, %v4375
      %v4440 = vpack.c.b16 %v4376, %v4376
      %v4441 = vpack.c.b16 %v4377, %v4377
      %v4442 = vpack.c.b16 %v4378, %v4378
      %v4443 = vpack.c.b16 %v4379, %v4379
      %v4444 = vpack.c.b16 %v4380, %v4380
      %v4445 = vpack.c.b16 %v4381, %v4381
      %v4446 = vpack.c.b16 %v4382, %v4382
      %v4447 = vpack.c.b16 %v4383, %v4383
      %v4448 = vpack.c.b16 %v4384, %v4384
      %v4449 = vpack.c.b16 %v4385, %v4385
      %v4450 = vpack.c.b16 %v4386, %v4386
      %v4451 = vpack.c.b16 %v4387, %v4387
      %v4452 = vpack.c.b16 %v4388, %v4388
      %v4453 = vpack.c.b16 %v4389, %v4389
      %v4454 = vpack.c.b16 %v4390, %v4390
      %v4455 = vpack.c.b16 %v4391, %v4391
      %v4456 = vpack.c.b16 %v4392, %v4392
      %v4457 = vpack.c.b16 %v4393, %v4393
      %v4458 = vpack.c.b16 %v4394, %v4394
      %v4459 = vpack.c.b16 %v4395, %v4395
      %v4460 = vpack.c.b16 %v4396, %v4396
      %v4461 = vpack.c.b16 %v4397, %v4397
      %v4462 = vpack.c.b16 %v4398, %v4398
      %v4463 = vpack.c.b16 %v4399, %v4399
      %v4464 = vpack.c.b16 %v4400, %v4400
      %v4465 = vpack.c.b16 %v4401, %v4401
      %v4466 = vpack.c.b16 %v4402, %v4402
      %v4467 = vpack.c.b16 %v4403, %v4403
      %v4468 = vpack.c.b16 %v4404, %v4404
      %v4469 = vpack.c.b16 %v4405, %v4405
      %v4470 = vpack.c.b16 %v4406, %v4406
      %v4471 = vpack.c.b16 %v4407, %v4407
      %v4472 = vpack.c.b16 %v4408, %v4408
      %v4473 = vpack.c.b16 %v4409, %v4409
      %v4474 = vpack.c.b16 %v4410, %v4410
      %v4475 = vpack.c.b16 %v4411, %v4411
      %v4476 = vpack.c.b16 %v4412, %v4412
      %v4477 = vpack.c.b16 %v4413, %v4413
      %v4478 = vpack.c.b16 %v4414, %v4414
      %v4479 = vpack.c.b16 %v4415, %v4415
      %v4480 = vpack.c.b16 %v4416, %v4416
      %4545 = vst [vmem:[%s267] sm:$0xf] %v4417
      %4546 = vst [vmem:[%s267 + $0x4] sm:$0xf] %v4418
      %4547 = vst [vmem:[%s267 + $0x8] sm:$0xf] %v4419
      %4548 = vst [vmem:[%s267 + $0xc] sm:$0xf] %v4420
      %4549 = vst [vmem:[%s267 + $0x10] sm:$0xf] %v4421
      %4550 = vst [vmem:[%s267 + $0x14] sm:$0xf] %v4422
      %4551 = vst [vmem:[%s267 + $0x18] sm:$0xf] %v4423
      %4552 = vst [vmem:[%s267 + $0x1c] sm:$0xf] %v4424
      %4553 = vst [vmem:[%s267 + $0x20] sm:$0xf] %v4425
      %4554 = vst [vmem:[%s267 + $0x24] sm:$0xf] %v4426
      %4555 = vst [vmem:[%s267 + $0x28] sm:$0xf] %v4427
      %4556 = vst [vmem:[%s267 + $0x2c] sm:$0xf] %v4428
      %4557 = vst [vmem:[%s267 + $0x30] sm:$0xf] %v4429
      %4558 = vst [vmem:[%s267 + $0x34] sm:$0xf] %v4430
      %4559 = vst [vmem:[%s267 + $0x38] sm:$0xf] %v4431
      %4560 = vst [vmem:[%s267 + $0x3c] sm:$0xf] %v4432
      %4561 = vst [vmem:[%s267 + $0x40] sm:$0xf] %v4433
      %4562 = vst [vmem:[%s267 + $0x44] sm:$0xf] %v4434
      %4563 = vst [vmem:[%s267 + $0x48] sm:$0xf] %v4435
      %4564 = vst [vmem:[%s267 + $0x4c] sm:$0xf] %v4436
      %4565 = vst [vmem:[%s267 + $0x50] sm:$0xf] %v4437
      %4566 = vst [vmem:[%s267 + $0x54] sm:$0xf] %v4438
      %4567 = vst [vmem:[%s267 + $0x58] sm:$0xf] %v4439
      %4568 = vst [vmem:[%s267 + $0x5c] sm:$0xf] %v4440
      %4569 = vst [vmem:[%s267 + $0x60] sm:$0xf] %v4441
      %4570 = vst [vmem:[%s267 + $0x64] sm:$0xf] %v4442
      %4571 = vst [vmem:[%s267 + $0x68] sm:$0xf] %v4443
      %4572 = vst [vmem:[%s267 + $0x6c] sm:$0xf] %v4444
      %4573 = vst [vmem:[%s267 + $0x70] sm:$0xf] %v4445
      %4574 = vst [vmem:[%s267 + $0x74] sm:$0xf] %v4446
      %4575 = vst [vmem:[%s267 + $0x78] sm:$0xf] %v4447
      %4576 = vst [vmem:[%s267 + $0x7c] sm:$0xf] %v4448
      %4577 = vst [vmem:[%s267 + $0x80] sm:$0xf] %v4449
      %4578 = vst [vmem:[%s267 + $0x84] sm:$0xf] %v4450
      %4579 = vst [vmem:[%s267 + $0x88] sm:$0xf] %v4451
      %4580 = vst [vmem:[%s267 + $0x8c] sm:$0xf] %v4452
      %4581 = vst [vmem:[%s267 + $0x90] sm:$0xf] %v4453
      %4582 = vst [vmem:[%s267 + $0x94] sm:$0xf] %v4454
      %4583 = vst [vmem:[%s267 + $0x98] sm:$0xf] %v4455
      %4584 = vst [vmem:[%s267 + $0x9c] sm:$0xf] %v4456
      %4585 = vst [vmem:[%s267 + $0xa0] sm:$0xf] %v4457
      %4586 = vst [vmem:[%s267 + $0xa4] sm:$0xf] %v4458
      %4587 = vst [vmem:[%s267 + $0xa8] sm:$0xf] %v4459
      %4588 = vst [vmem:[%s267 + $0xac] sm:$0xf] %v4460
      %4589 = vst [vmem:[%s267 + $0xb0] sm:$0xf] %v4461
      %4590 = vst [vmem:[%s267 + $0xb4] sm:$0xf] %v4462
      %4591 = vst [vmem:[%s267 + $0xb8] sm:$0xf] %v4463
      %4592 = vst [vmem:[%s267 + $0xbc] sm:$0xf] %v4464
      %4593 = vst [vmem:[%s267 + $0xc0] sm:$0xf] %v4465
      %4594 = vst [vmem:[%s267 + $0xc4] sm:$0xf] %v4466
      %4595 = vst [vmem:[%s267 + $0xc8] sm:$0xf] %v4467
      %4596 = vst [vmem:[%s267 + $0xcc] sm:$0xf] %v4468
      %4597 = vst [vmem:[%s267 + $0xd0] sm:$0xf] %v4469
      %4598 = vst [vmem:[%s267 + $0xd4] sm:$0xf] %v4470
      %4599 = vst [vmem:[%s267 + $0xd8] sm:$0xf] %v4471
      %4600 = vst [vmem:[%s267 + $0xdc] sm:$0xf] %v4472
      %4601 = vst [vmem:[%s267 + $0xe0] sm:$0xf] %v4473
      %4602 = vst [vmem:[%s267 + $0xe4] sm:$0xf] %v4474
      %4603 = vst [vmem:[%s267 + $0xe8] sm:$0xf] %v4475
      %4604 = vst [vmem:[%s267 + $0xec] sm:$0xf] %v4476
      %4605 = vst [vmem:[%s267 + $0xf0] sm:$0xf] %v4477
      %4606 = vst [vmem:[%s267 + $0xf4] sm:$0xf] %v4478
      %4607 = vst [vmem:[%s267 + $0xf8] sm:$0xf] %v4479
      %4608 = vst [vmem:[%s267 + $0xfc] sm:$0xf] %v4480
      %s4609 = smul.u32 64, %s19
      %p4610 = scmp.lt.s32.totalorder %s4609, 127
      %s4611 = scalar_select %p4610, %s4609, 127
      %p4612 = scmp.lt.s32.totalorder %s20, 0
      %s4613 = scalar_select %p4612, %s20, 0
      %s4614 = sadd.s32 %s4613, %s4611
      %s4615 = smul.addr %s4614, 4
      %s4616 = scalar_lea.vmem %s4, %s4615
      // Predicated region
      $region37: #{resnet_forward.11} parent=35 // pred_check
        %p4617 = pneg %p151
      $region38: #{resnet_forward.11} parent=35 // pred_check_branch
        %4619 = sbr.rel (%p4617) target = $region40
      $region39: #{resnet_forward.11} parent=35 // pred_region
        %s4620 = smul.u32 64, %s19
      $region40: #{resnet_forward.11} parent=35 // pred_fallthru
        _
    $region36: #{resnet_forward.11} parent=5 // pred_fallthru
      _
    %p4621 = scmp.le.s32.totalorder 2, %s10
    // Predicated region
    $region41: #{resnet_forward.11} parent=5 // pred_check
      %p4622 = pneg %p4621
    $region42: #{resnet_forward.11} parent=5 // pred_check_branch
      %4624 = sbr.rel (%p4622) target = $region44
    $region43: #{resnet_forward.11} parent=5 // pred_region
      %s4625 = ssub.s32 %s10, 2
      // Predicated region
      $region45: #{resnet_forward.11} parent=43 // pred_check
        %p4626 = pneg %p157
      $region46: #{resnet_forward.11} parent=43 // pred_check_branch
        %4628 = sbr.rel (%p4626) target = $region48
      $region47: #{resnet_forward.11} parent=43 // pred_region
        %s4629 = smul.u32 64, %s21
        %p4630 = scmp.lt.s32.totalorder %s4629, 127
        %s4631 = scalar_select %p4630, %s4629, 127
        %p4632 = scmp.lt.s32.totalorder %s22, 0
        %s4633 = scalar_select %p4632, %s22, 0
        %s4634 = sadd.s32 %s4633, %s4631
        %s4635 = smul.addr %s4634, 4
        %s4636 = scalar_lea.vmem %s4, %s4635
      $region48: #{resnet_forward.11} parent=43 // pred_fallthru
        _
    $region44: #{resnet_forward.11} parent=5 // pred_fallthru
      _
  $region6: #{resnet_forward.11} parent=0 // loop_footer
    %s14 = sadd.s32 1, %s10
  $region7: #{resnet_forward.11} parent=0 // loop_footer_branch
    %9 = sbr.rel target = $region3
  $region8: #{resnet_forward.11} parent=0 // loop_exit
    _

// kernel: resnet_forward.13
$region0: #{resnet_forward.13}
  #allocation0 [shape = 'u32[]', space=smem, size = 0x4, offset = 0x4, fixed_abs, tag = 'smem constant byte address 0x4 - core index']
  #allocation1 [shape = 'u32[144,128]{1,0:T(1,128)}', space=vmem, size = 0x12000, scoped, tag = 'internal scratch']
  %s0 = inlined_call_operand.vmem [shape: bf16[128,128], index: 0, kind: input, shape index: {}]
  %s1 = inlined_call_operand.vmem [shape: bf16[128,128], index: 1, kind: input, shape index: {}]
  %s2 = inlined_call_operand.vmem [shape: f32[1,128], index: 2, kind: input, shape index: {}]
  %s3 = inlined_call_operand.vmem [shape: f32[1,128], index: 3, kind: input, shape index: {}]
  %s4 = inlined_call_operand.vmem [shape: bf16[128,128], index: 4, kind: output, shape index: {}]
  %s5 = sld [smem:[#allocation0]]
  $region26: #{resnet_forward.13} parent=0
    _
  %s7 = ssub.s32 1, %s5
  %s8 = scalar_select 0, %s7, %s5
  // Predicated region
  $region2: #{resnet_forward.13} parent=0 // pred_check
    _
  $region3: #{resnet_forward.13} parent=0 // pred_check_branch
    %10 = sbr.rel (0) target = $region5
  $region4: #{resnet_forward.13} parent=0 // pred_region
    _
  $region5: #{resnet_forward.13} parent=0 // pred_fallthru
    _
  // Predicated region
  $region6: #{resnet_forward.13} parent=0 // pred_check
    _
  $region7: #{resnet_forward.13} parent=0 // pred_check_branch
    %12 = sbr.rel (0) target = $region9
  $region8: #{resnet_forward.13} parent=0 // pred_region
    _
  $region9: #{resnet_forward.13} parent=0 // pred_fallthru
    _
  // Predicated region
  $region10: #{resnet_forward.13} parent=0 // pred_check
    _
  $region11: #{resnet_forward.13} parent=0 // pred_check_branch
    %14 = sbr.rel (0) target = $region13
  $region12: #{resnet_forward.13} parent=0 // pred_region
    _
  $region13: #{resnet_forward.13} parent=0 // pred_fallthru
    _
  // Predicated region
  $region14: #{resnet_forward.13} parent=0 // pred_check
    _
  $region15: #{resnet_forward.13} parent=0 // pred_check_branch
    %16 = sbr.rel (0) target = $region17
  $region16: #{resnet_forward.13} parent=0 // pred_region
    _
  $region17: #{resnet_forward.13} parent=0 // pred_fallthru
    _
  %v18 = vld [vmem:[%s0] sm:$0xf]
  %v19 = vld [vmem:[%s0 + $0x4] sm:$0xf]
  %v20 = vld [vmem:[%s0 + $0x8] sm:$0xf]
  %v21 = vld [vmem:[%s0 + $0xc] sm:$0xf]
  %v22 = vld [vmem:[%s0 + $0x10] sm:$0xf]
  %v23 = vld [vmem:[%s0 + $0x14] sm:$0xf]
  %v24 = vld [vmem:[%s0 + $0x18] sm:$0xf]
  %v25 = vld [vmem:[%s0 + $0x1c] sm:$0xf]
  %v26 = vld [vmem:[%s0 + $0x20] sm:$0xf]
  %v27 = vld [vmem:[%s0 + $0x24] sm:$0xf]
  %v28 = vld [vmem:[%s0 + $0x28] sm:$0xf]
  %v29 = vld [vmem:[%s0 + $0x2c] sm:$0xf]
  %v30 = vld [vmem:[%s0 + $0x30] sm:$0xf]
  %v31 = vld [vmem:[%s0 + $0x34] sm:$0xf]
  %v32 = vld [vmem:[%s0 + $0x38] sm:$0xf]
  %v33 = vld [vmem:[%s0 + $0x3c] sm:$0xf]
  %v34 = vld [vmem:[%s1] sm:$0xf]
  %v35 = vld [vmem:[%s1 + $0x4] sm:$0xf]
  %v36 = vld [vmem:[%s1 + $0x8] sm:$0xf]
  %v37 = vld [vmem:[%s1 + $0xc] sm:$0xf]
  %v38 = vld [vmem:[%s1 + $0x10] sm:$0xf]
  %v39 = vld [vmem:[%s1 + $0x14] sm:$0xf]
  %v40 = vld [vmem:[%s1 + $0x18] sm:$0xf]
  %v41 = vld [vmem:[%s1 + $0x1c] sm:$0xf]
  %v42 = vld [vmem:[%s1 + $0x20] sm:$0xf]
  %v43 = vld [vmem:[%s1 + $0x24] sm:$0xf]
  %v44 = vld [vmem:[%s1 + $0x28] sm:$0xf]
  %v45 = vld [vmem:[%s1 + $0x2c] sm:$0xf]
  %v46 = vld [vmem:[%s1 + $0x30] sm:$0xf]
  %v47 = vld [vmem:[%s1 + $0x34] sm:$0xf]
  %v48 = vld [vmem:[%s1 + $0x38] sm:$0xf]
  %v49 = vld [vmem:[%s1 + $0x3c] sm:$0xf]
  %v66 = vunpack.c.l.b16 %v18
  %v67 = vunpack.c.l.b16 %v19
  %v68 = vunpack.c.l.b16 %v20
  %v69 = vunpack.c.l.b16 %v21
  %v70 = vunpack.c.l.b16 %v22
  %v71 = vunpack.c.l.b16 %v23
  %v72 = vunpack.c.l.b16 %v24
  %v73 = vunpack.c.l.b16 %v25
  %v74 = vunpack.c.l.b16 %v26
  %v75 = vunpack.c.l.b16 %v27
  %v76 = vunpack.c.l.b16 %v28
  %v77 = vunpack.c.l.b16 %v29
  %v78 = vunpack.c.l.b16 %v30
  %v79 = vunpack.c.l.b16 %v31
  %v80 = vunpack.c.l.b16 %v32
  %v81 = vunpack.c.l.b16 %v33
  %v82 = vpack.c.b16 %v67, %v66
  %v83 = vpack.c.b16 %v69, %v68
  %v84 = vpack.c.b16 %v71, %v70
  %v85 = vpack.c.b16 %v73, %v72
  %v86 = vpack.c.b16 %v75, %v74
  %v87 = vpack.c.b16 %v77, %v76
  %v88 = vpack.c.b16 %v79, %v78
  %v89 = vpack.c.b16 %v81, %v80
  %v114 = vunpack.c.l.b16 %v34
  %v115 = vunpack.c.l.b16 %v35
  %v116 = vunpack.c.l.b16 %v36
  %v117 = vunpack.c.l.b16 %v37
  %v118 = vunpack.c.l.b16 %v38
  %v119 = vunpack.c.l.b16 %v39
  %v120 = vunpack.c.l.b16 %v40
  %v121 = vunpack.c.l.b16 %v41
  %v122 = vunpack.c.l.b16 %v42
  %v123 = vunpack.c.l.b16 %v43
  %v124 = vunpack.c.l.b16 %v44
  %v125 = vunpack.c.l.b16 %v45
  %v126 = vunpack.c.l.b16 %v46
  %v127 = vunpack.c.l.b16 %v47
  %v128 = vunpack.c.l.b16 %v48
  %v129 = vunpack.c.l.b16 %v49
  %v130 = vpack.c.b16 %v115, %v114
  %v131 = vpack.c.b16 %v117, %v116
  %v132 = vpack.c.b16 %v119, %v118
  %v133 = vpack.c.b16 %v121, %v120
  %v134 = vpack.c.b16 %v123, %v122
  %v135 = vpack.c.b16 %v125, %v124
  %v136 = vpack.c.b16 %v127, %v126
  %v137 = vpack.c.b16 %v129, %v128
  %146 = vmatprep.subr.bf16.mxu0 0
  %147 = vmatpush1.bf16.msra.mxu0 %v130
  %148 = vmatprep.subr.bf16.mxu0 0
  %149 = vmatpush1.bf16.msra.mxu0 %v131
  %150 = vmatprep.subr.bf16.mxu0 0
  %151 = vmatpush1.bf16.msra.mxu0 %v132
  %152 = vmatprep.subr.bf16.mxu0 0
  %153 = vmatpush1.bf16.msra.mxu0 %v133
  %154 = vmatprep.subr.bf16.mxu0 0
  %155 = vmatpush1.bf16.msra.mxu0 %v134
  %156 = vmatprep.subr.bf16.mxu0 0
  %157 = vmatpush1.bf16.msra.mxu0 %v135
  %158 = vmatprep.subr.bf16.mxu0 0
  %159 = vmatpush1.bf16.msra.mxu0 %v136
  %160 = vmatprep.subr.bf16.mxu0 0
  %161 = vmatpush1.bf16.msra.mxu0 %v137
  %162 = vmatprep.subr.bf16.mxu0 0
  %163 = vmatpush1.bf16.msra.mxu0 0
  %164 = vmatprep.subr.bf16.mxu0 0
  %165 = vmatpush1.bf16.msra.mxu0 0
  %166 = vmatprep.subr.bf16.mxu0 0
  %167 = vmatpush1.bf16.msra.mxu0 0
  %168 = vmatprep.subr.bf16.mxu0 0
  %169 = vmatpush1.bf16.msra.mxu0 0
  %170 = vmatprep.subr.bf16.mxu0 0
  %171 = vmatpush1.bf16.msra.mxu0 0
  %172 = vmatprep.subr.bf16.mxu0 0
  %173 = vmatpush1.bf16.msra.mxu0 0
  %174 = vmatprep.subr.bf16.mxu0 0
  %175 = vmatpush1.bf16.msra.mxu0 0
  %176 = vmatprep.subr.bf16.mxu0 0
  %177 = vmatpush1.bf16.msra.mxu0 0
  %178 = vmatprep.mubr.bf16.mxu0 0
  %179 = vmatmul.mubr.bf16.gmra.mrb[0].mxu0 %v82
  %v180 = vpop.f32.mrb[0].mxu0
  %v181 = vadd.f32 0.0, %v180
  %v182 = vpop.f32.mrb[0].mxu0
  %v183 = vpop.f32.mrb[0].mxu0
  %v184 = vadd.f32 0.0, %v183
  %v185 = vpop.f32.mrb[0].mxu0
  %186 = vmatprep.mubr.bf16.mxu0 0
  %187 = vmatmul.mubr.bf16.gmra.mrb[0].mxu0 %v83
  %v188 = vpop.f32.mrb[0].mxu0
  %v189 = vadd.f32 0.0, %v188
  %v190 = vpop.f32.mrb[0].mxu0
  %v191 = vpop.f32.mrb[0].mxu0
  %v192 = vadd.f32 0.0, %v191
  %v193 = vpop.f32.mrb[0].mxu0
  %194 = vmatprep.mubr.bf16.mxu0 0
  %195 = vmatmul.mubr.bf16.gmra.mrb[0].mxu0 %v84
  %v196 = vpop.f32.mrb[0].mxu0
  %v197 = vadd.f32 0.0, %v196
  %v198 = vpop.f32.mrb[0].mxu0
  %v199 = vpop.f32.mrb[0].mxu0
  %v200 = vadd.f32 0.0, %v199
  %v201 = vpop.f32.mrb[0].mxu0
  %202 = vmatprep.mubr.bf16.mxu0 0
  %203 = vmatmul.mubr.bf16.gmra.mrb[0].mxu0 %v85
  %v204 = vpop.f32.mrb[0].mxu0
  %v205 = vadd.f32 0.0, %v204
  %v206 = vpop.f32.mrb[0].mxu0
  %v207 = vpop.f32.mrb[0].mxu0
  %v208 = vadd.f32 0.0, %v207
  %v209 = vpop.f32.mrb[0].mxu0
  %210 = vmatprep.mubr.bf16.mxu0 0
  %211 = vmatmul.mubr.bf16.gmra.mrb[0].mxu0 %v86
  %v212 = vpop.f32.mrb[0].mxu0
  %v213 = vadd.f32 0.0, %v212
  %v214 = vpop.f32.mrb[0].mxu0
  %v215 = vpop.f32.mrb[0].mxu0
  %v216 = vadd.f32 0.0, %v215
  %v217 = vpop.f32.mrb[0].mxu0
  %218 = vmatprep.mubr.bf16.mxu0 0
  %219 = vmatmul.mubr.bf16.gmra.mrb[0].mxu0 %v87
  %v220 = vpop.f32.mrb[0].mxu0
  %v221 = vadd.f32 0.0, %v220
  %v222 = vpop.f32.mrb[0].mxu0
  %v223 = vpop.f32.mrb[0].mxu0
  %v224 = vadd.f32 0.0, %v223
  %v225 = vpop.f32.mrb[0].mxu0
  %226 = vmatprep.mubr.bf16.mxu0 0
  %227 = vmatmul.mubr.bf16.gmra.mrb[0].mxu0 %v88
  %v228 = vpop.f32.mrb[0].mxu0
  %v229 = vadd.f32 0.0, %v228
  %v230 = vpop.f32.mrb[0].mxu0
  %v231 = vpop.f32.mrb[0].mxu0
  %v232 = vadd.f32 0.0, %v231
  %v233 = vpop.f32.mrb[0].mxu0
  %234 = vmatprep.mubr.bf16.mxu0 0
  %235 = vmatmul.mubr.bf16.gmra.mrb[0].mxu0 %v89
  %v236 = vpop.f32.mrb[0].mxu0
  %v237 = vadd.f32 0.0, %v236
  %v238 = vpop.f32.mrb[0].mxu0
  %v239 = vpop.f32.mrb[0].mxu0
  %v240 = vadd.f32 0.0, %v239
  %v241 = vpop.f32.mrb[0].mxu0
  %242 = vdwg.mxu0
  %v243 = vld [vmem:[%s2] sm:$0x1]
  %v245 = vlaneseq
  %v246 = vshrl.u32 %v245, 7
  %v247 = vsub.s32 0, %v246
  %v248 = vrot.slane %v243, %v247
  %v250 = vmul.f32 %v181, %v248
  %v251 = vmul.f32 %v184, %v248
  %v252 = vmul.f32 %v189, %v248
  %v253 = vmul.f32 %v192, %v248
  %v254 = vmul.f32 %v197, %v248
  %v255 = vmul.f32 %v200, %v248
  %v256 = vmul.f32 %v205, %v248
  %v257 = vmul.f32 %v208, %v248
  %v258 = vmul.f32 %v213, %v248
  %v259 = vmul.f32 %v216, %v248
  %v260 = vmul.f32 %v221, %v248
  %v261 = vmul.f32 %v224, %v248
  %v262 = vmul.f32 %v229, %v248
  %v263 = vmul.f32 %v232, %v248
  %v264 = vmul.f32 %v237, %v248
  %v265 = vmul.f32 %v240, %v248
  %v266 = vld [vmem:[%s3] sm:$0x1]
  %v268 = vlaneseq
  %v269 = vshrl.u32 %v268, 7
  %v270 = vsub.s32 0, %v269
  %v271 = vrot.slane %v266, %v270
  %v273 = vadd.f32 %v250, %v271
  %v274 = vadd.f32 %v251, %v271
  %v275 = vadd.f32 %v252, %v271
  %v276 = vadd.f32 %v253, %v271
  %v277 = vadd.f32 %v254, %v271
  %v278 = vadd.f32 %v255, %v271
  %v279 = vadd.f32 %v256, %v271
  %v280 = vadd.f32 %v257, %v271
  %v281 = vadd.f32 %v258, %v271
  %v282 = vadd.f32 %v259, %v271
  %v283 = vadd.f32 %v260, %v271
  %v284 = vadd.f32 %v261, %v271
  %v285 = vadd.f32 %v262, %v271
  %v286 = vadd.f32 %v263, %v271
  %v287 = vadd.f32 %v264, %v271
  %v288 = vadd.f32 %v265, %v271
  %v289 = vmax.f32 %v273, 0.0
  %v290 = vmax.f32 %v274, 0.0
  %v291 = vmax.f32 %v275, 0.0
  %v292 = vmax.f32 %v276, 0.0
  %v293 = vmax.f32 %v277, 0.0
  %v294 = vmax.f32 %v278, 0.0
  %v295 = vmax.f32 %v279, 0.0
  %v296 = vmax.f32 %v280, 0.0
  %v297 = vmax.f32 %v281, 0.0
  %v298 = vmax.f32 %v282, 0.0
  %v299 = vmax.f32 %v283, 0.0
  %v300 = vmax.f32 %v284, 0.0
  %v301 = vmax.f32 %v285, 0.0
  %v302 = vmax.f32 %v286, 0.0
  %v303 = vmax.f32 %v287, 0.0
  %v304 = vmax.f32 %v288, 0.0
  %v305 = vpack.c.bf16 %v290, %v289
  %v306 = vpack.c.bf16 %v292, %v291
  %v307 = vpack.c.bf16 %v294, %v293
  %v308 = vpack.c.bf16 %v296, %v295
  %v309 = vpack.c.bf16 %v298, %v297
  %v310 = vpack.c.bf16 %v300, %v299
  %v311 = vpack.c.bf16 %v302, %v301
  %v312 = vpack.c.bf16 %v304, %v303
  %v321 = vunpack.c.l.b16 %v305
  %v322 = vunpack.c.h.b16 %v305
  %v323 = vunpack.c.l.b16 %v306
  %v324 = vunpack.c.h.b16 %v306
  %v325 = vunpack.c.l.b16 %v307
  %v326 = vunpack.c.h.b16 %v307
  %v327 = vunpack.c.l.b16 %v308
  %v328 = vunpack.c.h.b16 %v308
  %v329 = vunpack.c.l.b16 %v309
  %v330 = vunpack.c.h.b16 %v309
  %v331 = vunpack.c.l.b16 %v310
  %v332 = vunpack.c.h.b16 %v310
  %v333 = vunpack.c.l.b16 %v311
  %v334 = vunpack.c.h.b16 %v311
  %v335 = vunpack.c.l.b16 %v312
  %v336 = vunpack.c.h.b16 %v312
  %v337 = vpack.c.b16 %v321, %v321
  %v338 = vpack.c.b16 %v322, %v322
  %v339 = vpack.c.b16 %v323, %v323
  %v340 = vpack.c.b16 %v324, %v324
  %v341 = vpack.c.b16 %v325, %v325
  %v342 = vpack.c.b16 %v326, %v326
  %v343 = vpack.c.b16 %v327, %v327
  %v344 = vpack.c.b16 %v328, %v328
  %v345 = vpack.c.b16 %v329, %v329
  %v346 = vpack.c.b16 %v330, %v330
  %v347 = vpack.c.b16 %v331, %v331
  %v348 = vpack.c.b16 %v332, %v332
  %v349 = vpack.c.b16 %v333, %v333
  %v350 = vpack.c.b16 %v334, %v334
  %v351 = vpack.c.b16 %v335, %v335
  %v352 = vpack.c.b16 %v336, %v336
  %369 = vst [vmem:[%s4] sm:$0xf] %v337
  %370 = vst [vmem:[%s4 + $0x4] sm:$0xf] %v338
  %371 = vst [vmem:[%s4 + $0x8] sm:$0xf] %v339
  %372 = vst [vmem:[%s4 + $0xc] sm:$0xf] %v340
  %373 = vst [vmem:[%s4 + $0x10] sm:$0xf] %v341
  %374 = vst [vmem:[%s4 + $0x14] sm:$0xf] %v342
  %375 = vst [vmem:[%s4 + $0x18] sm:$0xf] %v343
  %376 = vst [vmem:[%s4 + $0x1c] sm:$0xf] %v344
  %377 = vst [vmem:[%s4 + $0x20] sm:$0xf] %v345
  %378 = vst [vmem:[%s4 + $0x24] sm:$0xf] %v346
  %379 = vst [vmem:[%s4 + $0x28] sm:$0xf] %v347
  %380 = vst [vmem:[%s4 + $0x2c] sm:$0xf] %v348
  %381 = vst [vmem:[%s4 + $0x30] sm:$0xf] %v349
  %382 = vst [vmem:[%s4 + $0x34] sm:$0xf] %v350
  %383 = vst [vmem:[%s4 + $0x38] sm:$0xf] %v351
  %384 = vst [vmem:[%s4 + $0x3c] sm:$0xf] %v352
  // Predicated region
  $region18: #{resnet_forward.13} parent=0 // pred_check
    _
  $region19: #{resnet_forward.13} parent=0 // pred_check_branch
    %386 = sbr.rel (0) target = $region21
  $region20: #{resnet_forward.13} parent=0 // pred_region
    _
  $region21: #{resnet_forward.13} parent=0 // pred_fallthru
    _
  // Predicated region
  $region22: #{resnet_forward.13} parent=0 // pred_check
    _
  $region23: #{resnet_forward.13} parent=0 // pred_check_branch
    %388 = sbr.rel (0) target = $region25
  $region24: #{resnet_forward.13} parent=0 // pred_region
    _
  $region25: #{resnet_forward.13} parent=0 // pred_fallthru
    _

// kernel: resnet_forward.14
$region0: #{resnet_forward.14}
  #allocation0 [shape = 'u32[]', space=smem, size = 0x4, offset = 0x4, fixed_abs, tag = 'smem constant byte address 0x4 - core index']
  #allocation1 [shape = 'u32[144,128]{1,0:T(1,128)}', space=vmem, size = 0x12000, scoped, tag = 'internal scratch']
  %s0 = inlined_call_operand.vmem [shape: bf16[128,128], index: 0, kind: input, shape index: {}]
  %s1 = inlined_call_operand.vmem [shape: bf16[128,128], index: 1, kind: input, shape index: {}]
  %s2 = inlined_call_operand.vmem [shape: f32[1,128], index: 2, kind: input, shape index: {}]
  %s3 = inlined_call_operand.vmem [shape: f32[1,128], index: 3, kind: input, shape index: {}]
  %s4 = inlined_call_operand.vmem [shape: bf16[128,128], index: 4, kind: input, shape index: {}]
  %s5 = inlined_call_operand.vmem [shape: bf16[128,128], index: 5, kind: output, shape index: {}]
  %s6 = sld [smem:[#allocation0]]
  $region30: #{resnet_forward.14} parent=0
    _
  %s8 = ssub.s32 1, %s6
  %s9 = scalar_select 0, %s8, %s6
  // Predicated region
  $region2: #{resnet_forward.14} parent=0 // pred_check
    _
  $region3: #{resnet_forward.14} parent=0 // pred_check_branch
    %11 = sbr.rel (0) target = $region5
  $region4: #{resnet_forward.14} parent=0 // pred_region
    _
  $region5: #{resnet_forward.14} parent=0 // pred_fallthru
    _
  // Predicated region
  $region6: #{resnet_forward.14} parent=0 // pred_check
    _
  $region7: #{resnet_forward.14} parent=0 // pred_check_branch
    %13 = sbr.rel (0) target = $region9
  $region8: #{resnet_forward.14} parent=0 // pred_region
    _
  $region9: #{resnet_forward.14} parent=0 // pred_fallthru
    _
  // Predicated region
  $region10: #{resnet_forward.14} parent=0 // pred_check
    _
  $region11: #{resnet_forward.14} parent=0 // pred_check_branch
    %15 = sbr.rel (0) target = $region13
  $region12: #{resnet_forward.14} parent=0 // pred_region
    _
  $region13: #{resnet_forward.14} parent=0 // pred_fallthru
    _
  // Predicated region
  $region14: #{resnet_forward.14} parent=0 // pred_check
    _
  $region15: #{resnet_forward.14} parent=0 // pred_check_branch
    %17 = sbr.rel (0) target = $region17
  $region16: #{resnet_forward.14} parent=0 // pred_region
    _
  $region17: #{resnet_forward.14} parent=0 // pred_fallthru
    _
  // Predicated region
  $region18: #{resnet_forward.14} parent=0 // pred_check
    _
  $region19: #{resnet_forward.14} parent=0 // pred_check_branch
    %19 = sbr.rel (0) target = $region21
  $region20: #{resnet_forward.14} parent=0 // pred_region
    _
  $region21: #{resnet_forward.14} parent=0 // pred_fallthru
    _
  %v21 = vld [vmem:[%s0] sm:$0xf]
  %v22 = vld [vmem:[%s0 + $0x4] sm:$0xf]
  %v23 = vld [vmem:[%s0 + $0x8] sm:$0xf]
  %v24 = vld [vmem:[%s0 + $0xc] sm:$0xf]
  %v25 = vld [vmem:[%s0 + $0x10] sm:$0xf]
  %v26 = vld [vmem:[%s0 + $0x14] sm:$0xf]
  %v27 = vld [vmem:[%s0 + $0x18] sm:$0xf]
  %v28 = vld [vmem:[%s0 + $0x1c] sm:$0xf]
  %v29 = vld [vmem:[%s0 + $0x20] sm:$0xf]
  %v30 = vld [vmem:[%s0 + $0x24] sm:$0xf]
  %v31 = vld [vmem:[%s0 + $0x28] sm:$0xf]
  %v32 = vld [vmem:[%s0 + $0x2c] sm:$0xf]
  %v33 = vld [vmem:[%s0 + $0x30] sm:$0xf]
  %v34 = vld [vmem:[%s0 + $0x34] sm:$0xf]
  %v35 = vld [vmem:[%s0 + $0x38] sm:$0xf]
  %v36 = vld [vmem:[%s0 + $0x3c] sm:$0xf]
  %v37 = vld [vmem:[%s1] sm:$0xf]
  %v38 = vld [vmem:[%s1 + $0x4] sm:$0xf]
  %v39 = vld [vmem:[%s1 + $0x8] sm:$0xf]
  %v40 = vld [vmem:[%s1 + $0xc] sm:$0xf]
  %v41 = vld [vmem:[%s1 + $0x10] sm:$0xf]
  %v42 = vld [vmem:[%s1 + $0x14] sm:$0xf]
  %v43 = vld [vmem:[%s1 + $0x18] sm:$0xf]
  %v44 = vld [vmem:[%s1 + $0x1c] sm:$0xf]
  %v45 = vld [vmem:[%s1 + $0x20] sm:$0xf]
  %v46 = vld [vmem:[%s1 + $0x24] sm:$0xf]
  %v47 = vld [vmem:[%s1 + $0x28] sm:$0xf]
  %v48 = vld [vmem:[%s1 + $0x2c] sm:$0xf]
  %v49 = vld [vmem:[%s1 + $0x30] sm:$0xf]
  %v50 = vld [vmem:[%s1 + $0x34] sm:$0xf]
  %v51 = vld [vmem:[%s1 + $0x38] sm:$0xf]
  %v52 = vld [vmem:[%s1 + $0x3c] sm:$0xf]
  %v69 = vunpack.c.l.b16 %v21
  %v70 = vunpack.c.l.b16 %v22
  %v71 = vunpack.c.l.b16 %v23
  %v72 = vunpack.c.l.b16 %v24
  %v73 = vunpack.c.l.b16 %v25
  %v74 = vunpack.c.l.b16 %v26
  %v75 = vunpack.c.l.b16 %v27
  %v76 = vunpack.c.l.b16 %v28
  %v77 = vunpack.c.l.b16 %v29
  %v78 = vunpack.c.l.b16 %v30
  %v79 = vunpack.c.l.b16 %v31
  %v80 = vunpack.c.l.b16 %v32
  %v81 = vunpack.c.l.b16 %v33
  %v82 = vunpack.c.l.b16 %v34
  %v83 = vunpack.c.l.b16 %v35
  %v84 = vunpack.c.l.b16 %v36
  %v85 = vpack.c.b16 %v70, %v69
  %v86 = vpack.c.b16 %v72, %v71
  %v87 = vpack.c.b16 %v74, %v73
  %v88 = vpack.c.b16 %v76, %v75
  %v89 = vpack.c.b16 %v78, %v77
  %v90 = vpack.c.b16 %v80, %v79
  %v91 = vpack.c.b16 %v82, %v81
  %v92 = vpack.c.b16 %v84, %v83
  %v117 = vunpack.c.l.b16 %v37
  %v118 = vunpack.c.l.b16 %v38
  %v119 = vunpack.c.l.b16 %v39
  %v120 = vunpack.c.l.b16 %v40
  %v121 = vunpack.c.l.b16 %v41
  %v122 = vunpack.c.l.b16 %v42
  %v123 = vunpack.c.l.b16 %v43
  %v124 = vunpack.c.l.b16 %v44
  %v125 = vunpack.c.l.b16 %v45
  %v126 = vunpack.c.l.b16 %v46
  %v127 = vunpack.c.l.b16 %v47
  %v128 = vunpack.c.l.b16 %v48
  %v129 = vunpack.c.l.b16 %v49
  %v130 = vunpack.c.l.b16 %v50
  %v131 = vunpack.c.l.b16 %v51
  %v132 = vunpack.c.l.b16 %v52
  %v133 = vpack.c.b16 %v118, %v117
  %v134 = vpack.c.b16 %v120, %v119
  %v135 = vpack.c.b16 %v122, %v121
  %v136 = vpack.c.b16 %v124, %v123
  %v137 = vpack.c.b16 %v126, %v125
  %v138 = vpack.c.b16 %v128, %v127
  %v139 = vpack.c.b16 %v130, %v129
  %v140 = vpack.c.b16 %v132, %v131
  %149 = vmatprep.subr.bf16.mxu0 0
  %150 = vmatpush1.bf16.msra.mxu0 %v133
  %151 = vmatprep.subr.bf16.mxu0 0
  %152 = vmatpush1.bf16.msra.mxu0 %v134
  %153 = vmatprep.subr.bf16.mxu0 0
  %154 = vmatpush1.bf16.msra.mxu0 %v135
  %155 = vmatprep.subr.bf16.mxu0 0
  %156 = vmatpush1.bf16.msra.mxu0 %v136
  %157 = vmatprep.subr.bf16.mxu0 0
  %158 = vmatpush1.bf16.msra.mxu0 %v137
  %159 = vmatprep.subr.bf16.mxu0 0
  %160 = vmatpush1.bf16.msra.mxu0 %v138
  %161 = vmatprep.subr.bf16.mxu0 0
  %162 = vmatpush1.bf16.msra.mxu0 %v139
  %163 = vmatprep.subr.bf16.mxu0 0
  %164 = vmatpush1.bf16.msra.mxu0 %v140
  %165 = vmatprep.subr.bf16.mxu0 0
  %166 = vmatpush1.bf16.msra.mxu0 0
  %167 = vmatprep.subr.bf16.mxu0 0
  %168 = vmatpush1.bf16.msra.mxu0 0
  %169 = vmatprep.subr.bf16.mxu0 0
  %170 = vmatpush1.bf16.msra.mxu0 0
  %171 = vmatprep.subr.bf16.mxu0 0
  %172 = vmatpush1.bf16.msra.mxu0 0
  %173 = vmatprep.subr.bf16.mxu0 0
  %174 = vmatpush1.bf16.msra.mxu0 0
  %175 = vmatprep.subr.bf16.mxu0 0
  %176 = vmatpush1.bf16.msra.mxu0 0
  %177 = vmatprep.subr.bf16.mxu0 0
  %178 = vmatpush1.bf16.msra.mxu0 0
  %179 = vmatprep.subr.bf16.mxu0 0
  %180 = vmatpush1.bf16.msra.mxu0 0
  %181 = vmatprep.mubr.bf16.mxu0 0
  %182 = vmatmul.mubr.bf16.gmra.mrb[0].mxu0 %v85
  %v183 = vpop.f32.mrb[0].mxu0
  %v184 = vadd.f32 0.0, %v183
  %v185 = vpop.f32.mrb[0].mxu0
  %v186 = vpop.f32.mrb[0].mxu0
  %v187 = vadd.f32 0.0, %v186
  %v188 = vpop.f32.mrb[0].mxu0
  %189 = vmatprep.mubr.bf16.mxu0 0
  %190 = vmatmul.mubr.bf16.gmra.mrb[0].mxu0 %v86
  %v191 = vpop.f32.mrb[0].mxu0
  %v192 = vadd.f32 0.0, %v191
  %v193 = vpop.f32.mrb[0].mxu0
  %v194 = vpop.f32.mrb[0].mxu0
  %v195 = vadd.f32 0.0, %v194
  %v196 = vpop.f32.mrb[0].mxu0
  %197 = vmatprep.mubr.bf16.mxu0 0
  %198 = vmatmul.mubr.bf16.gmra.mrb[0].mxu0 %v87
  %v199 = vpop.f32.mrb[0].mxu0
  %v200 = vadd.f32 0.0, %v199
  %v201 = vpop.f32.mrb[0].mxu0
  %v202 = vpop.f32.mrb[0].mxu0
  %v203 = vadd.f32 0.0, %v202
  %v204 = vpop.f32.mrb[0].mxu0
  %205 = vmatprep.mubr.bf16.mxu0 0
  %206 = vmatmul.mubr.bf16.gmra.mrb[0].mxu0 %v88
  %v207 = vpop.f32.mrb[0].mxu0
  %v208 = vadd.f32 0.0, %v207
  %v209 = vpop.f32.mrb[0].mxu0
  %v210 = vpop.f32.mrb[0].mxu0
  %v211 = vadd.f32 0.0, %v210
  %v212 = vpop.f32.mrb[0].mxu0
  %213 = vmatprep.mubr.bf16.mxu0 0
  %214 = vmatmul.mubr.bf16.gmra.mrb[0].mxu0 %v89
  %v215 = vpop.f32.mrb[0].mxu0
  %v216 = vadd.f32 0.0, %v215
  %v217 = vpop.f32.mrb[0].mxu0
  %v218 = vpop.f32.mrb[0].mxu0
  %v219 = vadd.f32 0.0, %v218
  %v220 = vpop.f32.mrb[0].mxu0
  %221 = vmatprep.mubr.bf16.mxu0 0
  %222 = vmatmul.mubr.bf16.gmra.mrb[0].mxu0 %v90
  %v223 = vpop.f32.mrb[0].mxu0
  %v224 = vadd.f32 0.0, %v223
  %v225 = vpop.f32.mrb[0].mxu0
  %v226 = vpop.f32.mrb[0].mxu0
  %v227 = vadd.f32 0.0, %v226
  %v228 = vpop.f32.mrb[0].mxu0
  %229 = vmatprep.mubr.bf16.mxu0 0
  %230 = vmatmul.mubr.bf16.gmra.mrb[0].mxu0 %v91
  %v231 = vpop.f32.mrb[0].mxu0
  %v232 = vadd.f32 0.0, %v231
  %v233 = vpop.f32.mrb[0].mxu0
  %v234 = vpop.f32.mrb[0].mxu0
  %v235 = vadd.f32 0.0, %v234
  %v236 = vpop.f32.mrb[0].mxu0
  %237 = vmatprep.mubr.bf16.mxu0 0
  %238 = vmatmul.mubr.bf16.gmra.mrb[0].mxu0 %v92
  %v239 = vpop.f32.mrb[0].mxu0
  %v240 = vadd.f32 0.0, %v239
  %v241 = vpop.f32.mrb[0].mxu0
  %v242 = vpop.f32.mrb[0].mxu0
  %v243 = vadd.f32 0.0, %v242
  %v244 = vpop.f32.mrb[0].mxu0
  %245 = vdwg.mxu0
  %v246 = vld [vmem:[%s2] sm:$0x1]
  %v248 = vlaneseq
  %v249 = vshrl.u32 %v248, 7
  %v250 = vsub.s32 0, %v249
  %v251 = vrot.slane %v246, %v250
  %v253 = vmul.f32 %v184, %v251
  %v254 = vmul.f32 %v187, %v251
  %v255 = vmul.f32 %v192, %v251
  %v256 = vmul.f32 %v195, %v251
  %v257 = vmul.f32 %v200, %v251
  %v258 = vmul.f32 %v203, %v251
  %v259 = vmul.f32 %v208, %v251
  %v260 = vmul.f32 %v211, %v251
  %v261 = vmul.f32 %v216, %v251
  %v262 = vmul.f32 %v219, %v251
  %v263 = vmul.f32 %v224, %v251
  %v264 = vmul.f32 %v227, %v251
  %v265 = vmul.f32 %v232, %v251
  %v266 = vmul.f32 %v235, %v251
  %v267 = vmul.f32 %v240, %v251
  %v268 = vmul.f32 %v243, %v251
  %v269 = vld [vmem:[%s3] sm:$0x1]
  %v271 = vlaneseq
  %v272 = vshrl.u32 %v271, 7
  %v273 = vsub.s32 0, %v272
  %v274 = vrot.slane %v269, %v273
  %v276 = vadd.f32 %v253, %v274
  %v277 = vadd.f32 %v254, %v274
  %v278 = vadd.f32 %v255, %v274
  %v279 = vadd.f32 %v256, %v274
  %v280 = vadd.f32 %v257, %v274
  %v281 = vadd.f32 %v258, %v274
  %v282 = vadd.f32 %v259, %v274
  %v283 = vadd.f32 %v260, %v274
  %v284 = vadd.f32 %v261, %v274
  %v285 = vadd.f32 %v262, %v274
  %v286 = vadd.f32 %v263, %v274
  %v287 = vadd.f32 %v264, %v274
  %v288 = vadd.f32 %v265, %v274
  %v289 = vadd.f32 %v266, %v274
  %v290 = vadd.f32 %v267, %v274
  %v291 = vadd.f32 %v268, %v274
  %v292 = vld [vmem:[%s4] sm:$0xf]
  %v293 = vld [vmem:[%s4 + $0x4] sm:$0xf]
  %v294 = vld [vmem:[%s4 + $0x8] sm:$0xf]
  %v295 = vld [vmem:[%s4 + $0xc] sm:$0xf]
  %v296 = vld [vmem:[%s4 + $0x10] sm:$0xf]
  %v297 = vld [vmem:[%s4 + $0x14] sm:$0xf]
  %v298 = vld [vmem:[%s4 + $0x18] sm:$0xf]
  %v299 = vld [vmem:[%s4 + $0x1c] sm:$0xf]
  %v300 = vld [vmem:[%s4 + $0x20] sm:$0xf]
  %v301 = vld [vmem:[%s4 + $0x24] sm:$0xf]
  %v302 = vld [vmem:[%s4 + $0x28] sm:$0xf]
  %v303 = vld [vmem:[%s4 + $0x2c] sm:$0xf]
  %v304 = vld [vmem:[%s4 + $0x30] sm:$0xf]
  %v305 = vld [vmem:[%s4 + $0x34] sm:$0xf]
  %v306 = vld [vmem:[%s4 + $0x38] sm:$0xf]
  %v307 = vld [vmem:[%s4 + $0x3c] sm:$0xf]
  %v308 = vunpack.c.l.bf16 %v292
  %v309 = vunpack.c.l.bf16 %v293
  %v310 = vunpack.c.l.bf16 %v294
  %v311 = vunpack.c.l.bf16 %v295
  %v312 = vunpack.c.l.bf16 %v296
  %v313 = vunpack.c.l.bf16 %v297
  %v314 = vunpack.c.l.bf16 %v298
  %v315 = vunpack.c.l.bf16 %v299
  %v316 = vunpack.c.l.bf16 %v300
  %v317 = vunpack.c.l.bf16 %v301
  %v318 = vunpack.c.l.bf16 %v302
  %v319 = vunpack.c.l.bf16 %v303
  %v320 = vunpack.c.l.bf16 %v304
  %v321 = vunpack.c.l.bf16 %v305
  %v322 = vunpack.c.l.bf16 %v306
  %v323 = vunpack.c.l.bf16 %v307
  %v324 = vadd.f32 %v276, %v308
  %v325 = vadd.f32 %v277, %v309
  %v326 = vadd.f32 %v278, %v310
  %v327 = vadd.f32 %v279, %v311
  %v328 = vadd.f32 %v280, %v312
  %v329 = vadd.f32 %v281, %v313
  %v330 = vadd.f32 %v282, %v314
  %v331 = vadd.f32 %v283, %v315
  %v332 = vadd.f32 %v284, %v316
  %v333 = vadd.f32 %v285, %v317
  %v334 = vadd.f32 %v286, %v318
  %v335 = vadd.f32 %v287, %v319
  %v336 = vadd.f32 %v288, %v320
  %v337 = vadd.f32 %v289, %v321
  %v338 = vadd.f32 %v290, %v322
  %v339 = vadd.f32 %v291, %v323
  %v340 = vmax.f32 %v324, 0.0
  %v341 = vmax.f32 %v325, 0.0
  %v342 = vmax.f32 %v326, 0.0
  %v343 = vmax.f32 %v327, 0.0
  %v344 = vmax.f32 %v328, 0.0
  %v345 = vmax.f32 %v329, 0.0
  %v346 = vmax.f32 %v330, 0.0
  %v347 = vmax.f32 %v331, 0.0
  %v348 = vmax.f32 %v332, 0.0
  %v349 = vmax.f32 %v333, 0.0
  %v350 = vmax.f32 %v334, 0.0
  %v351 = vmax.f32 %v335, 0.0
  %v352 = vmax.f32 %v336, 0.0
  %v353 = vmax.f32 %v337, 0.0
  %v354 = vmax.f32 %v338, 0.0
  %v355 = vmax.f32 %v339, 0.0
  %v356 = vpack.c.bf16 %v341, %v340
  %v357 = vpack.c.bf16 %v343, %v342
  %v358 = vpack.c.bf16 %v345, %v344
  %v359 = vpack.c.bf16 %v347, %v346
  %v360 = vpack.c.bf16 %v349, %v348
  %v361 = vpack.c.bf16 %v351, %v350
  %v362 = vpack.c.bf16 %v353, %v352
  %v363 = vpack.c.bf16 %v355, %v354
  %v372 = vunpack.c.l.b16 %v356
  %v373 = vunpack.c.h.b16 %v356
  %v374 = vunpack.c.l.b16 %v357
  %v375 = vunpack.c.h.b16 %v357
  %v376 = vunpack.c.l.b16 %v358
  %v377 = vunpack.c.h.b16 %v358
  %v378 = vunpack.c.l.b16 %v359
  %v379 = vunpack.c.h.b16 %v359
  %v380 = vunpack.c.l.b16 %v360
  %v381 = vunpack.c.h.b16 %v360
  %v382 = vunpack.c.l.b16 %v361
  %v383 = vunpack.c.h.b16 %v361
  %v384 = vunpack.c.l.b16 %v362
  %v385 = vunpack.c.h.b16 %v362
  %v386 = vunpack.c.l.b16 %v363
  %v387 = vunpack.c.h.b16 %v363
  %v388 = vpack.c.b16 %v372, %v372
  %v389 = vpack.c.b16 %v373, %v373
  %v390 = vpack.c.b16 %v374, %v374
  %v391 = vpack.c.b16 %v375, %v375
  %v392 = vpack.c.b16 %v376, %v376
  %v393 = vpack.c.b16 %v377, %v377
  %v394 = vpack.c.b16 %v378, %v378
  %v395 = vpack.c.b16 %v379, %v379
  %v396 = vpack.c.b16 %v380, %v380
  %v397 = vpack.c.b16 %v381, %v381
  %v398 = vpack.c.b16 %v382, %v382
  %v399 = vpack.c.b16 %v383, %v383
  %v400 = vpack.c.b16 %v384, %v384
  %v401 = vpack.c.b16 %v385, %v385
  %v402 = vpack.c.b16 %v386, %v386
  %v403 = vpack.c.b16 %v387, %v387
  %420 = vst [vmem:[%s5] sm:$0xf] %v388
  %421 = vst [vmem:[%s5 + $0x4] sm:$0xf] %v389
  %422 = vst [vmem:[%s5 + $0x8] sm:$0xf] %v390
  %423 = vst [vmem:[%s5 + $0xc] sm:$0xf] %v391
  %424 = vst [vmem:[%s5 + $0x10] sm:$0xf] %v392
  %425 = vst [vmem:[%s5 + $0x14] sm:$0xf] %v393
  %426 = vst [vmem:[%s5 + $0x18] sm:$0xf] %v394
  %427 = vst [vmem:[%s5 + $0x1c] sm:$0xf] %v395
  %428 = vst [vmem:[%s5 + $0x20] sm:$0xf] %v396
  %429 = vst [vmem:[%s5 + $0x24] sm:$0xf] %v397
  %430 = vst [vmem:[%s5 + $0x28] sm:$0xf] %v398
  %431 = vst [vmem:[%s5 + $0x2c] sm:$0xf] %v399
  %432 = vst [vmem:[%s5 + $0x30] sm:$0xf] %v400
  %433 = vst [vmem:[%s5 + $0x34] sm:$0xf] %v401
  %434 = vst [vmem:[%s5 + $0x38] sm:$0xf] %v402
  %435 = vst [vmem:[%s5 + $0x3c] sm:$0xf] %v403
  // Predicated region
  $region22: #{resnet_forward.14} parent=0 // pred_check
    _
  $region23: #{resnet_forward.14} parent=0 // pred_check_branch
    %437 = sbr.rel (0) target = $region25
  $region24: #{resnet_forward.14} parent=0 // pred_region
    _
  $region25: #{resnet_forward.14} parent=0 // pred_fallthru
    _
  // Predicated region
  $region26: #{resnet_forward.14} parent=0 // pred_check
    _
  $region27: #{resnet_forward.14} parent=0 // pred_check_branch
    %439 = sbr.rel (0) target = $region29
  $region28: #{resnet_forward.14} parent=0 // pred_region
    _
  $region29: #{resnet_forward.14} parent=0 // pred_fallthru
    _

// kernel: resnet_forward.15
$region0: #{resnet_forward.15}
  #allocation0 [shape = 'u32[]', space=smem, size = 0x4, offset = 0x4, fixed_abs, tag = 'smem constant byte address 0x4 - core index']
  #allocation1 [shape = 'u32[144,128]{1,0:T(1,128)}', space=vmem, size = 0x12000, scoped, tag = 'internal scratch']
  %s0 = inlined_call_operand.vmem [shape: bf16[16,128], index: 0, kind: input, shape index: {}]
  %s1 = inlined_call_operand.vmem [shape: bf16[128,128], index: 1, kind: input, shape index: {}]
  %s2 = inlined_call_operand.vmem [shape: f32[1,128], index: 2, kind: input, shape index: {}]
  %s3 = inlined_call_operand.vmem [shape: f32[1,128], index: 3, kind: input, shape index: {}]
  %s4 = inlined_call_operand.vmem [shape: bf16[16,128], index: 4, kind: output, shape index: {}]
  %s5 = sld [smem:[#allocation0]]
  $region26: #{resnet_forward.15} parent=0
    _
  %s7 = ssub.s32 1, %s5
  %s8 = scalar_select 0, %s7, %s5
  // Predicated region
  $region2: #{resnet_forward.15} parent=0 // pred_check
    _
  $region3: #{resnet_forward.15} parent=0 // pred_check_branch
    %10 = sbr.rel (0) target = $region5
  $region4: #{resnet_forward.15} parent=0 // pred_region
    _
  $region5: #{resnet_forward.15} parent=0 // pred_fallthru
    _
  // Predicated region
  $region6: #{resnet_forward.15} parent=0 // pred_check
    _
  $region7: #{resnet_forward.15} parent=0 // pred_check_branch
    %12 = sbr.rel (0) target = $region9
  $region8: #{resnet_forward.15} parent=0 // pred_region
    _
  $region9: #{resnet_forward.15} parent=0 // pred_fallthru
    _
  // Predicated region
  $region10: #{resnet_forward.15} parent=0 // pred_check
    _
  $region11: #{resnet_forward.15} parent=0 // pred_check_branch
    %14 = sbr.rel (0) target = $region13
  $region12: #{resnet_forward.15} parent=0 // pred_region
    _
  $region13: #{resnet_forward.15} parent=0 // pred_fallthru
    _
  // Predicated region
  $region14: #{resnet_forward.15} parent=0 // pred_check
    _
  $region15: #{resnet_forward.15} parent=0 // pred_check_branch
    %16 = sbr.rel (0) target = $region17
  $region16: #{resnet_forward.15} parent=0 // pred_region
    _
  $region17: #{resnet_forward.15} parent=0 // pred_fallthru
    _
  %v18 = vld [vmem:[%s0] sm:$0xf]
  %v19 = vld [vmem:[%s0 + $0x4] sm:$0xf]
  %v20 = vld [vmem:[%s1] sm:$0xf]
  %v21 = vld [vmem:[%s1 + $0x4] sm:$0xf]
  %v22 = vld [vmem:[%s1 + $0x8] sm:$0xf]
  %v23 = vld [vmem:[%s1 + $0xc] sm:$0xf]
  %v24 = vld [vmem:[%s1 + $0x10] sm:$0xf]
  %v25 = vld [vmem:[%s1 + $0x14] sm:$0xf]
  %v26 = vld [vmem:[%s1 + $0x18] sm:$0xf]
  %v27 = vld [vmem:[%s1 + $0x1c] sm:$0xf]
  %v28 = vld [vmem:[%s1 + $0x20] sm:$0xf]
  %v29 = vld [vmem:[%s1 + $0x24] sm:$0xf]
  %v30 = vld [vmem:[%s1 + $0x28] sm:$0xf]
  %v31 = vld [vmem:[%s1 + $0x2c] sm:$0xf]
  %v32 = vld [vmem:[%s1 + $0x30] sm:$0xf]
  %v33 = vld [vmem:[%s1 + $0x34] sm:$0xf]
  %v34 = vld [vmem:[%s1 + $0x38] sm:$0xf]
  %v35 = vld [vmem:[%s1 + $0x3c] sm:$0xf]
  %v38 = vunpack.c.l.b16 %v18
  %v39 = vunpack.c.l.b16 %v19
  %v40 = vpack.c.b16 %v39, %v38
  %v58 = vunpack.c.l.b16 %v20
  %v59 = vunpack.c.l.b16 %v21
  %v60 = vunpack.c.l.b16 %v22
  %v61 = vunpack.c.l.b16 %v23
  %v62 = vunpack.c.l.b16 %v24
  %v63 = vunpack.c.l.b16 %v25
  %v64 = vunpack.c.l.b16 %v26
  %v65 = vunpack.c.l.b16 %v27
  %v66 = vunpack.c.l.b16 %v28
  %v67 = vunpack.c.l.b16 %v29
  %v68 = vunpack.c.l.b16 %v30
  %v69 = vunpack.c.l.b16 %v31
  %v70 = vunpack.c.l.b16 %v32
  %v71 = vunpack.c.l.b16 %v33
  %v72 = vunpack.c.l.b16 %v34
  %v73 = vunpack.c.l.b16 %v35
  %v74 = vpack.c.b16 %v59, %v58
  %v75 = vpack.c.b16 %v61, %v60
  %v76 = vpack.c.b16 %v63, %v62
  %v77 = vpack.c.b16 %v65, %v64
  %v78 = vpack.c.b16 %v67, %v66
  %v79 = vpack.c.b16 %v69, %v68
  %v80 = vpack.c.b16 %v71, %v70
  %v81 = vpack.c.b16 %v73, %v72
  %90 = vmatprep.subr.bf16.mxu0 0
  %91 = vmatpush1.bf16.msra.mxu0 %v74
  %92 = vmatprep.subr.bf16.mxu0 0
  %93 = vmatpush1.bf16.msra.mxu0 %v75
  %94 = vmatprep.subr.bf16.mxu0 0
  %95 = vmatpush1.bf16.msra.mxu0 %v76
  %96 = vmatprep.subr.bf16.mxu0 0
  %97 = vmatpush1.bf16.msra.mxu0 %v77
  %98 = vmatprep.subr.bf16.mxu0 0
  %99 = vmatpush1.bf16.msra.mxu0 %v78
  %100 = vmatprep.subr.bf16.mxu0 0
  %101 = vmatpush1.bf16.msra.mxu0 %v79
  %102 = vmatprep.subr.bf16.mxu0 0
  %103 = vmatpush1.bf16.msra.mxu0 %v80
  %104 = vmatprep.subr.bf16.mxu0 0
  %105 = vmatpush1.bf16.msra.mxu0 %v81
  %106 = vmatprep.subr.bf16.mxu0 0
  %107 = vmatpush1.bf16.msra.mxu0 0
  %108 = vmatprep.subr.bf16.mxu0 0
  %109 = vmatpush1.bf16.msra.mxu0 0
  %110 = vmatprep.subr.bf16.mxu0 0
  %111 = vmatpush1.bf16.msra.mxu0 0
  %112 = vmatprep.subr.bf16.mxu0 0
  %113 = vmatpush1.bf16.msra.mxu0 0
  %114 = vmatprep.subr.bf16.mxu0 0
  %115 = vmatpush1.bf16.msra.mxu0 0
  %116 = vmatprep.subr.bf16.mxu0 0
  %117 = vmatpush1.bf16.msra.mxu0 0
  %118 = vmatprep.subr.bf16.mxu0 0
  %119 = vmatpush1.bf16.msra.mxu0 0
  %120 = vmatprep.subr.bf16.mxu0 0
  %121 = vmatpush1.bf16.msra.mxu0 0
  %122 = vmatprep.mubr.bf16.mxu0 0
  %123 = vmatmul.mubr.bf16.gmra.mrb[0].mxu0 %v40
  %v124 = vpop.f32.mrb[0].mxu0
  %v125 = vadd.f32 0.0, %v124
  %v126 = vpop.f32.mrb[0].mxu0
  %v127 = vpop.f32.mrb[0].mxu0
  %v128 = vadd.f32 0.0, %v127
  %v129 = vpop.f32.mrb[0].mxu0
  %130 = vdwg.mxu0
  %v131 = vld [vmem:[%s2] sm:$0x1]
  %v133 = vlaneseq
  %v134 = vshrl.u32 %v133, 7
  %v135 = vsub.s32 0, %v134
  %v136 = vrot.slane %v131, %v135
  %v138 = vmul.f32 %v125, %v136
  %v139 = vmul.f32 %v128, %v136
  %v140 = vld [vmem:[%s3] sm:$0x1]
  %v142 = vlaneseq
  %v143 = vshrl.u32 %v142, 7
  %v144 = vsub.s32 0, %v143
  %v145 = vrot.slane %v140, %v144
  %v147 = vadd.f32 %v138, %v145
  %v148 = vadd.f32 %v139, %v145
  %v149 = vlaneseq
  %v150 = vand.u32 %v149, 127
  %s151 = smul.u32 0, 128
  %v152 = vstv %s151
  %v153 = vadd.s32 %v150, %v152
  %vm154 = vcmp.lt.s32.totalorder %v153, 8
  %v155 = vmax.f32 %v147, 0.0
  %v156 = vmax.f32 %v148, 0.0
  %v157 = vsel %vm154, %v155, %v147
  %v158 = vsel %vm154, %v156, %v148
  %v159 = vpack.c.bf16 %v158, %v157
  %v161 = vunpack.c.l.b16 %v159
  %v162 = vunpack.c.h.b16 %v159
  %v163 = vpack.c.b16 %v161, %v161
  %v164 = vpack.c.b16 %v162, %v162
  %167 = vst [vmem:[%s4] sm:$0xf] %v163
  %168 = vst [vmem:[%s4 + $0x4] sm:$0xf] %v164
  // Predicated region
  $region18: #{resnet_forward.15} parent=0 // pred_check
    _
  $region19: #{resnet_forward.15} parent=0 // pred_check_branch
    %170 = sbr.rel (0) target = $region21
  $region20: #{resnet_forward.15} parent=0 // pred_region
    _
  $region21: #{resnet_forward.15} parent=0 // pred_fallthru
    _
  // Predicated region
  $region22: #{resnet_forward.15} parent=0 // pred_check
    _
  $region23: #{resnet_forward.15} parent=0 // pred_check_branch
    %172 = sbr.rel (0) target = $region25
  $region24: #{resnet_forward.15} parent=0 // pred_region
    _
  $region25: #{resnet_forward.15} parent=0 // pred_fallthru
    _

// kernel: resnet_forward.16
$region0: #{resnet_forward.16}
  #allocation0 [shape = 'u32[]', space=smem, size = 0x4, offset = 0x4, fixed_abs, tag = 'smem constant byte address 0x4 - core index']
  #allocation1 [shape = 'u32[144,128]{1,0:T(1,128)}', space=vmem, size = 0x12000, scoped, tag = 'internal scratch']
  %s0 = inlined_call_operand.vmem [shape: bf16[16,256], index: 0, kind: input, shape index: {}]
  %s1 = inlined_call_operand.vmem [shape: bf16[256,128], index: 1, kind: input, shape index: {}]
  %s2 = inlined_call_operand.vmem [shape: f32[1,128], index: 2, kind: input, shape index: {}]
  %s3 = inlined_call_operand.vmem [shape: f32[1,128], index: 3, kind: input, shape index: {}]
  %s4 = inlined_call_operand.vmem [shape: bf16[16,128], index: 4, kind: input, shape index: {}]
  %s5 = inlined_call_operand.vmem [shape: bf16[16,128], index: 5, kind: output, shape index: {}]
  %s6 = sld [smem:[#allocation0]]
  $region30: #{resnet_forward.16} parent=0
    _
  %s8 = ssub.s32 1, %s6
  %s9 = scalar_select 0, %s8, %s6
  // Predicated region
  $region2: #{resnet_forward.16} parent=0 // pred_check
    _
  $region3: #{resnet_forward.16} parent=0 // pred_check_branch
    %11 = sbr.rel (0) target = $region5
  $region4: #{resnet_forward.16} parent=0 // pred_region
    _
  $region5: #{resnet_forward.16} parent=0 // pred_fallthru
    _
  // Predicated region
  $region6: #{resnet_forward.16} parent=0 // pred_check
    _
  $region7: #{resnet_forward.16} parent=0 // pred_check_branch
    %13 = sbr.rel (0) target = $region9
  $region8: #{resnet_forward.16} parent=0 // pred_region
    _
  $region9: #{resnet_forward.16} parent=0 // pred_fallthru
    _
  // Predicated region
  $region10: #{resnet_forward.16} parent=0 // pred_check
    _
  $region11: #{resnet_forward.16} parent=0 // pred_check_branch
    %15 = sbr.rel (0) target = $region13
  $region12: #{resnet_forward.16} parent=0 // pred_region
    _
  $region13: #{resnet_forward.16} parent=0 // pred_fallthru
    _
  // Predicated region
  $region14: #{resnet_forward.16} parent=0 // pred_check
    _
  $region15: #{resnet_forward.16} parent=0 // pred_check_branch
    %17 = sbr.rel (0) target = $region17
  $region16: #{resnet_forward.16} parent=0 // pred_region
    _
  $region17: #{resnet_forward.16} parent=0 // pred_fallthru
    _
  // Predicated region
  $region18: #{resnet_forward.16} parent=0 // pred_check
    _
  $region19: #{resnet_forward.16} parent=0 // pred_check_branch
    %19 = sbr.rel (0) target = $region21
  $region20: #{resnet_forward.16} parent=0 // pred_region
    _
  $region21: #{resnet_forward.16} parent=0 // pred_fallthru
    _
  %v21 = vld [vmem:[%s0] sm:$0xff]
  %v22 = vld [vmem:[%s0 + $0x8] sm:$0xff]
  %v23 = vld [vmem:[%s1] sm:$0xf]
  %v24 = vld [vmem:[%s1 + $0x4] sm:$0xf]
  %v25 = vld [vmem:[%s1 + $0x8] sm:$0xf]
  %v26 = vld [vmem:[%s1 + $0xc] sm:$0xf]
  %v27 = vld [vmem:[%s1 + $0x10] sm:$0xf]
  %v28 = vld [vmem:[%s1 + $0x14] sm:$0xf]
  %v29 = vld [vmem:[%s1 + $0x18] sm:$0xf]
  %v30 = vld [vmem:[%s1 + $0x1c] sm:$0xf]
  %v31 = vld [vmem:[%s1 + $0x20] sm:$0xf]
  %v32 = vld [vmem:[%s1 + $0x24] sm:$0xf]
  %v33 = vld [vmem:[%s1 + $0x28] sm:$0xf]
  %v34 = vld [vmem:[%s1 + $0x2c] sm:$0xf]
  %v35 = vld [vmem:[%s1 + $0x30] sm:$0xf]
  %v36 = vld [vmem:[%s1 + $0x34] sm:$0xf]
  %v37 = vld [vmem:[%s1 + $0x38] sm:$0xf]
  %v38 = vld [vmem:[%s1 + $0x3c] sm:$0xf]
  %v39 = vld [vmem:[%s1 + $0x40] sm:$0xf]
  %v40 = vld [vmem:[%s1 + $0x44] sm:$0xf]
  %v41 = vld [vmem:[%s1 + $0x48] sm:$0xf]
  %v42 = vld [vmem:[%s1 + $0x4c] sm:$0xf]
  %v43 = vld [vmem:[%s1 + $0x50] sm:$0xf]
  %v44 = vld [vmem:[%s1 + $0x54] sm:$0xf]
  %v45 = vld [vmem:[%s1 + $0x58] sm:$0xf]
  %v46 = vld [vmem:[%s1 + $0x5c] sm:$0xf]
  %v47 = vld [vmem:[%s1 + $0x60] sm:$0xf]
  %v48 = vld [vmem:[%s1 + $0x64] sm:$0xf]
  %v49 = vld [vmem:[%s1 + $0x68] sm:$0xf]
  %v50 = vld [vmem:[%s1 + $0x6c] sm:$0xf]
  %v51 = vld [vmem:[%s1 + $0x70] sm:$0xf]
  %v52 = vld [vmem:[%s1 + $0x74] sm:$0xf]
  %v53 = vld [vmem:[%s1 + $0x78] sm:$0xf]
  %v54 = vld [vmem:[%s1 + $0x7c] sm:$0xf]
  %v57 = vunpack.c.l.b16 %v21
  %v58 = vunpack.c.h.b16 %v21
  %v59 = vunpack.c.l.b16 %v22
  %v60 = vunpack.c.h.b16 %v22
  %v61 = vpack.c.b16 %v59, %v57
  %v62 = vpack.c.b16 %v60, %v58
  %v97 = vunpack.c.l.b16 %v23
  %v98 = vunpack.c.l.b16 %v24
  %v99 = vunpack.c.l.b16 %v25
  %v100 = vunpack.c.l.b16 %v26
  %v101 = vunpack.c.l.b16 %v27
  %v102 = vunpack.c.l.b16 %v28
  %v103 = vunpack.c.l.b16 %v29
  %v104 = vunpack.c.l.b16 %v30
  %v105 = vunpack.c.l.b16 %v31
  %v106 = vunpack.c.l.b16 %v32
  %v107 = vunpack.c.l.b16 %v33
  %v108 = vunpack.c.l.b16 %v34
  %v109 = vunpack.c.l.b16 %v35
  %v110 = vunpack.c.l.b16 %v36
  %v111 = vunpack.c.l.b16 %v37
  %v112 = vunpack.c.l.b16 %v38
  %v113 = vunpack.c.l.b16 %v39
  %v114 = vunpack.c.l.b16 %v40
  %v115 = vunpack.c.l.b16 %v41
  %v116 = vunpack.c.l.b16 %v42
  %v117 = vunpack.c.l.b16 %v43
  %v118 = vunpack.c.l.b16 %v44
  %v119 = vunpack.c.l.b16 %v45
  %v120 = vunpack.c.l.b16 %v46
  %v121 = vunpack.c.l.b16 %v47
  %v122 = vunpack.c.l.b16 %v48
  %v123 = vunpack.c.l.b16 %v49
  %v124 = vunpack.c.l.b16 %v50
  %v125 = vunpack.c.l.b16 %v51
  %v126 = vunpack.c.l.b16 %v52
  %v127 = vunpack.c.l.b16 %v53
  %v128 = vunpack.c.l.b16 %v54
  %v129 = vpack.c.b16 %v98, %v97
  %v130 = vpack.c.b16 %v100, %v99
  %v131 = vpack.c.b16 %v102, %v101
  %v132 = vpack.c.b16 %v104, %v103
  %v133 = vpack.c.b16 %v106, %v105
  %v134 = vpack.c.b16 %v108, %v107
  %v135 = vpack.c.b16 %v110, %v109
  %v136 = vpack.c.b16 %v112, %v111
  %v137 = vpack.c.b16 %v114, %v113
  %v138 = vpack.c.b16 %v116, %v115
  %v139 = vpack.c.b16 %v118, %v117
  %v140 = vpack.c.b16 %v120, %v119
  %v141 = vpack.c.b16 %v122, %v121
  %v142 = vpack.c.b16 %v124, %v123
  %v143 = vpack.c.b16 %v126, %v125
  %v144 = vpack.c.b16 %v128, %v127
  %161 = vmatprep.subr.bf16.mxu0 0
  %162 = vmatpush1.bf16.msra.mxu0 %v129
  %163 = vmatprep.subr.bf16.mxu0 0
  %164 = vmatpush1.bf16.msra.mxu0 %v130
  %165 = vmatprep.subr.bf16.mxu0 0
  %166 = vmatpush1.bf16.msra.mxu0 %v131
  %167 = vmatprep.subr.bf16.mxu0 0
  %168 = vmatpush1.bf16.msra.mxu0 %v132
  %169 = vmatprep.subr.bf16.mxu0 0
  %170 = vmatpush1.bf16.msra.mxu0 %v133
  %171 = vmatprep.subr.bf16.mxu0 0
  %172 = vmatpush1.bf16.msra.mxu0 %v134
  %173 = vmatprep.subr.bf16.mxu0 0
  %174 = vmatpush1.bf16.msra.mxu0 %v135
  %175 = vmatprep.subr.bf16.mxu0 0
  %176 = vmatpush1.bf16.msra.mxu0 %v136
  %177 = vmatprep.subr.bf16.mxu0 0
  %178 = vmatpush1.bf16.msra.mxu0 %v137
  %179 = vmatprep.subr.bf16.mxu0 0
  %180 = vmatpush1.bf16.msra.mxu0 %v138
  %181 = vmatprep.subr.bf16.mxu0 0
  %182 = vmatpush1.bf16.msra.mxu0 %v139
  %183 = vmatprep.subr.bf16.mxu0 0
  %184 = vmatpush1.bf16.msra.mxu0 %v140
  %185 = vmatprep.subr.bf16.mxu0 0
  %186 = vmatpush1.bf16.msra.mxu0 %v141
  %187 = vmatprep.subr.bf16.mxu0 0
  %188 = vmatpush1.bf16.msra.mxu0 %v142
  %189 = vmatprep.subr.bf16.mxu0 0
  %190 = vmatpush1.bf16.msra.mxu0 %v143
  %191 = vmatprep.subr.bf16.mxu0 0
  %192 = vmatpush1.bf16.msra.mxu0 %v144
  %193 = vmatprep.mubr.bf16.mxu0 %v62
  %194 = vmatmul.mubr.bf16.gmra.mrb[0].mxu0 %v61
  %v195 = vpop.f32.mrb[0].mxu0
  %v196 = vadd.f32 0.0, %v195
  %v197 = vpop.f32.mrb[0].mxu0
  %v198 = vpop.f32.mrb[0].mxu0
  %v199 = vadd.f32 0.0, %v198
  %v200 = vpop.f32.mrb[0].mxu0
  %201 = vdwg.mxu0
  %v202 = vld [vmem:[%s2] sm:$0x1]
  %v204 = vlaneseq
  %v205 = vshrl.u32 %v204, 7
  %v206 = vsub.s32 0, %v205
  %v207 = vrot.slane %v202, %v206
  %v209 = vmul.f32 %v196, %v207
  %v210 = vmul.f32 %v199, %v207
  %v211 = vld [vmem:[%s3] sm:$0x1]
  %v213 = vlaneseq
  %v214 = vshrl.u32 %v213, 7
  %v215 = vsub.s32 0, %v214
  %v216 = vrot.slane %v211, %v215
  %v218 = vadd.f32 %v209, %v216
  %v219 = vadd.f32 %v210, %v216
  %v220 = vld [vmem:[%s4] sm:$0xf]
  %v221 = vld [vmem:[%s4 + $0x4] sm:$0xf]
  %v222 = vunpack.c.l.bf16 %v220
  %v223 = vunpack.c.l.bf16 %v221
  %v224 = vadd.f32 %v218, %v222
  %v225 = vadd.f32 %v219, %v223
  %v226 = vmax.f32 %v224, 0.0
  %v227 = vmax.f32 %v225, 0.0
  %v228 = vpack.c.bf16 %v227, %v226
  %v230 = vunpack.c.l.b16 %v228
  %v231 = vunpack.c.h.b16 %v228
  %v232 = vpack.c.b16 %v230, %v230
  %v233 = vpack.c.b16 %v231, %v231
  %236 = vst [vmem:[%s5] sm:$0xf] %v232
  %237 = vst [vmem:[%s5 + $0x4] sm:$0xf] %v233
  // Predicated region
  $region22: #{resnet_forward.16} parent=0 // pred_check
    _
  $region23: #{resnet_forward.16} parent=0 // pred_check_branch
    %239 = sbr.rel (0) target = $region25
  $region24: #{resnet_forward.16} parent=0 // pred_region
    _
  $region25: #{resnet_forward.16} parent=0 // pred_fallthru
    _
  // Predicated region
  $region26: #{resnet_forward.16} parent=0 // pred_check
    _
  $region27: #{resnet_forward.16} parent=0 // pred_check_branch
    %241 = sbr.rel (0) target = $region29
  $region28: #{resnet_forward.16} parent=0 // pred_region
    _
  $region29: #{resnet_forward.16} parent=0 // pred_fallthru
    _

// kernel: resnet_forward.17
$region0: #{resnet_forward.17}
  #allocation0 [shape = 'u32[]', space=smem, size = 0x4, offset = 0x4, fixed_abs, tag = 'smem constant byte address 0x4 - core index']
  #allocation1 [shape = 'u32[144,128]{1,0:T(1,128)}', space=vmem, size = 0x12000, scoped, tag = 'internal scratch']
  %s0 = inlined_call_operand.vmem [shape: bf16[8,256], index: 0, kind: input, shape index: {}]
  %s1 = inlined_call_operand.vmem [shape: bf16[256,128], index: 1, kind: input, shape index: {}]
  %s2 = inlined_call_operand.vmem [shape: f32[1,128], index: 2, kind: input, shape index: {}]
  %s3 = inlined_call_operand.vmem [shape: f32[1,128], index: 3, kind: input, shape index: {}]
  %s4 = inlined_call_operand.vmem [shape: bf16[8,128], index: 4, kind: output, shape index: {}]
  %s5 = sld [smem:[#allocation0]]
  $region26: #{resnet_forward.17} parent=0
    _
  %s7 = ssub.s32 1, %s5
  %s8 = scalar_select 0, %s7, %s5
  // Predicated region
  $region2: #{resnet_forward.17} parent=0 // pred_check
    _
  $region3: #{resnet_forward.17} parent=0 // pred_check_branch
    %10 = sbr.rel (0) target = $region5
  $region4: #{resnet_forward.17} parent=0 // pred_region
    _
  $region5: #{resnet_forward.17} parent=0 // pred_fallthru
    _
  // Predicated region
  $region6: #{resnet_forward.17} parent=0 // pred_check
    _
  $region7: #{resnet_forward.17} parent=0 // pred_check_branch
    %12 = sbr.rel (0) target = $region9
  $region8: #{resnet_forward.17} parent=0 // pred_region
    _
  $region9: #{resnet_forward.17} parent=0 // pred_fallthru
    _
  // Predicated region
  $region10: #{resnet_forward.17} parent=0 // pred_check
    _
  $region11: #{resnet_forward.17} parent=0 // pred_check_branch
    %14 = sbr.rel (0) target = $region13
  $region12: #{resnet_forward.17} parent=0 // pred_region
    _
  $region13: #{resnet_forward.17} parent=0 // pred_fallthru
    _
  // Predicated region
  $region14: #{resnet_forward.17} parent=0 // pred_check
    _
  $region15: #{resnet_forward.17} parent=0 // pred_check_branch
    %16 = sbr.rel (0) target = $region17
  $region16: #{resnet_forward.17} parent=0 // pred_region
    _
  $region17: #{resnet_forward.17} parent=0 // pred_fallthru
    _
  %v18 = vld [vmem:[%s0] sm:$0xff]
  %v19 = vld [vmem:[%s1] sm:$0xf]
  %v20 = vld [vmem:[%s1 + $0x4] sm:$0xf]
  %v21 = vld [vmem:[%s1 + $0x8] sm:$0xf]
  %v22 = vld [vmem:[%s1 + $0xc] sm:$0xf]
  %v23 = vld [vmem:[%s1 + $0x10] sm:$0xf]
  %v24 = vld [vmem:[%s1 + $0x14] sm:$0xf]
  %v25 = vld [vmem:[%s1 + $0x18] sm:$0xf]
  %v26 = vld [vmem:[%s1 + $0x1c] sm:$0xf]
  %v27 = vld [vmem:[%s1 + $0x20] sm:$0xf]
  %v28 = vld [vmem:[%s1 + $0x24] sm:$0xf]
  %v29 = vld [vmem:[%s1 + $0x28] sm:$0xf]
  %v30 = vld [vmem:[%s1 + $0x2c] sm:$0xf]
  %v31 = vld [vmem:[%s1 + $0x30] sm:$0xf]
  %v32 = vld [vmem:[%s1 + $0x34] sm:$0xf]
  %v33 = vld [vmem:[%s1 + $0x38] sm:$0xf]
  %v34 = vld [vmem:[%s1 + $0x3c] sm:$0xf]
  %v35 = vld [vmem:[%s1 + $0x40] sm:$0xf]
  %v36 = vld [vmem:[%s1 + $0x44] sm:$0xf]
  %v37 = vld [vmem:[%s1 + $0x48] sm:$0xf]
  %v38 = vld [vmem:[%s1 + $0x4c] sm:$0xf]
  %v39 = vld [vmem:[%s1 + $0x50] sm:$0xf]
  %v40 = vld [vmem:[%s1 + $0x54] sm:$0xf]
  %v41 = vld [vmem:[%s1 + $0x58] sm:$0xf]
  %v42 = vld [vmem:[%s1 + $0x5c] sm:$0xf]
  %v43 = vld [vmem:[%s1 + $0x60] sm:$0xf]
  %v44 = vld [vmem:[%s1 + $0x64] sm:$0xf]
  %v45 = vld [vmem:[%s1 + $0x68] sm:$0xf]
  %v46 = vld [vmem:[%s1 + $0x6c] sm:$0xf]
  %v47 = vld [vmem:[%s1 + $0x70] sm:$0xf]
  %v48 = vld [vmem:[%s1 + $0x74] sm:$0xf]
  %v49 = vld [vmem:[%s1 + $0x78] sm:$0xf]
  %v50 = vld [vmem:[%s1 + $0x7c] sm:$0xf]
  %v52 = vunpack.c.l.b16 %v18
  %v53 = vunpack.c.h.b16 %v18
  %v54 = vpack.c.b16 %v52, %v52
  %v55 = vpack.c.b16 %v53, %v53
  %v90 = vunpack.c.l.b16 %v19
  %v91 = vunpack.c.l.b16 %v20
  %v92 = vunpack.c.l.b16 %v21
  %v93 = vunpack.c.l.b16 %v22
  %v94 = vunpack.c.l.b16 %v23
  %v95 = vunpack.c.l.b16 %v24
  %v96 = vunpack.c.l.b16 %v25
  %v97 = vunpack.c.l.b16 %v26
  %v98 = vunpack.c.l.b16 %v27
  %v99 = vunpack.c.l.b16 %v28
  %v100 = vunpack.c.l.b16 %v29
  %v101 = vunpack.c.l.b16 %v30
  %v102 = vunpack.c.l.b16 %v31
  %v103 = vunpack.c.l.b16 %v32
  %v104 = vunpack.c.l.b16 %v33
  %v105 = vunpack.c.l.b16 %v34
  %v106 = vunpack.c.l.b16 %v35
  %v107 = vunpack.c.l.b16 %v36
  %v108 = vunpack.c.l.b16 %v37
  %v109 = vunpack.c.l.b16 %v38
  %v110 = vunpack.c.l.b16 %v39
  %v111 = vunpack.c.l.b16 %v40
  %v112 = vunpack.c.l.b16 %v41
  %v113 = vunpack.c.l.b16 %v42
  %v114 = vunpack.c.l.b16 %v43
  %v115 = vunpack.c.l.b16 %v44
  %v116 = vunpack.c.l.b16 %v45
  %v117 = vunpack.c.l.b16 %v46
  %v118 = vunpack.c.l.b16 %v47
  %v119 = vunpack.c.l.b16 %v48
  %v120 = vunpack.c.l.b16 %v49
  %v121 = vunpack.c.l.b16 %v50
  %v122 = vpack.c.b16 %v91, %v90
  %v123 = vpack.c.b16 %v93, %v92
  %v124 = vpack.c.b16 %v95, %v94
  %v125 = vpack.c.b16 %v97, %v96
  %v126 = vpack.c.b16 %v99, %v98
  %v127 = vpack.c.b16 %v101, %v100
  %v128 = vpack.c.b16 %v103, %v102
  %v129 = vpack.c.b16 %v105, %v104
  %v130 = vpack.c.b16 %v107, %v106
  %v131 = vpack.c.b16 %v109, %v108
  %v132 = vpack.c.b16 %v111, %v110
  %v133 = vpack.c.b16 %v113, %v112
  %v134 = vpack.c.b16 %v115, %v114
  %v135 = vpack.c.b16 %v117, %v116
  %v136 = vpack.c.b16 %v119, %v118
  %v137 = vpack.c.b16 %v121, %v120
  %154 = vmatprep.subr.bf16.mxu0 0
  %155 = vmatpush1.bf16.msra.mxu0 %v122
  %156 = vmatprep.subr.bf16.mxu0 0
  %157 = vmatpush1.bf16.msra.mxu0 %v123
  %158 = vmatprep.subr.bf16.mxu0 0
  %159 = vmatpush1.bf16.msra.mxu0 %v124
  %160 = vmatprep.subr.bf16.mxu0 0
  %161 = vmatpush1.bf16.msra.mxu0 %v125
  %162 = vmatprep.subr.bf16.mxu0 0
  %163 = vmatpush1.bf16.msra.mxu0 %v126
  %164 = vmatprep.subr.bf16.mxu0 0
  %165 = vmatpush1.bf16.msra.mxu0 %v127
  %166 = vmatprep.subr.bf16.mxu0 0
  %167 = vmatpush1.bf16.msra.mxu0 %v128
  %168 = vmatprep.subr.bf16.mxu0 0
  %169 = vmatpush1.bf16.msra.mxu0 %v129
  %170 = vmatprep.subr.bf16.mxu0 0
  %171 = vmatpush1.bf16.msra.mxu0 %v130
  %172 = vmatprep.subr.bf16.mxu0 0
  %173 = vmatpush1.bf16.msra.mxu0 %v131
  %174 = vmatprep.subr.bf16.mxu0 0
  %175 = vmatpush1.bf16.msra.mxu0 %v132
  %176 = vmatprep.subr.bf16.mxu0 0
  %177 = vmatpush1.bf16.msra.mxu0 %v133
  %178 = vmatprep.subr.bf16.mxu0 0
  %179 = vmatpush1.bf16.msra.mxu0 %v134
  %180 = vmatprep.subr.bf16.mxu0 0
  %181 = vmatpush1.bf16.msra.mxu0 %v135
  %182 = vmatprep.subr.bf16.mxu0 0
  %183 = vmatpush1.bf16.msra.mxu0 %v136
  %184 = vmatprep.subr.bf16.mxu0 0
  %185 = vmatpush1.bf16.msra.mxu0 %v137
  %186 = vmatprep.mubr.bf16.mxu0 %v55
  %187 = vmatmul.mubr.bf16.gmra.mrb[0].mxu0 %v54
  %v188 = vpop.f32.mrb[0].mxu0
  %v189 = vadd.f32 0.0, %v188
  %v190 = vpop.f32.mrb[0].mxu0
  %v191 = vpop.f32.mrb[0].mxu0
  %v192 = vpop.f32.mrb[0].mxu0
  %193 = vdwg.mxu0
  %v194 = vld [vmem:[%s2] sm:$0x1]
  %v196 = vlaneseq
  %v197 = vshrl.u32 %v196, 7
  %v198 = vsub.s32 0, %v197
  %v199 = vrot.slane %v194, %v198
  %v201 = vmul.f32 %v189, %v199
  %v202 = vld [vmem:[%s3] sm:$0x1]
  %v204 = vlaneseq
  %v205 = vshrl.u32 %v204, 7
  %v206 = vsub.s32 0, %v205
  %v207 = vrot.slane %v202, %v206
  %v209 = vadd.f32 %v201, %v207
  %v210 = vlaneseq
  %v211 = vand.u32 %v210, 127
  %s212 = smul.u32 0, 128
  %v213 = vstv %s212
  %v214 = vadd.s32 %v211, %v213
  %vm215 = vcmp.lt.s32.totalorder %v214, 16
  %v216 = vmax.f32 %v209, 0.0
  %v217 = vsel %vm215, %v216, %v209
  %v218 = vpack.c.bf16 %v217, %v217
  %219 = vst [vmem:[%s4] sm:$0xf] %v218
  // Predicated region
  $region18: #{resnet_forward.17} parent=0 // pred_check
    _
  $region19: #{resnet_forward.17} parent=0 // pred_check_branch
    %221 = sbr.rel (0) target = $region21
  $region20: #{resnet_forward.17} parent=0 // pred_region
    _
  $region21: #{resnet_forward.17} parent=0 // pred_fallthru
    _
  // Predicated region
  $region22: #{resnet_forward.17} parent=0 // pred_check
    _
  $region23: #{resnet_forward.17} parent=0 // pred_check_branch
    %223 = sbr.rel (0) target = $region25
  $region24: #{resnet_forward.17} parent=0 // pred_region
    _
  $region25: #{resnet_forward.17} parent=0 // pred_fallthru
    _

// kernel: resnet_forward.18
$region0: #{resnet_forward.18}
  #allocation0 [shape = 'u32[]', space=smem, size = 0x4, offset = 0x4, fixed_abs, tag = 'smem constant byte address 0x4 - core index']
  #allocation1 [shape = 'u32[144,128]{1,0:T(1,128)}', space=vmem, size = 0x12000, scoped, tag = 'internal scratch']
  %s0 = inlined_call_operand.vmem [shape: bf16[8,512], index: 0, kind: input, shape index: {}]
  %s1 = inlined_call_operand.vmem [shape: bf16[512,128], index: 1, kind: input, shape index: {}]
  %s2 = inlined_call_operand.vmem [shape: f32[1,128], index: 2, kind: input, shape index: {}]
  %s3 = inlined_call_operand.vmem [shape: f32[1,128], index: 3, kind: input, shape index: {}]
  %s4 = inlined_call_operand.vmem [shape: bf16[8,128], index: 4, kind: input, shape index: {}]
  %s5 = inlined_call_operand.vmem [shape: bf16[8,128], index: 5, kind: output, shape index: {}]
  %s6 = sld [smem:[#allocation0]]
  $region30: #{resnet_forward.18} parent=0
    _
  %s8 = ssub.s32 1, %s6
  %s9 = scalar_select 0, %s8, %s6
  // Predicated region
  $region2: #{resnet_forward.18} parent=0 // pred_check
    _
  $region3: #{resnet_forward.18} parent=0 // pred_check_branch
    %11 = sbr.rel (0) target = $region5
  $region4: #{resnet_forward.18} parent=0 // pred_region
    _
  $region5: #{resnet_forward.18} parent=0 // pred_fallthru
    _
  // Predicated region
  $region6: #{resnet_forward.18} parent=0 // pred_check
    _
  $region7: #{resnet_forward.18} parent=0 // pred_check_branch
    %13 = sbr.rel (0) target = $region9
  $region8: #{resnet_forward.18} parent=0 // pred_region
    _
  $region9: #{resnet_forward.18} parent=0 // pred_fallthru
    _
  // Predicated region
  $region10: #{resnet_forward.18} parent=0 // pred_check
    _
  $region11: #{resnet_forward.18} parent=0 // pred_check_branch
    %15 = sbr.rel (0) target = $region13
  $region12: #{resnet_forward.18} parent=0 // pred_region
    _
  $region13: #{resnet_forward.18} parent=0 // pred_fallthru
    _
  // Predicated region
  $region14: #{resnet_forward.18} parent=0 // pred_check
    _
  $region15: #{resnet_forward.18} parent=0 // pred_check_branch
    %17 = sbr.rel (0) target = $region17
  $region16: #{resnet_forward.18} parent=0 // pred_region
    _
  $region17: #{resnet_forward.18} parent=0 // pred_fallthru
    _
  // Predicated region
  $region18: #{resnet_forward.18} parent=0 // pred_check
    _
  $region19: #{resnet_forward.18} parent=0 // pred_check_branch
    %19 = sbr.rel (0) target = $region21
  $region20: #{resnet_forward.18} parent=0 // pred_region
    _
  $region21: #{resnet_forward.18} parent=0 // pred_fallthru
    _
  %v21 = vld [vmem:[%s0] sm:$0xff]
  %v22 = vld [vmem:[%s0 + $0x8] sm:$0xff]
  %v23 = vld [vmem:[%s1] sm:$0xf]
  %v24 = vld [vmem:[%s1 + $0x4] sm:$0xf]
  %v25 = vld [vmem:[%s1 + $0x8] sm:$0xf]
  %v26 = vld [vmem:[%s1 + $0xc] sm:$0xf]
  %v27 = vld [vmem:[%s1 + $0x10] sm:$0xf]
  %v28 = vld [vmem:[%s1 + $0x14] sm:$0xf]
  %v29 = vld [vmem:[%s1 + $0x18] sm:$0xf]
  %v30 = vld [vmem:[%s1 + $0x1c] sm:$0xf]
  %v31 = vld [vmem:[%s1 + $0x20] sm:$0xf]
  %v32 = vld [vmem:[%s1 + $0x24] sm:$0xf]
  %v33 = vld [vmem:[%s1 + $0x28] sm:$0xf]
  %v34 = vld [vmem:[%s1 + $0x2c] sm:$0xf]
  %v35 = vld [vmem:[%s1 + $0x30] sm:$0xf]
  %v36 = vld [vmem:[%s1 + $0x34] sm:$0xf]
  %v37 = vld [vmem:[%s1 + $0x38] sm:$0xf]
  %v38 = vld [vmem:[%s1 + $0x3c] sm:$0xf]
  %v39 = vld [vmem:[%s1 + $0x40] sm:$0xf]
  %v40 = vld [vmem:[%s1 + $0x44] sm:$0xf]
  %v41 = vld [vmem:[%s1 + $0x48] sm:$0xf]
  %v42 = vld [vmem:[%s1 + $0x4c] sm:$0xf]
  %v43 = vld [vmem:[%s1 + $0x50] sm:$0xf]
  %v44 = vld [vmem:[%s1 + $0x54] sm:$0xf]
  %v45 = vld [vmem:[%s1 + $0x58] sm:$0xf]
  %v46 = vld [vmem:[%s1 + $0x5c] sm:$0xf]
  %v47 = vld [vmem:[%s1 + $0x60] sm:$0xf]
  %v48 = vld [vmem:[%s1 + $0x64] sm:$0xf]
  %v49 = vld [vmem:[%s1 + $0x68] sm:$0xf]
  %v50 = vld [vmem:[%s1 + $0x6c] sm:$0xf]
  %v51 = vld [vmem:[%s1 + $0x70] sm:$0xf]
  %v52 = vld [vmem:[%s1 + $0x74] sm:$0xf]
  %v53 = vld [vmem:[%s1 + $0x78] sm:$0xf]
  %v54 = vld [vmem:[%s1 + $0x7c] sm:$0xf]
  %v55 = vld [vmem:[%s1 + $0x80] sm:$0xf]
  %v56 = vld [vmem:[%s1 + $0x84] sm:$0xf]
  %v57 = vld [vmem:[%s1 + $0x88] sm:$0xf]
  %v58 = vld [vmem:[%s1 + $0x8c] sm:$0xf]
  %v59 = vld [vmem:[%s1 + $0x90] sm:$0xf]
  %v60 = vld [vmem:[%s1 + $0x94] sm:$0xf]
  %v61 = vld [vmem:[%s1 + $0x98] sm:$0xf]
  %v62 = vld [vmem:[%s1 + $0x9c] sm:$0xf]
  %v63 = vld [vmem:[%s1 + $0xa0] sm:$0xf]
  %v64 = vld [vmem:[%s1 + $0xa4] sm:$0xf]
  %v65 = vld [vmem:[%s1 + $0xa8] sm:$0xf]
  %v66 = vld [vmem:[%s1 + $0xac] sm:$0xf]
  %v67 = vld [vmem:[%s1 + $0xb0] sm:$0xf]
  %v68 = vld [vmem:[%s1 + $0xb4] sm:$0xf]
  %v69 = vld [vmem:[%s1 + $0xb8] sm:$0xf]
  %v70 = vld [vmem:[%s1 + $0xbc] sm:$0xf]
  %v71 = vld [vmem:[%s1 + $0xc0] sm:$0xf]
  %v72 = vld [vmem:[%s1 + $0xc4] sm:$0xf]
  %v73 = vld [vmem:[%s1 + $0xc8] sm:$0xf]
  %v74 = vld [vmem:[%s1 + $0xcc] sm:$0xf]
  %v75 = vld [vmem:[%s1 + $0xd0] sm:$0xf]
  %v76 = vld [vmem:[%s1 + $0xd4] sm:$0xf]
  %v77 = vld [vmem:[%s1 + $0xd8] sm:$0xf]
  %v78 = vld [vmem:[%s1 + $0xdc] sm:$0xf]
  %v79 = vld [vmem:[%s1 + $0xe0] sm:$0xf]
  %v80 = vld [vmem:[%s1 + $0xe4] sm:$0xf]
  %v81 = vld [vmem:[%s1 + $0xe8] sm:$0xf]
  %v82 = vld [vmem:[%s1 + $0xec] sm:$0xf]
  %v83 = vld [vmem:[%s1 + $0xf0] sm:$0xf]
  %v84 = vld [vmem:[%s1 + $0xf4] sm:$0xf]
  %v85 = vld [vmem:[%s1 + $0xf8] sm:$0xf]
  %v86 = vld [vmem:[%s1 + $0xfc] sm:$0xf]
  %v89 = vunpack.c.l.b16 %v21
  %v90 = vunpack.c.h.b16 %v21
  %v91 = vunpack.c.l.b16 %v22
  %v92 = vunpack.c.h.b16 %v22
  %v93 = vpack.c.b16 %v89, %v89
  %v94 = vpack.c.b16 %v90, %v90
  %v95 = vpack.c.b16 %v91, %v91
  %v96 = vpack.c.b16 %v92, %v92
  %v165 = vunpack.c.l.b16 %v23
  %v166 = vunpack.c.l.b16 %v24
  %v167 = vunpack.c.l.b16 %v25
  %v168 = vunpack.c.l.b16 %v26
  %v169 = vunpack.c.l.b16 %v27
  %v170 = vunpack.c.l.b16 %v28
  %v171 = vunpack.c.l.b16 %v29
  %v172 = vunpack.c.l.b16 %v30
  %v173 = vunpack.c.l.b16 %v31
  %v174 = vunpack.c.l.b16 %v32
  %v175 = vunpack.c.l.b16 %v33
  %v176 = vunpack.c.l.b16 %v34
  %v177 = vunpack.c.l.b16 %v35
  %v178 = vunpack.c.l.b16 %v36
  %v179 = vunpack.c.l.b16 %v37
  %v180 = vunpack.c.l.b16 %v38
  %v181 = vunpack.c.l.b16 %v39
  %v182 = vunpack.c.l.b16 %v40
  %v183 = vunpack.c.l.b16 %v41
  %v184 = vunpack.c.l.b16 %v42
  %v185 = vunpack.c.l.b16 %v43
  %v186 = vunpack.c.l.b16 %v44
  %v187 = vunpack.c.l.b16 %v45
  %v188 = vunpack.c.l.b16 %v46
  %v189 = vunpack.c.l.b16 %v47
  %v190 = vunpack.c.l.b16 %v48
  %v191 = vunpack.c.l.b16 %v49
  %v192 = vunpack.c.l.b16 %v50
  %v193 = vunpack.c.l.b16 %v51
  %v194 = vunpack.c.l.b16 %v52
  %v195 = vunpack.c.l.b16 %v53
  %v196 = vunpack.c.l.b16 %v54
  %v197 = vunpack.c.l.b16 %v55
  %v198 = vunpack.c.l.b16 %v56
  %v199 = vunpack.c.l.b16 %v57
  %v200 = vunpack.c.l.b16 %v58
  %v201 = vunpack.c.l.b16 %v59
  %v202 = vunpack.c.l.b16 %v60
  %v203 = vunpack.c.l.b16 %v61
  %v204 = vunpack.c.l.b16 %v62
  %v205 = vunpack.c.l.b16 %v63
  %v206 = vunpack.c.l.b16 %v64
  %v207 = vunpack.c.l.b16 %v65
  %v208 = vunpack.c.l.b16 %v66
  %v209 = vunpack.c.l.b16 %v67
  %v210 = vunpack.c.l.b16 %v68
  %v211 = vunpack.c.l.b16 %v69
  %v212 = vunpack.c.l.b16 %v70
  %v213 = vunpack.c.l.b16 %v71
  %v214 = vunpack.c.l.b16 %v72
  %v215 = vunpack.c.l.b16 %v73
  %v216 = vunpack.c.l.b16 %v74
  %v217 = vunpack.c.l.b16 %v75
  %v218 = vunpack.c.l.b16 %v76
  %v219 = vunpack.c.l.b16 %v77
  %v220 = vunpack.c.l.b16 %v78
  %v221 = vunpack.c.l.b16 %v79
  %v222 = vunpack.c.l.b16 %v80
  %v223 = vunpack.c.l.b16 %v81
  %v224 = vunpack.c.l.b16 %v82
  %v225 = vunpack.c.l.b16 %v83
  %v226 = vunpack.c.l.b16 %v84
  %v227 = vunpack.c.l.b16 %v85
  %v228 = vunpack.c.l.b16 %v86
  %v229 = vpack.c.b16 %v166, %v165
  %v230 = vpack.c.b16 %v168, %v167
  %v231 = vpack.c.b16 %v170, %v169
  %v232 = vpack.c.b16 %v172, %v171
  %v233 = vpack.c.b16 %v174, %v173
  %v234 = vpack.c.b16 %v176, %v175
  %v235 = vpack.c.b16 %v178, %v177
  %v236 = vpack.c.b16 %v180, %v179
  %v237 = vpack.c.b16 %v182, %v181
  %v238 = vpack.c.b16 %v184, %v183
  %v239 = vpack.c.b16 %v186, %v185
  %v240 = vpack.c.b16 %v188, %v187
  %v241 = vpack.c.b16 %v190, %v189
  %v242 = vpack.c.b16 %v192, %v191
  %v243 = vpack.c.b16 %v194, %v193
  %v244 = vpack.c.b16 %v196, %v195
  %v245 = vpack.c.b16 %v198, %v197
  %v246 = vpack.c.b16 %v200, %v199
  %v247 = vpack.c.b16 %v202, %v201
  %v248 = vpack.c.b16 %v204, %v203
  %v249 = vpack.c.b16 %v206, %v205
  %v250 = vpack.c.b16 %v208, %v207
  %v251 = vpack.c.b16 %v210, %v209
  %v252 = vpack.c.b16 %v212, %v211
  %v253 = vpack.c.b16 %v214, %v213
  %v254 = vpack.c.b16 %v216, %v215
  %v255 = vpack.c.b16 %v218, %v217
  %v256 = vpack.c.b16 %v220, %v219
  %v257 = vpack.c.b16 %v222, %v221
  %v258 = vpack.c.b16 %v224, %v223
  %v259 = vpack.c.b16 %v226, %v225
  %v260 = vpack.c.b16 %v228, %v227
  %293 = vmatprep.subr.bf16.mxu0 0
  %294 = vmatpush1.bf16.msra.mxu0 %v229
  %295 = vmatprep.subr.bf16.mxu0 0
  %296 = vmatpush1.bf16.msra.mxu0 %v230
  %297 = vmatprep.subr.bf16.mxu0 0
  %298 = vmatpush1.bf16.msra.mxu0 %v231
  %299 = vmatprep.subr.bf16.mxu0 0
  %300 = vmatpush1.bf16.msra.mxu0 %v232
  %301 = vmatprep.subr.bf16.mxu0 0
  %302 = vmatpush1.bf16.msra.mxu0 %v233
  %303 = vmatprep.subr.bf16.mxu0 0
  %304 = vmatpush1.bf16.msra.mxu0 %v234
  %305 = vmatprep.subr.bf16.mxu0 0
  %306 = vmatpush1.bf16.msra.mxu0 %v235
  %307 = vmatprep.subr.bf16.mxu0 0
  %308 = vmatpush1.bf16.msra.mxu0 %v236
  %309 = vmatprep.subr.bf16.mxu0 0
  %310 = vmatpush1.bf16.msra.mxu0 %v237
  %311 = vmatprep.subr.bf16.mxu0 0
  %312 = vmatpush1.bf16.msra.mxu0 %v238
  %313 = vmatprep.subr.bf16.mxu0 0
  %314 = vmatpush1.bf16.msra.mxu0 %v239
  %315 = vmatprep.subr.bf16.mxu0 0
  %316 = vmatpush1.bf16.msra.mxu0 %v240
  %317 = vmatprep.subr.bf16.mxu0 0
  %318 = vmatpush1.bf16.msra.mxu0 %v241
  %319 = vmatprep.subr.bf16.mxu0 0
  %320 = vmatpush1.bf16.msra.mxu0 %v242
  %321 = vmatprep.subr.bf16.mxu0 0
  %322 = vmatpush1.bf16.msra.mxu0 %v243
  %323 = vmatprep.subr.bf16.mxu0 0
  %324 = vmatpush1.bf16.msra.mxu0 %v244
  %325 = vmatprep.mubr.bf16.mxu0 %v94
  %326 = vmatmul.mubr.bf16.gmra.mrb[0].mxu0 %v93
  %v327 = vpop.f32.mrb[0].mxu0
  %v328 = vadd.f32 0.0, %v327
  %v329 = vpop.f32.mrb[0].mxu0
  %v330 = vpop.f32.mrb[0].mxu0
  %v331 = vpop.f32.mrb[0].mxu0
  %332 = vdwg.mxu0
  %333 = vmatprep.subr.bf16.mxu0 0
  %334 = vmatpush1.bf16.msra.mxu0 %v245
  %335 = vmatprep.subr.bf16.mxu0 0
  %336 = vmatpush1.bf16.msra.mxu0 %v246
  %337 = vmatprep.subr.bf16.mxu0 0
  %338 = vmatpush1.bf16.msra.mxu0 %v247
  %339 = vmatprep.subr.bf16.mxu0 0
  %340 = vmatpush1.bf16.msra.mxu0 %v248
  %341 = vmatprep.subr.bf16.mxu0 0
  %342 = vmatpush1.bf16.msra.mxu0 %v249
  %343 = vmatprep.subr.bf16.mxu0 0
  %344 = vmatpush1.bf16.msra.mxu0 %v250
  %345 = vmatprep.subr.bf16.mxu0 0
  %346 = vmatpush1.bf16.msra.mxu0 %v251
  %347 = vmatprep.subr.bf16.mxu0 0
  %348 = vmatpush1.bf16.msra.mxu0 %v252
  %349 = vmatprep.subr.bf16.mxu0 0
  %350 = vmatpush1.bf16.msra.mxu0 %v253
  %351 = vmatprep.subr.bf16.mxu0 0
  %352 = vmatpush1.bf16.msra.mxu0 %v254
  %353 = vmatprep.subr.bf16.mxu0 0
  %354 = vmatpush1.bf16.msra.mxu0 %v255
  %355 = vmatprep.subr.bf16.mxu0 0
  %356 = vmatpush1.bf16.msra.mxu0 %v256
  %357 = vmatprep.subr.bf16.mxu0 0
  %358 = vmatpush1.bf16.msra.mxu0 %v257
  %359 = vmatprep.subr.bf16.mxu0 0
  %360 = vmatpush1.bf16.msra.mxu0 %v258
  %361 = vmatprep.subr.bf16.mxu0 0
  %362 = vmatpush1.bf16.msra.mxu0 %v259
  %363 = vmatprep.subr.bf16.mxu0 0
  %364 = vmatpush1.bf16.msra.mxu0 %v260
  %365 = vmatprep.mubr.bf16.mxu0 %v96
  %366 = vmatmul.mubr.bf16.gmra.mrb[0].mxu0 %v95
  %v367 = vpop.f32.mrb[0].mxu0
  %v368 = vadd.f32 %v328, %v367
  %v369 = vpop.f32.mrb[0].mxu0
  %v370 = vpop.f32.mrb[0].mxu0
  %v371 = vpop.f32.mrb[0].mxu0
  %372 = vdwg.mxu0
  %v373 = vld [vmem:[%s2] sm:$0x1]
  %v375 = vlaneseq
  %v376 = vshrl.u32 %v375, 7
  %v377 = vsub.s32 0, %v376
  %v378 = vrot.slane %v373, %v377
  %v380 = vmul.f32 %v368, %v378
  %v381 = vld [vmem:[%s3] sm:$0x1]
  %v383 = vlaneseq
  %v384 = vshrl.u32 %v383, 7
  %v385 = vsub.s32 0, %v384
  %v386 = vrot.slane %v381, %v385
  %v388 = vadd.f32 %v380, %v386
  %v389 = vld [vmem:[%s4] sm:$0xf]
  %v390 = vunpack.c.l.bf16 %v389
  %v391 = vadd.f32 %v388, %v390
  %v392 = vmax.f32 %v391, 0.0
  %v393 = vpack.c.bf16 %v392, %v392
  %394 = vst [vmem:[%s5] sm:$0xf] %v393
  // Predicated region
  $region22: #{resnet_forward.18} parent=0 // pred_check
    _
  $region23: #{resnet_forward.18} parent=0 // pred_check_branch
    %396 = sbr.rel (0) target = $region25
  $region24: #{resnet_forward.18} parent=0 // pred_region
    _
  $region25: #{resnet_forward.18} parent=0 // pred_fallthru
    _
  // Predicated region
  $region26: #{resnet_forward.18} parent=0 // pred_check
    _
  $region27: #{resnet_forward.18} parent=0 // pred_check_branch
    %398 = sbr.rel (0) target = $region29
  $region28: #{resnet_forward.18} parent=0 // pred_region
    _
  $region29: #{resnet_forward.18} parent=0 // pred_fallthru
    _

// kernel: resnet_forward.19
$region0: #{resnet_forward.19}
  #allocation0 [shape = 'u32[]', space=smem, size = 0x4, offset = 0x4, fixed_abs, tag = 'smem constant byte address 0x4 - core index']
  #allocation1 [shape = 'u32[144,128]{1,0:T(1,128)}', space=vmem, size = 0x12000, scoped, tag = 'internal scratch']
  %s0 = inlined_call_operand.vmem [shape: bf16[8,512], index: 0, kind: input, shape index: {}]
  %s1 = inlined_call_operand.vmem [shape: bf16[512,128], index: 1, kind: input, shape index: {}]
  %s2 = inlined_call_operand.vmem [shape: f32[1,128], index: 2, kind: input, shape index: {}]
  %s3 = inlined_call_operand.vmem [shape: f32[1,128], index: 3, kind: input, shape index: {}]
  %s4 = inlined_call_operand.vmem [shape: bf16[8,128], index: 4, kind: output, shape index: {}]
  %s5 = sld [smem:[#allocation0]]
  $region26: #{resnet_forward.19} parent=0
    _
  %s7 = ssub.s32 1, %s5
  %s8 = scalar_select 0, %s7, %s5
  // Predicated region
  $region2: #{resnet_forward.19} parent=0 // pred_check
    _
  $region3: #{resnet_forward.19} parent=0 // pred_check_branch
    %10 = sbr.rel (0) target = $region5
  $region4: #{resnet_forward.19} parent=0 // pred_region
    _
  $region5: #{resnet_forward.19} parent=0 // pred_fallthru
    _
  // Predicated region
  $region6: #{resnet_forward.19} parent=0 // pred_check
    _
  $region7: #{resnet_forward.19} parent=0 // pred_check_branch
    %12 = sbr.rel (0) target = $region9
  $region8: #{resnet_forward.19} parent=0 // pred_region
    _
  $region9: #{resnet_forward.19} parent=0 // pred_fallthru
    _
  // Predicated region
  $region10: #{resnet_forward.19} parent=0 // pred_check
    _
  $region11: #{resnet_forward.19} parent=0 // pred_check_branch
    %14 = sbr.rel (0) target = $region13
  $region12: #{resnet_forward.19} parent=0 // pred_region
    _
  $region13: #{resnet_forward.19} parent=0 // pred_fallthru
    _
  // Predicated region
  $region14: #{resnet_forward.19} parent=0 // pred_check
    _
  $region15: #{resnet_forward.19} parent=0 // pred_check_branch
    %16 = sbr.rel (0) target = $region17
  $region16: #{resnet_forward.19} parent=0 // pred_region
    _
  $region17: #{resnet_forward.19} parent=0 // pred_fallthru
    _
  %v18 = vld [vmem:[%s0] sm:$0xff]
  %v19 = vld [vmem:[%s0 + $0x8] sm:$0xff]
  %v20 = vld [vmem:[%s1] sm:$0xf]
  %v21 = vld [vmem:[%s1 + $0x4] sm:$0xf]
  %v22 = vld [vmem:[%s1 + $0x8] sm:$0xf]
  %v23 = vld [vmem:[%s1 + $0xc] sm:$0xf]
  %v24 = vld [vmem:[%s1 + $0x10] sm:$0xf]
  %v25 = vld [vmem:[%s1 + $0x14] sm:$0xf]
  %v26 = vld [vmem:[%s1 + $0x18] sm:$0xf]
  %v27 = vld [vmem:[%s1 + $0x1c] sm:$0xf]
  %v28 = vld [vmem:[%s1 + $0x20] sm:$0xf]
  %v29 = vld [vmem:[%s1 + $0x24] sm:$0xf]
  %v30 = vld [vmem:[%s1 + $0x28] sm:$0xf]
  %v31 = vld [vmem:[%s1 + $0x2c] sm:$0xf]
  %v32 = vld [vmem:[%s1 + $0x30] sm:$0xf]
  %v33 = vld [vmem:[%s1 + $0x34] sm:$0xf]
  %v34 = vld [vmem:[%s1 + $0x38] sm:$0xf]
  %v35 = vld [vmem:[%s1 + $0x3c] sm:$0xf]
  %v36 = vld [vmem:[%s1 + $0x40] sm:$0xf]
  %v37 = vld [vmem:[%s1 + $0x44] sm:$0xf]
  %v38 = vld [vmem:[%s1 + $0x48] sm:$0xf]
  %v39 = vld [vmem:[%s1 + $0x4c] sm:$0xf]
  %v40 = vld [vmem:[%s1 + $0x50] sm:$0xf]
  %v41 = vld [vmem:[%s1 + $0x54] sm:$0xf]
  %v42 = vld [vmem:[%s1 + $0x58] sm:$0xf]
  %v43 = vld [vmem:[%s1 + $0x5c] sm:$0xf]
  %v44 = vld [vmem:[%s1 + $0x60] sm:$0xf]
  %v45 = vld [vmem:[%s1 + $0x64] sm:$0xf]
  %v46 = vld [vmem:[%s1 + $0x68] sm:$0xf]
  %v47 = vld [vmem:[%s1 + $0x6c] sm:$0xf]
  %v48 = vld [vmem:[%s1 + $0x70] sm:$0xf]
  %v49 = vld [vmem:[%s1 + $0x74] sm:$0xf]
  %v50 = vld [vmem:[%s1 + $0x78] sm:$0xf]
  %v51 = vld [vmem:[%s1 + $0x7c] sm:$0xf]
  %v52 = vld [vmem:[%s1 + $0x80] sm:$0xf]
  %v53 = vld [vmem:[%s1 + $0x84] sm:$0xf]
  %v54 = vld [vmem:[%s1 + $0x88] sm:$0xf]
  %v55 = vld [vmem:[%s1 + $0x8c] sm:$0xf]
  %v56 = vld [vmem:[%s1 + $0x90] sm:$0xf]
  %v57 = vld [vmem:[%s1 + $0x94] sm:$0xf]
  %v58 = vld [vmem:[%s1 + $0x98] sm:$0xf]
  %v59 = vld [vmem:[%s1 + $0x9c] sm:$0xf]
  %v60 = vld [vmem:[%s1 + $0xa0] sm:$0xf]
  %v61 = vld [vmem:[%s1 + $0xa4] sm:$0xf]
  %v62 = vld [vmem:[%s1 + $0xa8] sm:$0xf]
  %v63 = vld [vmem:[%s1 + $0xac] sm:$0xf]
  %v64 = vld [vmem:[%s1 + $0xb0] sm:$0xf]
  %v65 = vld [vmem:[%s1 + $0xb4] sm:$0xf]
  %v66 = vld [vmem:[%s1 + $0xb8] sm:$0xf]
  %v67 = vld [vmem:[%s1 + $0xbc] sm:$0xf]
  %v68 = vld [vmem:[%s1 + $0xc0] sm:$0xf]
  %v69 = vld [vmem:[%s1 + $0xc4] sm:$0xf]
  %v70 = vld [vmem:[%s1 + $0xc8] sm:$0xf]
  %v71 = vld [vmem:[%s1 + $0xcc] sm:$0xf]
  %v72 = vld [vmem:[%s1 + $0xd0] sm:$0xf]
  %v73 = vld [vmem:[%s1 + $0xd4] sm:$0xf]
  %v74 = vld [vmem:[%s1 + $0xd8] sm:$0xf]
  %v75 = vld [vmem:[%s1 + $0xdc] sm:$0xf]
  %v76 = vld [vmem:[%s1 + $0xe0] sm:$0xf]
  %v77 = vld [vmem:[%s1 + $0xe4] sm:$0xf]
  %v78 = vld [vmem:[%s1 + $0xe8] sm:$0xf]
  %v79 = vld [vmem:[%s1 + $0xec] sm:$0xf]
  %v80 = vld [vmem:[%s1 + $0xf0] sm:$0xf]
  %v81 = vld [vmem:[%s1 + $0xf4] sm:$0xf]
  %v82 = vld [vmem:[%s1 + $0xf8] sm:$0xf]
  %v83 = vld [vmem:[%s1 + $0xfc] sm:$0xf]
  %v86 = vunpack.c.l.b16 %v18
  %v87 = vunpack.c.h.b16 %v18
  %v88 = vunpack.c.l.b16 %v19
  %v89 = vunpack.c.h.b16 %v19
  %v90 = vpack.c.b16 %v86, %v86
  %v91 = vpack.c.b16 %v87, %v87
  %v92 = vpack.c.b16 %v88, %v88
  %v93 = vpack.c.b16 %v89, %v89
  %v162 = vunpack.c.l.b16 %v20
  %v163 = vunpack.c.l.b16 %v21
  %v164 = vunpack.c.l.b16 %v22
  %v165 = vunpack.c.l.b16 %v23
  %v166 = vunpack.c.l.b16 %v24
  %v167 = vunpack.c.l.b16 %v25
  %v168 = vunpack.c.l.b16 %v26
  %v169 = vunpack.c.l.b16 %v27
  %v170 = vunpack.c.l.b16 %v28
  %v171 = vunpack.c.l.b16 %v29
  %v172 = vunpack.c.l.b16 %v30
  %v173 = vunpack.c.l.b16 %v31
  %v174 = vunpack.c.l.b16 %v32
  %v175 = vunpack.c.l.b16 %v33
  %v176 = vunpack.c.l.b16 %v34
  %v177 = vunpack.c.l.b16 %v35
  %v178 = vunpack.c.l.b16 %v36
  %v179 = vunpack.c.l.b16 %v37
  %v180 = vunpack.c.l.b16 %v38
  %v181 = vunpack.c.l.b16 %v39
  %v182 = vunpack.c.l.b16 %v40
  %v183 = vunpack.c.l.b16 %v41
  %v184 = vunpack.c.l.b16 %v42
  %v185 = vunpack.c.l.b16 %v43
  %v186 = vunpack.c.l.b16 %v44
  %v187 = vunpack.c.l.b16 %v45
  %v188 = vunpack.c.l.b16 %v46
  %v189 = vunpack.c.l.b16 %v47
  %v190 = vunpack.c.l.b16 %v48
  %v191 = vunpack.c.l.b16 %v49
  %v192 = vunpack.c.l.b16 %v50
  %v193 = vunpack.c.l.b16 %v51
  %v194 = vunpack.c.l.b16 %v52
  %v195 = vunpack.c.l.b16 %v53
  %v196 = vunpack.c.l.b16 %v54
  %v197 = vunpack.c.l.b16 %v55
  %v198 = vunpack.c.l.b16 %v56
  %v199 = vunpack.c.l.b16 %v57
  %v200 = vunpack.c.l.b16 %v58
  %v201 = vunpack.c.l.b16 %v59
  %v202 = vunpack.c.l.b16 %v60
  %v203 = vunpack.c.l.b16 %v61
  %v204 = vunpack.c.l.b16 %v62
  %v205 = vunpack.c.l.b16 %v63
  %v206 = vunpack.c.l.b16 %v64
  %v207 = vunpack.c.l.b16 %v65
  %v208 = vunpack.c.l.b16 %v66
  %v209 = vunpack.c.l.b16 %v67
  %v210 = vunpack.c.l.b16 %v68
  %v211 = vunpack.c.l.b16 %v69
  %v212 = vunpack.c.l.b16 %v70
  %v213 = vunpack.c.l.b16 %v71
  %v214 = vunpack.c.l.b16 %v72
  %v215 = vunpack.c.l.b16 %v73
  %v216 = vunpack.c.l.b16 %v74
  %v217 = vunpack.c.l.b16 %v75
  %v218 = vunpack.c.l.b16 %v76
  %v219 = vunpack.c.l.b16 %v77
  %v220 = vunpack.c.l.b16 %v78
  %v221 = vunpack.c.l.b16 %v79
  %v222 = vunpack.c.l.b16 %v80
  %v223 = vunpack.c.l.b16 %v81
  %v224 = vunpack.c.l.b16 %v82
  %v225 = vunpack.c.l.b16 %v83
  %v226 = vpack.c.b16 %v163, %v162
  %v227 = vpack.c.b16 %v165, %v164
  %v228 = vpack.c.b16 %v167, %v166
  %v229 = vpack.c.b16 %v169, %v168
  %v230 = vpack.c.b16 %v171, %v170
  %v231 = vpack.c.b16 %v173, %v172
  %v232 = vpack.c.b16 %v175, %v174
  %v233 = vpack.c.b16 %v177, %v176
  %v234 = vpack.c.b16 %v179, %v178
  %v235 = vpack.c.b16 %v181, %v180
  %v236 = vpack.c.b16 %v183, %v182
  %v237 = vpack.c.b16 %v185, %v184
  %v238 = vpack.c.b16 %v187, %v186
  %v239 = vpack.c.b16 %v189, %v188
  %v240 = vpack.c.b16 %v191, %v190
  %v241 = vpack.c.b16 %v193, %v192
  %v242 = vpack.c.b16 %v195, %v194
  %v243 = vpack.c.b16 %v197, %v196
  %v244 = vpack.c.b16 %v199, %v198
  %v245 = vpack.c.b16 %v201, %v200
  %v246 = vpack.c.b16 %v203, %v202
  %v247 = vpack.c.b16 %v205, %v204
  %v248 = vpack.c.b16 %v207, %v206
  %v249 = vpack.c.b16 %v209, %v208
  %v250 = vpack.c.b16 %v211, %v210
  %v251 = vpack.c.b16 %v213, %v212
  %v252 = vpack.c.b16 %v215, %v214
  %v253 = vpack.c.b16 %v217, %v216
  %v254 = vpack.c.b16 %v219, %v218
  %v255 = vpack.c.b16 %v221, %v220
  %v256 = vpack.c.b16 %v223, %v222
  %v257 = vpack.c.b16 %v225, %v224
  %290 = vmatprep.subr.bf16.mxu0 0
  %291 = vmatpush1.bf16.msra.mxu0 %v226
  %292 = vmatprep.subr.bf16.mxu0 0
  %293 = vmatpush1.bf16.msra.mxu0 %v227
  %294 = vmatprep.subr.bf16.mxu0 0
  %295 = vmatpush1.bf16.msra.mxu0 %v228
  %296 = vmatprep.subr.bf16.mxu0 0
  %297 = vmatpush1.bf16.msra.mxu0 %v229
  %298 = vmatprep.subr.bf16.mxu0 0
  %299 = vmatpush1.bf16.msra.mxu0 %v230
  %300 = vmatprep.subr.bf16.mxu0 0
  %301 = vmatpush1.bf16.msra.mxu0 %v231
  %302 = vmatprep.subr.bf16.mxu0 0
  %303 = vmatpush1.bf16.msra.mxu0 %v232
  %304 = vmatprep.subr.bf16.mxu0 0
  %305 = vmatpush1.bf16.msra.mxu0 %v233
  %306 = vmatprep.subr.bf16.mxu0 0
  %307 = vmatpush1.bf16.msra.mxu0 %v234
  %308 = vmatprep.subr.bf16.mxu0 0
  %309 = vmatpush1.bf16.msra.mxu0 %v235
  %310 = vmatprep.subr.bf16.mxu0 0
  %311 = vmatpush1.bf16.msra.mxu0 %v236
  %312 = vmatprep.subr.bf16.mxu0 0
  %313 = vmatpush1.bf16.msra.mxu0 %v237
  %314 = vmatprep.subr.bf16.mxu0 0
  %315 = vmatpush1.bf16.msra.mxu0 %v238
  %316 = vmatprep.subr.bf16.mxu0 0
  %317 = vmatpush1.bf16.msra.mxu0 %v239
  %318 = vmatprep.subr.bf16.mxu0 0
  %319 = vmatpush1.bf16.msra.mxu0 %v240
  %320 = vmatprep.subr.bf16.mxu0 0
  %321 = vmatpush1.bf16.msra.mxu0 %v241
  %322 = vmatprep.mubr.bf16.mxu0 %v91
  %323 = vmatmul.mubr.bf16.gmra.mrb[0].mxu0 %v90
  %v324 = vpop.f32.mrb[0].mxu0
  %v325 = vadd.f32 0.0, %v324
  %v326 = vpop.f32.mrb[0].mxu0
  %v327 = vpop.f32.mrb[0].mxu0
  %v328 = vpop.f32.mrb[0].mxu0
  %329 = vdwg.mxu0
  %330 = vmatprep.subr.bf16.mxu0 0
  %331 = vmatpush1.bf16.msra.mxu0 %v242
  %332 = vmatprep.subr.bf16.mxu0 0
  %333 = vmatpush1.bf16.msra.mxu0 %v243
  %334 = vmatprep.subr.bf16.mxu0 0
  %335 = vmatpush1.bf16.msra.mxu0 %v244
  %336 = vmatprep.subr.bf16.mxu0 0
  %337 = vmatpush1.bf16.msra.mxu0 %v245
  %338 = vmatprep.subr.bf16.mxu0 0
  %339 = vmatpush1.bf16.msra.mxu0 %v246
  %340 = vmatprep.subr.bf16.mxu0 0
  %341 = vmatpush1.bf16.msra.mxu0 %v247
  %342 = vmatprep.subr.bf16.mxu0 0
  %343 = vmatpush1.bf16.msra.mxu0 %v248
  %344 = vmatprep.subr.bf16.mxu0 0
  %345 = vmatpush1.bf16.msra.mxu0 %v249
  %346 = vmatprep.subr.bf16.mxu0 0
  %347 = vmatpush1.bf16.msra.mxu0 %v250
  %348 = vmatprep.subr.bf16.mxu0 0
  %349 = vmatpush1.bf16.msra.mxu0 %v251
  %350 = vmatprep.subr.bf16.mxu0 0
  %351 = vmatpush1.bf16.msra.mxu0 %v252
  %352 = vmatprep.subr.bf16.mxu0 0
  %353 = vmatpush1.bf16.msra.mxu0 %v253
  %354 = vmatprep.subr.bf16.mxu0 0
  %355 = vmatpush1.bf16.msra.mxu0 %v254
  %356 = vmatprep.subr.bf16.mxu0 0
  %357 = vmatpush1.bf16.msra.mxu0 %v255
  %358 = vmatprep.subr.bf16.mxu0 0
  %359 = vmatpush1.bf16.msra.mxu0 %v256
  %360 = vmatprep.subr.bf16.mxu0 0
  %361 = vmatpush1.bf16.msra.mxu0 %v257
  %362 = vmatprep.mubr.bf16.mxu0 %v93
  %363 = vmatmul.mubr.bf16.gmra.mrb[0].mxu0 %v92
  %v364 = vpop.f32.mrb[0].mxu0
  %v365 = vadd.f32 %v325, %v364
  %v366 = vpop.f32.mrb[0].mxu0
  %v367 = vpop.f32.mrb[0].mxu0
  %v368 = vpop.f32.mrb[0].mxu0
  %369 = vdwg.mxu0
  %v370 = vld [vmem:[%s2] sm:$0x1]
  %v372 = vlaneseq
  %v373 = vshrl.u32 %v372, 7
  %v374 = vsub.s32 0, %v373
  %v375 = vrot.slane %v370, %v374
  %v377 = vmul.f32 %v365, %v375
  %v378 = vld [vmem:[%s3] sm:$0x1]
  %v380 = vlaneseq
  %v381 = vshrl.u32 %v380, 7
  %v382 = vsub.s32 0, %v381
  %v383 = vrot.slane %v378, %v382
  %v385 = vadd.f32 %v377, %v383
  %v386 = vlaneseq
  %v387 = vand.u32 %v386, 127
  %s388 = smul.u32 0, 128
  %v389 = vstv %s388
  %v390 = vadd.s32 %v387, %v389
  %vm391 = vcmp.lt.s32.totalorder %v390, 32
  %v392 = vmax.f32 %v385, 0.0
  %v393 = vsel %vm391, %v392, %v385
  %v394 = vpack.c.bf16 %v393, %v393
  %395 = vst [vmem:[%s4] sm:$0xf] %v394
  // Predicated region
  $region18: #{resnet_forward.19} parent=0 // pred_check
    _
  $region19: #{resnet_forward.19} parent=0 // pred_check_branch
    %397 = sbr.rel (0) target = $region21
  $region20: #{resnet_forward.19} parent=0 // pred_region
    _
  $region21: #{resnet_forward.19} parent=0 // pred_fallthru
    _
  // Predicated region
  $region22: #{resnet_forward.19} parent=0 // pred_check
    _
  $region23: #{resnet_forward.19} parent=0 // pred_check_branch
    %399 = sbr.rel (0) target = $region25
  $region24: #{resnet_forward.19} parent=0 // pred_region
    _
  $region25: #{resnet_forward.19} parent=0 // pred_fallthru
    _

// kernel: resnet_forward.21
$region0: #{resnet_forward.21}
  #allocation0 [shape = 'u32[]', space=smem, size = 0x4, offset = 0x4, fixed_abs, tag = 'smem constant byte address 0x4 - core index']
  #allocation1 [shape = 'u32[144,128]{1,0:T(1,128)}', space=vmem, size = 0x12000, scoped, tag = 'internal scratch']
  %s0 = inlined_call_operand.vmem [shape: bf16[2,1,128], index: 0, kind: input, shape index: {}]
  %s1 = inlined_call_operand.vmem [shape: f32[128,128], index: 1, kind: input, shape index: {}]
  %s2 = inlined_call_operand.vmem [shape: f32[1,128], index: 2, kind: input, shape index: {}]
  %s3 = inlined_call_operand.hbm [shape: f32[2,128], index: 3, kind: output, shape index: {}]
  %s4 = sld [smem:[#allocation0]]
  $region22: #{resnet_forward.21} parent=0
    _
  %s6 = ssub.s32 1, %s4
  %s7 = scalar_select 0, %s6, %s4
  $region1: #{resnet_forward.21} parent=0
    #allocation2 [shape = 'u8[1024]{0}', space=vmem, size = 0x400, scoped, tag = 'output window, operand 0, single buffered']
    #allocation3 [shape = 's32[1]{0}', space=sflag, size = 0x4, scoped, tag = 'scoped memory for resnet_forward.21']
    %8 = vsyncpa [#allocation3], 0
    // Predicated region
    $region2: #{resnet_forward.21} parent=1 // pred_check
      _
    $region3: #{resnet_forward.21} parent=1 // pred_check_branch
      %10 = sbr.rel (0) target = $region5
    $region4: #{resnet_forward.21} parent=1 // pred_region
      _
    $region5: #{resnet_forward.21} parent=1 // pred_fallthru
      _
    // Predicated region
    $region6: #{resnet_forward.21} parent=1 // pred_check
      _
    $region7: #{resnet_forward.21} parent=1 // pred_check_branch
      %12 = sbr.rel (0) target = $region9
    $region8: #{resnet_forward.21} parent=1 // pred_region
      _
    $region9: #{resnet_forward.21} parent=1 // pred_fallthru
      _
    // Predicated region
    $region10: #{resnet_forward.21} parent=1 // pred_check
      _
    $region11: #{resnet_forward.21} parent=1 // pred_check_branch
      %14 = sbr.rel (0) target = $region13
    $region12: #{resnet_forward.21} parent=1 // pred_region
      _
    $region13: #{resnet_forward.21} parent=1 // pred_fallthru
      _
    %v15 = vld [vmem:[%s0] sm:$0x1]
    %v16 = vld [vmem:[%s0 + $0x1] sm:$0x1]
    %v17 = vunpack.c.l.bf16 %v15
    %v18 = vunpack.c.l.bf16 %v16
    %v19 = vadd.f32 %v17, 0.0
    %v20 = vadd.f32 %v18, 0.0
    %v21 = vld [vmem:[%s1] sm:$0xff]
    %v22 = vld [vmem:[%s1 + $0x8] sm:$0xff]
    %v23 = vld [vmem:[%s1 + $0x10] sm:$0xff]
    %v24 = vld [vmem:[%s1 + $0x18] sm:$0xff]
    %v25 = vld [vmem:[%s1 + $0x20] sm:$0xff]
    %v26 = vld [vmem:[%s1 + $0x28] sm:$0xff]
    %v27 = vld [vmem:[%s1 + $0x30] sm:$0xff]
    %v28 = vld [vmem:[%s1 + $0x38] sm:$0xff]
    %v29 = vld [vmem:[%s1 + $0x40] sm:$0xff]
    %v30 = vld [vmem:[%s1 + $0x48] sm:$0xff]
    %v31 = vld [vmem:[%s1 + $0x50] sm:$0xff]
    %v32 = vld [vmem:[%s1 + $0x58] sm:$0xff]
    %v33 = vld [vmem:[%s1 + $0x60] sm:$0xff]
    %v34 = vld [vmem:[%s1 + $0x68] sm:$0xff]
    %v35 = vld [vmem:[%s1 + $0x70] sm:$0xff]
    %v36 = vld [vmem:[%s1 + $0x78] sm:$0xff]
    %v37 = vld [vmem:[%s2] sm:$0x1]
    %v39 = vlaneseq
    %v40 = vshrl.u32 %v39, 7
    %v41 = vsub.s32 0, %v40
    %v42 = vrot.slane %v37, %v41
    %v46 = vlaneseq
    %v47 = vshrl.u32 %v46, 7
    %v48 = vsub.s32 0, %v47
    %v49 = vrot.slane %v19, %v48
    %v50 = vlaneseq
    %v51 = vshrl.u32 %v50, 7
    %v52 = vsub.s32 0, %v51
    %v53 = vrot.slane %v20, %v52
    %vm54 = vcmask 1041409
    %v55 = vsel %vm54, %v53, %v49
    %57 = vmatprep.subr.mxu0 0.0
    %58 = vmatpush1.msra.mxu0 %v21
    %59 = vmatprep.subr.mxu0 0.0
    %60 = vmatpush1.msra.mxu0 %v22
    %61 = vmatprep.subr.mxu0 0.0
    %62 = vmatpush1.msra.mxu0 %v23
    %63 = vmatprep.subr.mxu0 0.0
    %64 = vmatpush1.msra.mxu0 %v24
    %65 = vmatprep.subr.mxu0 0.0
    %66 = vmatpush1.msra.mxu0 %v25
    %67 = vmatprep.subr.mxu0 0.0
    %68 = vmatpush1.msra.mxu0 %v26
    %69 = vmatprep.subr.mxu0 0.0
    %70 = vmatpush1.msra.mxu0 %v27
    %71 = vmatprep.subr.mxu0 0.0
    %72 = vmatpush1.msra.mxu0 %v28
    %73 = vmatprep.subr.mxu0 0.0
    %74 = vmatpush1.msra.mxu0 %v29
    %75 = vmatprep.subr.mxu0 0.0
    %76 = vmatpush1.msra.mxu0 %v30
    %77 = vmatprep.subr.mxu0 0.0
    %78 = vmatpush1.msra.mxu0 %v31
    %79 = vmatprep.subr.mxu0 0.0
    %80 = vmatpush1.msra.mxu0 %v32
    %81 = vmatprep.subr.mxu0 0.0
    %82 = vmatpush1.msra.mxu0 %v33
    %83 = vmatprep.subr.mxu0 0.0
    %84 = vmatpush1.msra.mxu0 %v34
    %85 = vmatprep.subr.mxu0 0.0
    %86 = vmatpush1.msra.mxu0 %v35
    %87 = vmatprep.subr.mxu0 0.0
    %88 = vmatpush1.msra.mxu0 %v36
    %89 = vmatprep.subr.mxu0 0.0
    %90 = vmatpush1.msra.mxu0 0.0
    %91 = vmatprep.subr.mxu0 0.0
    %92 = vmatpush1.msra.mxu0 0.0
    %93 = vmatprep.subr.mxu0 0.0
    %94 = vmatpush1.msra.mxu0 0.0
    %95 = vmatprep.subr.mxu0 0.0
    %96 = vmatpush1.msra.mxu0 0.0
    %97 = vmatprep.subr.mxu0 0.0
    %98 = vmatpush1.msra.mxu0 0.0
    %99 = vmatprep.subr.mxu0 0.0
    %100 = vmatpush1.msra.mxu0 0.0
    %101 = vmatprep.subr.mxu0 0.0
    %102 = vmatpush1.msra.mxu0 0.0
    %103 = vmatprep.subr.mxu0 0.0
    %104 = vmatpush1.msra.mxu0 0.0
    %105 = vmatprep.subr.mxu0 0.0
    %106 = vmatpush1.msra.mxu0 0.0
    %107 = vmatprep.subr.mxu0 0.0
    %108 = vmatpush1.msra.mxu0 0.0
    %109 = vmatprep.subr.mxu0 0.0
    %110 = vmatpush1.msra.mxu0 0.0
    %111 = vmatprep.subr.mxu0 0.0
    %112 = vmatpush1.msra.mxu0 0.0
    %113 = vmatprep.subr.mxu0 0.0
    %114 = vmatpush1.msra.mxu0 0.0
    %115 = vmatprep.subr.mxu0 0.0
    %116 = vmatpush1.msra.mxu0 0.0
    %117 = vmatprep.subr.mxu0 0.0
    %118 = vmatpush1.msra.mxu0 0.0
    %119 = vmatprep.subr.mxu0 0.0
    %120 = vmatpush1.msra.mxu0 0.0
    %121 = vmatprep.mubr.f32.mxu0 0.0
    %122 = vmatmul.mubr.f32.gmra.mrb[0].mxu0 %v55
    %v123 = vpop.f32.mrb[0].mxu0
    %v124 = vadd.f32 %v42, %v123
    %v125 = vpop.f32.mrb[0].mxu0
    %126 = vdwg.mxu0
    %127 = vst [vmem:[#allocation2] sm:$0x3] %v124
    // Predicated region
    $region14: #{resnet_forward.21} parent=1 // pred_check
      _
    $region15: #{resnet_forward.21} parent=1 // pred_check_branch
      %129 = sbr.rel (0) target = $region17
    $region16: #{resnet_forward.21} parent=1 // pred_region
      %s131 = ssub.s32 32, 32
      %132 = vsyncadd [#allocation3], %s131
      %s134 = sshll.u32 [#allocation2], 4
      %s135 = int_to_ptr.vmem [resolvable:$true] %s134
      %137 = dma.vmem_to_hbm [thread:$0]  %s135, 32, %s3, [#allocation3]
    $region17: #{resnet_forward.21} parent=1 // pred_fallthru
      _
    // Predicated region
    $region18: #{resnet_forward.21} parent=1 // pred_check
      _
    $region19: #{resnet_forward.21} parent=1 // pred_check_branch
      %139 = sbr.rel (0) target = $region21
    $region20: #{resnet_forward.21} parent=1 // pred_region
      %140 = dma.done [#allocation3], 32
    $region21: #{resnet_forward.21} parent=1 // pred_fallthru
      _
    %141 = vsyncpa [#allocation3], 1

// kernel: resnet_forward.20
$region0: #{resnet_forward.20}
  #allocation0 [shape = 'u32[]', space=smem, size = 0x4, offset = 0x4, fixed_abs, tag = 'smem constant byte address 0x4 - core index']
  #allocation1 [shape = 'u32[144,128]{1,0:T(1,128)}', space=vmem, size = 0x12000, scoped, tag = 'internal scratch']
  %s0 = inlined_call_operand.vmem [shape: bf16[8,896], index: 0, kind: input, shape index: {}]
  %s1 = inlined_call_operand.vmem [shape: bf16[896,128], index: 1, kind: input, shape index: {}]
  %s2 = inlined_call_operand.vmem [shape: f32[1,128], index: 2, kind: input, shape index: {}]
  %s3 = inlined_call_operand.vmem [shape: f32[1,128], index: 3, kind: input, shape index: {}]
  %s4 = inlined_call_operand.vmem [shape: bf16[8,128], index: 4, kind: input, shape index: {}]
  %s5 = inlined_call_operand.vmem [shape: bf16[8,128], index: 5, kind: output, shape index: {}]
  %s6 = sld [smem:[#allocation0]]
  $region30: #{resnet_forward.20} parent=0
    _
  %s8 = ssub.s32 1, %s6
  %s9 = scalar_select 0, %s8, %s6
  // Predicated region
  $region2: #{resnet_forward.20} parent=0 // pred_check
    _
  $region3: #{resnet_forward.20} parent=0 // pred_check_branch
    %11 = sbr.rel (0) target = $region5
  $region4: #{resnet_forward.20} parent=0 // pred_region
    _
  $region5: #{resnet_forward.20} parent=0 // pred_fallthru
    _
  // Predicated region
  $region6: #{resnet_forward.20} parent=0 // pred_check
    _
  $region7: #{resnet_forward.20} parent=0 // pred_check_branch
    %13 = sbr.rel (0) target = $region9
  $region8: #{resnet_forward.20} parent=0 // pred_region
    _
  $region9: #{resnet_forward.20} parent=0 // pred_fallthru
    _
  // Predicated region
  $region10: #{resnet_forward.20} parent=0 // pred_check
    _
  $region11: #{resnet_forward.20} parent=0 // pred_check_branch
    %15 = sbr.rel (0) target = $region13
  $region12: #{resnet_forward.20} parent=0 // pred_region
    _
  $region13: #{resnet_forward.20} parent=0 // pred_fallthru
    _
  // Predicated region
  $region14: #{resnet_forward.20} parent=0 // pred_check
    _
  $region15: #{resnet_forward.20} parent=0 // pred_check_branch
    %17 = sbr.rel (0) target = $region17
  $region16: #{resnet_forward.20} parent=0 // pred_region
    _
  $region17: #{resnet_forward.20} parent=0 // pred_fallthru
    _
  // Predicated region
  $region18: #{resnet_forward.20} parent=0 // pred_check
    _
  $region19: #{resnet_forward.20} parent=0 // pred_check_branch
    %19 = sbr.rel (0) target = $region21
  $region20: #{resnet_forward.20} parent=0 // pred_region
    _
  $region21: #{resnet_forward.20} parent=0 // pred_fallthru
    _
  %v21 = vld [vmem:[%s0] sm:$0xff]
  %v22 = vld [vmem:[%s0 + $0x8] sm:$0xff]
  %v23 = vld [vmem:[%s0 + $0x10] sm:$0xff]
  %v24 = vld [vmem:[%s0 + $0x18] sm:$0xf]
  %v25 = vld [vmem:[%s1] sm:$0xf]
  %v26 = vld [vmem:[%s1 + $0x4] sm:$0xf]
  %v27 = vld [vmem:[%s1 + $0x8] sm:$0xf]
  %v28 = vld [vmem:[%s1 + $0xc] sm:$0xf]
  %v29 = vld [vmem:[%s1 + $0x10] sm:$0xf]
  %v30 = vld [vmem:[%s1 + $0x14] sm:$0xf]
  %v31 = vld [vmem:[%s1 + $0x18] sm:$0xf]
  %v32 = vld [vmem:[%s1 + $0x1c] sm:$0xf]
  %v33 = vld [vmem:[%s1 + $0x20] sm:$0xf]
  %v34 = vld [vmem:[%s1 + $0x24] sm:$0xf]
  %v35 = vld [vmem:[%s1 + $0x28] sm:$0xf]
  %v36 = vld [vmem:[%s1 + $0x2c] sm:$0xf]
  %v37 = vld [vmem:[%s1 + $0x30] sm:$0xf]
  %v38 = vld [vmem:[%s1 + $0x34] sm:$0xf]
  %v39 = vld [vmem:[%s1 + $0x38] sm:$0xf]
  %v40 = vld [vmem:[%s1 + $0x3c] sm:$0xf]
  %v41 = vld [vmem:[%s1 + $0x40] sm:$0xf]
  %v42 = vld [vmem:[%s1 + $0x44] sm:$0xf]
  %v43 = vld [vmem:[%s1 + $0x48] sm:$0xf]
  %v44 = vld [vmem:[%s1 + $0x4c] sm:$0xf]
  %v45 = vld [vmem:[%s1 + $0x50] sm:$0xf]
  %v46 = vld [vmem:[%s1 + $0x54] sm:$0xf]
  %v47 = vld [vmem:[%s1 + $0x58] sm:$0xf]
  %v48 = vld [vmem:[%s1 + $0x5c] sm:$0xf]
  %v49 = vld [vmem:[%s1 + $0x60] sm:$0xf]
  %v50 = vld [vmem:[%s1 + $0x64] sm:$0xf]
  %v51 = vld [vmem:[%s1 + $0x68] sm:$0xf]
  %v52 = vld [vmem:[%s1 + $0x6c] sm:$0xf]
  %v53 = vld [vmem:[%s1 + $0x70] sm:$0xf]
  %v54 = vld [vmem:[%s1 + $0x74] sm:$0xf]
  %v55 = vld [vmem:[%s1 + $0x78] sm:$0xf]
  %v56 = vld [vmem:[%s1 + $0x7c] sm:$0xf]
  %v57 = vld [vmem:[%s1 + $0x80] sm:$0xf]
  %v58 = vld [vmem:[%s1 + $0x84] sm:$0xf]
  %v59 = vld [vmem:[%s1 + $0x88] sm:$0xf]
  %v60 = vld [vmem:[%s1 + $0x8c] sm:$0xf]
  %v61 = vld [vmem:[%s1 + $0x90] sm:$0xf]
  %v62 = vld [vmem:[%s1 + $0x94] sm:$0xf]
  %v63 = vld [vmem:[%s1 + $0x98] sm:$0xf]
  %v64 = vld [vmem:[%s1 + $0x9c] sm:$0xf]
  %v65 = vld [vmem:[%s1 + $0xa0] sm:$0xf]
  %v66 = vld [vmem:[%s1 + $0xa4] sm:$0xf]
  %v67 = vld [vmem:[%s1 + $0xa8] sm:$0xf]
  %v68 = vld [vmem:[%s1 + $0xac] sm:$0xf]
  %v69 = vld [vmem:[%s1 + $0xb0] sm:$0xf]
  %v70 = vld [vmem:[%s1 + $0xb4] sm:$0xf]
  %v71 = vld [vmem:[%s1 + $0xb8] sm:$0xf]
  %v72 = vld [vmem:[%s1 + $0xbc] sm:$0xf]
  %v73 = vld [vmem:[%s1 + $0xc0] sm:$0xf]
  %v74 = vld [vmem:[%s1 + $0xc4] sm:$0xf]
  %v75 = vld [vmem:[%s1 + $0xc8] sm:$0xf]
  %v76 = vld [vmem:[%s1 + $0xcc] sm:$0xf]
  %v77 = vld [vmem:[%s1 + $0xd0] sm:$0xf]
  %v78 = vld [vmem:[%s1 + $0xd4] sm:$0xf]
  %v79 = vld [vmem:[%s1 + $0xd8] sm:$0xf]
  %v80 = vld [vmem:[%s1 + $0xdc] sm:$0xf]
  %v81 = vld [vmem:[%s1 + $0xe0] sm:$0xf]
  %v82 = vld [vmem:[%s1 + $0xe4] sm:$0xf]
  %v83 = vld [vmem:[%s1 + $0xe8] sm:$0xf]
  %v84 = vld [vmem:[%s1 + $0xec] sm:$0xf]
  %v85 = vld [vmem:[%s1 + $0xf0] sm:$0xf]
  %v86 = vld [vmem:[%s1 + $0xf4] sm:$0xf]
  %v87 = vld [vmem:[%s1 + $0xf8] sm:$0xf]
  %v88 = vld [vmem:[%s1 + $0xfc] sm:$0xf]
  %v89 = vld [vmem:[%s1 + $0x100] sm:$0xf]
  %v90 = vld [vmem:[%s1 + $0x104] sm:$0xf]
  %v91 = vld [vmem:[%s1 + $0x108] sm:$0xf]
  %v92 = vld [vmem:[%s1 + $0x10c] sm:$0xf]
  %v93 = vld [vmem:[%s1 + $0x110] sm:$0xf]
  %v94 = vld [vmem:[%s1 + $0x114] sm:$0xf]
  %v95 = vld [vmem:[%s1 + $0x118] sm:$0xf]
  %v96 = vld [vmem:[%s1 + $0x11c] sm:$0xf]
  %v97 = vld [vmem:[%s1 + $0x120] sm:$0xf]
  %v98 = vld [vmem:[%s1 + $0x124] sm:$0xf]
  %v99 = vld [vmem:[%s1 + $0x128] sm:$0xf]
  %v100 = vld [vmem:[%s1 + $0x12c] sm:$0xf]
  %v101 = vld [vmem:[%s1 + $0x130] sm:$0xf]
  %v102 = vld [vmem:[%s1 + $0x134] sm:$0xf]
  %v103 = vld [vmem:[%s1 + $0x138] sm:$0xf]
  %v104 = vld [vmem:[%s1 + $0x13c] sm:$0xf]
  %v105 = vld [vmem:[%s1 + $0x140] sm:$0xf]
  %v106 = vld [vmem:[%s1 + $0x144] sm:$0xf]
  %v107 = vld [vmem:[%s1 + $0x148] sm:$0xf]
  %v108 = vld [vmem:[%s1 + $0x14c] sm:$0xf]
  %v109 = vld [vmem:[%s1 + $0x150] sm:$0xf]
  %v110 = vld [vmem:[%s1 + $0x154] sm:$0xf]
  %v111 = vld [vmem:[%s1 + $0x158] sm:$0xf]
  %v112 = vld [vmem:[%s1 + $0x15c] sm:$0xf]
  %v113 = vld [vmem:[%s1 + $0x160] sm:$0xf]
  %v114 = vld [vmem:[%s1 + $0x164] sm:$0xf]
  %v115 = vld [vmem:[%s1 + $0x168] sm:$0xf]
  %v116 = vld [vmem:[%s1 + $0x16c] sm:$0xf]
  %v117 = vld [vmem:[%s1 + $0x170] sm:$0xf]
  %v118 = vld [vmem:[%s1 + $0x174] sm:$0xf]
  %v119 = vld [vmem:[%s1 + $0x178] sm:$0xf]
  %v120 = vld [vmem:[%s1 + $0x17c] sm:$0xf]
  %v121 = vld [vmem:[%s1 + $0x180] sm:$0xf]
  %v122 = vld [vmem:[%s1 + $0x184] sm:$0xf]
  %v123 = vld [vmem:[%s1 + $0x188] sm:$0xf]
  %v124 = vld [vmem:[%s1 + $0x18c] sm:$0xf]
  %v125 = vld [vmem:[%s1 + $0x190] sm:$0xf]
  %v126 = vld [vmem:[%s1 + $0x194] sm:$0xf]
  %v127 = vld [vmem:[%s1 + $0x198] sm:$0xf]
  %v128 = vld [vmem:[%s1 + $0x19c] sm:$0xf]
  %v129 = vld [vmem:[%s1 + $0x1a0] sm:$0xf]
  %v130 = vld [vmem:[%s1 + $0x1a4] sm:$0xf]
  %v131 = vld [vmem:[%s1 + $0x1a8] sm:$0xf]
  %v132 = vld [vmem:[%s1 + $0x1ac] sm:$0xf]
  %v133 = vld [vmem:[%s1 + $0x1b0] sm:$0xf]
  %v134 = vld [vmem:[%s1 + $0x1b4] sm:$0xf]
  %v135 = vld [vmem:[%s1 + $0x1b8] sm:$0xf]
  %v136 = vld [vmem:[%s1 + $0x1bc] sm:$0xf]
  %v141 = vunpack.c.l.b16 %v21
  %v142 = vunpack.c.h.b16 %v21
  %v143 = vunpack.c.l.b16 %v22
  %v144 = vunpack.c.h.b16 %v22
  %v145 = vunpack.c.l.b16 %v23
  %v146 = vunpack.c.h.b16 %v23
  %v147 = vunpack.c.l.b16 %v24
  %v148 = vpack.c.b16 %v141, %v141
  %v149 = vpack.c.b16 %v142, %v142
  %v150 = vpack.c.b16 %v143, %v143
  %v151 = vpack.c.b16 %v144, %v144
  %v152 = vpack.c.b16 %v145, %v145
  %v153 = vpack.c.b16 %v146, %v146
  %v154 = vpack.c.b16 %v147, %v147
  %v274 = vunpack.c.l.b16 %v25
  %v275 = vunpack.c.l.b16 %v26
  %v276 = vunpack.c.l.b16 %v27
  %v277 = vunpack.c.l.b16 %v28
  %v278 = vunpack.c.l.b16 %v29
  %v279 = vunpack.c.l.b16 %v30
  %v280 = vunpack.c.l.b16 %v31
  %v281 = vunpack.c.l.b16 %v32
  %v282 = vunpack.c.l.b16 %v33
  %v283 = vunpack.c.l.b16 %v34
  %v284 = vunpack.c.l.b16 %v35
  %v285 = vunpack.c.l.b16 %v36
  %v286 = vunpack.c.l.b16 %v37
  %v287 = vunpack.c.l.b16 %v38
  %v288 = vunpack.c.l.b16 %v39
  %v289 = vunpack.c.l.b16 %v40
  %v290 = vunpack.c.l.b16 %v41
  %v291 = vunpack.c.l.b16 %v42
  %v292 = vunpack.c.l.b16 %v43
  %v293 = vunpack.c.l.b16 %v44
  %v294 = vunpack.c.l.b16 %v45
  %v295 = vunpack.c.l.b16 %v46
  %v296 = vunpack.c.l.b16 %v47
  %v297 = vunpack.c.l.b16 %v48
  %v298 = vunpack.c.l.b16 %v49
  %v299 = vunpack.c.l.b16 %v50
  %v300 = vunpack.c.l.b16 %v51
  %v301 = vunpack.c.l.b16 %v52
  %v302 = vunpack.c.l.b16 %v53
  %v303 = vunpack.c.l.b16 %v54
  %v304 = vunpack.c.l.b16 %v55
  %v305 = vunpack.c.l.b16 %v56
  %v306 = vunpack.c.l.b16 %v57
  %v307 = vunpack.c.l.b16 %v58
  %v308 = vunpack.c.l.b16 %v59
  %v309 = vunpack.c.l.b16 %v60
  %v310 = vunpack.c.l.b16 %v61
  %v311 = vunpack.c.l.b16 %v62
  %v312 = vunpack.c.l.b16 %v63
  %v313 = vunpack.c.l.b16 %v64
  %v314 = vunpack.c.l.b16 %v65
  %v315 = vunpack.c.l.b16 %v66
  %v316 = vunpack.c.l.b16 %v67
  %v317 = vunpack.c.l.b16 %v68
  %v318 = vunpack.c.l.b16 %v69
  %v319 = vunpack.c.l.b16 %v70
  %v320 = vunpack.c.l.b16 %v71
  %v321 = vunpack.c.l.b16 %v72
  %v322 = vunpack.c.l.b16 %v73
  %v323 = vunpack.c.l.b16 %v74
  %v324 = vunpack.c.l.b16 %v75
  %v325 = vunpack.c.l.b16 %v76
  %v326 = vunpack.c.l.b16 %v77
  %v327 = vunpack.c.l.b16 %v78
  %v328 = vunpack.c.l.b16 %v79
  %v329 = vunpack.c.l.b16 %v80
  %v330 = vunpack.c.l.b16 %v81
  %v331 = vunpack.c.l.b16 %v82
  %v332 = vunpack.c.l.b16 %v83
  %v333 = vunpack.c.l.b16 %v84
  %v334 = vunpack.c.l.b16 %v85
  %v335 = vunpack.c.l.b16 %v86
  %v336 = vunpack.c.l.b16 %v87
  %v337 = vunpack.c.l.b16 %v88
  %v338 = vunpack.c.l.b16 %v89
  %v339 = vunpack.c.l.b16 %v90
  %v340 = vunpack.c.l.b16 %v91
  %v341 = vunpack.c.l.b16 %v92
  %v342 = vunpack.c.l.b16 %v93
  %v343 = vunpack.c.l.b16 %v94
  %v344 = vunpack.c.l.b16 %v95
  %v345 = vunpack.c.l.b16 %v96
  %v346 = vunpack.c.l.b16 %v97
  %v347 = vunpack.c.l.b16 %v98
  %v348 = vunpack.c.l.b16 %v99
  %v349 = vunpack.c.l.b16 %v100
  %v350 = vunpack.c.l.b16 %v101
  %v351 = vunpack.c.l.b16 %v102
  %v352 = vunpack.c.l.b16 %v103
  %v353 = vunpack.c.l.b16 %v104
  %v354 = vunpack.c.l.b16 %v105
  %v355 = vunpack.c.l.b16 %v106
  %v356 = vunpack.c.l.b16 %v107
  %v357 = vunpack.c.l.b16 %v108
  %v358 = vunpack.c.l.b16 %v109
  %v359 = vunpack.c.l.b16 %v110
  %v360 = vunpack.c.l.b16 %v111
  %v361 = vunpack.c.l.b16 %v112
  %v362 = vunpack.c.l.b16 %v113
  %v363 = vunpack.c.l.b16 %v114
  %v364 = vunpack.c.l.b16 %v115
  %v365 = vunpack.c.l.b16 %v116
  %v366 = vunpack.c.l.b16 %v117
  %v367 = vunpack.c.l.b16 %v118
  %v368 = vunpack.c.l.b16 %v119
  %v369 = vunpack.c.l.b16 %v120
  %v370 = vunpack.c.l.b16 %v121
  %v371 = vunpack.c.l.b16 %v122
  %v372 = vunpack.c.l.b16 %v123
  %v373 = vunpack.c.l.b16 %v124
  %v374 = vunpack.c.l.b16 %v125
  %v375 = vunpack.c.l.b16 %v126
  %v376 = vunpack.c.l.b16 %v127
  %v377 = vunpack.c.l.b16 %v128
  %v378 = vunpack.c.l.b16 %v129
  %v379 = vunpack.c.l.b16 %v130
  %v380 = vunpack.c.l.b16 %v131
  %v381 = vunpack.c.l.b16 %v132
  %v382 = vunpack.c.l.b16 %v133
  %v383 = vunpack.c.l.b16 %v134
  %v384 = vunpack.c.l.b16 %v135
  %v385 = vunpack.c.l.b16 %v136
  %v386 = vpack.c.b16 %v275, %v274
  %v387 = vpack.c.b16 %v277, %v276
  %v388 = vpack.c.b16 %v279, %v278
  %v389 = vpack.c.b16 %v281, %v280
  %v390 = vpack.c.b16 %v283, %v282
  %v391 = vpack.c.b16 %v285, %v284
  %v392 = vpack.c.b16 %v287, %v286
  %v393 = vpack.c.b16 %v289, %v288
  %v394 = vpack.c.b16 %v291, %v290
  %v395 = vpack.c.b16 %v293, %v292
  %v396 = vpack.c.b16 %v295, %v294
  %v397 = vpack.c.b16 %v297, %v296
  %v398 = vpack.c.b16 %v299, %v298
  %v399 = vpack.c.b16 %v301, %v300
  %v400 = vpack.c.b16 %v303, %v302
  %v401 = vpack.c.b16 %v305, %v304
  %v402 = vpack.c.b16 %v307, %v306
  %v403 = vpack.c.b16 %v309, %v308
  %v404 = vpack.c.b16 %v311, %v310
  %v405 = vpack.c.b16 %v313, %v312
  %v406 = vpack.c.b16 %v315, %v314
  %v407 = vpack.c.b16 %v317, %v316
  %v408 = vpack.c.b16 %v319, %v318
  %v409 = vpack.c.b16 %v321, %v320
  %v410 = vpack.c.b16 %v323, %v322
  %v411 = vpack.c.b16 %v325, %v324
  %v412 = vpack.c.b16 %v327, %v326
  %v413 = vpack.c.b16 %v329, %v328
  %v414 = vpack.c.b16 %v331, %v330
  %v415 = vpack.c.b16 %v333, %v332
  %v416 = vpack.c.b16 %v335, %v334
  %v417 = vpack.c.b16 %v337, %v336
  %v418 = vpack.c.b16 %v339, %v338
  %v419 = vpack.c.b16 %v341, %v340
  %v420 = vpack.c.b16 %v343, %v342
  %v421 = vpack.c.b16 %v345, %v344
  %v422 = vpack.c.b16 %v347, %v346
  %v423 = vpack.c.b16 %v349, %v348
  %v424 = vpack.c.b16 %v351, %v350
  %v425 = vpack.c.b16 %v353, %v352
  %v426 = vpack.c.b16 %v355, %v354
  %v427 = vpack.c.b16 %v357, %v356
  %v428 = vpack.c.b16 %v359, %v358
  %v429 = vpack.c.b16 %v361, %v360
  %v430 = vpack.c.b16 %v363, %v362
  %v431 = vpack.c.b16 %v365, %v364
  %v432 = vpack.c.b16 %v367, %v366
  %v433 = vpack.c.b16 %v369, %v368
  %v434 = vpack.c.b16 %v371, %v370
  %v435 = vpack.c.b16 %v373, %v372
  %v436 = vpack.c.b16 %v375, %v374
  %v437 = vpack.c.b16 %v377, %v376
  %v438 = vpack.c.b16 %v379, %v378
  %v439 = vpack.c.b16 %v381, %v380
  %v440 = vpack.c.b16 %v383, %v382
  %v441 = vpack.c.b16 %v385, %v384
  %498 = vmatprep.subr.bf16.mxu0 0
  %499 = vmatpush1.bf16.msra.mxu0 %v386
  %500 = vmatprep.subr.bf16.mxu0 0
  %501 = vmatpush1.bf16.msra.mxu0 %v387
  %502 = vmatprep.subr.bf16.mxu0 0
  %503 = vmatpush1.bf16.msra.mxu0 %v388
  %504 = vmatprep.subr.bf16.mxu0 0
  %505 = vmatpush1.bf16.msra.mxu0 %v389
  %506 = vmatprep.subr.bf16.mxu0 0
  %507 = vmatpush1.bf16.msra.mxu0 %v390
  %508 = vmatprep.subr.bf16.mxu0 0
  %509 = vmatpush1.bf16.msra.mxu0 %v391
  %510 = vmatprep.subr.bf16.mxu0 0
  %511 = vmatpush1.bf16.msra.mxu0 %v392
  %512 = vmatprep.subr.bf16.mxu0 0
  %513 = vmatpush1.bf16.msra.mxu0 %v393
  %514 = vmatprep.subr.bf16.mxu0 0
  %515 = vmatpush1.bf16.msra.mxu0 %v394
  %516 = vmatprep.subr.bf16.mxu0 0
  %517 = vmatpush1.bf16.msra.mxu0 %v395
  %518 = vmatprep.subr.bf16.mxu0 0
  %519 = vmatpush1.bf16.msra.mxu0 %v396
  %520 = vmatprep.subr.bf16.mxu0 0
  %521 = vmatpush1.bf16.msra.mxu0 %v397
  %522 = vmatprep.subr.bf16.mxu0 0
  %523 = vmatpush1.bf16.msra.mxu0 %v398
  %524 = vmatprep.subr.bf16.mxu0 0
  %525 = vmatpush1.bf16.msra.mxu0 %v399
  %526 = vmatprep.subr.bf16.mxu0 0
  %527 = vmatpush1.bf16.msra.mxu0 %v400
  %528 = vmatprep.subr.bf16.mxu0 0
  %529 = vmatpush1.bf16.msra.mxu0 %v401
  %530 = vmatprep.mubr.bf16.mxu0 %v149
  %531 = vmatmul.mubr.bf16.gmra.mrb[0].mxu0 %v148
  %v532 = vpop.f32.mrb[0].mxu0
  %v533 = vadd.f32 0.0, %v532
  %v534 = vpop.f32.mrb[0].mxu0
  %v535 = vpop.f32.mrb[0].mxu0
  %v536 = vpop.f32.mrb[0].mxu0
  %537 = vdwg.mxu0
  %538 = vmatprep.subr.bf16.mxu0 0
  %539 = vmatpush1.bf16.msra.mxu0 %v402
  %540 = vmatprep.subr.bf16.mxu0 0
  %541 = vmatpush1.bf16.msra.mxu0 %v403
  %542 = vmatprep.subr.bf16.mxu0 0
  %543 = vmatpush1.bf16.msra.mxu0 %v404
  %544 = vmatprep.subr.bf16.mxu0 0
  %545 = vmatpush1.bf16.msra.mxu0 %v405
  %546 = vmatprep.subr.bf16.mxu0 0
  %547 = vmatpush1.bf16.msra.mxu0 %v406
  %548 = vmatprep.subr.bf16.mxu0 0
  %549 = vmatpush1.bf16.msra.mxu0 %v407
  %550 = vmatprep.subr.bf16.mxu0 0
  %551 = vmatpush1.bf16.msra.mxu0 %v408
  %552 = vmatprep.subr.bf16.mxu0 0
  %553 = vmatpush1.bf16.msra.mxu0 %v409
  %554 = vmatprep.subr.bf16.mxu0 0
  %555 = vmatpush1.bf16.msra.mxu0 %v410
  %556 = vmatprep.subr.bf16.mxu0 0
  %557 = vmatpush1.bf16.msra.mxu0 %v411
  %558 = vmatprep.subr.bf16.mxu0 0
  %559 = vmatpush1.bf16.msra.mxu0 %v412
  %560 = vmatprep.subr.bf16.mxu0 0
  %561 = vmatpush1.bf16.msra.mxu0 %v413
  %562 = vmatprep.subr.bf16.mxu0 0
  %563 = vmatpush1.bf16.msra.mxu0 %v414
  %564 = vmatprep.subr.bf16.mxu0 0
  %565 = vmatpush1.bf16.msra.mxu0 %v415
  %566 = vmatprep.subr.bf16.mxu0 0
  %567 = vmatpush1.bf16.msra.mxu0 %v416
  %568 = vmatprep.subr.bf16.mxu0 0
  %569 = vmatpush1.bf16.msra.mxu0 %v417
  %570 = vmatprep.mubr.bf16.mxu0 %v151
  %571 = vmatmul.mubr.bf16.gmra.mrb[0].mxu0 %v150
  %v572 = vpop.f32.mrb[0].mxu0
  %v573 = vadd.f32 %v533, %v572
  %v574 = vpop.f32.mrb[0].mxu0
  %v575 = vpop.f32.mrb[0].mxu0
  %v576 = vpop.f32.mrb[0].mxu0
  %577 = vdwg.mxu0
  %578 = vmatprep.subr.bf16.mxu0 0
  %579 = vmatpush1.bf16.msra.mxu0 %v418
  %580 = vmatprep.subr.bf16.mxu0 0
  %581 = vmatpush1.bf16.msra.mxu0 %v419
  %582 = vmatprep.subr.bf16.mxu0 0
  %583 = vmatpush1.bf16.msra.mxu0 %v420
  %584 = vmatprep.subr.bf16.mxu0 0
  %585 = vmatpush1.bf16.msra.mxu0 %v421
  %586 = vmatprep.subr.bf16.mxu0 0
  %587 = vmatpush1.bf16.msra.mxu0 %v422
  %588 = vmatprep.subr.bf16.mxu0 0
  %589 = vmatpush1.bf16.msra.mxu0 %v423
  %590 = vmatprep.subr.bf16.mxu0 0
  %591 = vmatpush1.bf16.msra.mxu0 %v424
  %592 = vmatprep.subr.bf16.mxu0 0
  %593 = vmatpush1.bf16.msra.mxu0 %v425
  %594 = vmatprep.subr.bf16.mxu0 0
  %595 = vmatpush1.bf16.msra.mxu0 %v426
  %596 = vmatprep.subr.bf16.mxu0 0
  %597 = vmatpush1.bf16.msra.mxu0 %v427
  %598 = vmatprep.subr.bf16.mxu0 0
  %599 = vmatpush1.bf16.msra.mxu0 %v428
  %600 = vmatprep.subr.bf16.mxu0 0
  %601 = vmatpush1.bf16.msra.mxu0 %v429
  %602 = vmatprep.subr.bf16.mxu0 0
  %603 = vmatpush1.bf16.msra.mxu0 %v430
  %604 = vmatprep.subr.bf16.mxu0 0
  %605 = vmatpush1.bf16.msra.mxu0 %v431
  %606 = vmatprep.subr.bf16.mxu0 0
  %607 = vmatpush1.bf16.msra.mxu0 %v432
  %608 = vmatprep.subr.bf16.mxu0 0
  %609 = vmatpush1.bf16.msra.mxu0 %v433
  %610 = vmatprep.mubr.bf16.mxu0 %v153
  %611 = vmatmul.mubr.bf16.gmra.mrb[0].mxu0 %v152
  %v612 = vpop.f32.mrb[0].mxu0
  %v613 = vadd.f32 %v573, %v612
  %v614 = vpop.f32.mrb[0].mxu0
  %v615 = vpop.f32.mrb[0].mxu0
  %v616 = vpop.f32.mrb[0].mxu0
  %617 = vdwg.mxu0
  %618 = vmatprep.subr.bf16.mxu0 0
  %619 = vmatpush1.bf16.msra.mxu0 %v434
  %620 = vmatprep.subr.bf16.mxu0 0
  %621 = vmatpush1.bf16.msra.mxu0 %v435
  %622 = vmatprep.subr.bf16.mxu0 0
  %623 = vmatpush1.bf16.msra.mxu0 %v436
  %624 = vmatprep.subr.bf16.mxu0 0
  %625 = vmatpush1.bf16.msra.mxu0 %v437
  %626 = vmatprep.subr.bf16.mxu0 0
  %627 = vmatpush1.bf16.msra.mxu0 %v438
  %628 = vmatprep.subr.bf16.mxu0 0
  %629 = vmatpush1.bf16.msra.mxu0 %v439
  %630 = vmatprep.subr.bf16.mxu0 0
  %631 = vmatpush1.bf16.msra.mxu0 %v440
  %632 = vmatprep.subr.bf16.mxu0 0
  %633 = vmatpush1.bf16.msra.mxu0 %v441
  %634 = vmatprep.subr.bf16.mxu0 0
  %635 = vmatpush1.bf16.msra.mxu0 0
  %636 = vmatprep.subr.bf16.mxu0 0
  %637 = vmatpush1.bf16.msra.mxu0 0
  %638 = vmatprep.subr.bf16.mxu0 0
  %639 = vmatpush1.bf16.msra.mxu0 0
  %640 = vmatprep.subr.bf16.mxu0 0
  %641 = vmatpush1.bf16.msra.mxu0 0
  %642 = vmatprep.subr.bf16.mxu0 0
  %643 = vmatpush1.bf16.msra.mxu0 0
  %644 = vmatprep.subr.bf16.mxu0 0
  %645 = vmatpush1.bf16.msra.mxu0 0
  %646 = vmatprep.subr.bf16.mxu0 0
  %647 = vmatpush1.bf16.msra.mxu0 0
  %648 = vmatprep.subr.bf16.mxu0 0
  %649 = vmatpush1.bf16.msra.mxu0 0
  %650 = vmatprep.mubr.bf16.mxu0 0
  %651 = vmatmul.mubr.bf16.gmra.mrb[0].mxu0 %v154
  %v652 = vpop.f32.mrb[0].mxu0
  %v653 = vadd.f32 %v613, %v652
  %v654 = vpop.f32.mrb[0].mxu0
  %v655 = vpop.f32.mrb[0].mxu0
  %v656 = vpop.f32.mrb[0].mxu0
  %657 = vdwg.mxu0
  %v658 = vld [vmem:[%s2] sm:$0x1]
  %v660 = vlaneseq
  %v661 = vshrl.u32 %v660, 7
  %v662 = vsub.s32 0, %v661
  %v663 = vrot.slane %v658, %v662
  %v665 = vmul.f32 %v653, %v663
  %v666 = vld [vmem:[%s3] sm:$0x1]
  %v668 = vlaneseq
  %v669 = vshrl.u32 %v668, 7
  %v670 = vsub.s32 0, %v669
  %v671 = vrot.slane %v666, %v670
  %v673 = vadd.f32 %v665, %v671
  %v674 = vld [vmem:[%s4] sm:$0xf]
  %v675 = vunpack.c.l.bf16 %v674
  %v676 = vadd.f32 %v673, %v675
  %v677 = vmax.f32 %v676, 0.0
  %v678 = vpack.c.bf16 %v677, %v677
  %679 = vst [vmem:[%s5] sm:$0xf] %v678
  // Predicated region
  $region22: #{resnet_forward.20} parent=0 // pred_check
    _
  $region23: #{resnet_forward.20} parent=0 // pred_check_branch
    %681 = sbr.rel (0) target = $region25
  $region24: #{resnet_forward.20} parent=0 // pred_region
    _
  $region25: #{resnet_forward.20} parent=0 // pred_fallthru
    _
  // Predicated region
  $region26: #{resnet_forward.20} parent=0 // pred_check
    _
  $region27: #{resnet_forward.20} parent=0 // pred_check_branch
    %683 = sbr.rel (0) target = $region29
  $region28: #{resnet_forward.20} parent=0 // pred_region
    _
  $region29: #{resnet_forward.20} parent=0 // pred_fallthru
    _

</llo_original>
